<compile_context>
chip_gen: v6e
topology: v6e:2x2x1
jax: 0.10.0
libtpu: 0.0.40
codegen_flags: <defaults>
</compile_context>

<pallas_src>
import functools

import jax
import jax.numpy as jnp
from jax.experimental import pallas as pl
from jax.experimental.pallas import tpu as pltpu


# ----------------------------------------------------------------------------
# Kernel
# ----------------------------------------------------------------------------
def _conv3x3_bn_relu(x, w_ref, scale, shift):
    """3x3 valid conv (stride 1, no bias) + folded BN + ReLU on an NHWC VMEM value.

    x:      (n, H, W, Cin) float32
    w_ref:  bf16 weight ref, either (3, 3*Cin, Cout)  [kw taps merged along K]
            or (3, 3, Cin, Cout)                      [per-tap, used when Cin < 8]
    scale/shift: (1, Cout) float32 folded BatchNorm affine.
    """
    n, H, W, Cin = x.shape
    OH, OW = H - 2, W - 2
    Cout = w_ref.shape[-1]
    merged = (w_ref.ndim == 3)

    acc = jnp.zeros((n * OH * OW, Cout), jnp.float32)
    for kh in range(3):
        rows = x[:, kh:kh + OH, :, :]                            # (n, OH, W, Cin)
        if merged:
            # One fat K = 3*Cin matmul per kh (feeds the MXU with K=192, not 64).
            patch = jnp.concatenate(
                [rows[:, :, kw:kw + OW, :] for kw in range(3)], axis=-1
            ).reshape(n * OH * OW, 3 * Cin)
            acc = acc + jnp.dot(patch.astype(jnp.bfloat16), w_ref[kh],
                                preferred_element_type=jnp.float32)
        else:
            # Tiny-Cin first layer: plain per-tap matmuls (K=Cin).
            for kw in range(3):
                patch = rows[:, :, kw:kw + OW, :].reshape(n * OH * OW, Cin)
                acc = acc + jnp.dot(patch.astype(jnp.bfloat16), w_ref[kh, kw],
                                    preferred_element_type=jnp.float32)

    y = acc.reshape(n, OH, OW, Cout)
    y = y * scale.reshape(1, 1, 1, Cout) + shift.reshape(1, 1, 1, Cout)   # BN (eval)
    return jnp.maximum(y, 0.0)                                            # ReLU, f32


def _critic_fused_kernel(x_ref,
                         w1_ref, s1_ref, b1_ref,
                         w2_ref, s2_ref, b2_ref,
                         w3_ref, s3_ref, b3_ref,
                         hw_ref, hb_ref,
                         o_ref):
    """Whole CriticNet forward for one batch tile, entirely in VMEM."""
    x = x_ref[...].astype(jnp.float32)                          # (tn, H, W, Cin)
    h = _conv3x3_bn_relu(x, w1_ref, s1_ref[...], b1_ref[...])   # (tn, H-2, W-2, 64)
    h = _conv3x3_bn_relu(h, w2_ref, s2_ref[...], b2_ref[...])   # (tn, H-4, W-4, 64)
    h = _conv3x3_bn_relu(h, w3_ref, s3_ref[...], b3_ref[...])   # (tn, H-6, W-6, 128)
    pooled = jnp.mean(h, axis=(1, 2))                           # GAP -> (tn, 128)
    out = jnp.dot(pooled, hw_ref[...],
                  preferred_element_type=jnp.float32) + hb_ref[...]      # (tn, 1)
    o_ref[...] = out.reshape(o_ref.shape).astype(o_ref.dtype)


# ----------------------------------------------------------------------------
# Wrapper (pallas_call glue)
# ----------------------------------------------------------------------------
def critic_net_forward(x_nchw, kp, *, batch_tile=1):
    """x_nchw: (N, stacked_frames, H, W) pixels in [0, 255] -> (N, 1) values."""
    # TODO(synk): fold this NCHW->NHWC transpose into the kernel's first DMA/gather.
    x = jnp.transpose(x_nchw, (0, 2, 3, 1)).astype(jnp.float32)
    N, H, W, Cin = x.shape
    assert N % batch_tile == 0, "batch_tile must divide the batch size"
    tn = batch_tile

    consts = (kp["w1"], kp["s1"], kp["b1"],
              kp["w2"], kp["s2"], kp["b2"],
              kp["w3"], kp["s3"], kp["b3"],
              kp["head_w"], kp["head_b"])
    # Weights / BN affines / head are small: full-array blocks, constant index_map.
    const_specs = [pl.BlockSpec(a.shape, lambda i, nd=a.ndim: (0,) * nd)
                   for a in consts]

    oh1, ow1 = H - 2, W - 2
    oh2, ow2 = oh1 - 2, ow1 - 2
    oh3, ow3 = oh2 - 2, ow2 - 2
    flops = 2 * N * (oh1 * ow1 * 9 * Cin * 64
                     + oh2 * ow2 * 9 * 64 * 64
                     + oh3 * ow3 * 9 * 64 * 128
                     + 128)
    bytes_accessed = int(x.size * 4 + N * 4
                         + sum(int(a.size) * a.dtype.itemsize for a in consts))

    out = pl.pallas_call(
        _critic_fused_kernel,
        out_shape=jax.ShapeDtypeStruct((N, 1, 1), jnp.float32),
        grid=(N // tn,),
        in_specs=[pl.BlockSpec((tn, H, W, Cin), lambda i: (i, 0, 0, 0))] + const_specs,
        out_specs=pl.BlockSpec((tn, 1, 1), lambda i: (i, 0, 0)),
        compiler_params=pltpu.CompilerParams(
            dimension_semantics=("parallel",),       # megacore sharding on v7x
            vmem_limit_bytes=48 * 1024 * 1024,       # headroom under v7x's 64 MiB
        ),
        cost_estimate=pl.CostEstimate(flops=flops, transcendentals=0,
                                      bytes_accessed=bytes_accessed),
    )(x, *consts)
    return out.reshape(N, 1)


# ----------------------------------------------------------------------------
# Parameter construction (synthetic, mirrors module shapes) + folding
# ----------------------------------------------------------------------------
def init_params(key, stacked_frames):
    keys = jax.random.split(key, 8)

    def conv_w(k, cin, cout):
        bound = 1.0 / (cin * 3 * 3) ** 0.5
        return jax.random.uniform(k, (3, 3, cin, cout), jnp.float32, -bound, bound)

    def bn(k, c):
        k1, k2, k3, k4 = jax.random.split(k, 4)
        gamma = jax.random.uniform(k1, (c,), jnp.float32, 0.5, 1.5)
        beta = jax.random.uniform(k2, (c,), jnp.float32, -0.1, 0.1)
        mean = jax.random.uniform(k3, (c,), jnp.float32, -0.1, 0.1)
        var = jax.random.uniform(k4, (c,), jnp.float32, 0.5, 1.5)
        return gamma, beta, mean, var

    p = {
        "w1": conv_w(keys[0], stacked_frames, 64), "bn1": bn(keys[1], 64),
        "w2": conv_w(keys[2], 64, 64),             "bn2": bn(keys[3], 64),
        "w3": conv_w(keys[4], 64, 128),            "bn3": bn(keys[5], 128),
    }
    hb = 1.0 / (128.0 ** 0.5)
    p["head_w"] = jax.random.uniform(keys[6], (128, 1), jnp.float32, -hb, hb)
    p["head_b"] = jax.random.uniform(keys[7], (1, 1), jnp.float32, -hb, hb)
    return p


def fold_params(p, eps=1e-5):
    """Fold eval-mode BN into scale/shift, fold x/255-0.5 into conv1, pack weights."""
    def bn_fold(gamma, beta, mean, var):
        s = gamma / jnp.sqrt(var + eps)
        return s, beta - mean * s

    s1, t1 = bn_fold(*p["bn1"])
    s2, t2 = bn_fold(*p["bn2"])
    s3, t3 = bn_fold(*p["bn3"])
    w1, w2, w3 = p["w1"], p["w2"], p["w3"]

    # Exact fold of x/255 - 0.5 (valid conv, no bias):
    #   conv(x/255 - 0.5, w) = conv(x, w/255) - 0.5 * sum_{kh,kw,cin} w
    t1 = t1 - s1 * 0.5 * jnp.sum(w1, axis=(0, 1, 2))
    w1 = w1 / 255.0

    def pack(w):
        kh, kw, cin, cout = w.shape
        wk = w.reshape(kh, kw * cin, cout) if cin % 8 == 0 else w  # merge kw taps
        return wk.astype(jnp.bfloat16)                              # MXU operands bf16

    return dict(
        w1=pack(w1), s1=s1.reshape(1, -1), b1=t1.reshape(1, -1),
        w2=pack(w2), s2=s2.reshape(1, -1), b2=t2.reshape(1, -1),
        w3=pack(w3), s3=s3.reshape(1, -1), b3=t3.reshape(1, -1),
        head_w=p["head_w"].astype(jnp.float32),
        head_b=p["head_b"].astype(jnp.float32),
    )


# ----------------------------------------------------------------------------
# Demo
# ----------------------------------------------------------------------------
if __name__ == "__main__":
    key = jax.random.PRNGKey(0)
    k_params, k_x = jax.random.split(key)

    stacked_frames = 4
    batch, spatial = 2, 16

    raw_params = init_params(k_params, stacked_frames)
    kernel_params = fold_params(raw_params)

    # Pixel-like input (values in [0, 255]), NCHW as in the PyTorch module.
    x = jax.random.uniform(k_x, (batch, stacked_frames, spatial, spatial),
                           jnp.float32, 0.0, 255.0)

    out = critic_net_forward(x, kernel_params, batch_tile=1)
    out = jax.block_until_ready(out)
    assert out.shape == (batch, 1), out.shape
    print("KERNEL_OK")
</pallas_src>

<mosaic_0001>
module attributes {stable_mosaic.version = 11 : i64} {
  func.func @_critic_fused_kernel(%arg0: i32, %arg1: memref<1x16x16x4xf32, #tpu.memory_space<vmem>>, %arg2: memref<3x3x4x64xbf16, #tpu.memory_space<vmem>>, %arg3: memref<1x64xf32, #tpu.memory_space<vmem>>, %arg4: memref<1x64xf32, #tpu.memory_space<vmem>>, %arg5: memref<3x192x64xbf16, #tpu.memory_space<vmem>>, %arg6: memref<1x64xf32, #tpu.memory_space<vmem>>, %arg7: memref<1x64xf32, #tpu.memory_space<vmem>>, %arg8: memref<3x192x128xbf16, #tpu.memory_space<vmem>>, %arg9: memref<1x128xf32, #tpu.memory_space<vmem>>, %arg10: memref<1x128xf32, #tpu.memory_space<vmem>>, %arg11: memref<128x1xf32, #tpu.memory_space<vmem>>, %arg12: memref<1x1xf32, #tpu.memory_space<vmem>>, %arg13: memref<1x1x1xf32, #tpu.memory_space<vmem>>) attributes {dimension_semantics = [#tpu.dimension_semantics<parallel>], iteration_bounds = array<i64: 2>, scalar_prefetch = 0 : i64, scratch_operands = 0 : i64, tpu.core_type = #tpu.core_type<tc>, window_params = [{transform_indices = @transform_0, window_bounds = array<i64: 1, 16, 16, 4>}, {pipeline_mode = #tpu.pipeline_mode<synchronous>, transform_indices = @transform_1, window_bounds = array<i64: 3, 3, 4, 64>}, {pipeline_mode = #tpu.pipeline_mode<synchronous>, transform_indices = @transform_2, window_bounds = array<i64: 1, 64>}, {pipeline_mode = #tpu.pipeline_mode<synchronous>, transform_indices = @transform_3, window_bounds = array<i64: 1, 64>}, {pipeline_mode = #tpu.pipeline_mode<synchronous>, transform_indices = @transform_4, window_bounds = array<i64: 3, 192, 64>}, {pipeline_mode = #tpu.pipeline_mode<synchronous>, transform_indices = @transform_5, window_bounds = array<i64: 1, 64>}, {pipeline_mode = #tpu.pipeline_mode<synchronous>, transform_indices = @transform_6, window_bounds = array<i64: 1, 64>}, {pipeline_mode = #tpu.pipeline_mode<synchronous>, transform_indices = @transform_7, window_bounds = array<i64: 3, 192, 128>}, {pipeline_mode = #tpu.pipeline_mode<synchronous>, transform_indices = @transform_8, window_bounds = array<i64: 1, 128>}, {pipeline_mode = #tpu.pipeline_mode<synchronous>, transform_indices = @transform_9, window_bounds = array<i64: 1, 128>}, {pipeline_mode = #tpu.pipeline_mode<synchronous>, transform_indices = @transform_10, window_bounds = array<i64: 128, 1>}, {pipeline_mode = #tpu.pipeline_mode<synchronous>, transform_indices = @transform_11, window_bounds = array<i64: 1, 1>}, {transform_indices = @transform_12, window_bounds = array<i64: 1, 1, 1>}]} {
    %c0 = arith.constant 0 : index
    %c0_0 = arith.constant 0 : index
    %c0_1 = arith.constant 0 : index
    %c0_2 = arith.constant 0 : index
    %0 = vector.load %arg1[%c0, %c0_0, %c0_1, %c0_2] : memref<1x16x16x4xf32, #tpu.memory_space<vmem>>, vector<1x16x16x4xf32>
    %c0_3 = arith.constant 0 : index
    %c0_4 = arith.constant 0 : index
    %1 = vector.load %arg3[%c0_3, %c0_4] : memref<1x64xf32, #tpu.memory_space<vmem>>, vector<1x64xf32>
    %c0_5 = arith.constant 0 : index
    %c0_6 = arith.constant 0 : index
    %2 = vector.load %arg4[%c0_5, %c0_6] : memref<1x64xf32, #tpu.memory_space<vmem>>, vector<1x64xf32>
    %cst = arith.constant 0.000000e+00 : f32
    %3 = vector.broadcast %cst : f32 to vector<196x64xf32>
    %4 = vector.extract_strided_slice %0 {offsets = [0, 0, 0, 0], sizes = [1, 14, 16, 4], strides = [1, 1, 1, 1]} : vector<1x16x16x4xf32> to vector<1x14x16x4xf32>
    %5 = vector.extract_strided_slice %4 {offsets = [0, 0, 0, 0], sizes = [1, 14, 14, 4], strides = [1, 1, 1, 1]} : vector<1x14x16x4xf32> to vector<1x14x14x4xf32>
    %6 = vector.shape_cast %5 : vector<1x14x14x4xf32> to vector<196x4xf32>
    %7 = arith.truncf %6 : vector<196x4xf32> to vector<196x4xbf16>
    %c0_7 = arith.constant 0 : index
    %c0_8 = arith.constant 0 : index
    %c0_9 = arith.constant 0 : index
    %c0_10 = arith.constant 0 : index
    %8 = vector.load %arg2[%c0_7, %c0_8, %c0_9, %c0_10] : memref<3x3x4x64xbf16, #tpu.memory_space<vmem>>, vector<1x1x4x64xbf16>
    %9 = vector.shape_cast %8 : vector<1x1x4x64xbf16> to vector<4x64xbf16>
    %cst_11 = arith.constant dense<0.000000e+00> : vector<196x64xf32>
    %10 = tpu.matmul %7, %9, %cst_11 {dimension_numbers = #tpu.dot_dimension_numbers<[1], [0], [0], [1], [0, 0, 1, 1], [], []>} : vector<196x4xbf16>, vector<4x64xbf16>, vector<196x64xf32> -> vector<196x64xf32>
    %11 = arith.addf %3, %10 : vector<196x64xf32>
    %12 = vector.extract_strided_slice %4 {offsets = [0, 0, 1, 0], sizes = [1, 14, 14, 4], strides = [1, 1, 1, 1]} : vector<1x14x16x4xf32> to vector<1x14x14x4xf32>
    %13 = vector.shape_cast %12 : vector<1x14x14x4xf32> to vector<196x4xf32>
    %14 = arith.truncf %13 : vector<196x4xf32> to vector<196x4xbf16>
    %c0_12 = arith.constant 0 : index
    %c1 = arith.constant 1 : index
    %c0_13 = arith.constant 0 : index
    %c0_14 = arith.constant 0 : index
    %15 = vector.load %arg2[%c0_12, %c1, %c0_13, %c0_14] : memref<3x3x4x64xbf16, #tpu.memory_space<vmem>>, vector<1x1x4x64xbf16>
    %16 = vector.shape_cast %15 : vector<1x1x4x64xbf16> to vector<4x64xbf16>
    %cst_15 = arith.constant dense<0.000000e+00> : vector<196x64xf32>
    %17 = tpu.matmul %14, %16, %cst_15 {dimension_numbers = #tpu.dot_dimension_numbers<[1], [0], [0], [1], [0, 0, 1, 1], [], []>} : vector<196x4xbf16>, vector<4x64xbf16>, vector<196x64xf32> -> vector<196x64xf32>
    %18 = arith.addf %11, %17 : vector<196x64xf32>
    %19 = vector.extract_strided_slice %4 {offsets = [0, 0, 2, 0], sizes = [1, 14, 14, 4], strides = [1, 1, 1, 1]} : vector<1x14x16x4xf32> to vector<1x14x14x4xf32>
    %20 = vector.shape_cast %19 : vector<1x14x14x4xf32> to vector<196x4xf32>
    %21 = arith.truncf %20 : vector<196x4xf32> to vector<196x4xbf16>
    %c0_16 = arith.constant 0 : index
    %c2 = arith.constant 2 : index
    %c0_17 = arith.constant 0 : index
    %c0_18 = arith.constant 0 : index
    %22 = vector.load %arg2[%c0_16, %c2, %c0_17, %c0_18] : memref<3x3x4x64xbf16, #tpu.memory_space<vmem>>, vector<1x1x4x64xbf16>
    %23 = vector.shape_cast %22 : vector<1x1x4x64xbf16> to vector<4x64xbf16>
    %cst_19 = arith.constant dense<0.000000e+00> : vector<196x64xf32>
    %24 = tpu.matmul %21, %23, %cst_19 {dimension_numbers = #tpu.dot_dimension_numbers<[1], [0], [0], [1], [0, 0, 1, 1], [], []>} : vector<196x4xbf16>, vector<4x64xbf16>, vector<196x64xf32> -> vector<196x64xf32>
    %25 = arith.addf %18, %24 : vector<196x64xf32>
    %26 = vector.extract_strided_slice %0 {offsets = [0, 1, 0, 0], sizes = [1, 14, 16, 4], strides = [1, 1, 1, 1]} : vector<1x16x16x4xf32> to vector<1x14x16x4xf32>
    %27 = vector.extract_strided_slice %26 {offsets = [0, 0, 0, 0], sizes = [1, 14, 14, 4], strides = [1, 1, 1, 1]} : vector<1x14x16x4xf32> to vector<1x14x14x4xf32>
    %28 = vector.shape_cast %27 : vector<1x14x14x4xf32> to vector<196x4xf32>
    %29 = arith.truncf %28 : vector<196x4xf32> to vector<196x4xbf16>
    %c1_20 = arith.constant 1 : index
    %c0_21 = arith.constant 0 : index
    %c0_22 = arith.constant 0 : index
    %c0_23 = arith.constant 0 : index
    %30 = vector.load %arg2[%c1_20, %c0_21, %c0_22, %c0_23] : memref<3x3x4x64xbf16, #tpu.memory_space<vmem>>, vector<1x1x4x64xbf16>
    %31 = vector.shape_cast %30 : vector<1x1x4x64xbf16> to vector<4x64xbf16>
    %cst_24 = arith.constant dense<0.000000e+00> : vector<196x64xf32>
    %32 = tpu.matmul %29, %31, %cst_24 {dimension_numbers = #tpu.dot_dimension_numbers<[1], [0], [0], [1], [0, 0, 1, 1], [], []>} : vector<196x4xbf16>, vector<4x64xbf16>, vector<196x64xf32> -> vector<196x64xf32>
    %33 = arith.addf %25, %32 : vector<196x64xf32>
    %34 = vector.extract_strided_slice %26 {offsets = [0, 0, 1, 0], sizes = [1, 14, 14, 4], strides = [1, 1, 1, 1]} : vector<1x14x16x4xf32> to vector<1x14x14x4xf32>
    %35 = vector.shape_cast %34 : vector<1x14x14x4xf32> to vector<196x4xf32>
    %36 = arith.truncf %35 : vector<196x4xf32> to vector<196x4xbf16>
    %c1_25 = arith.constant 1 : index
    %c1_26 = arith.constant 1 : index
    %c0_27 = arith.constant 0 : index
    %c0_28 = arith.constant 0 : index
    %37 = vector.load %arg2[%c1_25, %c1_26, %c0_27, %c0_28] : memref<3x3x4x64xbf16, #tpu.memory_space<vmem>>, vector<1x1x4x64xbf16>
    %38 = vector.shape_cast %37 : vector<1x1x4x64xbf16> to vector<4x64xbf16>
    %cst_29 = arith.constant dense<0.000000e+00> : vector<196x64xf32>
    %39 = tpu.matmul %36, %38, %cst_29 {dimension_numbers = #tpu.dot_dimension_numbers<[1], [0], [0], [1], [0, 0, 1, 1], [], []>} : vector<196x4xbf16>, vector<4x64xbf16>, vector<196x64xf32> -> vector<196x64xf32>
    %40 = arith.addf %33, %39 : vector<196x64xf32>
    %41 = vector.extract_strided_slice %26 {offsets = [0, 0, 2, 0], sizes = [1, 14, 14, 4], strides = [1, 1, 1, 1]} : vector<1x14x16x4xf32> to vector<1x14x14x4xf32>
    %42 = vector.shape_cast %41 : vector<1x14x14x4xf32> to vector<196x4xf32>
    %43 = arith.truncf %42 : vector<196x4xf32> to vector<196x4xbf16>
    %c1_30 = arith.constant 1 : index
    %c2_31 = arith.constant 2 : index
    %c0_32 = arith.constant 0 : index
    %c0_33 = arith.constant 0 : index
    %44 = vector.load %arg2[%c1_30, %c2_31, %c0_32, %c0_33] : memref<3x3x4x64xbf16, #tpu.memory_space<vmem>>, vector<1x1x4x64xbf16>
    %45 = vector.shape_cast %44 : vector<1x1x4x64xbf16> to vector<4x64xbf16>
    %cst_34 = arith.constant dense<0.000000e+00> : vector<196x64xf32>
    %46 = tpu.matmul %43, %45, %cst_34 {dimension_numbers = #tpu.dot_dimension_numbers<[1], [0], [0], [1], [0, 0, 1, 1], [], []>} : vector<196x4xbf16>, vector<4x64xbf16>, vector<196x64xf32> -> vector<196x64xf32>
    %47 = arith.addf %40, %46 : vector<196x64xf32>
    %48 = vector.extract_strided_slice %0 {offsets = [0, 2, 0, 0], sizes = [1, 14, 16, 4], strides = [1, 1, 1, 1]} : vector<1x16x16x4xf32> to vector<1x14x16x4xf32>
    %49 = vector.extract_strided_slice %48 {offsets = [0, 0, 0, 0], sizes = [1, 14, 14, 4], strides = [1, 1, 1, 1]} : vector<1x14x16x4xf32> to vector<1x14x14x4xf32>
    %50 = vector.shape_cast %49 : vector<1x14x14x4xf32> to vector<196x4xf32>
    %51 = arith.truncf %50 : vector<196x4xf32> to vector<196x4xbf16>
    %c2_35 = arith.constant 2 : index
    %c0_36 = arith.constant 0 : index
    %c0_37 = arith.constant 0 : index
    %c0_38 = arith.constant 0 : index
    %52 = vector.load %arg2[%c2_35, %c0_36, %c0_37, %c0_38] : memref<3x3x4x64xbf16, #tpu.memory_space<vmem>>, vector<1x1x4x64xbf16>
    %53 = vector.shape_cast %52 : vector<1x1x4x64xbf16> to vector<4x64xbf16>
    %cst_39 = arith.constant dense<0.000000e+00> : vector<196x64xf32>
    %54 = tpu.matmul %51, %53, %cst_39 {dimension_numbers = #tpu.dot_dimension_numbers<[1], [0], [0], [1], [0, 0, 1, 1], [], []>} : vector<196x4xbf16>, vector<4x64xbf16>, vector<196x64xf32> -> vector<196x64xf32>
    %55 = arith.addf %47, %54 : vector<196x64xf32>
    %56 = vector.extract_strided_slice %48 {offsets = [0, 0, 1, 0], sizes = [1, 14, 14, 4], strides = [1, 1, 1, 1]} : vector<1x14x16x4xf32> to vector<1x14x14x4xf32>
    %57 = vector.shape_cast %56 : vector<1x14x14x4xf32> to vector<196x4xf32>
    %58 = arith.truncf %57 : vector<196x4xf32> to vector<196x4xbf16>
    %c2_40 = arith.constant 2 : index
    %c1_41 = arith.constant 1 : index
    %c0_42 = arith.constant 0 : index
    %c0_43 = arith.constant 0 : index
    %59 = vector.load %arg2[%c2_40, %c1_41, %c0_42, %c0_43] : memref<3x3x4x64xbf16, #tpu.memory_space<vmem>>, vector<1x1x4x64xbf16>
    %60 = vector.shape_cast %59 : vector<1x1x4x64xbf16> to vector<4x64xbf16>
    %cst_44 = arith.constant dense<0.000000e+00> : vector<196x64xf32>
    %61 = tpu.matmul %58, %60, %cst_44 {dimension_numbers = #tpu.dot_dimension_numbers<[1], [0], [0], [1], [0, 0, 1, 1], [], []>} : vector<196x4xbf16>, vector<4x64xbf16>, vector<196x64xf32> -> vector<196x64xf32>
    %62 = arith.addf %55, %61 : vector<196x64xf32>
    %63 = vector.extract_strided_slice %48 {offsets = [0, 0, 2, 0], sizes = [1, 14, 14, 4], strides = [1, 1, 1, 1]} : vector<1x14x16x4xf32> to vector<1x14x14x4xf32>
    %64 = vector.shape_cast %63 : vector<1x14x14x4xf32> to vector<196x4xf32>
    %65 = arith.truncf %64 : vector<196x4xf32> to vector<196x4xbf16>
    %c2_45 = arith.constant 2 : index
    %c2_46 = arith.constant 2 : index
    %c0_47 = arith.constant 0 : index
    %c0_48 = arith.constant 0 : index
    %66 = vector.load %arg2[%c2_45, %c2_46, %c0_47, %c0_48] : memref<3x3x4x64xbf16, #tpu.memory_space<vmem>>, vector<1x1x4x64xbf16>
    %67 = vector.shape_cast %66 : vector<1x1x4x64xbf16> to vector<4x64xbf16>
    %cst_49 = arith.constant dense<0.000000e+00> : vector<196x64xf32>
    %68 = tpu.matmul %65, %67, %cst_49 {dimension_numbers = #tpu.dot_dimension_numbers<[1], [0], [0], [1], [0, 0, 1, 1], [], []>} : vector<196x4xbf16>, vector<4x64xbf16>, vector<196x64xf32> -> vector<196x64xf32>
    %69 = arith.addf %62, %68 : vector<196x64xf32>
    %70 = vector.shape_cast %69 : vector<196x64xf32> to vector<1x14x14x64xf32>
    %71 = vector.shape_cast %1 : vector<1x64xf32> to vector<1x1x1x64xf32>
    %72 = vector.broadcast %71 : vector<1x1x1x64xf32> to vector<1x14x14x64xf32>
    %73 = arith.mulf %70, %72 : vector<1x14x14x64xf32>
    %74 = vector.shape_cast %2 : vector<1x64xf32> to vector<1x1x1x64xf32>
    %75 = vector.broadcast %74 : vector<1x1x1x64xf32> to vector<1x14x14x64xf32>
    %76 = arith.addf %73, %75 : vector<1x14x14x64xf32>
    %cst_50 = arith.constant 0.000000e+00 : f32
    %77 = vector.broadcast %cst_50 : f32 to vector<1x14x14x64xf32>
    %78 = arith.maximumf %76, %77 : vector<1x14x14x64xf32>
    %c0_51 = arith.constant 0 : index
    %c0_52 = arith.constant 0 : index
    %79 = vector.load %arg6[%c0_51, %c0_52] : memref<1x64xf32, #tpu.memory_space<vmem>>, vector<1x64xf32>
    %c0_53 = arith.constant 0 : index
    %c0_54 = arith.constant 0 : index
    %80 = vector.load %arg7[%c0_53, %c0_54] : memref<1x64xf32, #tpu.memory_space<vmem>>, vector<1x64xf32>
    %cst_55 = arith.constant 0.000000e+00 : f32
    %81 = vector.broadcast %cst_55 : f32 to vector<144x64xf32>
    %82 = vector.extract_strided_slice %78 {offsets = [0, 0, 0, 0], sizes = [1, 12, 14, 64], strides = [1, 1, 1, 1]} : vector<1x14x14x64xf32> to vector<1x12x14x64xf32>
    %83 = vector.extract_strided_slice %82 {offsets = [0, 0, 0, 0], sizes = [1, 12, 12, 64], strides = [1, 1, 1, 1]} : vector<1x12x14x64xf32> to vector<1x12x12x64xf32>
    %84 = vector.extract_strided_slice %82 {offsets = [0, 0, 1, 0], sizes = [1, 12, 12, 64], strides = [1, 1, 1, 1]} : vector<1x12x14x64xf32> to vector<1x12x12x64xf32>
    %85 = vector.extract_strided_slice %82 {offsets = [0, 0, 2, 0], sizes = [1, 12, 12, 64], strides = [1, 1, 1, 1]} : vector<1x12x14x64xf32> to vector<1x12x12x64xf32>
    %86 = tpu.concatenate %83, %84, %85 in 3 : vector<1x12x12x64xf32>, vector<1x12x12x64xf32>, vector<1x12x12x64xf32> -> vector<1x12x12x192xf32>
    %87 = vector.shape_cast %86 : vector<1x12x12x192xf32> to vector<144x192xf32>
    %88 = arith.truncf %87 : vector<144x192xf32> to vector<144x192xbf16>
    %c0_56 = arith.constant 0 : index
    %c0_57 = arith.constant 0 : index
    %c0_58 = arith.constant 0 : index
    %89 = vector.load %arg5[%c0_56, %c0_57, %c0_58] : memref<3x192x64xbf16, #tpu.memory_space<vmem>>, vector<1x192x64xbf16>
    %90 = vector.shape_cast %89 : vector<1x192x64xbf16> to vector<192x64xbf16>
    %cst_59 = arith.constant dense<0.000000e+00> : vector<144x64xf32>
    %91 = tpu.matmul %88, %90, %cst_59 {dimension_numbers = #tpu.dot_dimension_numbers<[1], [0], [0], [1], [0, 0, 1, 1], [], []>} : vector<144x192xbf16>, vector<192x64xbf16>, vector<144x64xf32> -> vector<144x64xf32>
    %92 = arith.addf %81, %91 : vector<144x64xf32>
    %93 = vector.extract_strided_slice %78 {offsets = [0, 1, 0, 0], sizes = [1, 12, 14, 64], strides = [1, 1, 1, 1]} : vector<1x14x14x64xf32> to vector<1x12x14x64xf32>
    %94 = vector.extract_strided_slice %93 {offsets = [0, 0, 0, 0], sizes = [1, 12, 12, 64], strides = [1, 1, 1, 1]} : vector<1x12x14x64xf32> to vector<1x12x12x64xf32>
    %95 = vector.extract_strided_slice %93 {offsets = [0, 0, 1, 0], sizes = [1, 12, 12, 64], strides = [1, 1, 1, 1]} : vector<1x12x14x64xf32> to vector<1x12x12x64xf32>
    %96 = vector.extract_strided_slice %93 {offsets = [0, 0, 2, 0], sizes = [1, 12, 12, 64], strides = [1, 1, 1, 1]} : vector<1x12x14x64xf32> to vector<1x12x12x64xf32>
    %97 = tpu.concatenate %94, %95, %96 in 3 : vector<1x12x12x64xf32>, vector<1x12x12x64xf32>, vector<1x12x12x64xf32> -> vector<1x12x12x192xf32>
    %98 = vector.shape_cast %97 : vector<1x12x12x192xf32> to vector<144x192xf32>
    %99 = arith.truncf %98 : vector<144x192xf32> to vector<144x192xbf16>
    %c1_60 = arith.constant 1 : index
    %c0_61 = arith.constant 0 : index
    %c0_62 = arith.constant 0 : index
    %100 = vector.load %arg5[%c1_60, %c0_61, %c0_62] : memref<3x192x64xbf16, #tpu.memory_space<vmem>>, vector<1x192x64xbf16>
    %101 = vector.shape_cast %100 : vector<1x192x64xbf16> to vector<192x64xbf16>
    %cst_63 = arith.constant dense<0.000000e+00> : vector<144x64xf32>
    %102 = tpu.matmul %99, %101, %cst_63 {dimension_numbers = #tpu.dot_dimension_numbers<[1], [0], [0], [1], [0, 0, 1, 1], [], []>} : vector<144x192xbf16>, vector<192x64xbf16>, vector<144x64xf32> -> vector<144x64xf32>
    %103 = arith.addf %92, %102 : vector<144x64xf32>
    %104 = vector.extract_strided_slice %78 {offsets = [0, 2, 0, 0], sizes = [1, 12, 14, 64], strides = [1, 1, 1, 1]} : vector<1x14x14x64xf32> to vector<1x12x14x64xf32>
    %105 = vector.extract_strided_slice %104 {offsets = [0, 0, 0, 0], sizes = [1, 12, 12, 64], strides = [1, 1, 1, 1]} : vector<1x12x14x64xf32> to vector<1x12x12x64xf32>
    %106 = vector.extract_strided_slice %104 {offsets = [0, 0, 1, 0], sizes = [1, 12, 12, 64], strides = [1, 1, 1, 1]} : vector<1x12x14x64xf32> to vector<1x12x12x64xf32>
    %107 = vector.extract_strided_slice %104 {offsets = [0, 0, 2, 0], sizes = [1, 12, 12, 64], strides = [1, 1, 1, 1]} : vector<1x12x14x64xf32> to vector<1x12x12x64xf32>
    %108 = tpu.concatenate %105, %106, %107 in 3 : vector<1x12x12x64xf32>, vector<1x12x12x64xf32>, vector<1x12x12x64xf32> -> vector<1x12x12x192xf32>
    %109 = vector.shape_cast %108 : vector<1x12x12x192xf32> to vector<144x192xf32>
    %110 = arith.truncf %109 : vector<144x192xf32> to vector<144x192xbf16>
    %c2_64 = arith.constant 2 : index
    %c0_65 = arith.constant 0 : index
    %c0_66 = arith.constant 0 : index
    %111 = vector.load %arg5[%c2_64, %c0_65, %c0_66] : memref<3x192x64xbf16, #tpu.memory_space<vmem>>, vector<1x192x64xbf16>
    %112 = vector.shape_cast %111 : vector<1x192x64xbf16> to vector<192x64xbf16>
    %cst_67 = arith.constant dense<0.000000e+00> : vector<144x64xf32>
    %113 = tpu.matmul %110, %112, %cst_67 {dimension_numbers = #tpu.dot_dimension_numbers<[1], [0], [0], [1], [0, 0, 1, 1], [], []>} : vector<144x192xbf16>, vector<192x64xbf16>, vector<144x64xf32> -> vector<144x64xf32>
    %114 = arith.addf %103, %113 : vector<144x64xf32>
    %115 = vector.shape_cast %114 : vector<144x64xf32> to vector<1x12x12x64xf32>
    %116 = vector.shape_cast %79 : vector<1x64xf32> to vector<1x1x1x64xf32>
    %117 = vector.broadcast %116 : vector<1x1x1x64xf32> to vector<1x12x12x64xf32>
    %118 = arith.mulf %115, %117 : vector<1x12x12x64xf32>
    %119 = vector.shape_cast %80 : vector<1x64xf32> to vector<1x1x1x64xf32>
    %120 = vector.broadcast %119 : vector<1x1x1x64xf32> to vector<1x12x12x64xf32>
    %121 = arith.addf %118, %120 : vector<1x12x12x64xf32>
    %cst_68 = arith.constant 0.000000e+00 : f32
    %122 = vector.broadcast %cst_68 : f32 to vector<1x12x12x64xf32>
    %123 = arith.maximumf %121, %122 : vector<1x12x12x64xf32>
    %c0_69 = arith.constant 0 : index
    %c0_70 = arith.constant 0 : index
    %124 = vector.load %arg9[%c0_69, %c0_70] : memref<1x128xf32, #tpu.memory_space<vmem>>, vector<1x128xf32>
    %c0_71 = arith.constant 0 : index
    %c0_72 = arith.constant 0 : index
    %125 = vector.load %arg10[%c0_71, %c0_72] : memref<1x128xf32, #tpu.memory_space<vmem>>, vector<1x128xf32>
    %cst_73 = arith.constant 0.000000e+00 : f32
    %126 = vector.broadcast %cst_73 : f32 to vector<100x128xf32>
    %127 = vector.extract_strided_slice %123 {offsets = [0, 0, 0, 0], sizes = [1, 10, 12, 64], strides = [1, 1, 1, 1]} : vector<1x12x12x64xf32> to vector<1x10x12x64xf32>
    %128 = vector.extract_strided_slice %127 {offsets = [0, 0, 0, 0], sizes = [1, 10, 10, 64], strides = [1, 1, 1, 1]} : vector<1x10x12x64xf32> to vector<1x10x10x64xf32>
    %129 = vector.extract_strided_slice %127 {offsets = [0, 0, 1, 0], sizes = [1, 10, 10, 64], strides = [1, 1, 1, 1]} : vector<1x10x12x64xf32> to vector<1x10x10x64xf32>
    %130 = vector.extract_strided_slice %127 {offsets = [0, 0, 2, 0], sizes = [1, 10, 10, 64], strides = [1, 1, 1, 1]} : vector<1x10x12x64xf32> to vector<1x10x10x64xf32>
    %131 = tpu.concatenate %128, %129, %130 in 3 : vector<1x10x10x64xf32>, vector<1x10x10x64xf32>, vector<1x10x10x64xf32> -> vector<1x10x10x192xf32>
    %132 = vector.shape_cast %131 : vector<1x10x10x192xf32> to vector<100x192xf32>
    %133 = arith.truncf %132 : vector<100x192xf32> to vector<100x192xbf16>
    %c0_74 = arith.constant 0 : index
    %c0_75 = arith.constant 0 : index
    %c0_76 = arith.constant 0 : index
    %134 = vector.load %arg8[%c0_74, %c0_75, %c0_76] : memref<3x192x128xbf16, #tpu.memory_space<vmem>>, vector<1x192x128xbf16>
    %135 = vector.shape_cast %134 : vector<1x192x128xbf16> to vector<192x128xbf16>
    %cst_77 = arith.constant dense<0.000000e+00> : vector<100x128xf32>
    %136 = tpu.matmul %133, %135, %cst_77 {dimension_numbers = #tpu.dot_dimension_numbers<[1], [0], [0], [1], [0, 0, 1, 1], [], []>} : vector<100x192xbf16>, vector<192x128xbf16>, vector<100x128xf32> -> vector<100x128xf32>
    %137 = arith.addf %126, %136 : vector<100x128xf32>
    %138 = vector.extract_strided_slice %123 {offsets = [0, 1, 0, 0], sizes = [1, 10, 12, 64], strides = [1, 1, 1, 1]} : vector<1x12x12x64xf32> to vector<1x10x12x64xf32>
    %139 = vector.extract_strided_slice %138 {offsets = [0, 0, 0, 0], sizes = [1, 10, 10, 64], strides = [1, 1, 1, 1]} : vector<1x10x12x64xf32> to vector<1x10x10x64xf32>
    %140 = vector.extract_strided_slice %138 {offsets = [0, 0, 1, 0], sizes = [1, 10, 10, 64], strides = [1, 1, 1, 1]} : vector<1x10x12x64xf32> to vector<1x10x10x64xf32>
    %141 = vector.extract_strided_slice %138 {offsets = [0, 0, 2, 0], sizes = [1, 10, 10, 64], strides = [1, 1, 1, 1]} : vector<1x10x12x64xf32> to vector<1x10x10x64xf32>
    %142 = tpu.concatenate %139, %140, %141 in 3 : vector<1x10x10x64xf32>, vector<1x10x10x64xf32>, vector<1x10x10x64xf32> -> vector<1x10x10x192xf32>
    %143 = vector.shape_cast %142 : vector<1x10x10x192xf32> to vector<100x192xf32>
    %144 = arith.truncf %143 : vector<100x192xf32> to vector<100x192xbf16>
    %c1_78 = arith.constant 1 : index
    %c0_79 = arith.constant 0 : index
    %c0_80 = arith.constant 0 : index
    %145 = vector.load %arg8[%c1_78, %c0_79, %c0_80] : memref<3x192x128xbf16, #tpu.memory_space<vmem>>, vector<1x192x128xbf16>
    %146 = vector.shape_cast %145 : vector<1x192x128xbf16> to vector<192x128xbf16>
    %cst_81 = arith.constant dense<0.000000e+00> : vector<100x128xf32>
    %147 = tpu.matmul %144, %146, %cst_81 {dimension_numbers = #tpu.dot_dimension_numbers<[1], [0], [0], [1], [0, 0, 1, 1], [], []>} : vector<100x192xbf16>, vector<192x128xbf16>, vector<100x128xf32> -> vector<100x128xf32>
    %148 = arith.addf %137, %147 : vector<100x128xf32>
    %149 = vector.extract_strided_slice %123 {offsets = [0, 2, 0, 0], sizes = [1, 10, 12, 64], strides = [1, 1, 1, 1]} : vector<1x12x12x64xf32> to vector<1x10x12x64xf32>
    %150 = vector.extract_strided_slice %149 {offsets = [0, 0, 0, 0], sizes = [1, 10, 10, 64], strides = [1, 1, 1, 1]} : vector<1x10x12x64xf32> to vector<1x10x10x64xf32>
    %151 = vector.extract_strided_slice %149 {offsets = [0, 0, 1, 0], sizes = [1, 10, 10, 64], strides = [1, 1, 1, 1]} : vector<1x10x12x64xf32> to vector<1x10x10x64xf32>
    %152 = vector.extract_strided_slice %149 {offsets = [0, 0, 2, 0], sizes = [1, 10, 10, 64], strides = [1, 1, 1, 1]} : vector<1x10x12x64xf32> to vector<1x10x10x64xf32>
    %153 = tpu.concatenate %150, %151, %152 in 3 : vector<1x10x10x64xf32>, vector<1x10x10x64xf32>, vector<1x10x10x64xf32> -> vector<1x10x10x192xf32>
    %154 = vector.shape_cast %153 : vector<1x10x10x192xf32> to vector<100x192xf32>
    %155 = arith.truncf %154 : vector<100x192xf32> to vector<100x192xbf16>
    %c2_82 = arith.constant 2 : index
    %c0_83 = arith.constant 0 : index
    %c0_84 = arith.constant 0 : index
    %156 = vector.load %arg8[%c2_82, %c0_83, %c0_84] : memref<3x192x128xbf16, #tpu.memory_space<vmem>>, vector<1x192x128xbf16>
    %157 = vector.shape_cast %156 : vector<1x192x128xbf16> to vector<192x128xbf16>
    %cst_85 = arith.constant dense<0.000000e+00> : vector<100x128xf32>
    %158 = tpu.matmul %155, %157, %cst_85 {dimension_numbers = #tpu.dot_dimension_numbers<[1], [0], [0], [1], [0, 0, 1, 1], [], []>} : vector<100x192xbf16>, vector<192x128xbf16>, vector<100x128xf32> -> vector<100x128xf32>
    %159 = arith.addf %148, %158 : vector<100x128xf32>
    %160 = vector.shape_cast %159 : vector<100x128xf32> to vector<1x10x10x128xf32>
    %161 = vector.shape_cast %124 : vector<1x128xf32> to vector<1x1x1x128xf32>
    %162 = vector.broadcast %161 : vector<1x1x1x128xf32> to vector<1x10x10x128xf32>
    %163 = arith.mulf %160, %162 : vector<1x10x10x128xf32>
    %164 = vector.shape_cast %125 : vector<1x128xf32> to vector<1x1x1x128xf32>
    %165 = vector.broadcast %164 : vector<1x1x1x128xf32> to vector<1x10x10x128xf32>
    %166 = arith.addf %163, %165 : vector<1x10x10x128xf32>
    %cst_86 = arith.constant 0.000000e+00 : f32
    %167 = vector.broadcast %cst_86 : f32 to vector<1x10x10x128xf32>
    %168 = arith.maximumf %166, %167 : vector<1x10x10x128xf32>
    %cst_87 = arith.constant dense<0.000000e+00> : vector<1x128xf32>
    %169 = vector.multi_reduction <add>, %168, %cst_87 [1, 2] : vector<1x10x10x128xf32> to vector<1x128xf32>
    %cst_88 = arith.constant 1.000000e+02 : f32
    %170 = vector.broadcast %cst_88 : f32 to vector<1x128xf32>
    %171 = arith.divf %169, %170 : vector<1x128xf32>
    %c0_89 = arith.constant 0 : index
    %c0_90 = arith.constant 0 : index
    %172 = vector.load %arg11[%c0_89, %c0_90] : memref<128x1xf32, #tpu.memory_space<vmem>>, vector<128x1xf32>
    %cst_91 = arith.constant dense<0.000000e+00> : vector<1x1xf32>
    %173 = tpu.matmul %171, %172, %cst_91 {dimension_numbers = #tpu.dot_dimension_numbers<[1], [0], [0], [1], [0, 0, 1, 1], [], []>} : vector<1x128xf32>, vector<128x1xf32>, vector<1x1xf32> -> vector<1x1xf32>
    %c0_92 = arith.constant 0 : index
    %c0_93 = arith.constant 0 : index
    %174 = vector.load %arg12[%c0_92, %c0_93] : memref<1x1xf32, #tpu.memory_space<vmem>>, vector<1x1xf32>
    %175 = arith.addf %173, %174 : vector<1x1xf32>
    %176 = vector.shape_cast %175 : vector<1x1xf32> to vector<1x1x1xf32>
    %c0_94 = arith.constant 0 : index
    %c0_95 = arith.constant 0 : index
    %c0_96 = arith.constant 0 : index
    %177 = vector.load %arg13[%c0_94, %c0_95, %c0_96] : memref<1x1x1xf32, #tpu.memory_space<vmem>>, vector<1x1x1xf32>
    tpu.vector_store %arg13[%c0_94, %c0_95, %c0_96], %176 {strides = array<i32>} : memref<1x1x1xf32, #tpu.memory_space<vmem>>, vector<1x1x1xf32>,
    return
  }
  func.func @transform_0(%arg0: i32) -> (i32, i32, i32, i32) {
    %c0_i32 = arith.constant 0 : i32
    %c0_i32_0 = arith.constant 0 : i32
    %c0_i32_1 = arith.constant 0 : i32
    %c0_i32_2 = arith.constant 0 : i32
    return %arg0, %c0_i32, %c0_i32_0, %c0_i32_1 : i32, i32, i32, i32
  }
  func.func @transform_1(%arg0: i32) -> (i32, i32, i32, i32) {
    %c0_i32 = arith.constant 0 : i32
    %c0_i32_0 = arith.constant 0 : i32
    %c0_i32_1 = arith.constant 0 : i32
    %c0_i32_2 = arith.constant 0 : i32
    %c0_i32_3 = arith.constant 0 : i32
    return %c0_i32, %c0_i32_0, %c0_i32_1, %c0_i32_2 : i32, i32, i32, i32
  }
  func.func @transform_2(%arg0: i32) -> (i32, i32) {
    %c0_i32 = arith.constant 0 : i32
    %c0_i32_0 = arith.constant 0 : i32
    %c0_i32_1 = arith.constant 0 : i32
    return %c0_i32, %c0_i32_0 : i32, i32
  }
  func.func @transform_3(%arg0: i32) -> (i32, i32) {
    %c0_i32 = arith.constant 0 : i32
    %c0_i32_0 = arith.constant 0 : i32
    %c0_i32_1 = arith.constant 0 : i32
    return %c0_i32, %c0_i32_0 : i32, i32
  }
  func.func @transform_4(%arg0: i32) -> (i32, i32, i32) {
    %c0_i32 = arith.constant 0 : i32
    %c0_i32_0 = arith.constant 0 : i32
    %c0_i32_1 = arith.constant 0 : i32
    %c0_i32_2 = arith.constant 0 : i32
    return %c0_i32, %c0_i32_0, %c0_i32_1 : i32, i32, i32
  }
  func.func @transform_5(%arg0: i32) -> (i32, i32) {
    %c0_i32 = arith.constant 0 : i32
    %c0_i32_0 = arith.constant 0 : i32
    %c0_i32_1 = arith.constant 0 : i32
    return %c0_i32, %c0_i32_0 : i32, i32
  }
  func.func @transform_6(%arg0: i32) -> (i32, i32) {
    %c0_i32 = arith.constant 0 : i32
    %c0_i32_0 = arith.constant 0 : i32
    %c0_i32_1 = arith.constant 0 : i32
    return %c0_i32, %c0_i32_0 : i32, i32
  }
  func.func @transform_7(%arg0: i32) -> (i32, i32, i32) {
    %c0_i32 = arith.constant 0 : i32
    %c0_i32_0 = arith.constant 0 : i32
    %c0_i32_1 = arith.constant 0 : i32
    %c0_i32_2 = arith.constant 0 : i32
    return %c0_i32, %c0_i32_0, %c0_i32_1 : i32, i32, i32
  }
  func.func @transform_8(%arg0: i32) -> (i32, i32) {
    %c0_i32 = arith.constant 0 : i32
    %c0_i32_0 = arith.constant 0 : i32
    %c0_i32_1 = arith.constant 0 : i32
    return %c0_i32, %c0_i32_0 : i32, i32
  }
  func.func @transform_9(%arg0: i32) -> (i32, i32) {
    %c0_i32 = arith.constant 0 : i32
    %c0_i32_0 = arith.constant 0 : i32
    %c0_i32_1 = arith.constant 0 : i32
    return %c0_i32, %c0_i32_0 : i32, i32
  }
  func.func @transform_10(%arg0: i32) -> (i32, i32) {
    %c0_i32 = arith.constant 0 : i32
    %c0_i32_0 = arith.constant 0 : i32
    %c0_i32_1 = arith.constant 0 : i32
    return %c0_i32, %c0_i32_0 : i32, i32
  }
  func.func @transform_11(%arg0: i32) -> (i32, i32) {
    %c0_i32 = arith.constant 0 : i32
    %c0_i32_0 = arith.constant 0 : i32
    %c0_i32_1 = arith.constant 0 : i32
    return %c0_i32, %c0_i32_0 : i32, i32
  }
  func.func @transform_12(%arg0: i32) -> (i32, i32, i32) {
    %c0_i32 = arith.constant 0 : i32
    %c0_i32_0 = arith.constant 0 : i32
    %c0_i32_1 = arith.constant 0 : i32
    return %arg0, %c0_i32, %c0_i32_0 : i32, i32, i32
  }
}

</mosaic_0001>

<llo_original>
// kernel: tpu_custom_call.1
$region0: #{tpu_custom_call.1}
  #allocation0 [shape = 'u32[]', space=smem, size = 0x4, offset = 0x4, fixed_abs, tag = 'smem constant byte address 0x4 - core index']
  #allocation1 [shape = 'u32[144,128]{1,0:T(1,128)}', space=vmem, size = 0x12000, scoped, tag = 'internal scratch']
  #allocation2 [shape = 'f32[1,1]{1,0:T(1,128)S(1)}', space=vmem, size = 0x200, scoped, tag = 'scoped memory for tpu_custom_call.1']
  %s0 = inlined_call_operand.vmem [shape: f32[2,16,16,4], index: 0, kind: input, shape index: {}]
  %s1 = inlined_call_operand.vmem [shape: bf16[3,3,4,64], index: 1, kind: input, shape index: {}]
  %s2 = inlined_call_operand.vmem [shape: f32[1,64], index: 2, kind: input, shape index: {}]
  %s3 = inlined_call_operand.vmem [shape: f32[1,64], index: 3, kind: input, shape index: {}]
  %s4 = inlined_call_operand.vmem [shape: bf16[3,192,64], index: 4, kind: input, shape index: {}]
  %s5 = inlined_call_operand.vmem [shape: f32[1,64], index: 5, kind: input, shape index: {}]
  %s6 = inlined_call_operand.vmem [shape: f32[1,64], index: 6, kind: input, shape index: {}]
  %s7 = inlined_call_operand.vmem [shape: bf16[3,192,128], index: 7, kind: input, shape index: {}]
  %s8 = inlined_call_operand.vmem [shape: f32[1,128], index: 8, kind: input, shape index: {}]
  %s9 = inlined_call_operand.vmem [shape: f32[1,128], index: 9, kind: input, shape index: {}]
  %s10 = inlined_call_operand.vmem [shape: f32[128,1], index: 10, kind: input, shape index: {}]
  %s11 = inlined_call_operand.<no memory space> [shape: f32[1,1], index: 11, kind: input, shape index: {}]
  %s12 = inlined_call_operand.vmem [shape: f32[2,1,1], index: 12, kind: output, shape index: {}]
  %s13 = sld [smem:[#allocation0]]
  $region81: #{tpu_custom_call.1} parent=0
    _
  %s15 = ssub.s32 1, %s13
  %s16 = scalar_select 0, %s15, %s13
  %v17 = vstv %s11
  %18 = vst [vmem:[#allocation2] sm:$0x1] %v17
  loop: start=0, step=1, limit=4
  $region2: #{tpu_custom_call.1} parent=0 // loop_pre_header
    _
  $region3: #{tpu_custom_call.1} parent=0 // loop_header
    %s20 = sphi 0, %s24
    %p21 = scmp.ge.s32.totalorder %s20, 4
    %s30 = sphi 0, %s32
    %s33 = sphi 0, %s30
    %s34 = sphi 0, %s33
    %s50 = sphi 0, %s34
    %s54 = sphi 0, %s54
    %s56 = sphi 0, %s54
    %s57 = sphi 0, %s56
    %s71 = sphi 0, %s57
    %s75 = sphi 0, %s75
    %s77 = sphi 0, %s75
    %s78 = sphi 0, %s77
    %s92 = sphi 0, %s78
    %s96 = sphi 0, %s96
    %s98 = sphi 0, %s96
    %s99 = sphi 0, %s98
    %s113 = sphi 0, %s99
    %s117 = sphi 0, %s117
    %s119 = sphi 0, %s117
    %s120 = sphi 0, %s119
    %s134 = sphi 0, %s120
    %s138 = sphi 0, %s138
    %s140 = sphi 0, %s138
    %s141 = sphi 0, %s140
    %s155 = sphi 0, %s141
    %s159 = sphi 0, %s159
    %s161 = sphi 0, %s159
    %s162 = sphi 0, %s161
    %s176 = sphi 0, %s162
    %s180 = sphi 0, %s180
    %s182 = sphi 0, %s180
    %s183 = sphi 0, %s182
    %s197 = sphi 0, %s183
    %s201 = sphi 0, %s201
    %s203 = sphi 0, %s201
    %s204 = sphi 0, %s203
    %s218 = sphi 0, %s204
    %s222 = sphi 0, %s222
    %s224 = sphi 0, %s222
    %s225 = sphi 0, %s224
    %s239 = sphi 0, %s225
    %s243 = sphi 0, %s243
    %s245 = sphi 0, %s243
    %s246 = sphi 0, %s245
    %s260 = sphi 0, %s246
    %s264 = sphi 0, %s264
    %s266 = sphi 0, %s264
    %s267 = sphi 0, %s266
    %s281 = sphi 0, %s267
    %s287 = sphi 0, %s289
    %s290 = sphi 0, %s287
    %s291 = sphi 0, %s290
    %s307 = sphi 0, %s291
  $region4: #{tpu_custom_call.1} parent=0 // loop_header_branch
    %23 = sbr.rel (%p21) target = $region8
  $region5: #{tpu_custom_call.1} parent=0 // loop_body
    %s25 = ssub.s32 %s20, 1
    %s26 = ssub.s32 %s20, 2
    %s27 = sadd.s32 %s20, 1
    %s28 = ssub.s32 %s20, %s27
    %p29 = scmp.eq.s32.totalorder %s28, 0
    %s31 = sadd.s32 %s30, 1
    %s32 = scalar_select %p29, %s30, %s31
    %p35 = pneg %p29
    %p36 = scmp.eq.s32.totalorder %s20, 1
    %p37 = por %p35, %p36
    %p38 = scmp.ne.s32.totalorder %s30, %s33
    %p39 = scmp.eq.s32.totalorder %s20, 0
    %p40 = por %p38, %p39
    %p41 = scmp.ne.s32.totalorder %s30, %s33
    %p42 = scmp.eq.s32.totalorder %s25, 1
    %p43 = por %p41, %p42
    %p44 = scmp.ne.s32.totalorder %s33, %s34
    %p45 = scmp.eq.s32.totalorder %s25, 0
    %p46 = por %p44, %p45
    %p47 = scmp.ne.s32.totalorder %s33, %s34
    %p48 = scmp.eq.s32.totalorder %s26, 1
    %p49 = por %p47, %p48
    %p51 = scmp.ne.s32.totalorder %s34, %s50
    %p52 = scmp.eq.s32.totalorder %s26, 0
    %p53 = por %p51, %p52
    %s55 = sadd.s32 %s54, 1
    %p58 = scmp.eq.s32.totalorder %s20, 1
    %p59 = scmp.ne.s32.totalorder %s54, %s56
    %p60 = scmp.eq.s32.totalorder %s20, 0
    %p61 = por %p59, %p60
    %p62 = scmp.ne.s32.totalorder %s54, %s56
    %p63 = scmp.eq.s32.totalorder %s25, 1
    %p64 = por %p62, %p63
    %p65 = scmp.ne.s32.totalorder %s56, %s57
    %p66 = scmp.eq.s32.totalorder %s25, 0
    %p67 = por %p65, %p66
    %p68 = scmp.ne.s32.totalorder %s56, %s57
    %p69 = scmp.eq.s32.totalorder %s26, 1
    %p70 = por %p68, %p69
    %p72 = scmp.ne.s32.totalorder %s57, %s71
    %p73 = scmp.eq.s32.totalorder %s26, 0
    %p74 = por %p72, %p73
    %s76 = sadd.s32 %s75, 1
    %p79 = scmp.eq.s32.totalorder %s20, 1
    %p80 = scmp.ne.s32.totalorder %s75, %s77
    %p81 = scmp.eq.s32.totalorder %s20, 0
    %p82 = por %p80, %p81
    %p83 = scmp.ne.s32.totalorder %s75, %s77
    %p84 = scmp.eq.s32.totalorder %s25, 1
    %p85 = por %p83, %p84
    %p86 = scmp.ne.s32.totalorder %s77, %s78
    %p87 = scmp.eq.s32.totalorder %s25, 0
    %p88 = por %p86, %p87
    %p89 = scmp.ne.s32.totalorder %s77, %s78
    %p90 = scmp.eq.s32.totalorder %s26, 1
    %p91 = por %p89, %p90
    %p93 = scmp.ne.s32.totalorder %s78, %s92
    %p94 = scmp.eq.s32.totalorder %s26, 0
    %p95 = por %p93, %p94
    %s97 = sadd.s32 %s96, 1
    %p100 = scmp.eq.s32.totalorder %s20, 1
    %p101 = scmp.ne.s32.totalorder %s96, %s98
    %p102 = scmp.eq.s32.totalorder %s20, 0
    %p103 = por %p101, %p102
    %p104 = scmp.ne.s32.totalorder %s96, %s98
    %p105 = scmp.eq.s32.totalorder %s25, 1
    %p106 = por %p104, %p105
    %p107 = scmp.ne.s32.totalorder %s98, %s99
    %p108 = scmp.eq.s32.totalorder %s25, 0
    %p109 = por %p107, %p108
    %p110 = scmp.ne.s32.totalorder %s98, %s99
    %p111 = scmp.eq.s32.totalorder %s26, 1
    %p112 = por %p110, %p111
    %p114 = scmp.ne.s32.totalorder %s99, %s113
    %p115 = scmp.eq.s32.totalorder %s26, 0
    %p116 = por %p114, %p115
    %s118 = sadd.s32 %s117, 1
    %p121 = scmp.eq.s32.totalorder %s20, 1
    %p122 = scmp.ne.s32.totalorder %s117, %s119
    %p123 = scmp.eq.s32.totalorder %s20, 0
    %p124 = por %p122, %p123
    %p125 = scmp.ne.s32.totalorder %s117, %s119
    %p126 = scmp.eq.s32.totalorder %s25, 1
    %p127 = por %p125, %p126
    %p128 = scmp.ne.s32.totalorder %s119, %s120
    %p129 = scmp.eq.s32.totalorder %s25, 0
    %p130 = por %p128, %p129
    %p131 = scmp.ne.s32.totalorder %s119, %s120
    %p132 = scmp.eq.s32.totalorder %s26, 1
    %p133 = por %p131, %p132
    %p135 = scmp.ne.s32.totalorder %s120, %s134
    %p136 = scmp.eq.s32.totalorder %s26, 0
    %p137 = por %p135, %p136
    %s139 = sadd.s32 %s138, 1
    %p142 = scmp.eq.s32.totalorder %s20, 1
    %p143 = scmp.ne.s32.totalorder %s138, %s140
    %p144 = scmp.eq.s32.totalorder %s20, 0
    %p145 = por %p143, %p144
    %p146 = scmp.ne.s32.totalorder %s138, %s140
    %p147 = scmp.eq.s32.totalorder %s25, 1
    %p148 = por %p146, %p147
    %p149 = scmp.ne.s32.totalorder %s140, %s141
    %p150 = scmp.eq.s32.totalorder %s25, 0
    %p151 = por %p149, %p150
    %p152 = scmp.ne.s32.totalorder %s140, %s141
    %p153 = scmp.eq.s32.totalorder %s26, 1
    %p154 = por %p152, %p153
    %p156 = scmp.ne.s32.totalorder %s141, %s155
    %p157 = scmp.eq.s32.totalorder %s26, 0
    %p158 = por %p156, %p157
    %s160 = sadd.s32 %s159, 1
    %p163 = scmp.eq.s32.totalorder %s20, 1
    %p164 = scmp.ne.s32.totalorder %s159, %s161
    %p165 = scmp.eq.s32.totalorder %s20, 0
    %p166 = por %p164, %p165
    %p167 = scmp.ne.s32.totalorder %s159, %s161
    %p168 = scmp.eq.s32.totalorder %s25, 1
    %p169 = por %p167, %p168
    %p170 = scmp.ne.s32.totalorder %s161, %s162
    %p171 = scmp.eq.s32.totalorder %s25, 0
    %p172 = por %p170, %p171
    %p173 = scmp.ne.s32.totalorder %s161, %s162
    %p174 = scmp.eq.s32.totalorder %s26, 1
    %p175 = por %p173, %p174
    %p177 = scmp.ne.s32.totalorder %s162, %s176
    %p178 = scmp.eq.s32.totalorder %s26, 0
    %p179 = por %p177, %p178
    %s181 = sadd.s32 %s180, 1
    %p184 = scmp.eq.s32.totalorder %s20, 1
    %p185 = scmp.ne.s32.totalorder %s180, %s182
    %p186 = scmp.eq.s32.totalorder %s20, 0
    %p187 = por %p185, %p186
    %p188 = scmp.ne.s32.totalorder %s180, %s182
    %p189 = scmp.eq.s32.totalorder %s25, 1
    %p190 = por %p188, %p189
    %p191 = scmp.ne.s32.totalorder %s182, %s183
    %p192 = scmp.eq.s32.totalorder %s25, 0
    %p193 = por %p191, %p192
    %p194 = scmp.ne.s32.totalorder %s182, %s183
    %p195 = scmp.eq.s32.totalorder %s26, 1
    %p196 = por %p194, %p195
    %p198 = scmp.ne.s32.totalorder %s183, %s197
    %p199 = scmp.eq.s32.totalorder %s26, 0
    %p200 = por %p198, %p199
    %s202 = sadd.s32 %s201, 1
    %p205 = scmp.eq.s32.totalorder %s20, 1
    %p206 = scmp.ne.s32.totalorder %s201, %s203
    %p207 = scmp.eq.s32.totalorder %s20, 0
    %p208 = por %p206, %p207
    %p209 = scmp.ne.s32.totalorder %s201, %s203
    %p210 = scmp.eq.s32.totalorder %s25, 1
    %p211 = por %p209, %p210
    %p212 = scmp.ne.s32.totalorder %s203, %s204
    %p213 = scmp.eq.s32.totalorder %s25, 0
    %p214 = por %p212, %p213
    %p215 = scmp.ne.s32.totalorder %s203, %s204
    %p216 = scmp.eq.s32.totalorder %s26, 1
    %p217 = por %p215, %p216
    %p219 = scmp.ne.s32.totalorder %s204, %s218
    %p220 = scmp.eq.s32.totalorder %s26, 0
    %p221 = por %p219, %p220
    %s223 = sadd.s32 %s222, 1
    %p226 = scmp.eq.s32.totalorder %s20, 1
    %p227 = scmp.ne.s32.totalorder %s222, %s224
    %p228 = scmp.eq.s32.totalorder %s20, 0
    %p229 = por %p227, %p228
    %p230 = scmp.ne.s32.totalorder %s222, %s224
    %p231 = scmp.eq.s32.totalorder %s25, 1
    %p232 = por %p230, %p231
    %p233 = scmp.ne.s32.totalorder %s224, %s225
    %p234 = scmp.eq.s32.totalorder %s25, 0
    %p235 = por %p233, %p234
    %p236 = scmp.ne.s32.totalorder %s224, %s225
    %p237 = scmp.eq.s32.totalorder %s26, 1
    %p238 = por %p236, %p237
    %p240 = scmp.ne.s32.totalorder %s225, %s239
    %p241 = scmp.eq.s32.totalorder %s26, 0
    %p242 = por %p240, %p241
    %s244 = sadd.s32 %s243, 1
    %p247 = scmp.eq.s32.totalorder %s20, 1
    %p248 = scmp.ne.s32.totalorder %s243, %s245
    %p249 = scmp.eq.s32.totalorder %s20, 0
    %p250 = por %p248, %p249
    %p251 = scmp.ne.s32.totalorder %s243, %s245
    %p252 = scmp.eq.s32.totalorder %s25, 1
    %p253 = por %p251, %p252
    %p254 = scmp.ne.s32.totalorder %s245, %s246
    %p255 = scmp.eq.s32.totalorder %s25, 0
    %p256 = por %p254, %p255
    %p257 = scmp.ne.s32.totalorder %s245, %s246
    %p258 = scmp.eq.s32.totalorder %s26, 1
    %p259 = por %p257, %p258
    %p261 = scmp.ne.s32.totalorder %s246, %s260
    %p262 = scmp.eq.s32.totalorder %s26, 0
    %p263 = por %p261, %p262
    %s265 = sadd.s32 %s264, 1
    %p268 = scmp.eq.s32.totalorder %s20, 1
    %p269 = scmp.ne.s32.totalorder %s264, %s266
    %p270 = scmp.eq.s32.totalorder %s20, 0
    %p271 = por %p269, %p270
    %p272 = scmp.ne.s32.totalorder %s264, %s266
    %p273 = scmp.eq.s32.totalorder %s25, 1
    %p274 = por %p272, %p273
    %p275 = scmp.ne.s32.totalorder %s266, %s267
    %p276 = scmp.eq.s32.totalorder %s25, 0
    %p277 = por %p275, %p276
    %p278 = scmp.ne.s32.totalorder %s266, %s267
    %p279 = scmp.eq.s32.totalorder %s26, 1
    %p280 = por %p278, %p279
    %p282 = scmp.ne.s32.totalorder %s267, %s281
    %p283 = scmp.eq.s32.totalorder %s26, 0
    %p284 = por %p282, %p283
    %s285 = ssub.s32 %s20, %s27
    %p286 = scmp.eq.s32.totalorder %s285, 0
    %s288 = sadd.s32 %s287, 1
    %s289 = scalar_select %p286, %s287, %s288
    %p292 = pneg %p286
    %p293 = scmp.eq.s32.totalorder %s20, 1
    %p294 = por %p292, %p293
    %p295 = scmp.ne.s32.totalorder %s287, %s290
    %p296 = scmp.eq.s32.totalorder %s20, 0
    %p297 = por %p295, %p296
    %p298 = scmp.ne.s32.totalorder %s287, %s290
    %p299 = scmp.eq.s32.totalorder %s25, 1
    %p300 = por %p298, %p299
    %p301 = scmp.ne.s32.totalorder %s290, %s291
    %p302 = scmp.eq.s32.totalorder %s25, 0
    %p303 = por %p301, %p302
    %p304 = scmp.ne.s32.totalorder %s290, %s291
    %p305 = scmp.eq.s32.totalorder %s26, 1
    %p306 = por %p304, %p305
    %p308 = scmp.ne.s32.totalorder %s291, %s307
    %p309 = scmp.eq.s32.totalorder %s26, 0
    %p310 = por %p308, %p309
    %p311 = scmp.le.s32.totalorder 1, %s20
    %p312 = scmp.lt.s32.totalorder %s20, 3
    %p313 = pnand %p311, %p312
    %p314 = pneg %p313
    // Predicated region
    $region9: #{tpu_custom_call.1} parent=5 // pred_check
      _
    $region10: #{tpu_custom_call.1} parent=5 // pred_check_branch
      %316 = sbr.rel (%p313) target = $region12
    $region11: #{tpu_custom_call.1} parent=5 // pred_region
      %s317 = ssub.s32 %s20, 1
      // Predicated region
      $region13: #{tpu_custom_call.1} parent=11 // pred_check
        %p318 = pneg %p67
      $region14: #{tpu_custom_call.1} parent=11 // pred_check_branch
        %320 = sbr.rel (%p318) target = $region16
      $region15: #{tpu_custom_call.1} parent=11 // pred_region
        _
      $region16: #{tpu_custom_call.1} parent=11 // pred_fallthru
        _
      // Predicated region
      $region17: #{tpu_custom_call.1} parent=11 // pred_check
        %p321 = pneg %p88
      $region18: #{tpu_custom_call.1} parent=11 // pred_check_branch
        %323 = sbr.rel (%p321) target = $region20
      $region19: #{tpu_custom_call.1} parent=11 // pred_region
        _
      $region20: #{tpu_custom_call.1} parent=11 // pred_fallthru
        _
      // Predicated region
      $region21: #{tpu_custom_call.1} parent=11 // pred_check
        %p324 = pneg %p109
      $region22: #{tpu_custom_call.1} parent=11 // pred_check_branch
        %326 = sbr.rel (%p324) target = $region24
      $region23: #{tpu_custom_call.1} parent=11 // pred_region
        _
      $region24: #{tpu_custom_call.1} parent=11 // pred_fallthru
        _
      // Predicated region
      $region25: #{tpu_custom_call.1} parent=11 // pred_check
        %p327 = pneg %p130
      $region26: #{tpu_custom_call.1} parent=11 // pred_check_branch
        %329 = sbr.rel (%p327) target = $region28
      $region27: #{tpu_custom_call.1} parent=11 // pred_region
        _
      $region28: #{tpu_custom_call.1} parent=11 // pred_fallthru
        _
      // Predicated region
      $region29: #{tpu_custom_call.1} parent=11 // pred_check
        %p330 = pneg %p151
      $region30: #{tpu_custom_call.1} parent=11 // pred_check_branch
        %332 = sbr.rel (%p330) target = $region32
      $region31: #{tpu_custom_call.1} parent=11 // pred_region
        _
      $region32: #{tpu_custom_call.1} parent=11 // pred_fallthru
        _
      // Predicated region
      $region33: #{tpu_custom_call.1} parent=11 // pred_check
        %p333 = pneg %p172
      $region34: #{tpu_custom_call.1} parent=11 // pred_check_branch
        %335 = sbr.rel (%p333) target = $region36
      $region35: #{tpu_custom_call.1} parent=11 // pred_region
        _
      $region36: #{tpu_custom_call.1} parent=11 // pred_fallthru
        _
      // Predicated region
      $region37: #{tpu_custom_call.1} parent=11 // pred_check
        %p336 = pneg %p193
      $region38: #{tpu_custom_call.1} parent=11 // pred_check_branch
        %338 = sbr.rel (%p336) target = $region40
      $region39: #{tpu_custom_call.1} parent=11 // pred_region
        _
      $region40: #{tpu_custom_call.1} parent=11 // pred_fallthru
        _
      // Predicated region
      $region41: #{tpu_custom_call.1} parent=11 // pred_check
        %p339 = pneg %p214
      $region42: #{tpu_custom_call.1} parent=11 // pred_check_branch
        %341 = sbr.rel (%p339) target = $region44
      $region43: #{tpu_custom_call.1} parent=11 // pred_region
        _
      $region44: #{tpu_custom_call.1} parent=11 // pred_fallthru
        _
      // Predicated region
      $region45: #{tpu_custom_call.1} parent=11 // pred_check
        %p342 = pneg %p235
      $region46: #{tpu_custom_call.1} parent=11 // pred_check_branch
        %344 = sbr.rel (%p342) target = $region48
      $region47: #{tpu_custom_call.1} parent=11 // pred_region
        _
      $region48: #{tpu_custom_call.1} parent=11 // pred_fallthru
        _
      // Predicated region
      $region49: #{tpu_custom_call.1} parent=11 // pred_check
        %p345 = pneg %p256
      $region50: #{tpu_custom_call.1} parent=11 // pred_check_branch
        %347 = sbr.rel (%p345) target = $region52
      $region51: #{tpu_custom_call.1} parent=11 // pred_region
        _
      $region52: #{tpu_custom_call.1} parent=11 // pred_fallthru
        _
      // Predicated region
      $region53: #{tpu_custom_call.1} parent=11 // pred_check
        %p348 = pneg %p277
      $region54: #{tpu_custom_call.1} parent=11 // pred_check_branch
        %350 = sbr.rel (%p348) target = $region56
      $region55: #{tpu_custom_call.1} parent=11 // pred_region
        _
      $region56: #{tpu_custom_call.1} parent=11 // pred_fallthru
        _
    $region12: #{tpu_custom_call.1} parent=5 // pred_fallthru
      _
    %p351 = scmp.lt.s32.totalorder %s20, 2
    // Predicated region
    $region57: #{tpu_custom_call.1} parent=5 // pred_check
      %p352 = pneg %p351
    $region58: #{tpu_custom_call.1} parent=5 // pred_check_branch
      %354 = sbr.rel (%p352) target = $region60
    $region59: #{tpu_custom_call.1} parent=5 // pred_region
      // Predicated region
      $region61: #{tpu_custom_call.1} parent=59 // pred_check
        %p355 = pneg %p40
      $region62: #{tpu_custom_call.1} parent=59 // pred_check_branch
        %357 = sbr.rel (%p355) target = $region64
      $region63: #{tpu_custom_call.1} parent=59 // pred_region
        %p358 = scmp.lt.s32.totalorder %s20, 1
        %s359 = scalar_select %p358, %s20, 1
        %s360 = smul.addr %s359, 32
        %s361 = smul.addr %s360, 8
        %s362 = scalar_lea.vmem %s0, %s361
      $region64: #{tpu_custom_call.1} parent=59 // pred_fallthru
        _
    $region60: #{tpu_custom_call.1} parent=5 // pred_fallthru
      _
    %p363 = scmp.le.s32.totalorder 1, %s20
    %p364 = scmp.lt.s32.totalorder %s20, 3
    %p365 = pnand %p363, %p364
    %p366 = pneg %p365
    // Predicated region
    $region65: #{tpu_custom_call.1} parent=5 // pred_check
      _
    $region66: #{tpu_custom_call.1} parent=5 // pred_check_branch
      %368 = sbr.rel (%p365) target = $region68
    $region67: #{tpu_custom_call.1} parent=5 // pred_region
      %s369 = ssub.s32 %s20, 1
      %p370 = scmp.lt.s32.totalorder %s25, 1
      %s371 = scalar_select %p370, %s25, 1
      %s372 = smul.addr %s371, 32
      %s373 = smul.addr %s372, 8
      %s374 = scalar_lea.vmem %s0, %s373
      %p375 = pneg %p46
      %p376 = pneg %p43
      %p377 = pneg %p67
      %p378 = pneg %p64
      %p379 = pneg %p88
      %p380 = pneg %p85
      %p381 = pneg %p109
      %p382 = pneg %p106
      %p383 = pneg %p130
      %p384 = pneg %p127
      %p385 = pneg %p151
      %p386 = pneg %p148
      %p387 = pneg %p172
      %p388 = pneg %p169
      %p389 = pneg %p193
      %p390 = pneg %p190
      %p391 = pneg %p214
      %p392 = pneg %p211
      %p393 = pneg %p235
      %p394 = pneg %p232
      %p395 = pneg %p256
      %p396 = pneg %p253
      %p397 = pneg %p277
      %p398 = pneg %p274
      %p399 = pneg %p303
      %p400 = pneg %p300
      %p401 = scmp.lt.s32.totalorder %s25, 1
      %s402 = scalar_select %p401, %s25, 1
      %s403 = scalar_lea.vmem %s12, %s402
      %p404 = scmp.lt.s32.totalorder %s25, 1
      %s405 = scalar_select %p404, %s25, 1
      %s406 = smul.addr %s405, 32
      %s407 = smul.addr %s406, 8
      %s408 = scalar_lea.vmem %s0, %s407
      %p409 = scmp.lt.s32.totalorder %s25, 1
      %s410 = scalar_select %p409, %s25, 1
      %s411 = scalar_lea.vmem %s12, %s410
      %v413 = vld [vmem:[%s408] sm:$0xff]
      %v414 = vld [vmem:[%s408 + $0x8] sm:$0xff]
      %v415 = vld [vmem:[%s408 + $0x10] sm:$0xff]
      %v416 = vld [vmem:[%s408 + $0x18] sm:$0xff]
      %v417 = vld [vmem:[%s408 + $0x20] sm:$0xff]
      %v418 = vld [vmem:[%s408 + $0x28] sm:$0xff]
      %v419 = vld [vmem:[%s408 + $0x30] sm:$0xff]
      %v420 = vld [vmem:[%s408 + $0x38] sm:$0xff]
      %v421 = vld [vmem:[%s408 + $0x40] sm:$0xff]
      %v422 = vld [vmem:[%s408 + $0x48] sm:$0xff]
      %v423 = vld [vmem:[%s408 + $0x50] sm:$0xff]
      %v424 = vld [vmem:[%s408 + $0x58] sm:$0xff]
      %v425 = vld [vmem:[%s408 + $0x60] sm:$0xff]
      %v426 = vld [vmem:[%s408 + $0x68] sm:$0xff]
      %v427 = vld [vmem:[%s408 + $0x70] sm:$0xff]
      %v428 = vld [vmem:[%s408 + $0x78] sm:$0xff]
      %v429 = vld [vmem:[%s408 + $0x80] sm:$0xff]
      %v430 = vld [vmem:[%s408 + $0x88] sm:$0xff]
      %v431 = vld [vmem:[%s408 + $0x90] sm:$0xff]
      %v432 = vld [vmem:[%s408 + $0x98] sm:$0xff]
      %v433 = vld [vmem:[%s408 + $0xa0] sm:$0xff]
      %v434 = vld [vmem:[%s408 + $0xa8] sm:$0xff]
      %v435 = vld [vmem:[%s408 + $0xb0] sm:$0xff]
      %v436 = vld [vmem:[%s408 + $0xb8] sm:$0xff]
      %v437 = vld [vmem:[%s408 + $0xc0] sm:$0xff]
      %v438 = vld [vmem:[%s408 + $0xc8] sm:$0xff]
      %v439 = vld [vmem:[%s408 + $0xd0] sm:$0xff]
      %v440 = vld [vmem:[%s408 + $0xd8] sm:$0xff]
      %v441 = vld [vmem:[%s408 + $0xe0] sm:$0xff]
      %v442 = vld [vmem:[%s408 + $0xe8] sm:$0xff]
      %v443 = vld [vmem:[%s408 + $0xf0] sm:$0xff]
      %v444 = vld [vmem:[%s408 + $0xf8] sm:$0xff]
      %v445 = vld [vmem:[%s2] sm:$0x1]
      %v446 = vld [vmem:[%s3] sm:$0x1]
      %v475 = vcombine.high %v413, %v413
      %v477 = vunpack.c.l.s4 1983009808
      %v478 = vunpack.c.0.s8 %v477
      %v479 = vlaneseq
      %v480 = vshrl.u32 %v479, 7
      %v481 = vsub.s32 %v478, %v480
      %v482 = vrot.slane %v413, %v481
      %v484 = vunpack.c.l.s4 1983009808
      %v485 = vunpack.c.0.s8 %v484
      %v486 = vlaneseq
      %v487 = vshrl.u32 %v486, 7
      %v488 = vsub.s32 %v485, %v487
      %v489 = vrot.slane %v475, %v488
      %v490 = vcombine.high %v482, %v482
      %v491 = vcombine.high %v489, %v489
      %v492 = vcombine.high %v414, %v414
      %v494 = vunpack.c.l.s4 1983009808
      %v495 = vunpack.c.0.s8 %v494
      %v496 = vlaneseq
      %v497 = vshrl.u32 %v496, 7
      %v498 = vsub.s32 %v495, %v497
      %v499 = vrot.slane %v414, %v498
      %v501 = vunpack.c.l.s4 1983009808
      %v502 = vunpack.c.0.s8 %v501
      %v503 = vlaneseq
      %v504 = vshrl.u32 %v503, 7
      %v505 = vsub.s32 %v502, %v504
      %v506 = vrot.slane %v492, %v505
      %v507 = vcombine.high %v499, %v499
      %v508 = vcombine.high %v415, %v415
      %v510 = vunpack.c.l.s4 1983009808
      %v511 = vunpack.c.0.s8 %v510
      %v512 = vlaneseq
      %v513 = vshrl.u32 %v512, 7
      %v514 = vsub.s32 %v511, %v513
      %v515 = vrot.slane %v415, %v514
      %v517 = vunpack.c.l.s4 1983009808
      %v518 = vunpack.c.0.s8 %v517
      %v519 = vlaneseq
      %v520 = vshrl.u32 %v519, 7
      %v521 = vsub.s32 %v518, %v520
      %v522 = vrot.slane %v508, %v521
      %v523 = vcombine.high %v515, %v515
      %v524 = vcombine.high %v522, %v522
      %v525 = vcombine.high %v416, %v416
      %v527 = vunpack.c.l.s4 1983009808
      %v528 = vunpack.c.0.s8 %v527
      %v529 = vlaneseq
      %v530 = vshrl.u32 %v529, 7
      %v531 = vsub.s32 %v528, %v530
      %v532 = vrot.slane %v416, %v531
      %v534 = vunpack.c.l.s4 1983009808
      %v535 = vunpack.c.0.s8 %v534
      %v536 = vlaneseq
      %v537 = vshrl.u32 %v536, 7
      %v538 = vsub.s32 %v535, %v537
      %v539 = vrot.slane %v525, %v538
      %v540 = vcombine.high %v532, %v532
      %v541 = vcombine.high %v417, %v417
      %v543 = vunpack.c.l.s4 1983009808
      %v544 = vunpack.c.0.s8 %v543
      %v545 = vlaneseq
      %v546 = vshrl.u32 %v545, 7
      %v547 = vsub.s32 %v544, %v546
      %v548 = vrot.slane %v417, %v547
      %v550 = vunpack.c.l.s4 1983009808
      %v551 = vunpack.c.0.s8 %v550
      %v552 = vlaneseq
      %v553 = vshrl.u32 %v552, 7
      %v554 = vsub.s32 %v551, %v553
      %v555 = vrot.slane %v541, %v554
      %v556 = vcombine.high %v548, %v548
      %v557 = vcombine.high %v555, %v555
      %v558 = vcombine.high %v418, %v418
      %v560 = vunpack.c.l.s4 1983009808
      %v561 = vunpack.c.0.s8 %v560
      %v562 = vlaneseq
      %v563 = vshrl.u32 %v562, 7
      %v564 = vsub.s32 %v561, %v563
      %v565 = vrot.slane %v418, %v564
      %v567 = vunpack.c.l.s4 1983009808
      %v568 = vunpack.c.0.s8 %v567
      %v569 = vlaneseq
      %v570 = vshrl.u32 %v569, 7
      %v571 = vsub.s32 %v568, %v570
      %v572 = vrot.slane %v558, %v571
      %v573 = vcombine.high %v565, %v565
      %v574 = vcombine.high %v419, %v419
      %v576 = vunpack.c.l.s4 1983009808
      %v577 = vunpack.c.0.s8 %v576
      %v578 = vlaneseq
      %v579 = vshrl.u32 %v578, 7
      %v580 = vsub.s32 %v577, %v579
      %v581 = vrot.slane %v419, %v580
      %v583 = vunpack.c.l.s4 1983009808
      %v584 = vunpack.c.0.s8 %v583
      %v585 = vlaneseq
      %v586 = vshrl.u32 %v585, 7
      %v587 = vsub.s32 %v584, %v586
      %v588 = vrot.slane %v574, %v587
      %v589 = vcombine.high %v581, %v581
      %v590 = vcombine.high %v588, %v588
      %v591 = vcombine.high %v420, %v420
      %v593 = vunpack.c.l.s4 1983009808
      %v594 = vunpack.c.0.s8 %v593
      %v595 = vlaneseq
      %v596 = vshrl.u32 %v595, 7
      %v597 = vsub.s32 %v594, %v596
      %v598 = vrot.slane %v420, %v597
      %v600 = vunpack.c.l.s4 1983009808
      %v601 = vunpack.c.0.s8 %v600
      %v602 = vlaneseq
      %v603 = vshrl.u32 %v602, 7
      %v604 = vsub.s32 %v601, %v603
      %v605 = vrot.slane %v591, %v604
      %v606 = vcombine.high %v598, %v598
      %v607 = vcombine.high %v421, %v421
      %v609 = vunpack.c.l.s4 1983009808
      %v610 = vunpack.c.0.s8 %v609
      %v611 = vlaneseq
      %v612 = vshrl.u32 %v611, 7
      %v613 = vsub.s32 %v610, %v612
      %v614 = vrot.slane %v421, %v613
      %v616 = vunpack.c.l.s4 1983009808
      %v617 = vunpack.c.0.s8 %v616
      %v618 = vlaneseq
      %v619 = vshrl.u32 %v618, 7
      %v620 = vsub.s32 %v617, %v619
      %v621 = vrot.slane %v607, %v620
      %v622 = vcombine.high %v614, %v614
      %v623 = vcombine.high %v621, %v621
      %v624 = vcombine.high %v422, %v422
      %v626 = vunpack.c.l.s4 1983009808
      %v627 = vunpack.c.0.s8 %v626
      %v628 = vlaneseq
      %v629 = vshrl.u32 %v628, 7
      %v630 = vsub.s32 %v627, %v629
      %v631 = vrot.slane %v422, %v630
      %v633 = vunpack.c.l.s4 1983009808
      %v634 = vunpack.c.0.s8 %v633
      %v635 = vlaneseq
      %v636 = vshrl.u32 %v635, 7
      %v637 = vsub.s32 %v634, %v636
      %v638 = vrot.slane %v624, %v637
      %v639 = vcombine.high %v631, %v631
      %v640 = vcombine.high %v423, %v423
      %v642 = vunpack.c.l.s4 1983009808
      %v643 = vunpack.c.0.s8 %v642
      %v644 = vlaneseq
      %v645 = vshrl.u32 %v644, 7
      %v646 = vsub.s32 %v643, %v645
      %v647 = vrot.slane %v423, %v646
      %v649 = vunpack.c.l.s4 1983009808
      %v650 = vunpack.c.0.s8 %v649
      %v651 = vlaneseq
      %v652 = vshrl.u32 %v651, 7
      %v653 = vsub.s32 %v650, %v652
      %v654 = vrot.slane %v640, %v653
      %v655 = vcombine.high %v647, %v647
      %v656 = vcombine.high %v654, %v654
      %v657 = vcombine.high %v424, %v424
      %v659 = vunpack.c.l.s4 1983009808
      %v660 = vunpack.c.0.s8 %v659
      %v661 = vlaneseq
      %v662 = vshrl.u32 %v661, 7
      %v663 = vsub.s32 %v660, %v662
      %v664 = vrot.slane %v424, %v663
      %v666 = vunpack.c.l.s4 1983009808
      %v667 = vunpack.c.0.s8 %v666
      %v668 = vlaneseq
      %v669 = vshrl.u32 %v668, 7
      %v670 = vsub.s32 %v667, %v669
      %v671 = vrot.slane %v657, %v670
      %v672 = vcombine.high %v664, %v664
      %v673 = vcombine.high %v425, %v425
      %v675 = vunpack.c.l.s4 1983009808
      %v676 = vunpack.c.0.s8 %v675
      %v677 = vlaneseq
      %v678 = vshrl.u32 %v677, 7
      %v679 = vsub.s32 %v676, %v678
      %v680 = vrot.slane %v425, %v679
      %v682 = vunpack.c.l.s4 1983009808
      %v683 = vunpack.c.0.s8 %v682
      %v684 = vlaneseq
      %v685 = vshrl.u32 %v684, 7
      %v686 = vsub.s32 %v683, %v685
      %v687 = vrot.slane %v673, %v686
      %v688 = vcombine.high %v680, %v680
      %v689 = vcombine.high %v687, %v687
      %v690 = vcombine.high %v426, %v426
      %v692 = vunpack.c.l.s4 1983009808
      %v693 = vunpack.c.0.s8 %v692
      %v694 = vlaneseq
      %v695 = vshrl.u32 %v694, 7
      %v696 = vsub.s32 %v693, %v695
      %v697 = vrot.slane %v426, %v696
      %v699 = vunpack.c.l.s4 1983009808
      %v700 = vunpack.c.0.s8 %v699
      %v701 = vlaneseq
      %v702 = vshrl.u32 %v701, 7
      %v703 = vsub.s32 %v700, %v702
      %v704 = vrot.slane %v690, %v703
      %v705 = vcombine.high %v697, %v697
      %v706 = vcombine.high %v427, %v427
      %v708 = vunpack.c.l.s4 1983009808
      %v709 = vunpack.c.0.s8 %v708
      %v710 = vlaneseq
      %v711 = vshrl.u32 %v710, 7
      %v712 = vsub.s32 %v709, %v711
      %v713 = vrot.slane %v427, %v712
      %v715 = vunpack.c.l.s4 1983009808
      %v716 = vunpack.c.0.s8 %v715
      %v717 = vlaneseq
      %v718 = vshrl.u32 %v717, 7
      %v719 = vsub.s32 %v716, %v718
      %v720 = vrot.slane %v706, %v719
      %v721 = vcombine.high %v713, %v713
      %v722 = vcombine.high %v720, %v720
      %v723 = vcombine.high %v428, %v428
      %v725 = vunpack.c.l.s4 1983009808
      %v726 = vunpack.c.0.s8 %v725
      %v727 = vlaneseq
      %v728 = vshrl.u32 %v727, 7
      %v729 = vsub.s32 %v726, %v728
      %v730 = vrot.slane %v428, %v729
      %v732 = vunpack.c.l.s4 1983009808
      %v733 = vunpack.c.0.s8 %v732
      %v734 = vlaneseq
      %v735 = vshrl.u32 %v734, 7
      %v736 = vsub.s32 %v733, %v735
      %v737 = vrot.slane %v723, %v736
      %v738 = vcombine.high %v730, %v730
      %v739 = vcombine.high %v429, %v429
      %v741 = vunpack.c.l.s4 1983009808
      %v742 = vunpack.c.0.s8 %v741
      %v743 = vlaneseq
      %v744 = vshrl.u32 %v743, 7
      %v745 = vsub.s32 %v742, %v744
      %v746 = vrot.slane %v429, %v745
      %v748 = vunpack.c.l.s4 1983009808
      %v749 = vunpack.c.0.s8 %v748
      %v750 = vlaneseq
      %v751 = vshrl.u32 %v750, 7
      %v752 = vsub.s32 %v749, %v751
      %v753 = vrot.slane %v739, %v752
      %v754 = vcombine.high %v746, %v746
      %v755 = vcombine.high %v753, %v753
      %v756 = vcombine.high %v430, %v430
      %v758 = vunpack.c.l.s4 1983009808
      %v759 = vunpack.c.0.s8 %v758
      %v760 = vlaneseq
      %v761 = vshrl.u32 %v760, 7
      %v762 = vsub.s32 %v759, %v761
      %v763 = vrot.slane %v430, %v762
      %v765 = vunpack.c.l.s4 1983009808
      %v766 = vunpack.c.0.s8 %v765
      %v767 = vlaneseq
      %v768 = vshrl.u32 %v767, 7
      %v769 = vsub.s32 %v766, %v768
      %v770 = vrot.slane %v756, %v769
      %v771 = vcombine.high %v763, %v763
      %v772 = vcombine.high %v431, %v431
      %v774 = vunpack.c.l.s4 1983009808
      %v775 = vunpack.c.0.s8 %v774
      %v776 = vlaneseq
      %v777 = vshrl.u32 %v776, 7
      %v778 = vsub.s32 %v775, %v777
      %v779 = vrot.slane %v431, %v778
      %v781 = vunpack.c.l.s4 1983009808
      %v782 = vunpack.c.0.s8 %v781
      %v783 = vlaneseq
      %v784 = vshrl.u32 %v783, 7
      %v785 = vsub.s32 %v782, %v784
      %v786 = vrot.slane %v772, %v785
      %v787 = vcombine.high %v779, %v779
      %v788 = vcombine.high %v786, %v786
      %v789 = vcombine.high %v432, %v432
      %v791 = vunpack.c.l.s4 1983009808
      %v792 = vunpack.c.0.s8 %v791
      %v793 = vlaneseq
      %v794 = vshrl.u32 %v793, 7
      %v795 = vsub.s32 %v792, %v794
      %v796 = vrot.slane %v432, %v795
      %v798 = vunpack.c.l.s4 1983009808
      %v799 = vunpack.c.0.s8 %v798
      %v800 = vlaneseq
      %v801 = vshrl.u32 %v800, 7
      %v802 = vsub.s32 %v799, %v801
      %v803 = vrot.slane %v789, %v802
      %v804 = vcombine.high %v796, %v796
      %v805 = vcombine.high %v433, %v433
      %v807 = vunpack.c.l.s4 1983009808
      %v808 = vunpack.c.0.s8 %v807
      %v809 = vlaneseq
      %v810 = vshrl.u32 %v809, 7
      %v811 = vsub.s32 %v808, %v810
      %v812 = vrot.slane %v433, %v811
      %v814 = vunpack.c.l.s4 1983009808
      %v815 = vunpack.c.0.s8 %v814
      %v816 = vlaneseq
      %v817 = vshrl.u32 %v816, 7
      %v818 = vsub.s32 %v815, %v817
      %v819 = vrot.slane %v805, %v818
      %v820 = vcombine.high %v812, %v812
      %v821 = vcombine.high %v819, %v819
      %v822 = vcombine.high %v434, %v434
      %v824 = vunpack.c.l.s4 1983009808
      %v825 = vunpack.c.0.s8 %v824
      %v826 = vlaneseq
      %v827 = vshrl.u32 %v826, 7
      %v828 = vsub.s32 %v825, %v827
      %v829 = vrot.slane %v434, %v828
      %v831 = vunpack.c.l.s4 1983009808
      %v832 = vunpack.c.0.s8 %v831
      %v833 = vlaneseq
      %v834 = vshrl.u32 %v833, 7
      %v835 = vsub.s32 %v832, %v834
      %v836 = vrot.slane %v822, %v835
      %v837 = vcombine.high %v829, %v829
      %v838 = vcombine.high %v435, %v435
      %v840 = vunpack.c.l.s4 1983009808
      %v841 = vunpack.c.0.s8 %v840
      %v842 = vlaneseq
      %v843 = vshrl.u32 %v842, 7
      %v844 = vsub.s32 %v841, %v843
      %v845 = vrot.slane %v435, %v844
      %v847 = vunpack.c.l.s4 1983009808
      %v848 = vunpack.c.0.s8 %v847
      %v849 = vlaneseq
      %v850 = vshrl.u32 %v849, 7
      %v851 = vsub.s32 %v848, %v850
      %v852 = vrot.slane %v838, %v851
      %v853 = vcombine.high %v845, %v845
      %v854 = vcombine.high %v852, %v852
      %v855 = vcombine.high %v436, %v436
      %v857 = vunpack.c.l.s4 1983009808
      %v858 = vunpack.c.0.s8 %v857
      %v859 = vlaneseq
      %v860 = vshrl.u32 %v859, 7
      %v861 = vsub.s32 %v858, %v860
      %v862 = vrot.slane %v436, %v861
      %v864 = vunpack.c.l.s4 1983009808
      %v865 = vunpack.c.0.s8 %v864
      %v866 = vlaneseq
      %v867 = vshrl.u32 %v866, 7
      %v868 = vsub.s32 %v865, %v867
      %v869 = vrot.slane %v855, %v868
      %v870 = vcombine.high %v862, %v862
      %v871 = vcombine.high %v437, %v437
      %v873 = vunpack.c.l.s4 1983009808
      %v874 = vunpack.c.0.s8 %v873
      %v875 = vlaneseq
      %v876 = vshrl.u32 %v875, 7
      %v877 = vsub.s32 %v874, %v876
      %v878 = vrot.slane %v437, %v877
      %v880 = vunpack.c.l.s4 1983009808
      %v881 = vunpack.c.0.s8 %v880
      %v882 = vlaneseq
      %v883 = vshrl.u32 %v882, 7
      %v884 = vsub.s32 %v881, %v883
      %v885 = vrot.slane %v871, %v884
      %v886 = vcombine.high %v878, %v878
      %v887 = vcombine.high %v885, %v885
      %v888 = vcombine.high %v438, %v438
      %v890 = vunpack.c.l.s4 1983009808
      %v891 = vunpack.c.0.s8 %v890
      %v892 = vlaneseq
      %v893 = vshrl.u32 %v892, 7
      %v894 = vsub.s32 %v891, %v893
      %v895 = vrot.slane %v438, %v894
      %v897 = vunpack.c.l.s4 1983009808
      %v898 = vunpack.c.0.s8 %v897
      %v899 = vlaneseq
      %v900 = vshrl.u32 %v899, 7
      %v901 = vsub.s32 %v898, %v900
      %v902 = vrot.slane %v888, %v901
      %v903 = vcombine.high %v895, %v895
      %v904 = vcombine.high %v439, %v439
      %v906 = vunpack.c.l.s4 1983009808
      %v907 = vunpack.c.0.s8 %v906
      %v908 = vlaneseq
      %v909 = vshrl.u32 %v908, 7
      %v910 = vsub.s32 %v907, %v909
      %v911 = vrot.slane %v439, %v910
      %v913 = vunpack.c.l.s4 1983009808
      %v914 = vunpack.c.0.s8 %v913
      %v915 = vlaneseq
      %v916 = vshrl.u32 %v915, 7
      %v917 = vsub.s32 %v914, %v916
      %v918 = vrot.slane %v904, %v917
      %v919 = vcombine.high %v911, %v911
      %v920 = vcombine.high %v918, %v918
      %v921 = vcombine.high %v440, %v440
      %v923 = vunpack.c.l.s4 1983009808
      %v924 = vunpack.c.0.s8 %v923
      %v925 = vlaneseq
      %v926 = vshrl.u32 %v925, 7
      %v927 = vsub.s32 %v924, %v926
      %v928 = vrot.slane %v440, %v927
      %v930 = vunpack.c.l.s4 1983009808
      %v931 = vunpack.c.0.s8 %v930
      %v932 = vlaneseq
      %v933 = vshrl.u32 %v932, 7
      %v934 = vsub.s32 %v931, %v933
      %v935 = vrot.slane %v921, %v934
      %v936 = vcombine.high %v928, %v928
      %v937 = vcombine.low %v482, %v490
      %v938 = vcombine.low %v489, %v491
      %v940 = vunpack.c.l.s4 1983009808
      %v941 = vunpack.c.0.s8 %v940
      %v942 = vlaneseq
      %v943 = vshrl.u32 %v942, 7
      %v944 = vsub.s32 %v941, %v943
      %v945 = vrot.slane %v937, %v944
      %v947 = vunpack.c.l.s4 1983009808
      %v948 = vunpack.c.0.s8 %v947
      %v949 = vlaneseq
      %v950 = vshrl.u32 %v949, 7
      %v951 = vsub.s32 %v948, %v950
      %v952 = vrot.slane %v938, %v951
      %v953 = vcombine.low %v945, %v952
      %v954 = vcombine.low %v499, %v507
      %v955 = vcombine.low %v506, %v515
      %v957 = vunpack.c.l.s4 1983009808
      %v958 = vunpack.c.0.s8 %v957
      %v959 = vlaneseq
      %v960 = vshrl.u32 %v959, 7
      %v961 = vsub.s32 %v958, %v960
      %v962 = vrot.slane %v954, %v961
      %v964 = vunpack.c.l.s4 1983009808
      %v965 = vunpack.c.0.s8 %v964
      %v966 = vlaneseq
      %v967 = vshrl.u32 %v966, 7
      %v968 = vsub.s32 %v965, %v967
      %v969 = vrot.slane %v955, %v968
      %v970 = vcombine.low %v962, %v969
      %v971 = vcombine.low %v523, %v522
      %v972 = vcombine.low %v524, %v532
      %v974 = vunpack.c.l.s4 1983009808
      %v975 = vunpack.c.0.s8 %v974
      %v976 = vlaneseq
      %v977 = vshrl.u32 %v976, 7
      %v978 = vsub.s32 %v975, %v977
      %v979 = vrot.slane %v971, %v978
      %v981 = vunpack.c.l.s4 1983009808
      %v982 = vunpack.c.0.s8 %v981
      %v983 = vlaneseq
      %v984 = vshrl.u32 %v983, 7
      %v985 = vsub.s32 %v982, %v984
      %v986 = vrot.slane %v972, %v985
      %v987 = vcombine.low %v979, %v986
      %v988 = vcombine.low %v540, %v539
      %v989 = vcombine.low %v548, %v556
      %v991 = vunpack.c.l.s4 1983009808
      %v992 = vunpack.c.0.s8 %v991
      %v993 = vlaneseq
      %v994 = vshrl.u32 %v993, 7
      %v995 = vsub.s32 %v992, %v994
      %v996 = vrot.slane %v988, %v995
      %v998 = vunpack.c.l.s4 1983009808
      %v999 = vunpack.c.0.s8 %v998
      %v1000 = vlaneseq
      %v1001 = vshrl.u32 %v1000, 7
      %v1002 = vsub.s32 %v999, %v1001
      %v1003 = vrot.slane %v989, %v1002
      %v1004 = vcombine.low %v996, %v1003
      %v1005 = vcombine.low %v555, %v557
      %v1006 = vcombine.low %v565, %v573
      %v1008 = vunpack.c.l.s4 1983009808
      %v1009 = vunpack.c.0.s8 %v1008
      %v1010 = vlaneseq
      %v1011 = vshrl.u32 %v1010, 7
      %v1012 = vsub.s32 %v1009, %v1011
      %v1013 = vrot.slane %v1005, %v1012
      %v1015 = vunpack.c.l.s4 1983009808
      %v1016 = vunpack.c.0.s8 %v1015
      %v1017 = vlaneseq
      %v1018 = vshrl.u32 %v1017, 7
      %v1019 = vsub.s32 %v1016, %v1018
      %v1020 = vrot.slane %v1006, %v1019
      %v1021 = vcombine.low %v1013, %v1020
      %v1022 = vcombine.low %v572, %v581
      %v1023 = vcombine.low %v589, %v588
      %v1025 = vunpack.c.l.s4 1983009808
      %v1026 = vunpack.c.0.s8 %v1025
      %v1027 = vlaneseq
      %v1028 = vshrl.u32 %v1027, 7
      %v1029 = vsub.s32 %v1026, %v1028
      %v1030 = vrot.slane %v1022, %v1029
      %v1032 = vunpack.c.l.s4 1983009808
      %v1033 = vunpack.c.0.s8 %v1032
      %v1034 = vlaneseq
      %v1035 = vshrl.u32 %v1034, 7
      %v1036 = vsub.s32 %v1033, %v1035
      %v1037 = vrot.slane %v1023, %v1036
      %v1038 = vcombine.low %v1030, %v1037
      %v1039 = vcombine.low %v590, %v598
      %v1040 = vcombine.low %v606, %v605
      %v1042 = vunpack.c.l.s4 1983009808
      %v1043 = vunpack.c.0.s8 %v1042
      %v1044 = vlaneseq
      %v1045 = vshrl.u32 %v1044, 7
      %v1046 = vsub.s32 %v1043, %v1045
      %v1047 = vrot.slane %v1039, %v1046
      %v1049 = vunpack.c.l.s4 1983009808
      %v1050 = vunpack.c.0.s8 %v1049
      %v1051 = vlaneseq
      %v1052 = vshrl.u32 %v1051, 7
      %v1053 = vsub.s32 %v1050, %v1052
      %v1054 = vrot.slane %v1040, %v1053
      %v1055 = vcombine.low %v1047, %v1054
      %v1056 = vcombine.low %v614, %v622
      %v1057 = vcombine.low %v621, %v623
      %v1059 = vunpack.c.l.s4 1983009808
      %v1060 = vunpack.c.0.s8 %v1059
      %v1061 = vlaneseq
      %v1062 = vshrl.u32 %v1061, 7
      %v1063 = vsub.s32 %v1060, %v1062
      %v1064 = vrot.slane %v1056, %v1063
      %v1066 = vunpack.c.l.s4 1983009808
      %v1067 = vunpack.c.0.s8 %v1066
      %v1068 = vlaneseq
      %v1069 = vshrl.u32 %v1068, 7
      %v1070 = vsub.s32 %v1067, %v1069
      %v1071 = vrot.slane %v1057, %v1070
      %v1072 = vcombine.low %v1064, %v1071
      %v1073 = vcombine.low %v631, %v639
      %v1074 = vcombine.low %v638, %v647
      %v1076 = vunpack.c.l.s4 1983009808
      %v1077 = vunpack.c.0.s8 %v1076
      %v1078 = vlaneseq
      %v1079 = vshrl.u32 %v1078, 7
      %v1080 = vsub.s32 %v1077, %v1079
      %v1081 = vrot.slane %v1073, %v1080
      %v1083 = vunpack.c.l.s4 1983009808
      %v1084 = vunpack.c.0.s8 %v1083
      %v1085 = vlaneseq
      %v1086 = vshrl.u32 %v1085, 7
      %v1087 = vsub.s32 %v1084, %v1086
      %v1088 = vrot.slane %v1074, %v1087
      %v1089 = vcombine.low %v1081, %v1088
      %v1090 = vcombine.low %v655, %v654
      %v1091 = vcombine.low %v656, %v664
      %v1093 = vunpack.c.l.s4 1983009808
      %v1094 = vunpack.c.0.s8 %v1093
      %v1095 = vlaneseq
      %v1096 = vshrl.u32 %v1095, 7
      %v1097 = vsub.s32 %v1094, %v1096
      %v1098 = vrot.slane %v1090, %v1097
      %v1100 = vunpack.c.l.s4 1983009808
      %v1101 = vunpack.c.0.s8 %v1100
      %v1102 = vlaneseq
      %v1103 = vshrl.u32 %v1102, 7
      %v1104 = vsub.s32 %v1101, %v1103
      %v1105 = vrot.slane %v1091, %v1104
      %v1106 = vcombine.low %v1098, %v1105
      %v1107 = vcombine.low %v672, %v671
      %v1108 = vcombine.low %v680, %v688
      %v1110 = vunpack.c.l.s4 1983009808
      %v1111 = vunpack.c.0.s8 %v1110
      %v1112 = vlaneseq
      %v1113 = vshrl.u32 %v1112, 7
      %v1114 = vsub.s32 %v1111, %v1113
      %v1115 = vrot.slane %v1107, %v1114
      %v1117 = vunpack.c.l.s4 1983009808
      %v1118 = vunpack.c.0.s8 %v1117
      %v1119 = vlaneseq
      %v1120 = vshrl.u32 %v1119, 7
      %v1121 = vsub.s32 %v1118, %v1120
      %v1122 = vrot.slane %v1108, %v1121
      %v1123 = vcombine.low %v1115, %v1122
      %v1124 = vcombine.low %v687, %v689
      %v1125 = vcombine.low %v697, %v705
      %v1127 = vunpack.c.l.s4 1983009808
      %v1128 = vunpack.c.0.s8 %v1127
      %v1129 = vlaneseq
      %v1130 = vshrl.u32 %v1129, 7
      %v1131 = vsub.s32 %v1128, %v1130
      %v1132 = vrot.slane %v1124, %v1131
      %v1134 = vunpack.c.l.s4 1983009808
      %v1135 = vunpack.c.0.s8 %v1134
      %v1136 = vlaneseq
      %v1137 = vshrl.u32 %v1136, 7
      %v1138 = vsub.s32 %v1135, %v1137
      %v1139 = vrot.slane %v1125, %v1138
      %v1140 = vcombine.low %v1132, %v1139
      %v1141 = vcombine.low %v704, %v713
      %v1142 = vcombine.low %v721, %v720
      %v1144 = vunpack.c.l.s4 1983009808
      %v1145 = vunpack.c.0.s8 %v1144
      %v1146 = vlaneseq
      %v1147 = vshrl.u32 %v1146, 7
      %v1148 = vsub.s32 %v1145, %v1147
      %v1149 = vrot.slane %v1141, %v1148
      %v1151 = vunpack.c.l.s4 1983009808
      %v1152 = vunpack.c.0.s8 %v1151
      %v1153 = vlaneseq
      %v1154 = vshrl.u32 %v1153, 7
      %v1155 = vsub.s32 %v1152, %v1154
      %v1156 = vrot.slane %v1142, %v1155
      %v1157 = vcombine.low %v1149, %v1156
      %v1158 = vcombine.low %v722, %v730
      %v1159 = vcombine.low %v738, %v737
      %v1161 = vunpack.c.l.s4 1983009808
      %v1162 = vunpack.c.0.s8 %v1161
      %v1163 = vlaneseq
      %v1164 = vshrl.u32 %v1163, 7
      %v1165 = vsub.s32 %v1162, %v1164
      %v1166 = vrot.slane %v1158, %v1165
      %v1168 = vunpack.c.l.s4 1983009808
      %v1169 = vunpack.c.0.s8 %v1168
      %v1170 = vlaneseq
      %v1171 = vshrl.u32 %v1170, 7
      %v1172 = vsub.s32 %v1169, %v1171
      %v1173 = vrot.slane %v1159, %v1172
      %v1174 = vcombine.low %v1166, %v1173
      %v1175 = vcombine.low %v746, %v754
      %v1176 = vcombine.low %v753, %v755
      %v1178 = vunpack.c.l.s4 1983009808
      %v1179 = vunpack.c.0.s8 %v1178
      %v1180 = vlaneseq
      %v1181 = vshrl.u32 %v1180, 7
      %v1182 = vsub.s32 %v1179, %v1181
      %v1183 = vrot.slane %v1175, %v1182
      %v1185 = vunpack.c.l.s4 1983009808
      %v1186 = vunpack.c.0.s8 %v1185
      %v1187 = vlaneseq
      %v1188 = vshrl.u32 %v1187, 7
      %v1189 = vsub.s32 %v1186, %v1188
      %v1190 = vrot.slane %v1176, %v1189
      %v1191 = vcombine.low %v1183, %v1190
      %v1192 = vcombine.low %v763, %v771
      %v1193 = vcombine.low %v770, %v779
      %v1195 = vunpack.c.l.s4 1983009808
      %v1196 = vunpack.c.0.s8 %v1195
      %v1197 = vlaneseq
      %v1198 = vshrl.u32 %v1197, 7
      %v1199 = vsub.s32 %v1196, %v1198
      %v1200 = vrot.slane %v1192, %v1199
      %v1202 = vunpack.c.l.s4 1983009808
      %v1203 = vunpack.c.0.s8 %v1202
      %v1204 = vlaneseq
      %v1205 = vshrl.u32 %v1204, 7
      %v1206 = vsub.s32 %v1203, %v1205
      %v1207 = vrot.slane %v1193, %v1206
      %v1208 = vcombine.low %v1200, %v1207
      %v1209 = vcombine.low %v787, %v786
      %v1210 = vcombine.low %v788, %v796
      %v1212 = vunpack.c.l.s4 1983009808
      %v1213 = vunpack.c.0.s8 %v1212
      %v1214 = vlaneseq
      %v1215 = vshrl.u32 %v1214, 7
      %v1216 = vsub.s32 %v1213, %v1215
      %v1217 = vrot.slane %v1209, %v1216
      %v1219 = vunpack.c.l.s4 1983009808
      %v1220 = vunpack.c.0.s8 %v1219
      %v1221 = vlaneseq
      %v1222 = vshrl.u32 %v1221, 7
      %v1223 = vsub.s32 %v1220, %v1222
      %v1224 = vrot.slane %v1210, %v1223
      %v1225 = vcombine.low %v1217, %v1224
      %v1226 = vcombine.low %v804, %v803
      %v1227 = vcombine.low %v812, %v820
      %v1229 = vunpack.c.l.s4 1983009808
      %v1230 = vunpack.c.0.s8 %v1229
      %v1231 = vlaneseq
      %v1232 = vshrl.u32 %v1231, 7
      %v1233 = vsub.s32 %v1230, %v1232
      %v1234 = vrot.slane %v1226, %v1233
      %v1236 = vunpack.c.l.s4 1983009808
      %v1237 = vunpack.c.0.s8 %v1236
      %v1238 = vlaneseq
      %v1239 = vshrl.u32 %v1238, 7
      %v1240 = vsub.s32 %v1237, %v1239
      %v1241 = vrot.slane %v1227, %v1240
      %v1242 = vcombine.low %v1234, %v1241
      %v1243 = vcombine.low %v819, %v821
      %v1244 = vcombine.low %v829, %v837
      %v1246 = vunpack.c.l.s4 1983009808
      %v1247 = vunpack.c.0.s8 %v1246
      %v1248 = vlaneseq
      %v1249 = vshrl.u32 %v1248, 7
      %v1250 = vsub.s32 %v1247, %v1249
      %v1251 = vrot.slane %v1243, %v1250
      %v1253 = vunpack.c.l.s4 1983009808
      %v1254 = vunpack.c.0.s8 %v1253
      %v1255 = vlaneseq
      %v1256 = vshrl.u32 %v1255, 7
      %v1257 = vsub.s32 %v1254, %v1256
      %v1258 = vrot.slane %v1244, %v1257
      %v1259 = vcombine.low %v1251, %v1258
      %v1260 = vcombine.low %v836, %v845
      %v1261 = vcombine.low %v853, %v852
      %v1263 = vunpack.c.l.s4 1983009808
      %v1264 = vunpack.c.0.s8 %v1263
      %v1265 = vlaneseq
      %v1266 = vshrl.u32 %v1265, 7
      %v1267 = vsub.s32 %v1264, %v1266
      %v1268 = vrot.slane %v1260, %v1267
      %v1270 = vunpack.c.l.s4 1983009808
      %v1271 = vunpack.c.0.s8 %v1270
      %v1272 = vlaneseq
      %v1273 = vshrl.u32 %v1272, 7
      %v1274 = vsub.s32 %v1271, %v1273
      %v1275 = vrot.slane %v1261, %v1274
      %v1276 = vcombine.low %v1268, %v1275
      %v1277 = vcombine.low %v854, %v862
      %v1278 = vcombine.low %v870, %v869
      %v1280 = vunpack.c.l.s4 1983009808
      %v1281 = vunpack.c.0.s8 %v1280
      %v1282 = vlaneseq
      %v1283 = vshrl.u32 %v1282, 7
      %v1284 = vsub.s32 %v1281, %v1283
      %v1285 = vrot.slane %v1277, %v1284
      %v1287 = vunpack.c.l.s4 1983009808
      %v1288 = vunpack.c.0.s8 %v1287
      %v1289 = vlaneseq
      %v1290 = vshrl.u32 %v1289, 7
      %v1291 = vsub.s32 %v1288, %v1290
      %v1292 = vrot.slane %v1278, %v1291
      %v1293 = vcombine.low %v1285, %v1292
      %v1294 = vcombine.low %v878, %v886
      %v1295 = vcombine.low %v885, %v887
      %v1297 = vunpack.c.l.s4 1983009808
      %v1298 = vunpack.c.0.s8 %v1297
      %v1299 = vlaneseq
      %v1300 = vshrl.u32 %v1299, 7
      %v1301 = vsub.s32 %v1298, %v1300
      %v1302 = vrot.slane %v1294, %v1301
      %v1304 = vunpack.c.l.s4 1983009808
      %v1305 = vunpack.c.0.s8 %v1304
      %v1306 = vlaneseq
      %v1307 = vshrl.u32 %v1306, 7
      %v1308 = vsub.s32 %v1305, %v1307
      %v1309 = vrot.slane %v1295, %v1308
      %v1310 = vcombine.low %v1302, %v1309
      %v1311 = vcombine.low %v895, %v903
      %v1312 = vcombine.low %v902, %v911
      %v1314 = vunpack.c.l.s4 1983009808
      %v1315 = vunpack.c.0.s8 %v1314
      %v1316 = vlaneseq
      %v1317 = vshrl.u32 %v1316, 7
      %v1318 = vsub.s32 %v1315, %v1317
      %v1319 = vrot.slane %v1311, %v1318
      %v1321 = vunpack.c.l.s4 1983009808
      %v1322 = vunpack.c.0.s8 %v1321
      %v1323 = vlaneseq
      %v1324 = vshrl.u32 %v1323, 7
      %v1325 = vsub.s32 %v1322, %v1324
      %v1326 = vrot.slane %v1312, %v1325
      %v1327 = vcombine.low %v1319, %v1326
      %v1328 = vcombine.low %v919, %v918
      %v1329 = vcombine.low %v920, %v928
      %v1331 = vunpack.c.l.s4 1983009808
      %v1332 = vunpack.c.0.s8 %v1331
      %v1333 = vlaneseq
      %v1334 = vshrl.u32 %v1333, 7
      %v1335 = vsub.s32 %v1332, %v1334
      %v1336 = vrot.slane %v1328, %v1335
      %v1338 = vunpack.c.l.s4 1983009808
      %v1339 = vunpack.c.0.s8 %v1338
      %v1340 = vlaneseq
      %v1341 = vshrl.u32 %v1340, 7
      %v1342 = vsub.s32 %v1339, %v1341
      %v1343 = vrot.slane %v1329, %v1342
      %v1344 = vcombine.low %v1336, %v1343
      %v1345 = vcombine.low %v936, %v935
      %v1347 = vunpack.c.l.s4 1983009808
      %v1348 = vunpack.c.0.s8 %v1347
      %v1349 = vlaneseq
      %v1350 = vshrl.u32 %v1349, 7
      %v1351 = vsub.s32 %v1348, %v1350
      %v1352 = vrot.slane %v1345, %v1351
      %v1378 = vpack.c.bf16 %v970, %v953
      %v1379 = vpack.c.bf16 %v1004, %v987
      %v1380 = vpack.c.bf16 %v1038, %v1021
      %v1381 = vpack.c.bf16 %v1072, %v1055
      %v1382 = vpack.c.bf16 %v1106, %v1089
      %v1383 = vpack.c.bf16 %v1140, %v1123
      %v1384 = vpack.c.bf16 %v1174, %v1157
      %v1385 = vpack.c.bf16 %v1208, %v1191
      %v1386 = vpack.c.bf16 %v1242, %v1225
      %v1387 = vpack.c.bf16 %v1276, %v1259
      %v1388 = vpack.c.bf16 %v1310, %v1293
      %v1389 = vpack.c.bf16 %v1344, %v1327
      %v1390 = vpack.c.bf16 %v1352, %v1352
      %v1391 = vld [vmem:[%s1] sm:$0x3]
      %v1392 = vcombine.high %v506, %v506
      %v1393 = vcombine.high %v539, %v539
      %v1394 = vcombine.high %v572, %v572
      %v1395 = vcombine.high %v605, %v605
      %v1396 = vcombine.high %v638, %v638
      %v1397 = vcombine.high %v671, %v671
      %v1398 = vcombine.high %v704, %v704
      %v1399 = vcombine.high %v737, %v737
      %v1400 = vcombine.high %v770, %v770
      %v1401 = vcombine.high %v803, %v803
      %v1402 = vcombine.high %v836, %v836
      %v1403 = vcombine.high %v869, %v869
      %v1404 = vcombine.high %v902, %v902
      %v1405 = vcombine.high %v935, %v935
      %vm1406 = vcmask 1040384
      %vm1407 = vcmask 1042434
      %vm1408 = vmor %vm1406, %vm1407
      %vm1409 = vcmask 1044484
      %vm1410 = vmor %vm1408, %vm1409
      %vm1411 = vcmask 1046534
      %vm1412 = vmor %vm1410, %vm1411
      %v1413 = vrot.slane %v482, 7
      %v1414 = vrot.slane %v1413, 2
      %v1415 = vrot.slane %v490, 7
      %v1416 = vsel %vm1412, %v1414, %v1415
      %v1417 = vrot.slane %v1415, 2
      %v1418 = vrot.slane %v489, 7
      %v1419 = vsel %vm1412, %v1417, %v1418
      %v1420 = vrot.slane %v1418, 2
      %v1421 = vrot.slane %v491, 7
      %v1422 = vsel %vm1412, %v1420, %v1421
      %v1423 = vrot.slane %v1421, 2
      %v1424 = vrot.slane %v499, 7
      %v1425 = vsel %vm1412, %v1423, %v1424
      %v1426 = vrot.slane %v1424, 2
      %v1427 = vrot.slane %v507, 7
      %v1428 = vsel %vm1412, %v1426, %v1427
      %v1429 = vrot.slane %v1427, 2
      %v1430 = vrot.slane %v506, 7
      %v1431 = vsel %vm1412, %v1429, %v1430
      %v1432 = vrot.slane %v1430, 2
      %v1433 = vrot.slane %v1392, 7
      %v1434 = vsel %vm1412, %v1432, %v1433
      %v1435 = vrot.slane %v515, 7
      %v1436 = vrot.slane %v1435, 2
      %v1437 = vrot.slane %v523, 7
      %v1438 = vsel %vm1412, %v1436, %v1437
      %v1439 = vrot.slane %v1437, 2
      %v1440 = vrot.slane %v522, 7
      %v1441 = vsel %vm1412, %v1439, %v1440
      %v1442 = vrot.slane %v1440, 2
      %v1443 = vrot.slane %v524, 7
      %v1444 = vsel %vm1412, %v1442, %v1443
      %v1445 = vrot.slane %v1443, 2
      %v1446 = vrot.slane %v532, 7
      %v1447 = vsel %vm1412, %v1445, %v1446
      %v1448 = vrot.slane %v1446, 2
      %v1449 = vrot.slane %v540, 7
      %v1450 = vsel %vm1412, %v1448, %v1449
      %v1451 = vrot.slane %v1449, 2
      %v1452 = vrot.slane %v539, 7
      %v1453 = vsel %vm1412, %v1451, %v1452
      %v1454 = vrot.slane %v1452, 2
      %v1455 = vrot.slane %v1393, 7
      %v1456 = vsel %vm1412, %v1454, %v1455
      %v1457 = vrot.slane %v548, 7
      %v1458 = vrot.slane %v1457, 2
      %v1459 = vrot.slane %v556, 7
      %v1460 = vsel %vm1412, %v1458, %v1459
      %v1461 = vrot.slane %v1459, 2
      %v1462 = vrot.slane %v555, 7
      %v1463 = vsel %vm1412, %v1461, %v1462
      %v1464 = vrot.slane %v1462, 2
      %v1465 = vrot.slane %v557, 7
      %v1466 = vsel %vm1412, %v1464, %v1465
      %v1467 = vrot.slane %v1465, 2
      %v1468 = vrot.slane %v565, 7
      %v1469 = vsel %vm1412, %v1467, %v1468
      %v1470 = vrot.slane %v1468, 2
      %v1471 = vrot.slane %v573, 7
      %v1472 = vsel %vm1412, %v1470, %v1471
      %v1473 = vrot.slane %v1471, 2
      %v1474 = vrot.slane %v572, 7
      %v1475 = vsel %vm1412, %v1473, %v1474
      %v1476 = vrot.slane %v1474, 2
      %v1477 = vrot.slane %v1394, 7
      %v1478 = vsel %vm1412, %v1476, %v1477
      %v1479 = vrot.slane %v581, 7
      %v1480 = vrot.slane %v1479, 2
      %v1481 = vrot.slane %v589, 7
      %v1482 = vsel %vm1412, %v1480, %v1481
      %v1483 = vrot.slane %v1481, 2
      %v1484 = vrot.slane %v588, 7
      %v1485 = vsel %vm1412, %v1483, %v1484
      %v1486 = vrot.slane %v1484, 2
      %v1487 = vrot.slane %v590, 7
      %v1488 = vsel %vm1412, %v1486, %v1487
      %v1489 = vrot.slane %v1487, 2
      %v1490 = vrot.slane %v598, 7
      %v1491 = vsel %vm1412, %v1489, %v1490
      %v1492 = vrot.slane %v1490, 2
      %v1493 = vrot.slane %v606, 7
      %v1494 = vsel %vm1412, %v1492, %v1493
      %v1495 = vrot.slane %v1493, 2
      %v1496 = vrot.slane %v605, 7
      %v1497 = vsel %vm1412, %v1495, %v1496
      %v1498 = vrot.slane %v1496, 2
      %v1499 = vrot.slane %v1395, 7
      %v1500 = vsel %vm1412, %v1498, %v1499
      %v1501 = vrot.slane %v614, 7
      %v1502 = vrot.slane %v1501, 2
      %v1503 = vrot.slane %v622, 7
      %v1504 = vsel %vm1412, %v1502, %v1503
      %v1505 = vrot.slane %v1503, 2
      %v1506 = vrot.slane %v621, 7
      %v1507 = vsel %vm1412, %v1505, %v1506
      %v1508 = vrot.slane %v1506, 2
      %v1509 = vrot.slane %v623, 7
      %v1510 = vsel %vm1412, %v1508, %v1509
      %v1511 = vrot.slane %v1509, 2
      %v1512 = vrot.slane %v631, 7
      %v1513 = vsel %vm1412, %v1511, %v1512
      %v1514 = vrot.slane %v1512, 2
      %v1515 = vrot.slane %v639, 7
      %v1516 = vsel %vm1412, %v1514, %v1515
      %v1517 = vrot.slane %v1515, 2
      %v1518 = vrot.slane %v638, 7
      %v1519 = vsel %vm1412, %v1517, %v1518
      %v1520 = vrot.slane %v1518, 2
      %v1521 = vrot.slane %v1396, 7
      %v1522 = vsel %vm1412, %v1520, %v1521
      %v1523 = vrot.slane %v647, 7
      %v1524 = vrot.slane %v1523, 2
      %v1525 = vrot.slane %v655, 7
      %v1526 = vsel %vm1412, %v1524, %v1525
      %v1527 = vrot.slane %v1525, 2
      %v1528 = vrot.slane %v654, 7
      %v1529 = vsel %vm1412, %v1527, %v1528
      %v1530 = vrot.slane %v1528, 2
      %v1531 = vrot.slane %v656, 7
      %v1532 = vsel %vm1412, %v1530, %v1531
      %v1533 = vrot.slane %v1531, 2
      %v1534 = vrot.slane %v664, 7
      %v1535 = vsel %vm1412, %v1533, %v1534
      %v1536 = vrot.slane %v1534, 2
      %v1537 = vrot.slane %v672, 7
      %v1538 = vsel %vm1412, %v1536, %v1537
      %v1539 = vrot.slane %v1537, 2
      %v1540 = vrot.slane %v671, 7
      %v1541 = vsel %vm1412, %v1539, %v1540
      %v1542 = vrot.slane %v1540, 2
      %v1543 = vrot.slane %v1397, 7
      %v1544 = vsel %vm1412, %v1542, %v1543
      %v1545 = vrot.slane %v680, 7
      %v1546 = vrot.slane %v1545, 2
      %v1547 = vrot.slane %v688, 7
      %v1548 = vsel %vm1412, %v1546, %v1547
      %v1549 = vrot.slane %v1547, 2
      %v1550 = vrot.slane %v687, 7
      %v1551 = vsel %vm1412, %v1549, %v1550
      %v1552 = vrot.slane %v1550, 2
      %v1553 = vrot.slane %v689, 7
      %v1554 = vsel %vm1412, %v1552, %v1553
      %v1555 = vrot.slane %v1553, 2
      %v1556 = vrot.slane %v697, 7
      %v1557 = vsel %vm1412, %v1555, %v1556
      %v1558 = vrot.slane %v1556, 2
      %v1559 = vrot.slane %v705, 7
      %v1560 = vsel %vm1412, %v1558, %v1559
      %v1561 = vrot.slane %v1559, 2
      %v1562 = vrot.slane %v704, 7
      %v1563 = vsel %vm1412, %v1561, %v1562
      %v1564 = vrot.slane %v1562, 2
      %v1565 = vrot.slane %v1398, 7
      %v1566 = vsel %vm1412, %v1564, %v1565
      %v1567 = vrot.slane %v713, 7
      %v1568 = vrot.slane %v1567, 2
      %v1569 = vrot.slane %v721, 7
      %v1570 = vsel %vm1412, %v1568, %v1569
      %v1571 = vrot.slane %v1569, 2
      %v1572 = vrot.slane %v720, 7
      %v1573 = vsel %vm1412, %v1571, %v1572
      %v1574 = vrot.slane %v1572, 2
      %v1575 = vrot.slane %v722, 7
      %v1576 = vsel %vm1412, %v1574, %v1575
      %v1577 = vrot.slane %v1575, 2
      %v1578 = vrot.slane %v730, 7
      %v1579 = vsel %vm1412, %v1577, %v1578
      %v1580 = vrot.slane %v1578, 2
      %v1581 = vrot.slane %v738, 7
      %v1582 = vsel %vm1412, %v1580, %v1581
      %v1583 = vrot.slane %v1581, 2
      %v1584 = vrot.slane %v737, 7
      %v1585 = vsel %vm1412, %v1583, %v1584
      %v1586 = vrot.slane %v1584, 2
      %v1587 = vrot.slane %v1399, 7
      %v1588 = vsel %vm1412, %v1586, %v1587
      %v1589 = vrot.slane %v746, 7
      %v1590 = vrot.slane %v1589, 2
      %v1591 = vrot.slane %v754, 7
      %v1592 = vsel %vm1412, %v1590, %v1591
      %v1593 = vrot.slane %v1591, 2
      %v1594 = vrot.slane %v753, 7
      %v1595 = vsel %vm1412, %v1593, %v1594
      %v1596 = vrot.slane %v1594, 2
      %v1597 = vrot.slane %v755, 7
      %v1598 = vsel %vm1412, %v1596, %v1597
      %v1599 = vrot.slane %v1597, 2
      %v1600 = vrot.slane %v763, 7
      %v1601 = vsel %vm1412, %v1599, %v1600
      %v1602 = vrot.slane %v1600, 2
      %v1603 = vrot.slane %v771, 7
      %v1604 = vsel %vm1412, %v1602, %v1603
      %v1605 = vrot.slane %v1603, 2
      %v1606 = vrot.slane %v770, 7
      %v1607 = vsel %vm1412, %v1605, %v1606
      %v1608 = vrot.slane %v1606, 2
      %v1609 = vrot.slane %v1400, 7
      %v1610 = vsel %vm1412, %v1608, %v1609
      %v1611 = vrot.slane %v779, 7
      %v1612 = vrot.slane %v1611, 2
      %v1613 = vrot.slane %v787, 7
      %v1614 = vsel %vm1412, %v1612, %v1613
      %v1615 = vrot.slane %v1613, 2
      %v1616 = vrot.slane %v786, 7
      %v1617 = vsel %vm1412, %v1615, %v1616
      %v1618 = vrot.slane %v1616, 2
      %v1619 = vrot.slane %v788, 7
      %v1620 = vsel %vm1412, %v1618, %v1619
      %v1621 = vrot.slane %v1619, 2
      %v1622 = vrot.slane %v796, 7
      %v1623 = vsel %vm1412, %v1621, %v1622
      %v1624 = vrot.slane %v1622, 2
      %v1625 = vrot.slane %v804, 7
      %v1626 = vsel %vm1412, %v1624, %v1625
      %v1627 = vrot.slane %v1625, 2
      %v1628 = vrot.slane %v803, 7
      %v1629 = vsel %vm1412, %v1627, %v1628
      %v1630 = vrot.slane %v1628, 2
      %v1631 = vrot.slane %v1401, 7
      %v1632 = vsel %vm1412, %v1630, %v1631
      %v1633 = vrot.slane %v812, 7
      %v1634 = vrot.slane %v1633, 2
      %v1635 = vrot.slane %v820, 7
      %v1636 = vsel %vm1412, %v1634, %v1635
      %v1637 = vrot.slane %v1635, 2
      %v1638 = vrot.slane %v819, 7
      %v1639 = vsel %vm1412, %v1637, %v1638
      %v1640 = vrot.slane %v1638, 2
      %v1641 = vrot.slane %v821, 7
      %v1642 = vsel %vm1412, %v1640, %v1641
      %v1643 = vrot.slane %v1641, 2
      %v1644 = vrot.slane %v829, 7
      %v1645 = vsel %vm1412, %v1643, %v1644
      %v1646 = vrot.slane %v1644, 2
      %v1647 = vrot.slane %v837, 7
      %v1648 = vsel %vm1412, %v1646, %v1647
      %v1649 = vrot.slane %v1647, 2
      %v1650 = vrot.slane %v836, 7
      %v1651 = vsel %vm1412, %v1649, %v1650
      %v1652 = vrot.slane %v1650, 2
      %v1653 = vrot.slane %v1402, 7
      %v1654 = vsel %vm1412, %v1652, %v1653
      %v1655 = vrot.slane %v845, 7
      %v1656 = vrot.slane %v1655, 2
      %v1657 = vrot.slane %v853, 7
      %v1658 = vsel %vm1412, %v1656, %v1657
      %v1659 = vrot.slane %v1657, 2
      %v1660 = vrot.slane %v852, 7
      %v1661 = vsel %vm1412, %v1659, %v1660
      %v1662 = vrot.slane %v1660, 2
      %v1663 = vrot.slane %v854, 7
      %v1664 = vsel %vm1412, %v1662, %v1663
      %v1665 = vrot.slane %v1663, 2
      %v1666 = vrot.slane %v862, 7
      %v1667 = vsel %vm1412, %v1665, %v1666
      %v1668 = vrot.slane %v1666, 2
      %v1669 = vrot.slane %v870, 7
      %v1670 = vsel %vm1412, %v1668, %v1669
      %v1671 = vrot.slane %v1669, 2
      %v1672 = vrot.slane %v869, 7
      %v1673 = vsel %vm1412, %v1671, %v1672
      %v1674 = vrot.slane %v1672, 2
      %v1675 = vrot.slane %v1403, 7
      %v1676 = vsel %vm1412, %v1674, %v1675
      %v1677 = vrot.slane %v878, 7
      %v1678 = vrot.slane %v1677, 2
      %v1679 = vrot.slane %v886, 7
      %v1680 = vsel %vm1412, %v1678, %v1679
      %v1681 = vrot.slane %v1679, 2
      %v1682 = vrot.slane %v885, 7
      %v1683 = vsel %vm1412, %v1681, %v1682
      %v1684 = vrot.slane %v1682, 2
      %v1685 = vrot.slane %v887, 7
      %v1686 = vsel %vm1412, %v1684, %v1685
      %v1687 = vrot.slane %v1685, 2
      %v1688 = vrot.slane %v895, 7
      %v1689 = vsel %vm1412, %v1687, %v1688
      %v1690 = vrot.slane %v1688, 2
      %v1691 = vrot.slane %v903, 7
      %v1692 = vsel %vm1412, %v1690, %v1691
      %v1693 = vrot.slane %v1691, 2
      %v1694 = vrot.slane %v902, 7
      %v1695 = vsel %vm1412, %v1693, %v1694
      %v1696 = vrot.slane %v1694, 2
      %v1697 = vrot.slane %v1404, 7
      %v1698 = vsel %vm1412, %v1696, %v1697
      %v1699 = vrot.slane %v911, 7
      %v1700 = vrot.slane %v1699, 2
      %v1701 = vrot.slane %v919, 7
      %v1702 = vsel %vm1412, %v1700, %v1701
      %v1703 = vrot.slane %v1701, 2
      %v1704 = vrot.slane %v918, 7
      %v1705 = vsel %vm1412, %v1703, %v1704
      %v1706 = vrot.slane %v1704, 2
      %v1707 = vrot.slane %v920, 7
      %v1708 = vsel %vm1412, %v1706, %v1707
      %v1709 = vrot.slane %v1707, 2
      %v1710 = vrot.slane %v928, 7
      %v1711 = vsel %vm1412, %v1709, %v1710
      %v1712 = vrot.slane %v1710, 2
      %v1713 = vrot.slane %v936, 7
      %v1714 = vsel %vm1412, %v1712, %v1713
      %v1715 = vrot.slane %v1713, 2
      %v1716 = vrot.slane %v935, 7
      %v1717 = vsel %vm1412, %v1715, %v1716
      %v1718 = vrot.slane %v1716, 2
      %v1719 = vrot.slane %v1405, 7
      %v1720 = vsel %vm1412, %v1718, %v1719
      %v1721 = vcombine.low %v1416, %v1419
      %v1722 = vcombine.low %v1422, %v1425
      %v1724 = vunpack.c.l.s4 1983009808
      %v1725 = vunpack.c.0.s8 %v1724
      %v1726 = vlaneseq
      %v1727 = vshrl.u32 %v1726, 7
      %v1728 = vsub.s32 %v1725, %v1727
      %v1729 = vrot.slane %v1721, %v1728
      %v1731 = vunpack.c.l.s4 1983009808
      %v1732 = vunpack.c.0.s8 %v1731
      %v1733 = vlaneseq
      %v1734 = vshrl.u32 %v1733, 7
      %v1735 = vsub.s32 %v1732, %v1734
      %v1736 = vrot.slane %v1722, %v1735
      %v1737 = vcombine.low %v1729, %v1736
      %v1738 = vcombine.low %v1428, %v1431
      %v1739 = vcombine.low %v1434, %v1438
      %v1741 = vunpack.c.l.s4 1983009808
      %v1742 = vunpack.c.0.s8 %v1741
      %v1743 = vlaneseq
      %v1744 = vshrl.u32 %v1743, 7
      %v1745 = vsub.s32 %v1742, %v1744
      %v1746 = vrot.slane %v1738, %v1745
      %v1748 = vunpack.c.l.s4 1983009808
      %v1749 = vunpack.c.0.s8 %v1748
      %v1750 = vlaneseq
      %v1751 = vshrl.u32 %v1750, 7
      %v1752 = vsub.s32 %v1749, %v1751
      %v1753 = vrot.slane %v1739, %v1752
      %v1754 = vcombine.low %v1746, %v1753
      %v1755 = vcombine.low %v1441, %v1444
      %v1756 = vcombine.low %v1447, %v1450
      %v1758 = vunpack.c.l.s4 1983009808
      %v1759 = vunpack.c.0.s8 %v1758
      %v1760 = vlaneseq
      %v1761 = vshrl.u32 %v1760, 7
      %v1762 = vsub.s32 %v1759, %v1761
      %v1763 = vrot.slane %v1755, %v1762
      %v1765 = vunpack.c.l.s4 1983009808
      %v1766 = vunpack.c.0.s8 %v1765
      %v1767 = vlaneseq
      %v1768 = vshrl.u32 %v1767, 7
      %v1769 = vsub.s32 %v1766, %v1768
      %v1770 = vrot.slane %v1756, %v1769
      %v1771 = vcombine.low %v1763, %v1770
      %v1772 = vcombine.low %v1453, %v1456
      %v1773 = vcombine.low %v1460, %v1463
      %v1775 = vunpack.c.l.s4 1983009808
      %v1776 = vunpack.c.0.s8 %v1775
      %v1777 = vlaneseq
      %v1778 = vshrl.u32 %v1777, 7
      %v1779 = vsub.s32 %v1776, %v1778
      %v1780 = vrot.slane %v1772, %v1779
      %v1782 = vunpack.c.l.s4 1983009808
      %v1783 = vunpack.c.0.s8 %v1782
      %v1784 = vlaneseq
      %v1785 = vshrl.u32 %v1784, 7
      %v1786 = vsub.s32 %v1783, %v1785
      %v1787 = vrot.slane %v1773, %v1786
      %v1788 = vcombine.low %v1780, %v1787
      %v1789 = vcombine.low %v1466, %v1469
      %v1790 = vcombine.low %v1472, %v1475
      %v1792 = vunpack.c.l.s4 1983009808
      %v1793 = vunpack.c.0.s8 %v1792
      %v1794 = vlaneseq
      %v1795 = vshrl.u32 %v1794, 7
      %v1796 = vsub.s32 %v1793, %v1795
      %v1797 = vrot.slane %v1789, %v1796
      %v1799 = vunpack.c.l.s4 1983009808
      %v1800 = vunpack.c.0.s8 %v1799
      %v1801 = vlaneseq
      %v1802 = vshrl.u32 %v1801, 7
      %v1803 = vsub.s32 %v1800, %v1802
      %v1804 = vrot.slane %v1790, %v1803
      %v1805 = vcombine.low %v1797, %v1804
      %v1806 = vcombine.low %v1478, %v1482
      %v1807 = vcombine.low %v1485, %v1488
      %v1809 = vunpack.c.l.s4 1983009808
      %v1810 = vunpack.c.0.s8 %v1809
      %v1811 = vlaneseq
      %v1812 = vshrl.u32 %v1811, 7
      %v1813 = vsub.s32 %v1810, %v1812
      %v1814 = vrot.slane %v1806, %v1813
      %v1816 = vunpack.c.l.s4 1983009808
      %v1817 = vunpack.c.0.s8 %v1816
      %v1818 = vlaneseq
      %v1819 = vshrl.u32 %v1818, 7
      %v1820 = vsub.s32 %v1817, %v1819
      %v1821 = vrot.slane %v1807, %v1820
      %v1822 = vcombine.low %v1814, %v1821
      %v1823 = vcombine.low %v1491, %v1494
      %v1824 = vcombine.low %v1497, %v1500
      %v1826 = vunpack.c.l.s4 1983009808
      %v1827 = vunpack.c.0.s8 %v1826
      %v1828 = vlaneseq
      %v1829 = vshrl.u32 %v1828, 7
      %v1830 = vsub.s32 %v1827, %v1829
      %v1831 = vrot.slane %v1823, %v1830
      %v1833 = vunpack.c.l.s4 1983009808
      %v1834 = vunpack.c.0.s8 %v1833
      %v1835 = vlaneseq
      %v1836 = vshrl.u32 %v1835, 7
      %v1837 = vsub.s32 %v1834, %v1836
      %v1838 = vrot.slane %v1824, %v1837
      %v1839 = vcombine.low %v1831, %v1838
      %v1840 = vcombine.low %v1504, %v1507
      %v1841 = vcombine.low %v1510, %v1513
      %v1843 = vunpack.c.l.s4 1983009808
      %v1844 = vunpack.c.0.s8 %v1843
      %v1845 = vlaneseq
      %v1846 = vshrl.u32 %v1845, 7
      %v1847 = vsub.s32 %v1844, %v1846
      %v1848 = vrot.slane %v1840, %v1847
      %v1850 = vunpack.c.l.s4 1983009808
      %v1851 = vunpack.c.0.s8 %v1850
      %v1852 = vlaneseq
      %v1853 = vshrl.u32 %v1852, 7
      %v1854 = vsub.s32 %v1851, %v1853
      %v1855 = vrot.slane %v1841, %v1854
      %v1856 = vcombine.low %v1848, %v1855
      %v1857 = vcombine.low %v1516, %v1519
      %v1858 = vcombine.low %v1522, %v1526
      %v1860 = vunpack.c.l.s4 1983009808
      %v1861 = vunpack.c.0.s8 %v1860
      %v1862 = vlaneseq
      %v1863 = vshrl.u32 %v1862, 7
      %v1864 = vsub.s32 %v1861, %v1863
      %v1865 = vrot.slane %v1857, %v1864
      %v1867 = vunpack.c.l.s4 1983009808
      %v1868 = vunpack.c.0.s8 %v1867
      %v1869 = vlaneseq
      %v1870 = vshrl.u32 %v1869, 7
      %v1871 = vsub.s32 %v1868, %v1870
      %v1872 = vrot.slane %v1858, %v1871
      %v1873 = vcombine.low %v1865, %v1872
      %v1874 = vcombine.low %v1529, %v1532
      %v1875 = vcombine.low %v1535, %v1538
      %v1877 = vunpack.c.l.s4 1983009808
      %v1878 = vunpack.c.0.s8 %v1877
      %v1879 = vlaneseq
      %v1880 = vshrl.u32 %v1879, 7
      %v1881 = vsub.s32 %v1878, %v1880
      %v1882 = vrot.slane %v1874, %v1881
      %v1884 = vunpack.c.l.s4 1983009808
      %v1885 = vunpack.c.0.s8 %v1884
      %v1886 = vlaneseq
      %v1887 = vshrl.u32 %v1886, 7
      %v1888 = vsub.s32 %v1885, %v1887
      %v1889 = vrot.slane %v1875, %v1888
      %v1890 = vcombine.low %v1882, %v1889
      %v1891 = vcombine.low %v1541, %v1544
      %v1892 = vcombine.low %v1548, %v1551
      %v1894 = vunpack.c.l.s4 1983009808
      %v1895 = vunpack.c.0.s8 %v1894
      %v1896 = vlaneseq
      %v1897 = vshrl.u32 %v1896, 7
      %v1898 = vsub.s32 %v1895, %v1897
      %v1899 = vrot.slane %v1891, %v1898
      %v1901 = vunpack.c.l.s4 1983009808
      %v1902 = vunpack.c.0.s8 %v1901
      %v1903 = vlaneseq
      %v1904 = vshrl.u32 %v1903, 7
      %v1905 = vsub.s32 %v1902, %v1904
      %v1906 = vrot.slane %v1892, %v1905
      %v1907 = vcombine.low %v1899, %v1906
      %v1908 = vcombine.low %v1554, %v1557
      %v1909 = vcombine.low %v1560, %v1563
      %v1911 = vunpack.c.l.s4 1983009808
      %v1912 = vunpack.c.0.s8 %v1911
      %v1913 = vlaneseq
      %v1914 = vshrl.u32 %v1913, 7
      %v1915 = vsub.s32 %v1912, %v1914
      %v1916 = vrot.slane %v1908, %v1915
      %v1918 = vunpack.c.l.s4 1983009808
      %v1919 = vunpack.c.0.s8 %v1918
      %v1920 = vlaneseq
      %v1921 = vshrl.u32 %v1920, 7
      %v1922 = vsub.s32 %v1919, %v1921
      %v1923 = vrot.slane %v1909, %v1922
      %v1924 = vcombine.low %v1916, %v1923
      %v1925 = vcombine.low %v1566, %v1570
      %v1926 = vcombine.low %v1573, %v1576
      %v1928 = vunpack.c.l.s4 1983009808
      %v1929 = vunpack.c.0.s8 %v1928
      %v1930 = vlaneseq
      %v1931 = vshrl.u32 %v1930, 7
      %v1932 = vsub.s32 %v1929, %v1931
      %v1933 = vrot.slane %v1925, %v1932
      %v1935 = vunpack.c.l.s4 1983009808
      %v1936 = vunpack.c.0.s8 %v1935
      %v1937 = vlaneseq
      %v1938 = vshrl.u32 %v1937, 7
      %v1939 = vsub.s32 %v1936, %v1938
      %v1940 = vrot.slane %v1926, %v1939
      %v1941 = vcombine.low %v1933, %v1940
      %v1942 = vcombine.low %v1579, %v1582
      %v1943 = vcombine.low %v1585, %v1588
      %v1945 = vunpack.c.l.s4 1983009808
      %v1946 = vunpack.c.0.s8 %v1945
      %v1947 = vlaneseq
      %v1948 = vshrl.u32 %v1947, 7
      %v1949 = vsub.s32 %v1946, %v1948
      %v1950 = vrot.slane %v1942, %v1949
      %v1952 = vunpack.c.l.s4 1983009808
      %v1953 = vunpack.c.0.s8 %v1952
      %v1954 = vlaneseq
      %v1955 = vshrl.u32 %v1954, 7
      %v1956 = vsub.s32 %v1953, %v1955
      %v1957 = vrot.slane %v1943, %v1956
      %v1958 = vcombine.low %v1950, %v1957
      %v1959 = vcombine.low %v1592, %v1595
      %v1960 = vcombine.low %v1598, %v1601
      %v1962 = vunpack.c.l.s4 1983009808
      %v1963 = vunpack.c.0.s8 %v1962
      %v1964 = vlaneseq
      %v1965 = vshrl.u32 %v1964, 7
      %v1966 = vsub.s32 %v1963, %v1965
      %v1967 = vrot.slane %v1959, %v1966
      %v1969 = vunpack.c.l.s4 1983009808
      %v1970 = vunpack.c.0.s8 %v1969
      %v1971 = vlaneseq
      %v1972 = vshrl.u32 %v1971, 7
      %v1973 = vsub.s32 %v1970, %v1972
      %v1974 = vrot.slane %v1960, %v1973
      %v1975 = vcombine.low %v1967, %v1974
      %v1976 = vcombine.low %v1604, %v1607
      %v1977 = vcombine.low %v1610, %v1614
      %v1979 = vunpack.c.l.s4 1983009808
      %v1980 = vunpack.c.0.s8 %v1979
      %v1981 = vlaneseq
      %v1982 = vshrl.u32 %v1981, 7
      %v1983 = vsub.s32 %v1980, %v1982
      %v1984 = vrot.slane %v1976, %v1983
      %v1986 = vunpack.c.l.s4 1983009808
      %v1987 = vunpack.c.0.s8 %v1986
      %v1988 = vlaneseq
      %v1989 = vshrl.u32 %v1988, 7
      %v1990 = vsub.s32 %v1987, %v1989
      %v1991 = vrot.slane %v1977, %v1990
      %v1992 = vcombine.low %v1984, %v1991
      %v1993 = vcombine.low %v1617, %v1620
      %v1994 = vcombine.low %v1623, %v1626
      %v1996 = vunpack.c.l.s4 1983009808
      %v1997 = vunpack.c.0.s8 %v1996
      %v1998 = vlaneseq
      %v1999 = vshrl.u32 %v1998, 7
      %v2000 = vsub.s32 %v1997, %v1999
      %v2001 = vrot.slane %v1993, %v2000
      %v2003 = vunpack.c.l.s4 1983009808
      %v2004 = vunpack.c.0.s8 %v2003
      %v2005 = vlaneseq
      %v2006 = vshrl.u32 %v2005, 7
      %v2007 = vsub.s32 %v2004, %v2006
      %v2008 = vrot.slane %v1994, %v2007
      %v2009 = vcombine.low %v2001, %v2008
      %v2010 = vcombine.low %v1629, %v1632
      %v2011 = vcombine.low %v1636, %v1639
      %v2013 = vunpack.c.l.s4 1983009808
      %v2014 = vunpack.c.0.s8 %v2013
      %v2015 = vlaneseq
      %v2016 = vshrl.u32 %v2015, 7
      %v2017 = vsub.s32 %v2014, %v2016
      %v2018 = vrot.slane %v2010, %v2017
      %v2020 = vunpack.c.l.s4 1983009808
      %v2021 = vunpack.c.0.s8 %v2020
      %v2022 = vlaneseq
      %v2023 = vshrl.u32 %v2022, 7
      %v2024 = vsub.s32 %v2021, %v2023
      %v2025 = vrot.slane %v2011, %v2024
      %v2026 = vcombine.low %v2018, %v2025
      %v2027 = vcombine.low %v1642, %v1645
      %v2028 = vcombine.low %v1648, %v1651
      %v2030 = vunpack.c.l.s4 1983009808
      %v2031 = vunpack.c.0.s8 %v2030
      %v2032 = vlaneseq
      %v2033 = vshrl.u32 %v2032, 7
      %v2034 = vsub.s32 %v2031, %v2033
      %v2035 = vrot.slane %v2027, %v2034
      %v2037 = vunpack.c.l.s4 1983009808
      %v2038 = vunpack.c.0.s8 %v2037
      %v2039 = vlaneseq
      %v2040 = vshrl.u32 %v2039, 7
      %v2041 = vsub.s32 %v2038, %v2040
      %v2042 = vrot.slane %v2028, %v2041
      %v2043 = vcombine.low %v2035, %v2042
      %v2044 = vcombine.low %v1654, %v1658
      %v2045 = vcombine.low %v1661, %v1664
      %v2047 = vunpack.c.l.s4 1983009808
      %v2048 = vunpack.c.0.s8 %v2047
      %v2049 = vlaneseq
      %v2050 = vshrl.u32 %v2049, 7
      %v2051 = vsub.s32 %v2048, %v2050
      %v2052 = vrot.slane %v2044, %v2051
      %v2054 = vunpack.c.l.s4 1983009808
      %v2055 = vunpack.c.0.s8 %v2054
      %v2056 = vlaneseq
      %v2057 = vshrl.u32 %v2056, 7
      %v2058 = vsub.s32 %v2055, %v2057
      %v2059 = vrot.slane %v2045, %v2058
      %v2060 = vcombine.low %v2052, %v2059
      %v2061 = vcombine.low %v1667, %v1670
      %v2062 = vcombine.low %v1673, %v1676
      %v2064 = vunpack.c.l.s4 1983009808
      %v2065 = vunpack.c.0.s8 %v2064
      %v2066 = vlaneseq
      %v2067 = vshrl.u32 %v2066, 7
      %v2068 = vsub.s32 %v2065, %v2067
      %v2069 = vrot.slane %v2061, %v2068
      %v2071 = vunpack.c.l.s4 1983009808
      %v2072 = vunpack.c.0.s8 %v2071
      %v2073 = vlaneseq
      %v2074 = vshrl.u32 %v2073, 7
      %v2075 = vsub.s32 %v2072, %v2074
      %v2076 = vrot.slane %v2062, %v2075
      %v2077 = vcombine.low %v2069, %v2076
      %v2078 = vcombine.low %v1680, %v1683
      %v2079 = vcombine.low %v1686, %v1689
      %v2081 = vunpack.c.l.s4 1983009808
      %v2082 = vunpack.c.0.s8 %v2081
      %v2083 = vlaneseq
      %v2084 = vshrl.u32 %v2083, 7
      %v2085 = vsub.s32 %v2082, %v2084
      %v2086 = vrot.slane %v2078, %v2085
      %v2088 = vunpack.c.l.s4 1983009808
      %v2089 = vunpack.c.0.s8 %v2088
      %v2090 = vlaneseq
      %v2091 = vshrl.u32 %v2090, 7
      %v2092 = vsub.s32 %v2089, %v2091
      %v2093 = vrot.slane %v2079, %v2092
      %v2094 = vcombine.low %v2086, %v2093
      %v2095 = vcombine.low %v1692, %v1695
      %v2096 = vcombine.low %v1698, %v1702
      %v2098 = vunpack.c.l.s4 1983009808
      %v2099 = vunpack.c.0.s8 %v2098
      %v2100 = vlaneseq
      %v2101 = vshrl.u32 %v2100, 7
      %v2102 = vsub.s32 %v2099, %v2101
      %v2103 = vrot.slane %v2095, %v2102
      %v2105 = vunpack.c.l.s4 1983009808
      %v2106 = vunpack.c.0.s8 %v2105
      %v2107 = vlaneseq
      %v2108 = vshrl.u32 %v2107, 7
      %v2109 = vsub.s32 %v2106, %v2108
      %v2110 = vrot.slane %v2096, %v2109
      %v2111 = vcombine.low %v2103, %v2110
      %v2112 = vcombine.low %v1705, %v1708
      %v2113 = vcombine.low %v1711, %v1714
      %v2115 = vunpack.c.l.s4 1983009808
      %v2116 = vunpack.c.0.s8 %v2115
      %v2117 = vlaneseq
      %v2118 = vshrl.u32 %v2117, 7
      %v2119 = vsub.s32 %v2116, %v2118
      %v2120 = vrot.slane %v2112, %v2119
      %v2122 = vunpack.c.l.s4 1983009808
      %v2123 = vunpack.c.0.s8 %v2122
      %v2124 = vlaneseq
      %v2125 = vshrl.u32 %v2124, 7
      %v2126 = vsub.s32 %v2123, %v2125
      %v2127 = vrot.slane %v2113, %v2126
      %v2128 = vcombine.low %v2120, %v2127
      %v2129 = vcombine.low %v1717, %v1720
      %v2131 = vunpack.c.l.s4 1983009808
      %v2132 = vunpack.c.0.s8 %v2131
      %v2133 = vlaneseq
      %v2134 = vshrl.u32 %v2133, 7
      %v2135 = vsub.s32 %v2132, %v2134
      %v2136 = vrot.slane %v2129, %v2135
      %v2162 = vpack.c.bf16 %v1754, %v1737
      %v2163 = vpack.c.bf16 %v1788, %v1771
      %v2164 = vpack.c.bf16 %v1822, %v1805
      %v2165 = vpack.c.bf16 %v1856, %v1839
      %v2166 = vpack.c.bf16 %v1890, %v1873
      %v2167 = vpack.c.bf16 %v1924, %v1907
      %v2168 = vpack.c.bf16 %v1958, %v1941
      %v2169 = vpack.c.bf16 %v1992, %v1975
      %v2170 = vpack.c.bf16 %v2026, %v2009
      %v2171 = vpack.c.bf16 %v2060, %v2043
      %v2172 = vpack.c.bf16 %v2094, %v2077
      %v2173 = vpack.c.bf16 %v2128, %v2111
      %v2174 = vpack.c.bf16 %v2136, %v2136
      %s2175 = scalar_lea.vmem %s1, 2
      %v2176 = vld [vmem:[%s2175] sm:$0x3]
      %vm2177 = vcmask 31744
      %v2179 = vsel %vm2177, %v2162, 0
      %v2182 = vsel %vm2177, %v2163, 0
      %v2185 = vsel %vm2177, %v2164, 0
      %v2188 = vsel %vm2177, %v2165, 0
      %v2191 = vsel %vm2177, %v2166, 0
      %v2194 = vsel %vm2177, %v2167, 0
      %v2197 = vsel %vm2177, %v2168, 0
      %v2200 = vsel %vm2177, %v2169, 0
      %v2203 = vsel %vm2177, %v2170, 0
      %v2206 = vsel %vm2177, %v2171, 0
      %v2209 = vsel %vm2177, %v2172, 0
      %v2212 = vsel %vm2177, %v2173, 0
      %v2215 = vsel %vm2177, %v2174, 0
      %vm2217 = vcmask 1041408
      %v2219 = vsel %vm2217, %v2176, 0
      %2221 = vmatprep.subr.bf16.mxu0 0
      %2222 = vmatpush1.bf16.msra.mxu0 0
      %2223 = vmatprep.subr.bf16.mxu0 0
      %2224 = vmatpush1.bf16.msra.mxu0 0
      %2225 = vmatprep.subr.bf16.mxu0 0
      %2226 = vmatpush1.bf16.msra.mxu0 0
      %2227 = vmatprep.subr.bf16.mxu0 0
      %2228 = vmatpush1.bf16.msra.mxu0 0
      %2229 = vmatprep.subr.bf16.mxu0 0
      %2230 = vmatpush1.bf16.msra.mxu0 0
      %2231 = vmatprep.subr.bf16.mxu0 0
      %2232 = vmatpush1.bf16.msra.mxu0 0
      %2233 = vmatprep.subr.bf16.mxu0 0
      %2234 = vmatpush1.bf16.msra.mxu0 0
      %2235 = vmatprep.subr.bf16.mxu0 0
      %2236 = vmatpush1.bf16.msra.mxu0 %v2219
      %2237 = vmatprep.subr.bf16.mxu0 0
      %2238 = vmatpush2.bf16.msra.mxu0 0
      %2239 = vmatprep.subr.bf16.mxu0 0
      %2240 = vmatpush2.bf16.msra.mxu0 0
      %2241 = vmatprep.subr.bf16.mxu0 0
      %2242 = vmatpush2.bf16.msra.mxu0 0
      %2243 = vmatprep.subr.bf16.mxu0 0
      %2244 = vmatpush2.bf16.msra.mxu0 0
      %2245 = vmatprep.subr.bf16.mxu0 0
      %2246 = vmatpush2.bf16.msra.mxu0 0
      %2247 = vmatprep.subr.bf16.mxu0 0
      %2248 = vmatpush2.bf16.msra.mxu0 0
      %2249 = vmatprep.subr.bf16.mxu0 0
      %2250 = vmatpush2.bf16.msra.mxu0 0
      %2251 = vmatprep.subr.bf16.mxu0 0
      %2252 = vmatpush2.bf16.msra.mxu0 0
      %2253 = vmatprep.mubr.bf16.mxu0 0
      %2254 = vmatmul.mubr.bf16.gmra.mxu0 %v2179
      %v2255 = vpop.f32.mrf.mxu0
      %v2256 = vadd.f32 0.0, %v2255
      %v2257 = vpop.f32.mrf.mxu0
      %v2258 = vpop.f32.mrf.mxu0
      %v2259 = vadd.f32 0.0, %v2258
      %v2260 = vpop.f32.mrf.mxu0
      %2261 = vmatprep.mubr.bf16.mxu0 0
      %2262 = vmatmul.mubr.bf16.gmra.mxu0 %v2182
      %v2263 = vpop.f32.mrf.mxu0
      %v2264 = vadd.f32 0.0, %v2263
      %v2265 = vpop.f32.mrf.mxu0
      %v2266 = vpop.f32.mrf.mxu0
      %v2267 = vadd.f32 0.0, %v2266
      %v2268 = vpop.f32.mrf.mxu0
      %2269 = vmatprep.mubr.bf16.mxu0 0
      %2270 = vmatmul.mubr.bf16.gmra.mxu0 %v2185
      %v2271 = vpop.f32.mrf.mxu0
      %v2272 = vadd.f32 0.0, %v2271
      %v2273 = vpop.f32.mrf.mxu0
      %v2274 = vpop.f32.mrf.mxu0
      %v2275 = vadd.f32 0.0, %v2274
      %v2276 = vpop.f32.mrf.mxu0
      %2277 = vmatprep.mubr.bf16.mxu0 0
      %2278 = vmatmul.mubr.bf16.gmra.mxu0 %v2188
      %v2279 = vpop.f32.mrf.mxu0
      %v2280 = vadd.f32 0.0, %v2279
      %v2281 = vpop.f32.mrf.mxu0
      %v2282 = vpop.f32.mrf.mxu0
      %v2283 = vadd.f32 0.0, %v2282
      %v2284 = vpop.f32.mrf.mxu0
      %2285 = vmatprep.mubr.bf16.mxu0 0
      %2286 = vmatmul.mubr.bf16.gmra.mxu0 %v2191
      %v2287 = vpop.f32.mrf.mxu0
      %v2288 = vadd.f32 0.0, %v2287
      %v2289 = vpop.f32.mrf.mxu0
      %v2290 = vpop.f32.mrf.mxu0
      %v2291 = vadd.f32 0.0, %v2290
      %v2292 = vpop.f32.mrf.mxu0
      %2293 = vmatprep.mubr.bf16.mxu0 0
      %2294 = vmatmul.mubr.bf16.gmra.mxu0 %v2194
      %v2295 = vpop.f32.mrf.mxu0
      %v2296 = vadd.f32 0.0, %v2295
      %v2297 = vpop.f32.mrf.mxu0
      %v2298 = vpop.f32.mrf.mxu0
      %v2299 = vadd.f32 0.0, %v2298
      %v2300 = vpop.f32.mrf.mxu0
      %2301 = vmatprep.mubr.bf16.mxu0 0
      %2302 = vmatmul.mubr.bf16.gmra.mxu0 %v2197
      %v2303 = vpop.f32.mrf.mxu0
      %v2304 = vadd.f32 0.0, %v2303
      %v2305 = vpop.f32.mrf.mxu0
      %v2306 = vpop.f32.mrf.mxu0
      %v2307 = vadd.f32 0.0, %v2306
      %v2308 = vpop.f32.mrf.mxu0
      %2309 = vmatprep.mubr.bf16.mxu0 0
      %2310 = vmatmul.mubr.bf16.gmra.mxu0 %v2200
      %v2311 = vpop.f32.mrf.mxu0
      %v2312 = vadd.f32 0.0, %v2311
      %v2313 = vpop.f32.mrf.mxu0
      %v2314 = vpop.f32.mrf.mxu0
      %v2315 = vadd.f32 0.0, %v2314
      %v2316 = vpop.f32.mrf.mxu0
      %2317 = vmatprep.mubr.bf16.mxu0 0
      %2318 = vmatmul.mubr.bf16.gmra.mxu0 %v2203
      %v2319 = vpop.f32.mrf.mxu0
      %v2320 = vadd.f32 0.0, %v2319
      %v2321 = vpop.f32.mrf.mxu0
      %v2322 = vpop.f32.mrf.mxu0
      %v2323 = vadd.f32 0.0, %v2322
      %v2324 = vpop.f32.mrf.mxu0
      %2325 = vmatprep.mubr.bf16.mxu0 0
      %2326 = vmatmul.mubr.bf16.gmra.mxu0 %v2206
      %v2327 = vpop.f32.mrf.mxu0
      %v2328 = vadd.f32 0.0, %v2327
      %v2329 = vpop.f32.mrf.mxu0
      %v2330 = vpop.f32.mrf.mxu0
      %v2331 = vadd.f32 0.0, %v2330
      %v2332 = vpop.f32.mrf.mxu0
      %2333 = vmatprep.mubr.bf16.mxu0 0
      %2334 = vmatmul.mubr.bf16.gmra.mxu0 %v2209
      %v2335 = vpop.f32.mrf.mxu0
      %v2336 = vadd.f32 0.0, %v2335
      %v2337 = vpop.f32.mrf.mxu0
      %v2338 = vpop.f32.mrf.mxu0
      %v2339 = vadd.f32 0.0, %v2338
      %v2340 = vpop.f32.mrf.mxu0
      %2341 = vmatprep.mubr.bf16.mxu0 0
      %2342 = vmatmul.mubr.bf16.gmra.mxu0 %v2212
      %v2343 = vpop.f32.mrf.mxu0
      %v2344 = vadd.f32 0.0, %v2343
      %v2345 = vpop.f32.mrf.mxu0
      %v2346 = vpop.f32.mrf.mxu0
      %v2347 = vadd.f32 0.0, %v2346
      %v2348 = vpop.f32.mrf.mxu0
      %2349 = vmatprep.mubr.bf16.mxu0 0
      %2350 = vmatmul.mubr.bf16.gmra.mxu0 %v2215
      %v2351 = vpop.f32.mrf.mxu0
      %v2352 = vadd.f32 0.0, %v2351
      %v2353 = vpop.f32.mrf.mxu0
      %v2354 = vpop.f32.mrf.mxu0
      %v2355 = vpop.f32.mrf.mxu0
      %2356 = vdwg.mxu0
      %v2358 = vsel %vm2177, %v1378, 0
      %v2361 = vsel %vm2177, %v1379, 0
      %v2364 = vsel %vm2177, %v1380, 0
      %v2367 = vsel %vm2177, %v1381, 0
      %v2370 = vsel %vm2177, %v1382, 0
      %v2373 = vsel %vm2177, %v1383, 0
      %v2376 = vsel %vm2177, %v1384, 0
      %v2379 = vsel %vm2177, %v1385, 0
      %v2382 = vsel %vm2177, %v1386, 0
      %v2385 = vsel %vm2177, %v1387, 0
      %v2388 = vsel %vm2177, %v1388, 0
      %v2391 = vsel %vm2177, %v1389, 0
      %v2394 = vsel %vm2177, %v1390, 0
      %v2397 = vsel %vm2217, %v1391, 0
      %2399 = vmatprep.subr.bf16.mxu0 0
      %2400 = vmatpush1.bf16.msra.mxu0 0
      %2401 = vmatprep.subr.bf16.mxu0 0
      %2402 = vmatpush1.bf16.msra.mxu0 0
      %2403 = vmatprep.subr.bf16.mxu0 0
      %2404 = vmatpush1.bf16.msra.mxu0 0
      %2405 = vmatprep.subr.bf16.mxu0 0
      %2406 = vmatpush1.bf16.msra.mxu0 0
      %2407 = vmatprep.subr.bf16.mxu0 0
      %2408 = vmatpush1.bf16.msra.mxu0 0
      %2409 = vmatprep.subr.bf16.mxu0 0
      %2410 = vmatpush1.bf16.msra.mxu0 0
      %2411 = vmatprep.subr.bf16.mxu0 0
      %2412 = vmatpush1.bf16.msra.mxu0 0
      %2413 = vmatprep.subr.bf16.mxu0 0
      %2414 = vmatpush1.bf16.msra.mxu0 %v2397
      %2415 = vmatprep.subr.bf16.mxu0 0
      %2416 = vmatpush2.bf16.msra.mxu0 0
      %2417 = vmatprep.subr.bf16.mxu0 0
      %2418 = vmatpush2.bf16.msra.mxu0 0
      %2419 = vmatprep.subr.bf16.mxu0 0
      %2420 = vmatpush2.bf16.msra.mxu0 0
      %2421 = vmatprep.subr.bf16.mxu0 0
      %2422 = vmatpush2.bf16.msra.mxu0 0
      %2423 = vmatprep.subr.bf16.mxu0 0
      %2424 = vmatpush2.bf16.msra.mxu0 0
      %2425 = vmatprep.subr.bf16.mxu0 0
      %2426 = vmatpush2.bf16.msra.mxu0 0
      %2427 = vmatprep.subr.bf16.mxu0 0
      %2428 = vmatpush2.bf16.msra.mxu0 0
      %2429 = vmatprep.subr.bf16.mxu0 0
      %2430 = vmatpush2.bf16.msra.mxu0 0
      %2431 = vmatprep.mubr.bf16.mxu0 0
      %2432 = vmatmul.mubr.bf16.gmra.mxu0 %v2358
      %v2433 = vpop.f32.mrf.mxu0
      %v2434 = vadd.f32 %v2256, %v2433
      %v2435 = vpop.f32.mrf.mxu0
      %v2436 = vpop.f32.mrf.mxu0
      %v2437 = vadd.f32 %v2259, %v2436
      %v2438 = vpop.f32.mrf.mxu0
      %2439 = vmatprep.mubr.bf16.mxu0 0
      %2440 = vmatmul.mubr.bf16.gmra.mxu0 %v2361
      %v2441 = vpop.f32.mrf.mxu0
      %v2442 = vadd.f32 %v2264, %v2441
      %v2443 = vpop.f32.mrf.mxu0
      %v2444 = vpop.f32.mrf.mxu0
      %v2445 = vadd.f32 %v2267, %v2444
      %v2446 = vpop.f32.mrf.mxu0
      %2447 = vmatprep.mubr.bf16.mxu0 0
      %2448 = vmatmul.mubr.bf16.gmra.mxu0 %v2364
      %v2449 = vpop.f32.mrf.mxu0
      %v2450 = vadd.f32 %v2272, %v2449
      %v2451 = vpop.f32.mrf.mxu0
      %v2452 = vpop.f32.mrf.mxu0
      %v2453 = vadd.f32 %v2275, %v2452
      %v2454 = vpop.f32.mrf.mxu0
      %2455 = vmatprep.mubr.bf16.mxu0 0
      %2456 = vmatmul.mubr.bf16.gmra.mxu0 %v2367
      %v2457 = vpop.f32.mrf.mxu0
      %v2458 = vadd.f32 %v2280, %v2457
      %v2459 = vpop.f32.mrf.mxu0
      %v2460 = vpop.f32.mrf.mxu0
      %v2461 = vadd.f32 %v2283, %v2460
      %v2462 = vpop.f32.mrf.mxu0
      %2463 = vmatprep.mubr.bf16.mxu0 0
      %2464 = vmatmul.mubr.bf16.gmra.mxu0 %v2370
      %v2465 = vpop.f32.mrf.mxu0
      %v2466 = vadd.f32 %v2288, %v2465
      %v2467 = vpop.f32.mrf.mxu0
      %v2468 = vpop.f32.mrf.mxu0
      %v2469 = vadd.f32 %v2291, %v2468
      %v2470 = vpop.f32.mrf.mxu0
      %2471 = vmatprep.mubr.bf16.mxu0 0
      %2472 = vmatmul.mubr.bf16.gmra.mxu0 %v2373
      %v2473 = vpop.f32.mrf.mxu0
      %v2474 = vadd.f32 %v2296, %v2473
      %v2475 = vpop.f32.mrf.mxu0
      %v2476 = vpop.f32.mrf.mxu0
      %v2477 = vadd.f32 %v2299, %v2476
      %v2478 = vpop.f32.mrf.mxu0
      %2479 = vmatprep.mubr.bf16.mxu0 0
      %2480 = vmatmul.mubr.bf16.gmra.mxu0 %v2376
      %v2481 = vpop.f32.mrf.mxu0
      %v2482 = vadd.f32 %v2304, %v2481
      %v2483 = vpop.f32.mrf.mxu0
      %v2484 = vpop.f32.mrf.mxu0
      %v2485 = vadd.f32 %v2307, %v2484
      %v2486 = vpop.f32.mrf.mxu0
      %2487 = vmatprep.mubr.bf16.mxu0 0
      %2488 = vmatmul.mubr.bf16.gmra.mxu0 %v2379
      %v2489 = vpop.f32.mrf.mxu0
      %v2490 = vadd.f32 %v2312, %v2489
      %v2491 = vpop.f32.mrf.mxu0
      %v2492 = vpop.f32.mrf.mxu0
      %v2493 = vadd.f32 %v2315, %v2492
      %v2494 = vpop.f32.mrf.mxu0
      %2495 = vmatprep.mubr.bf16.mxu0 0
      %2496 = vmatmul.mubr.bf16.gmra.mxu0 %v2382
      %v2497 = vpop.f32.mrf.mxu0
      %v2498 = vadd.f32 %v2320, %v2497
      %v2499 = vpop.f32.mrf.mxu0
      %v2500 = vpop.f32.mrf.mxu0
      %v2501 = vadd.f32 %v2323, %v2500
      %v2502 = vpop.f32.mrf.mxu0
      %2503 = vmatprep.mubr.bf16.mxu0 0
      %2504 = vmatmul.mubr.bf16.gmra.mxu0 %v2385
      %v2505 = vpop.f32.mrf.mxu0
      %v2506 = vadd.f32 %v2328, %v2505
      %v2507 = vpop.f32.mrf.mxu0
      %v2508 = vpop.f32.mrf.mxu0
      %v2509 = vadd.f32 %v2331, %v2508
      %v2510 = vpop.f32.mrf.mxu0
      %2511 = vmatprep.mubr.bf16.mxu0 0
      %2512 = vmatmul.mubr.bf16.gmra.mxu0 %v2388
      %v2513 = vpop.f32.mrf.mxu0
      %v2514 = vadd.f32 %v2336, %v2513
      %v2515 = vpop.f32.mrf.mxu0
      %v2516 = vpop.f32.mrf.mxu0
      %v2517 = vadd.f32 %v2339, %v2516
      %v2518 = vpop.f32.mrf.mxu0
      %2519 = vmatprep.mubr.bf16.mxu0 0
      %2520 = vmatmul.mubr.bf16.gmra.mxu0 %v2391
      %v2521 = vpop.f32.mrf.mxu0
      %v2522 = vadd.f32 %v2344, %v2521
      %v2523 = vpop.f32.mrf.mxu0
      %v2524 = vpop.f32.mrf.mxu0
      %v2525 = vadd.f32 %v2347, %v2524
      %v2526 = vpop.f32.mrf.mxu0
      %2527 = vmatprep.mubr.bf16.mxu0 0
      %2528 = vmatmul.mubr.bf16.gmra.mxu0 %v2394
      %v2529 = vpop.f32.mrf.mxu0
      %v2530 = vadd.f32 %v2352, %v2529
      %v2531 = vpop.f32.mrf.mxu0
      %v2532 = vpop.f32.mrf.mxu0
      %v2533 = vpop.f32.mrf.mxu0
      %2534 = vdwg.mxu0
      %v2535 = vcombine.low %v490, %v489
      %v2536 = vcombine.low %v491, %v499
      %v2538 = vunpack.c.l.s4 1983009808
      %v2539 = vunpack.c.0.s8 %v2538
      %v2540 = vlaneseq
      %v2541 = vshrl.u32 %v2540, 7
      %v2542 = vsub.s32 %v2539, %v2541
      %v2543 = vrot.slane %v2535, %v2542
      %v2545 = vunpack.c.l.s4 1983009808
      %v2546 = vunpack.c.0.s8 %v2545
      %v2547 = vlaneseq
      %v2548 = vshrl.u32 %v2547, 7
      %v2549 = vsub.s32 %v2546, %v2548
      %v2550 = vrot.slane %v2536, %v2549
      %v2551 = vcombine.low %v2543, %v2550
      %v2552 = vcombine.low %v507, %v506
      %v2553 = vcombine.low %v1392, %v523
      %v2555 = vunpack.c.l.s4 1983009808
      %v2556 = vunpack.c.0.s8 %v2555
      %v2557 = vlaneseq
      %v2558 = vshrl.u32 %v2557, 7
      %v2559 = vsub.s32 %v2556, %v2558
      %v2560 = vrot.slane %v2552, %v2559
      %v2562 = vunpack.c.l.s4 1983009808
      %v2563 = vunpack.c.0.s8 %v2562
      %v2564 = vlaneseq
      %v2565 = vshrl.u32 %v2564, 7
      %v2566 = vsub.s32 %v2563, %v2565
      %v2567 = vrot.slane %v2553, %v2566
      %v2568 = vcombine.low %v2560, %v2567
      %v2569 = vcombine.low %v522, %v524
      %v2570 = vcombine.low %v532, %v540
      %v2572 = vunpack.c.l.s4 1983009808
      %v2573 = vunpack.c.0.s8 %v2572
      %v2574 = vlaneseq
      %v2575 = vshrl.u32 %v2574, 7
      %v2576 = vsub.s32 %v2573, %v2575
      %v2577 = vrot.slane %v2569, %v2576
      %v2579 = vunpack.c.l.s4 1983009808
      %v2580 = vunpack.c.0.s8 %v2579
      %v2581 = vlaneseq
      %v2582 = vshrl.u32 %v2581, 7
      %v2583 = vsub.s32 %v2580, %v2582
      %v2584 = vrot.slane %v2570, %v2583
      %v2585 = vcombine.low %v2577, %v2584
      %v2586 = vcombine.low %v539, %v1393
      %v2587 = vcombine.low %v556, %v555
      %v2589 = vunpack.c.l.s4 1983009808
      %v2590 = vunpack.c.0.s8 %v2589
      %v2591 = vlaneseq
      %v2592 = vshrl.u32 %v2591, 7
      %v2593 = vsub.s32 %v2590, %v2592
      %v2594 = vrot.slane %v2586, %v2593
      %v2596 = vunpack.c.l.s4 1983009808
      %v2597 = vunpack.c.0.s8 %v2596
      %v2598 = vlaneseq
      %v2599 = vshrl.u32 %v2598, 7
      %v2600 = vsub.s32 %v2597, %v2599
      %v2601 = vrot.slane %v2587, %v2600
      %v2602 = vcombine.low %v2594, %v2601
      %v2603 = vcombine.low %v557, %v565
      %v2604 = vcombine.low %v573, %v572
      %v2606 = vunpack.c.l.s4 1983009808
      %v2607 = vunpack.c.0.s8 %v2606
      %v2608 = vlaneseq
      %v2609 = vshrl.u32 %v2608, 7
      %v2610 = vsub.s32 %v2607, %v2609
      %v2611 = vrot.slane %v2603, %v2610
      %v2613 = vunpack.c.l.s4 1983009808
      %v2614 = vunpack.c.0.s8 %v2613
      %v2615 = vlaneseq
      %v2616 = vshrl.u32 %v2615, 7
      %v2617 = vsub.s32 %v2614, %v2616
      %v2618 = vrot.slane %v2604, %v2617
      %v2619 = vcombine.low %v2611, %v2618
      %v2620 = vcombine.low %v1394, %v589
      %v2621 = vcombine.low %v588, %v590
      %v2623 = vunpack.c.l.s4 1983009808
      %v2624 = vunpack.c.0.s8 %v2623
      %v2625 = vlaneseq
      %v2626 = vshrl.u32 %v2625, 7
      %v2627 = vsub.s32 %v2624, %v2626
      %v2628 = vrot.slane %v2620, %v2627
      %v2630 = vunpack.c.l.s4 1983009808
      %v2631 = vunpack.c.0.s8 %v2630
      %v2632 = vlaneseq
      %v2633 = vshrl.u32 %v2632, 7
      %v2634 = vsub.s32 %v2631, %v2633
      %v2635 = vrot.slane %v2621, %v2634
      %v2636 = vcombine.low %v2628, %v2635
      %v2637 = vcombine.low %v598, %v606
      %v2638 = vcombine.low %v605, %v1395
      %v2640 = vunpack.c.l.s4 1983009808
      %v2641 = vunpack.c.0.s8 %v2640
      %v2642 = vlaneseq
      %v2643 = vshrl.u32 %v2642, 7
      %v2644 = vsub.s32 %v2641, %v2643
      %v2645 = vrot.slane %v2637, %v2644
      %v2647 = vunpack.c.l.s4 1983009808
      %v2648 = vunpack.c.0.s8 %v2647
      %v2649 = vlaneseq
      %v2650 = vshrl.u32 %v2649, 7
      %v2651 = vsub.s32 %v2648, %v2650
      %v2652 = vrot.slane %v2638, %v2651
      %v2653 = vcombine.low %v2645, %v2652
      %v2654 = vcombine.low %v622, %v621
      %v2655 = vcombine.low %v623, %v631
      %v2657 = vunpack.c.l.s4 1983009808
      %v2658 = vunpack.c.0.s8 %v2657
      %v2659 = vlaneseq
      %v2660 = vshrl.u32 %v2659, 7
      %v2661 = vsub.s32 %v2658, %v2660
      %v2662 = vrot.slane %v2654, %v2661
      %v2664 = vunpack.c.l.s4 1983009808
      %v2665 = vunpack.c.0.s8 %v2664
      %v2666 = vlaneseq
      %v2667 = vshrl.u32 %v2666, 7
      %v2668 = vsub.s32 %v2665, %v2667
      %v2669 = vrot.slane %v2655, %v2668
      %v2670 = vcombine.low %v2662, %v2669
      %v2671 = vcombine.low %v639, %v638
      %v2672 = vcombine.low %v1396, %v655
      %v2674 = vunpack.c.l.s4 1983009808
      %v2675 = vunpack.c.0.s8 %v2674
      %v2676 = vlaneseq
      %v2677 = vshrl.u32 %v2676, 7
      %v2678 = vsub.s32 %v2675, %v2677
      %v2679 = vrot.slane %v2671, %v2678
      %v2681 = vunpack.c.l.s4 1983009808
      %v2682 = vunpack.c.0.s8 %v2681
      %v2683 = vlaneseq
      %v2684 = vshrl.u32 %v2683, 7
      %v2685 = vsub.s32 %v2682, %v2684
      %v2686 = vrot.slane %v2672, %v2685
      %v2687 = vcombine.low %v2679, %v2686
      %v2688 = vcombine.low %v654, %v656
      %v2689 = vcombine.low %v664, %v672
      %v2691 = vunpack.c.l.s4 1983009808
      %v2692 = vunpack.c.0.s8 %v2691
      %v2693 = vlaneseq
      %v2694 = vshrl.u32 %v2693, 7
      %v2695 = vsub.s32 %v2692, %v2694
      %v2696 = vrot.slane %v2688, %v2695
      %v2698 = vunpack.c.l.s4 1983009808
      %v2699 = vunpack.c.0.s8 %v2698
      %v2700 = vlaneseq
      %v2701 = vshrl.u32 %v2700, 7
      %v2702 = vsub.s32 %v2699, %v2701
      %v2703 = vrot.slane %v2689, %v2702
      %v2704 = vcombine.low %v2696, %v2703
      %v2705 = vcombine.low %v671, %v1397
      %v2706 = vcombine.low %v688, %v687
      %v2708 = vunpack.c.l.s4 1983009808
      %v2709 = vunpack.c.0.s8 %v2708
      %v2710 = vlaneseq
      %v2711 = vshrl.u32 %v2710, 7
      %v2712 = vsub.s32 %v2709, %v2711
      %v2713 = vrot.slane %v2705, %v2712
      %v2715 = vunpack.c.l.s4 1983009808
      %v2716 = vunpack.c.0.s8 %v2715
      %v2717 = vlaneseq
      %v2718 = vshrl.u32 %v2717, 7
      %v2719 = vsub.s32 %v2716, %v2718
      %v2720 = vrot.slane %v2706, %v2719
      %v2721 = vcombine.low %v2713, %v2720
      %v2722 = vcombine.low %v689, %v697
      %v2723 = vcombine.low %v705, %v704
      %v2725 = vunpack.c.l.s4 1983009808
      %v2726 = vunpack.c.0.s8 %v2725
      %v2727 = vlaneseq
      %v2728 = vshrl.u32 %v2727, 7
      %v2729 = vsub.s32 %v2726, %v2728
      %v2730 = vrot.slane %v2722, %v2729
      %v2732 = vunpack.c.l.s4 1983009808
      %v2733 = vunpack.c.0.s8 %v2732
      %v2734 = vlaneseq
      %v2735 = vshrl.u32 %v2734, 7
      %v2736 = vsub.s32 %v2733, %v2735
      %v2737 = vrot.slane %v2723, %v2736
      %v2738 = vcombine.low %v2730, %v2737
      %v2739 = vcombine.low %v1398, %v721
      %v2740 = vcombine.low %v720, %v722
      %v2742 = vunpack.c.l.s4 1983009808
      %v2743 = vunpack.c.0.s8 %v2742
      %v2744 = vlaneseq
      %v2745 = vshrl.u32 %v2744, 7
      %v2746 = vsub.s32 %v2743, %v2745
      %v2747 = vrot.slane %v2739, %v2746
      %v2749 = vunpack.c.l.s4 1983009808
      %v2750 = vunpack.c.0.s8 %v2749
      %v2751 = vlaneseq
      %v2752 = vshrl.u32 %v2751, 7
      %v2753 = vsub.s32 %v2750, %v2752
      %v2754 = vrot.slane %v2740, %v2753
      %v2755 = vcombine.low %v2747, %v2754
      %v2756 = vcombine.low %v730, %v738
      %v2757 = vcombine.low %v737, %v1399
      %v2759 = vunpack.c.l.s4 1983009808
      %v2760 = vunpack.c.0.s8 %v2759
      %v2761 = vlaneseq
      %v2762 = vshrl.u32 %v2761, 7
      %v2763 = vsub.s32 %v2760, %v2762
      %v2764 = vrot.slane %v2756, %v2763
      %v2766 = vunpack.c.l.s4 1983009808
      %v2767 = vunpack.c.0.s8 %v2766
      %v2768 = vlaneseq
      %v2769 = vshrl.u32 %v2768, 7
      %v2770 = vsub.s32 %v2767, %v2769
      %v2771 = vrot.slane %v2757, %v2770
      %v2772 = vcombine.low %v2764, %v2771
      %v2773 = vcombine.low %v754, %v753
      %v2774 = vcombine.low %v755, %v763
      %v2776 = vunpack.c.l.s4 1983009808
      %v2777 = vunpack.c.0.s8 %v2776
      %v2778 = vlaneseq
      %v2779 = vshrl.u32 %v2778, 7
      %v2780 = vsub.s32 %v2777, %v2779
      %v2781 = vrot.slane %v2773, %v2780
      %v2783 = vunpack.c.l.s4 1983009808
      %v2784 = vunpack.c.0.s8 %v2783
      %v2785 = vlaneseq
      %v2786 = vshrl.u32 %v2785, 7
      %v2787 = vsub.s32 %v2784, %v2786
      %v2788 = vrot.slane %v2774, %v2787
      %v2789 = vcombine.low %v2781, %v2788
      %v2790 = vcombine.low %v771, %v770
      %v2791 = vcombine.low %v1400, %v787
      %v2793 = vunpack.c.l.s4 1983009808
      %v2794 = vunpack.c.0.s8 %v2793
      %v2795 = vlaneseq
      %v2796 = vshrl.u32 %v2795, 7
      %v2797 = vsub.s32 %v2794, %v2796
      %v2798 = vrot.slane %v2790, %v2797
      %v2800 = vunpack.c.l.s4 1983009808
      %v2801 = vunpack.c.0.s8 %v2800
      %v2802 = vlaneseq
      %v2803 = vshrl.u32 %v2802, 7
      %v2804 = vsub.s32 %v2801, %v2803
      %v2805 = vrot.slane %v2791, %v2804
      %v2806 = vcombine.low %v2798, %v2805
      %v2807 = vcombine.low %v786, %v788
      %v2808 = vcombine.low %v796, %v804
      %v2810 = vunpack.c.l.s4 1983009808
      %v2811 = vunpack.c.0.s8 %v2810
      %v2812 = vlaneseq
      %v2813 = vshrl.u32 %v2812, 7
      %v2814 = vsub.s32 %v2811, %v2813
      %v2815 = vrot.slane %v2807, %v2814
      %v2817 = vunpack.c.l.s4 1983009808
      %v2818 = vunpack.c.0.s8 %v2817
      %v2819 = vlaneseq
      %v2820 = vshrl.u32 %v2819, 7
      %v2821 = vsub.s32 %v2818, %v2820
      %v2822 = vrot.slane %v2808, %v2821
      %v2823 = vcombine.low %v2815, %v2822
      %v2824 = vcombine.low %v803, %v1401
      %v2825 = vcombine.low %v820, %v819
      %v2827 = vunpack.c.l.s4 1983009808
      %v2828 = vunpack.c.0.s8 %v2827
      %v2829 = vlaneseq
      %v2830 = vshrl.u32 %v2829, 7
      %v2831 = vsub.s32 %v2828, %v2830
      %v2832 = vrot.slane %v2824, %v2831
      %v2834 = vunpack.c.l.s4 1983009808
      %v2835 = vunpack.c.0.s8 %v2834
      %v2836 = vlaneseq
      %v2837 = vshrl.u32 %v2836, 7
      %v2838 = vsub.s32 %v2835, %v2837
      %v2839 = vrot.slane %v2825, %v2838
      %v2840 = vcombine.low %v2832, %v2839
      %v2841 = vcombine.low %v821, %v829
      %v2842 = vcombine.low %v837, %v836
      %v2844 = vunpack.c.l.s4 1983009808
      %v2845 = vunpack.c.0.s8 %v2844
      %v2846 = vlaneseq
      %v2847 = vshrl.u32 %v2846, 7
      %v2848 = vsub.s32 %v2845, %v2847
      %v2849 = vrot.slane %v2841, %v2848
      %v2851 = vunpack.c.l.s4 1983009808
      %v2852 = vunpack.c.0.s8 %v2851
      %v2853 = vlaneseq
      %v2854 = vshrl.u32 %v2853, 7
      %v2855 = vsub.s32 %v2852, %v2854
      %v2856 = vrot.slane %v2842, %v2855
      %v2857 = vcombine.low %v2849, %v2856
      %v2858 = vcombine.low %v1402, %v853
      %v2859 = vcombine.low %v852, %v854
      %v2861 = vunpack.c.l.s4 1983009808
      %v2862 = vunpack.c.0.s8 %v2861
      %v2863 = vlaneseq
      %v2864 = vshrl.u32 %v2863, 7
      %v2865 = vsub.s32 %v2862, %v2864
      %v2866 = vrot.slane %v2858, %v2865
      %v2868 = vunpack.c.l.s4 1983009808
      %v2869 = vunpack.c.0.s8 %v2868
      %v2870 = vlaneseq
      %v2871 = vshrl.u32 %v2870, 7
      %v2872 = vsub.s32 %v2869, %v2871
      %v2873 = vrot.slane %v2859, %v2872
      %v2874 = vcombine.low %v2866, %v2873
      %v2875 = vcombine.low %v862, %v870
      %v2876 = vcombine.low %v869, %v1403
      %v2878 = vunpack.c.l.s4 1983009808
      %v2879 = vunpack.c.0.s8 %v2878
      %v2880 = vlaneseq
      %v2881 = vshrl.u32 %v2880, 7
      %v2882 = vsub.s32 %v2879, %v2881
      %v2883 = vrot.slane %v2875, %v2882
      %v2885 = vunpack.c.l.s4 1983009808
      %v2886 = vunpack.c.0.s8 %v2885
      %v2887 = vlaneseq
      %v2888 = vshrl.u32 %v2887, 7
      %v2889 = vsub.s32 %v2886, %v2888
      %v2890 = vrot.slane %v2876, %v2889
      %v2891 = vcombine.low %v2883, %v2890
      %v2892 = vcombine.low %v886, %v885
      %v2893 = vcombine.low %v887, %v895
      %v2895 = vunpack.c.l.s4 1983009808
      %v2896 = vunpack.c.0.s8 %v2895
      %v2897 = vlaneseq
      %v2898 = vshrl.u32 %v2897, 7
      %v2899 = vsub.s32 %v2896, %v2898
      %v2900 = vrot.slane %v2892, %v2899
      %v2902 = vunpack.c.l.s4 1983009808
      %v2903 = vunpack.c.0.s8 %v2902
      %v2904 = vlaneseq
      %v2905 = vshrl.u32 %v2904, 7
      %v2906 = vsub.s32 %v2903, %v2905
      %v2907 = vrot.slane %v2893, %v2906
      %v2908 = vcombine.low %v2900, %v2907
      %v2909 = vcombine.low %v903, %v902
      %v2910 = vcombine.low %v1404, %v919
      %v2912 = vunpack.c.l.s4 1983009808
      %v2913 = vunpack.c.0.s8 %v2912
      %v2914 = vlaneseq
      %v2915 = vshrl.u32 %v2914, 7
      %v2916 = vsub.s32 %v2913, %v2915
      %v2917 = vrot.slane %v2909, %v2916
      %v2919 = vunpack.c.l.s4 1983009808
      %v2920 = vunpack.c.0.s8 %v2919
      %v2921 = vlaneseq
      %v2922 = vshrl.u32 %v2921, 7
      %v2923 = vsub.s32 %v2920, %v2922
      %v2924 = vrot.slane %v2910, %v2923
      %v2925 = vcombine.low %v2917, %v2924
      %v2926 = vcombine.low %v918, %v920
      %v2927 = vcombine.low %v928, %v936
      %v2929 = vunpack.c.l.s4 1983009808
      %v2930 = vunpack.c.0.s8 %v2929
      %v2931 = vlaneseq
      %v2932 = vshrl.u32 %v2931, 7
      %v2933 = vsub.s32 %v2930, %v2932
      %v2934 = vrot.slane %v2926, %v2933
      %v2936 = vunpack.c.l.s4 1983009808
      %v2937 = vunpack.c.0.s8 %v2936
      %v2938 = vlaneseq
      %v2939 = vshrl.u32 %v2938, 7
      %v2940 = vsub.s32 %v2937, %v2939
      %v2941 = vrot.slane %v2927, %v2940
      %v2942 = vcombine.low %v2934, %v2941
      %v2943 = vcombine.low %v935, %v1405
      %v2945 = vunpack.c.l.s4 1983009808
      %v2946 = vunpack.c.0.s8 %v2945
      %v2947 = vlaneseq
      %v2948 = vshrl.u32 %v2947, 7
      %v2949 = vsub.s32 %v2946, %v2948
      %v2950 = vrot.slane %v2943, %v2949
      %v2976 = vpack.c.bf16 %v2568, %v2551
      %v2977 = vpack.c.bf16 %v2602, %v2585
      %v2978 = vpack.c.bf16 %v2636, %v2619
      %v2979 = vpack.c.bf16 %v2670, %v2653
      %v2980 = vpack.c.bf16 %v2704, %v2687
      %v2981 = vpack.c.bf16 %v2738, %v2721
      %v2982 = vpack.c.bf16 %v2772, %v2755
      %v2983 = vpack.c.bf16 %v2806, %v2789
      %v2984 = vpack.c.bf16 %v2840, %v2823
      %v2985 = vpack.c.bf16 %v2874, %v2857
      %v2986 = vpack.c.bf16 %v2908, %v2891
      %v2987 = vpack.c.bf16 %v2942, %v2925
      %v2988 = vpack.c.bf16 %v2950, %v2950
      %s2989 = scalar_lea.vmem %s1, 4
      %v2990 = vld [vmem:[%s2989] sm:$0x3]
      %v2992 = vsel %vm2177, %v2976, 0
      %v2995 = vsel %vm2177, %v2977, 0
      %v2998 = vsel %vm2177, %v2978, 0
      %v3001 = vsel %vm2177, %v2979, 0
      %v3004 = vsel %vm2177, %v2980, 0
      %v3007 = vsel %vm2177, %v2981, 0
      %v3010 = vsel %vm2177, %v2982, 0
      %v3013 = vsel %vm2177, %v2983, 0
      %v3016 = vsel %vm2177, %v2984, 0
      %v3019 = vsel %vm2177, %v2985, 0
      %v3022 = vsel %vm2177, %v2986, 0
      %v3025 = vsel %vm2177, %v2987, 0
      %v3028 = vsel %vm2177, %v2988, 0
      %v3031 = vsel %vm2217, %v2990, 0
      %3033 = vmatprep.subr.bf16.mxu0 0
      %3034 = vmatpush1.bf16.msra.mxu0 0
      %3035 = vmatprep.subr.bf16.mxu0 0
      %3036 = vmatpush1.bf16.msra.mxu0 0
      %3037 = vmatprep.subr.bf16.mxu0 0
      %3038 = vmatpush1.bf16.msra.mxu0 0
      %3039 = vmatprep.subr.bf16.mxu0 0
      %3040 = vmatpush1.bf16.msra.mxu0 0
      %3041 = vmatprep.subr.bf16.mxu0 0
      %3042 = vmatpush1.bf16.msra.mxu0 0
      %3043 = vmatprep.subr.bf16.mxu0 0
      %3044 = vmatpush1.bf16.msra.mxu0 0
      %3045 = vmatprep.subr.bf16.mxu0 0
      %3046 = vmatpush1.bf16.msra.mxu0 0
      %3047 = vmatprep.subr.bf16.mxu0 0
      %3048 = vmatpush1.bf16.msra.mxu0 %v3031
      %3049 = vmatprep.subr.bf16.mxu0 0
      %3050 = vmatpush2.bf16.msra.mxu0 0
      %3051 = vmatprep.subr.bf16.mxu0 0
      %3052 = vmatpush2.bf16.msra.mxu0 0
      %3053 = vmatprep.subr.bf16.mxu0 0
      %3054 = vmatpush2.bf16.msra.mxu0 0
      %3055 = vmatprep.subr.bf16.mxu0 0
      %3056 = vmatpush2.bf16.msra.mxu0 0
      %3057 = vmatprep.subr.bf16.mxu0 0
      %3058 = vmatpush2.bf16.msra.mxu0 0
      %3059 = vmatprep.subr.bf16.mxu0 0
      %3060 = vmatpush2.bf16.msra.mxu0 0
      %3061 = vmatprep.subr.bf16.mxu0 0
      %3062 = vmatpush2.bf16.msra.mxu0 0
      %3063 = vmatprep.subr.bf16.mxu0 0
      %3064 = vmatpush2.bf16.msra.mxu0 0
      %3065 = vmatprep.mubr.bf16.mxu0 0
      %3066 = vmatmul.mubr.bf16.gmra.mxu0 %v2992
      %v3067 = vpop.f32.mrf.mxu0
      %v3068 = vadd.f32 0.0, %v3067
      %v3069 = vpop.f32.mrf.mxu0
      %v3070 = vpop.f32.mrf.mxu0
      %v3071 = vadd.f32 0.0, %v3070
      %v3072 = vpop.f32.mrf.mxu0
      %3073 = vmatprep.mubr.bf16.mxu0 0
      %3074 = vmatmul.mubr.bf16.gmra.mxu0 %v2995
      %v3075 = vpop.f32.mrf.mxu0
      %v3076 = vadd.f32 0.0, %v3075
      %v3077 = vpop.f32.mrf.mxu0
      %v3078 = vpop.f32.mrf.mxu0
      %v3079 = vadd.f32 0.0, %v3078
      %v3080 = vpop.f32.mrf.mxu0
      %3081 = vmatprep.mubr.bf16.mxu0 0
      %3082 = vmatmul.mubr.bf16.gmra.mxu0 %v2998
      %v3083 = vpop.f32.mrf.mxu0
      %v3084 = vadd.f32 0.0, %v3083
      %v3085 = vpop.f32.mrf.mxu0
      %v3086 = vpop.f32.mrf.mxu0
      %v3087 = vadd.f32 0.0, %v3086
      %v3088 = vpop.f32.mrf.mxu0
      %3089 = vmatprep.mubr.bf16.mxu0 0
      %3090 = vmatmul.mubr.bf16.gmra.mxu0 %v3001
      %v3091 = vpop.f32.mrf.mxu0
      %v3092 = vadd.f32 0.0, %v3091
      %v3093 = vpop.f32.mrf.mxu0
      %v3094 = vpop.f32.mrf.mxu0
      %v3095 = vadd.f32 0.0, %v3094
      %v3096 = vpop.f32.mrf.mxu0
      %3097 = vmatprep.mubr.bf16.mxu0 0
      %3098 = vmatmul.mubr.bf16.gmra.mxu0 %v3004
      %v3099 = vpop.f32.mrf.mxu0
      %v3100 = vadd.f32 0.0, %v3099
      %v3101 = vpop.f32.mrf.mxu0
      %v3102 = vpop.f32.mrf.mxu0
      %v3103 = vadd.f32 0.0, %v3102
      %v3104 = vpop.f32.mrf.mxu0
      %3105 = vmatprep.mubr.bf16.mxu0 0
      %3106 = vmatmul.mubr.bf16.gmra.mxu0 %v3007
      %v3107 = vpop.f32.mrf.mxu0
      %v3108 = vadd.f32 0.0, %v3107
      %v3109 = vpop.f32.mrf.mxu0
      %v3110 = vpop.f32.mrf.mxu0
      %v3111 = vadd.f32 0.0, %v3110
      %v3112 = vpop.f32.mrf.mxu0
      %3113 = vmatprep.mubr.bf16.mxu0 0
      %3114 = vmatmul.mubr.bf16.gmra.mxu0 %v3010
      %v3115 = vpop.f32.mrf.mxu0
      %v3116 = vadd.f32 0.0, %v3115
      %v3117 = vpop.f32.mrf.mxu0
      %v3118 = vpop.f32.mrf.mxu0
      %v3119 = vadd.f32 0.0, %v3118
      %v3120 = vpop.f32.mrf.mxu0
      %3121 = vmatprep.mubr.bf16.mxu0 0
      %3122 = vmatmul.mubr.bf16.gmra.mxu0 %v3013
      %v3123 = vpop.f32.mrf.mxu0
      %v3124 = vadd.f32 0.0, %v3123
      %v3125 = vpop.f32.mrf.mxu0
      %v3126 = vpop.f32.mrf.mxu0
      %v3127 = vadd.f32 0.0, %v3126
      %v3128 = vpop.f32.mrf.mxu0
      %3129 = vmatprep.mubr.bf16.mxu0 0
      %3130 = vmatmul.mubr.bf16.gmra.mxu0 %v3016
      %v3131 = vpop.f32.mrf.mxu0
      %v3132 = vadd.f32 0.0, %v3131
      %v3133 = vpop.f32.mrf.mxu0
      %v3134 = vpop.f32.mrf.mxu0
      %v3135 = vadd.f32 0.0, %v3134
      %v3136 = vpop.f32.mrf.mxu0
      %3137 = vmatprep.mubr.bf16.mxu0 0
      %3138 = vmatmul.mubr.bf16.gmra.mxu0 %v3019
      %v3139 = vpop.f32.mrf.mxu0
      %v3140 = vadd.f32 0.0, %v3139
      %v3141 = vpop.f32.mrf.mxu0
      %v3142 = vpop.f32.mrf.mxu0
      %v3143 = vadd.f32 0.0, %v3142
      %v3144 = vpop.f32.mrf.mxu0
      %3145 = vmatprep.mubr.bf16.mxu0 0
      %3146 = vmatmul.mubr.bf16.gmra.mxu0 %v3022
      %v3147 = vpop.f32.mrf.mxu0
      %v3148 = vadd.f32 0.0, %v3147
      %v3149 = vpop.f32.mrf.mxu0
      %v3150 = vpop.f32.mrf.mxu0
      %v3151 = vadd.f32 0.0, %v3150
      %v3152 = vpop.f32.mrf.mxu0
      %3153 = vmatprep.mubr.bf16.mxu0 0
      %3154 = vmatmul.mubr.bf16.gmra.mxu0 %v3025
      %v3155 = vpop.f32.mrf.mxu0
      %v3156 = vadd.f32 0.0, %v3155
      %v3157 = vpop.f32.mrf.mxu0
      %v3158 = vpop.f32.mrf.mxu0
      %v3159 = vadd.f32 0.0, %v3158
      %v3160 = vpop.f32.mrf.mxu0
      %3161 = vmatprep.mubr.bf16.mxu0 0
      %3162 = vmatmul.mubr.bf16.gmra.mxu0 %v3028
      %v3163 = vpop.f32.mrf.mxu0
      %v3164 = vadd.f32 0.0, %v3163
      %v3165 = vpop.f32.mrf.mxu0
      %v3166 = vpop.f32.mrf.mxu0
      %v3167 = vpop.f32.mrf.mxu0
      %3168 = vdwg.mxu0
      %v3169 = vadd.f32 %v2434, %v3068
      %v3170 = vadd.f32 %v2437, %v3071
      %v3171 = vadd.f32 %v2442, %v3076
      %v3172 = vadd.f32 %v2445, %v3079
      %v3173 = vadd.f32 %v2450, %v3084
      %v3174 = vadd.f32 %v2453, %v3087
      %v3175 = vadd.f32 %v2458, %v3092
      %v3176 = vadd.f32 %v2461, %v3095
      %v3177 = vadd.f32 %v2466, %v3100
      %v3178 = vadd.f32 %v2469, %v3103
      %v3179 = vadd.f32 %v2474, %v3108
      %v3180 = vadd.f32 %v2477, %v3111
      %v3181 = vadd.f32 %v2482, %v3116
      %v3182 = vadd.f32 %v2485, %v3119
      %v3183 = vadd.f32 %v2490, %v3124
      %v3184 = vadd.f32 %v2493, %v3127
      %v3185 = vadd.f32 %v2498, %v3132
      %v3186 = vadd.f32 %v2501, %v3135
      %v3187 = vadd.f32 %v2506, %v3140
      %v3188 = vadd.f32 %v2509, %v3143
      %v3189 = vadd.f32 %v2514, %v3148
      %v3190 = vadd.f32 %v2517, %v3151
      %v3191 = vadd.f32 %v2522, %v3156
      %v3192 = vadd.f32 %v2525, %v3159
      %v3193 = vadd.f32 %v2530, %v3164
      %v3196 = vcombine.high %v441, %v441
      %v3198 = vunpack.c.l.s4 1983009808
      %v3199 = vunpack.c.0.s8 %v3198
      %v3200 = vlaneseq
      %v3201 = vshrl.u32 %v3200, 7
      %v3202 = vsub.s32 %v3199, %v3201
      %v3203 = vrot.slane %v441, %v3202
      %v3205 = vunpack.c.l.s4 1983009808
      %v3206 = vunpack.c.0.s8 %v3205
      %v3207 = vlaneseq
      %v3208 = vshrl.u32 %v3207, 7
      %v3209 = vsub.s32 %v3206, %v3208
      %v3210 = vrot.slane %v3196, %v3209
      %v3211 = vcombine.high %v3203, %v3203
      %v3212 = vcombine.high %v3210, %v3210
      %v3213 = vcombine.high %v442, %v442
      %v3215 = vunpack.c.l.s4 1983009808
      %v3216 = vunpack.c.0.s8 %v3215
      %v3217 = vlaneseq
      %v3218 = vshrl.u32 %v3217, 7
      %v3219 = vsub.s32 %v3216, %v3218
      %v3220 = vrot.slane %v442, %v3219
      %v3222 = vunpack.c.l.s4 1983009808
      %v3223 = vunpack.c.0.s8 %v3222
      %v3224 = vlaneseq
      %v3225 = vshrl.u32 %v3224, 7
      %v3226 = vsub.s32 %v3223, %v3225
      %v3227 = vrot.slane %v3213, %v3226
      %v3228 = vcombine.high %v3220, %v3220
      %v3229 = vcombine.low %v515, %v523
      %v3231 = vunpack.c.l.s4 1983009808
      %v3232 = vunpack.c.0.s8 %v3231
      %v3233 = vlaneseq
      %v3234 = vshrl.u32 %v3233, 7
      %v3235 = vsub.s32 %v3232, %v3234
      %v3236 = vrot.slane %v3229, %v3235
      %v3237 = vcombine.low %v3236, %v2577
      %v3238 = vcombine.low %v539, %v548
      %v3240 = vunpack.c.l.s4 1983009808
      %v3241 = vunpack.c.0.s8 %v3240
      %v3242 = vlaneseq
      %v3243 = vshrl.u32 %v3242, 7
      %v3244 = vsub.s32 %v3241, %v3243
      %v3245 = vrot.slane %v3238, %v3244
      %v3246 = vcombine.low %v2584, %v3245
      %v3247 = vcombine.low %v2601, %v2611
      %v3248 = vcombine.low %v581, %v589
      %v3250 = vunpack.c.l.s4 1983009808
      %v3251 = vunpack.c.0.s8 %v3250
      %v3252 = vlaneseq
      %v3253 = vshrl.u32 %v3252, 7
      %v3254 = vsub.s32 %v3251, %v3253
      %v3255 = vrot.slane %v3248, %v3254
      %v3256 = vcombine.low %v2618, %v3255
      %v3257 = vcombine.low %v2635, %v2645
      %v3258 = vcombine.low %v605, %v614
      %v3260 = vunpack.c.l.s4 1983009808
      %v3261 = vunpack.c.0.s8 %v3260
      %v3262 = vlaneseq
      %v3263 = vshrl.u32 %v3262, 7
      %v3264 = vsub.s32 %v3261, %v3263
      %v3265 = vrot.slane %v3258, %v3264
      %v3266 = vcombine.low %v3265, %v2662
      %v3267 = vcombine.low %v2669, %v2679
      %v3268 = vcombine.low %v647, %v655
      %v3270 = vunpack.c.l.s4 1983009808
      %v3271 = vunpack.c.0.s8 %v3270
      %v3272 = vlaneseq
      %v3273 = vshrl.u32 %v3272, 7
      %v3274 = vsub.s32 %v3271, %v3273
      %v3275 = vrot.slane %v3268, %v3274
      %v3276 = vcombine.low %v3275, %v2696
      %v3277 = vcombine.low %v671, %v680
      %v3279 = vunpack.c.l.s4 1983009808
      %v3280 = vunpack.c.0.s8 %v3279
      %v3281 = vlaneseq
      %v3282 = vshrl.u32 %v3281, 7
      %v3283 = vsub.s32 %v3280, %v3282
      %v3284 = vrot.slane %v3277, %v3283
      %v3285 = vcombine.low %v2703, %v3284
      %v3286 = vcombine.low %v2720, %v2730
      %v3287 = vcombine.low %v713, %v721
      %v3289 = vunpack.c.l.s4 1983009808
      %v3290 = vunpack.c.0.s8 %v3289
      %v3291 = vlaneseq
      %v3292 = vshrl.u32 %v3291, 7
      %v3293 = vsub.s32 %v3290, %v3292
      %v3294 = vrot.slane %v3287, %v3293
      %v3295 = vcombine.low %v2737, %v3294
      %v3296 = vcombine.low %v2754, %v2764
      %v3297 = vcombine.low %v737, %v746
      %v3299 = vunpack.c.l.s4 1983009808
      %v3300 = vunpack.c.0.s8 %v3299
      %v3301 = vlaneseq
      %v3302 = vshrl.u32 %v3301, 7
      %v3303 = vsub.s32 %v3300, %v3302
      %v3304 = vrot.slane %v3297, %v3303
      %v3305 = vcombine.low %v3304, %v2781
      %v3306 = vcombine.low %v2788, %v2798
      %v3307 = vcombine.low %v779, %v787
      %v3309 = vunpack.c.l.s4 1983009808
      %v3310 = vunpack.c.0.s8 %v3309
      %v3311 = vlaneseq
      %v3312 = vshrl.u32 %v3311, 7
      %v3313 = vsub.s32 %v3310, %v3312
      %v3314 = vrot.slane %v3307, %v3313
      %v3315 = vcombine.low %v3314, %v2815
      %v3316 = vcombine.low %v803, %v812
      %v3318 = vunpack.c.l.s4 1983009808
      %v3319 = vunpack.c.0.s8 %v3318
      %v3320 = vlaneseq
      %v3321 = vshrl.u32 %v3320, 7
      %v3322 = vsub.s32 %v3319, %v3321
      %v3323 = vrot.slane %v3316, %v3322
      %v3324 = vcombine.low %v2822, %v3323
      %v3325 = vcombine.low %v2839, %v2849
      %v3326 = vcombine.low %v845, %v853
      %v3328 = vunpack.c.l.s4 1983009808
      %v3329 = vunpack.c.0.s8 %v3328
      %v3330 = vlaneseq
      %v3331 = vshrl.u32 %v3330, 7
      %v3332 = vsub.s32 %v3329, %v3331
      %v3333 = vrot.slane %v3326, %v3332
      %v3334 = vcombine.low %v2856, %v3333
      %v3335 = vcombine.low %v2873, %v2883
      %v3336 = vcombine.low %v869, %v878
      %v3338 = vunpack.c.l.s4 1983009808
      %v3339 = vunpack.c.0.s8 %v3338
      %v3340 = vlaneseq
      %v3341 = vshrl.u32 %v3340, 7
      %v3342 = vsub.s32 %v3339, %v3341
      %v3343 = vrot.slane %v3336, %v3342
      %v3344 = vcombine.low %v3343, %v2900
      %v3345 = vcombine.low %v2907, %v2917
      %v3346 = vcombine.low %v911, %v919
      %v3348 = vunpack.c.l.s4 1983009808
      %v3349 = vunpack.c.0.s8 %v3348
      %v3350 = vlaneseq
      %v3351 = vshrl.u32 %v3350, 7
      %v3352 = vsub.s32 %v3349, %v3351
      %v3353 = vrot.slane %v3346, %v3352
      %v3354 = vcombine.low %v3353, %v2934
      %v3355 = vcombine.low %v935, %v3203
      %v3357 = vunpack.c.l.s4 1983009808
      %v3358 = vunpack.c.0.s8 %v3357
      %v3359 = vlaneseq
      %v3360 = vshrl.u32 %v3359, 7
      %v3361 = vsub.s32 %v3358, %v3360
      %v3362 = vrot.slane %v3355, %v3361
      %v3363 = vcombine.low %v2941, %v3362
      %v3364 = vcombine.low %v3211, %v3210
      %v3365 = vcombine.low %v3212, %v3220
      %v3367 = vunpack.c.l.s4 1983009808
      %v3368 = vunpack.c.0.s8 %v3367
      %v3369 = vlaneseq
      %v3370 = vshrl.u32 %v3369, 7
      %v3371 = vsub.s32 %v3368, %v3370
      %v3372 = vrot.slane %v3364, %v3371
      %v3374 = vunpack.c.l.s4 1983009808
      %v3375 = vunpack.c.0.s8 %v3374
      %v3376 = vlaneseq
      %v3377 = vshrl.u32 %v3376, 7
      %v3378 = vsub.s32 %v3375, %v3377
      %v3379 = vrot.slane %v3365, %v3378
      %v3380 = vcombine.low %v3372, %v3379
      %v3381 = vcombine.low %v3228, %v3227
      %v3383 = vunpack.c.l.s4 1983009808
      %v3384 = vunpack.c.0.s8 %v3383
      %v3385 = vlaneseq
      %v3386 = vshrl.u32 %v3385, 7
      %v3387 = vsub.s32 %v3384, %v3386
      %v3388 = vrot.slane %v3381, %v3387
      %v3414 = vpack.c.bf16 %v3246, %v3237
      %v3415 = vpack.c.bf16 %v3256, %v3247
      %v3416 = vpack.c.bf16 %v3266, %v3257
      %v3417 = vpack.c.bf16 %v3276, %v3267
      %v3418 = vpack.c.bf16 %v3286, %v3285
      %v3419 = vpack.c.bf16 %v3296, %v3295
      %v3420 = vpack.c.bf16 %v3306, %v3305
      %v3421 = vpack.c.bf16 %v3324, %v3315
      %v3422 = vpack.c.bf16 %v3334, %v3325
      %v3423 = vpack.c.bf16 %v3344, %v3335
      %v3424 = vpack.c.bf16 %v3354, %v3345
      %v3425 = vpack.c.bf16 %v3380, %v3363
      %v3426 = vpack.c.bf16 %v3388, %v3388
      %s3427 = scalar_lea.vmem %s1, 6
      %v3428 = vld [vmem:[%s3427] sm:$0x3]
      %v3430 = vsel %vm2177, %v3414, 0
      %v3433 = vsel %vm2177, %v3415, 0
      %v3436 = vsel %vm2177, %v3416, 0
      %v3439 = vsel %vm2177, %v3417, 0
      %v3442 = vsel %vm2177, %v3418, 0
      %v3445 = vsel %vm2177, %v3419, 0
      %v3448 = vsel %vm2177, %v3420, 0
      %v3451 = vsel %vm2177, %v3421, 0
      %v3454 = vsel %vm2177, %v3422, 0
      %v3457 = vsel %vm2177, %v3423, 0
      %v3460 = vsel %vm2177, %v3424, 0
      %v3463 = vsel %vm2177, %v3425, 0
      %v3466 = vsel %vm2177, %v3426, 0
      %v3469 = vsel %vm2217, %v3428, 0
      %3471 = vmatprep.subr.bf16.mxu0 0
      %3472 = vmatpush1.bf16.msra.mxu0 0
      %3473 = vmatprep.subr.bf16.mxu0 0
      %3474 = vmatpush1.bf16.msra.mxu0 0
      %3475 = vmatprep.subr.bf16.mxu0 0
      %3476 = vmatpush1.bf16.msra.mxu0 0
      %3477 = vmatprep.subr.bf16.mxu0 0
      %3478 = vmatpush1.bf16.msra.mxu0 0
      %3479 = vmatprep.subr.bf16.mxu0 0
      %3480 = vmatpush1.bf16.msra.mxu0 0
      %3481 = vmatprep.subr.bf16.mxu0 0
      %3482 = vmatpush1.bf16.msra.mxu0 0
      %3483 = vmatprep.subr.bf16.mxu0 0
      %3484 = vmatpush1.bf16.msra.mxu0 0
      %3485 = vmatprep.subr.bf16.mxu0 0
      %3486 = vmatpush1.bf16.msra.mxu0 %v3469
      %3487 = vmatprep.subr.bf16.mxu0 0
      %3488 = vmatpush2.bf16.msra.mxu0 0
      %3489 = vmatprep.subr.bf16.mxu0 0
      %3490 = vmatpush2.bf16.msra.mxu0 0
      %3491 = vmatprep.subr.bf16.mxu0 0
      %3492 = vmatpush2.bf16.msra.mxu0 0
      %3493 = vmatprep.subr.bf16.mxu0 0
      %3494 = vmatpush2.bf16.msra.mxu0 0
      %3495 = vmatprep.subr.bf16.mxu0 0
      %3496 = vmatpush2.bf16.msra.mxu0 0
      %3497 = vmatprep.subr.bf16.mxu0 0
      %3498 = vmatpush2.bf16.msra.mxu0 0
      %3499 = vmatprep.subr.bf16.mxu0 0
      %3500 = vmatpush2.bf16.msra.mxu0 0
      %3501 = vmatprep.subr.bf16.mxu0 0
      %3502 = vmatpush2.bf16.msra.mxu0 0
      %3503 = vmatprep.mubr.bf16.mxu0 0
      %3504 = vmatmul.mubr.bf16.gmra.mxu0 %v3430
      %v3505 = vpop.f32.mrf.mxu0
      %v3506 = vadd.f32 0.0, %v3505
      %v3507 = vpop.f32.mrf.mxu0
      %v3508 = vpop.f32.mrf.mxu0
      %v3509 = vadd.f32 0.0, %v3508
      %v3510 = vpop.f32.mrf.mxu0
      %3511 = vmatprep.mubr.bf16.mxu0 0
      %3512 = vmatmul.mubr.bf16.gmra.mxu0 %v3433
      %v3513 = vpop.f32.mrf.mxu0
      %v3514 = vadd.f32 0.0, %v3513
      %v3515 = vpop.f32.mrf.mxu0
      %v3516 = vpop.f32.mrf.mxu0
      %v3517 = vadd.f32 0.0, %v3516
      %v3518 = vpop.f32.mrf.mxu0
      %3519 = vmatprep.mubr.bf16.mxu0 0
      %3520 = vmatmul.mubr.bf16.gmra.mxu0 %v3436
      %v3521 = vpop.f32.mrf.mxu0
      %v3522 = vadd.f32 0.0, %v3521
      %v3523 = vpop.f32.mrf.mxu0
      %v3524 = vpop.f32.mrf.mxu0
      %v3525 = vadd.f32 0.0, %v3524
      %v3526 = vpop.f32.mrf.mxu0
      %3527 = vmatprep.mubr.bf16.mxu0 0
      %3528 = vmatmul.mubr.bf16.gmra.mxu0 %v3439
      %v3529 = vpop.f32.mrf.mxu0
      %v3530 = vadd.f32 0.0, %v3529
      %v3531 = vpop.f32.mrf.mxu0
      %v3532 = vpop.f32.mrf.mxu0
      %v3533 = vadd.f32 0.0, %v3532
      %v3534 = vpop.f32.mrf.mxu0
      %3535 = vmatprep.mubr.bf16.mxu0 0
      %3536 = vmatmul.mubr.bf16.gmra.mxu0 %v3442
      %v3537 = vpop.f32.mrf.mxu0
      %v3538 = vadd.f32 0.0, %v3537
      %v3539 = vpop.f32.mrf.mxu0
      %v3540 = vpop.f32.mrf.mxu0
      %v3541 = vadd.f32 0.0, %v3540
      %v3542 = vpop.f32.mrf.mxu0
      %3543 = vmatprep.mubr.bf16.mxu0 0
      %3544 = vmatmul.mubr.bf16.gmra.mxu0 %v3445
      %v3545 = vpop.f32.mrf.mxu0
      %v3546 = vadd.f32 0.0, %v3545
      %v3547 = vpop.f32.mrf.mxu0
      %v3548 = vpop.f32.mrf.mxu0
      %v3549 = vadd.f32 0.0, %v3548
      %v3550 = vpop.f32.mrf.mxu0
      %3551 = vmatprep.mubr.bf16.mxu0 0
      %3552 = vmatmul.mubr.bf16.gmra.mxu0 %v3448
      %v3553 = vpop.f32.mrf.mxu0
      %v3554 = vadd.f32 0.0, %v3553
      %v3555 = vpop.f32.mrf.mxu0
      %v3556 = vpop.f32.mrf.mxu0
      %v3557 = vadd.f32 0.0, %v3556
      %v3558 = vpop.f32.mrf.mxu0
      %3559 = vmatprep.mubr.bf16.mxu0 0
      %3560 = vmatmul.mubr.bf16.gmra.mxu0 %v3451
      %v3561 = vpop.f32.mrf.mxu0
      %v3562 = vadd.f32 0.0, %v3561
      %v3563 = vpop.f32.mrf.mxu0
      %v3564 = vpop.f32.mrf.mxu0
      %v3565 = vadd.f32 0.0, %v3564
      %v3566 = vpop.f32.mrf.mxu0
      %3567 = vmatprep.mubr.bf16.mxu0 0
      %3568 = vmatmul.mubr.bf16.gmra.mxu0 %v3454
      %v3569 = vpop.f32.mrf.mxu0
      %v3570 = vadd.f32 0.0, %v3569
      %v3571 = vpop.f32.mrf.mxu0
      %v3572 = vpop.f32.mrf.mxu0
      %v3573 = vadd.f32 0.0, %v3572
      %v3574 = vpop.f32.mrf.mxu0
      %3575 = vmatprep.mubr.bf16.mxu0 0
      %3576 = vmatmul.mubr.bf16.gmra.mxu0 %v3457
      %v3577 = vpop.f32.mrf.mxu0
      %v3578 = vadd.f32 0.0, %v3577
      %v3579 = vpop.f32.mrf.mxu0
      %v3580 = vpop.f32.mrf.mxu0
      %v3581 = vadd.f32 0.0, %v3580
      %v3582 = vpop.f32.mrf.mxu0
      %3583 = vmatprep.mubr.bf16.mxu0 0
      %3584 = vmatmul.mubr.bf16.gmra.mxu0 %v3460
      %v3585 = vpop.f32.mrf.mxu0
      %v3586 = vadd.f32 0.0, %v3585
      %v3587 = vpop.f32.mrf.mxu0
      %v3588 = vpop.f32.mrf.mxu0
      %v3589 = vadd.f32 0.0, %v3588
      %v3590 = vpop.f32.mrf.mxu0
      %3591 = vmatprep.mubr.bf16.mxu0 0
      %3592 = vmatmul.mubr.bf16.gmra.mxu0 %v3463
      %v3593 = vpop.f32.mrf.mxu0
      %v3594 = vadd.f32 0.0, %v3593
      %v3595 = vpop.f32.mrf.mxu0
      %v3596 = vpop.f32.mrf.mxu0
      %v3597 = vadd.f32 0.0, %v3596
      %v3598 = vpop.f32.mrf.mxu0
      %3599 = vmatprep.mubr.bf16.mxu0 0
      %3600 = vmatmul.mubr.bf16.gmra.mxu0 %v3466
      %v3601 = vpop.f32.mrf.mxu0
      %v3602 = vadd.f32 0.0, %v3601
      %v3603 = vpop.f32.mrf.mxu0
      %v3604 = vpop.f32.mrf.mxu0
      %v3605 = vpop.f32.mrf.mxu0
      %3606 = vdwg.mxu0
      %v3607 = vadd.f32 %v3169, %v3506
      %v3608 = vadd.f32 %v3170, %v3509
      %v3609 = vadd.f32 %v3171, %v3514
      %v3610 = vadd.f32 %v3172, %v3517
      %v3611 = vadd.f32 %v3173, %v3522
      %v3612 = vadd.f32 %v3174, %v3525
      %v3613 = vadd.f32 %v3175, %v3530
      %v3614 = vadd.f32 %v3176, %v3533
      %v3615 = vadd.f32 %v3177, %v3538
      %v3616 = vadd.f32 %v3178, %v3541
      %v3617 = vadd.f32 %v3179, %v3546
      %v3618 = vadd.f32 %v3180, %v3549
      %v3619 = vadd.f32 %v3181, %v3554
      %v3620 = vadd.f32 %v3182, %v3557
      %v3621 = vadd.f32 %v3183, %v3562
      %v3622 = vadd.f32 %v3184, %v3565
      %v3623 = vadd.f32 %v3185, %v3570
      %v3624 = vadd.f32 %v3186, %v3573
      %v3625 = vadd.f32 %v3187, %v3578
      %v3626 = vadd.f32 %v3188, %v3581
      %v3627 = vadd.f32 %v3189, %v3586
      %v3628 = vadd.f32 %v3190, %v3589
      %v3629 = vadd.f32 %v3191, %v3594
      %v3630 = vadd.f32 %v3192, %v3597
      %v3631 = vadd.f32 %v3193, %v3602
      %v3632 = vcombine.high %v3227, %v3227
      %v3633 = vrot.slane %v3203, 7
      %v3634 = vrot.slane %v3633, 2
      %v3635 = vrot.slane %v3211, 7
      %v3636 = vsel %vm1412, %v3634, %v3635
      %v3637 = vrot.slane %v3635, 2
      %v3638 = vrot.slane %v3210, 7
      %v3639 = vsel %vm1412, %v3637, %v3638
      %v3640 = vrot.slane %v3638, 2
      %v3641 = vrot.slane %v3212, 7
      %v3642 = vsel %vm1412, %v3640, %v3641
      %v3643 = vrot.slane %v3641, 2
      %v3644 = vrot.slane %v3220, 7
      %v3645 = vsel %vm1412, %v3643, %v3644
      %v3646 = vrot.slane %v3644, 2
      %v3647 = vrot.slane %v3228, 7
      %v3648 = vsel %vm1412, %v3646, %v3647
      %v3649 = vrot.slane %v3647, 2
      %v3650 = vrot.slane %v3227, 7
      %v3651 = vsel %vm1412, %v3649, %v3650
      %v3652 = vrot.slane %v3650, 2
      %v3653 = vrot.slane %v3632, 7
      %v3654 = vsel %vm1412, %v3652, %v3653
      %v3655 = vcombine.low %v1438, %v1441
      %v3656 = vcombine.low %v1444, %v1447
      %v3658 = vunpack.c.l.s4 1983009808
      %v3659 = vunpack.c.0.s8 %v3658
      %v3660 = vlaneseq
      %v3661 = vshrl.u32 %v3660, 7
      %v3662 = vsub.s32 %v3659, %v3661
      %v3663 = vrot.slane %v3655, %v3662
      %v3665 = vunpack.c.l.s4 1983009808
      %v3666 = vunpack.c.0.s8 %v3665
      %v3667 = vlaneseq
      %v3668 = vshrl.u32 %v3667, 7
      %v3669 = vsub.s32 %v3666, %v3668
      %v3670 = vrot.slane %v3656, %v3669
      %v3671 = vcombine.low %v3663, %v3670
      %v3672 = vcombine.low %v1450, %v1453
      %v3673 = vcombine.low %v1456, %v1460
      %v3675 = vunpack.c.l.s4 1983009808
      %v3676 = vunpack.c.0.s8 %v3675
      %v3677 = vlaneseq
      %v3678 = vshrl.u32 %v3677, 7
      %v3679 = vsub.s32 %v3676, %v3678
      %v3680 = vrot.slane %v3672, %v3679
      %v3682 = vunpack.c.l.s4 1983009808
      %v3683 = vunpack.c.0.s8 %v3682
      %v3684 = vlaneseq
      %v3685 = vshrl.u32 %v3684, 7
      %v3686 = vsub.s32 %v3683, %v3685
      %v3687 = vrot.slane %v3673, %v3686
      %v3688 = vcombine.low %v3680, %v3687
      %v3689 = vcombine.low %v1463, %v1466
      %v3690 = vcombine.low %v1469, %v1472
      %v3692 = vunpack.c.l.s4 1983009808
      %v3693 = vunpack.c.0.s8 %v3692
      %v3694 = vlaneseq
      %v3695 = vshrl.u32 %v3694, 7
      %v3696 = vsub.s32 %v3693, %v3695
      %v3697 = vrot.slane %v3689, %v3696
      %v3699 = vunpack.c.l.s4 1983009808
      %v3700 = vunpack.c.0.s8 %v3699
      %v3701 = vlaneseq
      %v3702 = vshrl.u32 %v3701, 7
      %v3703 = vsub.s32 %v3700, %v3702
      %v3704 = vrot.slane %v3690, %v3703
      %v3705 = vcombine.low %v3697, %v3704
      %v3706 = vcombine.low %v1475, %v1478
      %v3707 = vcombine.low %v1482, %v1485
      %v3709 = vunpack.c.l.s4 1983009808
      %v3710 = vunpack.c.0.s8 %v3709
      %v3711 = vlaneseq
      %v3712 = vshrl.u32 %v3711, 7
      %v3713 = vsub.s32 %v3710, %v3712
      %v3714 = vrot.slane %v3706, %v3713
      %v3716 = vunpack.c.l.s4 1983009808
      %v3717 = vunpack.c.0.s8 %v3716
      %v3718 = vlaneseq
      %v3719 = vshrl.u32 %v3718, 7
      %v3720 = vsub.s32 %v3717, %v3719
      %v3721 = vrot.slane %v3707, %v3720
      %v3722 = vcombine.low %v3714, %v3721
      %v3723 = vcombine.low %v1488, %v1491
      %v3724 = vcombine.low %v1494, %v1497
      %v3726 = vunpack.c.l.s4 1983009808
      %v3727 = vunpack.c.0.s8 %v3726
      %v3728 = vlaneseq
      %v3729 = vshrl.u32 %v3728, 7
      %v3730 = vsub.s32 %v3727, %v3729
      %v3731 = vrot.slane %v3723, %v3730
      %v3733 = vunpack.c.l.s4 1983009808
      %v3734 = vunpack.c.0.s8 %v3733
      %v3735 = vlaneseq
      %v3736 = vshrl.u32 %v3735, 7
      %v3737 = vsub.s32 %v3734, %v3736
      %v3738 = vrot.slane %v3724, %v3737
      %v3739 = vcombine.low %v3731, %v3738
      %v3740 = vcombine.low %v1500, %v1504
      %v3741 = vcombine.low %v1507, %v1510
      %v3743 = vunpack.c.l.s4 1983009808
      %v3744 = vunpack.c.0.s8 %v3743
      %v3745 = vlaneseq
      %v3746 = vshrl.u32 %v3745, 7
      %v3747 = vsub.s32 %v3744, %v3746
      %v3748 = vrot.slane %v3740, %v3747
      %v3750 = vunpack.c.l.s4 1983009808
      %v3751 = vunpack.c.0.s8 %v3750
      %v3752 = vlaneseq
      %v3753 = vshrl.u32 %v3752, 7
      %v3754 = vsub.s32 %v3751, %v3753
      %v3755 = vrot.slane %v3741, %v3754
      %v3756 = vcombine.low %v3748, %v3755
      %v3757 = vcombine.low %v1513, %v1516
      %v3758 = vcombine.low %v1519, %v1522
      %v3760 = vunpack.c.l.s4 1983009808
      %v3761 = vunpack.c.0.s8 %v3760
      %v3762 = vlaneseq
      %v3763 = vshrl.u32 %v3762, 7
      %v3764 = vsub.s32 %v3761, %v3763
      %v3765 = vrot.slane %v3757, %v3764
      %v3767 = vunpack.c.l.s4 1983009808
      %v3768 = vunpack.c.0.s8 %v3767
      %v3769 = vlaneseq
      %v3770 = vshrl.u32 %v3769, 7
      %v3771 = vsub.s32 %v3768, %v3770
      %v3772 = vrot.slane %v3758, %v3771
      %v3773 = vcombine.low %v3765, %v3772
      %v3774 = vcombine.low %v1526, %v1529
      %v3775 = vcombine.low %v1532, %v1535
      %v3777 = vunpack.c.l.s4 1983009808
      %v3778 = vunpack.c.0.s8 %v3777
      %v3779 = vlaneseq
      %v3780 = vshrl.u32 %v3779, 7
      %v3781 = vsub.s32 %v3778, %v3780
      %v3782 = vrot.slane %v3774, %v3781
      %v3784 = vunpack.c.l.s4 1983009808
      %v3785 = vunpack.c.0.s8 %v3784
      %v3786 = vlaneseq
      %v3787 = vshrl.u32 %v3786, 7
      %v3788 = vsub.s32 %v3785, %v3787
      %v3789 = vrot.slane %v3775, %v3788
      %v3790 = vcombine.low %v3782, %v3789
      %v3791 = vcombine.low %v1538, %v1541
      %v3792 = vcombine.low %v1544, %v1548
      %v3794 = vunpack.c.l.s4 1983009808
      %v3795 = vunpack.c.0.s8 %v3794
      %v3796 = vlaneseq
      %v3797 = vshrl.u32 %v3796, 7
      %v3798 = vsub.s32 %v3795, %v3797
      %v3799 = vrot.slane %v3791, %v3798
      %v3801 = vunpack.c.l.s4 1983009808
      %v3802 = vunpack.c.0.s8 %v3801
      %v3803 = vlaneseq
      %v3804 = vshrl.u32 %v3803, 7
      %v3805 = vsub.s32 %v3802, %v3804
      %v3806 = vrot.slane %v3792, %v3805
      %v3807 = vcombine.low %v3799, %v3806
      %v3808 = vcombine.low %v1551, %v1554
      %v3809 = vcombine.low %v1557, %v1560
      %v3811 = vunpack.c.l.s4 1983009808
      %v3812 = vunpack.c.0.s8 %v3811
      %v3813 = vlaneseq
      %v3814 = vshrl.u32 %v3813, 7
      %v3815 = vsub.s32 %v3812, %v3814
      %v3816 = vrot.slane %v3808, %v3815
      %v3818 = vunpack.c.l.s4 1983009808
      %v3819 = vunpack.c.0.s8 %v3818
      %v3820 = vlaneseq
      %v3821 = vshrl.u32 %v3820, 7
      %v3822 = vsub.s32 %v3819, %v3821
      %v3823 = vrot.slane %v3809, %v3822
      %v3824 = vcombine.low %v3816, %v3823
      %v3825 = vcombine.low %v1563, %v1566
      %v3826 = vcombine.low %v1570, %v1573
      %v3828 = vunpack.c.l.s4 1983009808
      %v3829 = vunpack.c.0.s8 %v3828
      %v3830 = vlaneseq
      %v3831 = vshrl.u32 %v3830, 7
      %v3832 = vsub.s32 %v3829, %v3831
      %v3833 = vrot.slane %v3825, %v3832
      %v3835 = vunpack.c.l.s4 1983009808
      %v3836 = vunpack.c.0.s8 %v3835
      %v3837 = vlaneseq
      %v3838 = vshrl.u32 %v3837, 7
      %v3839 = vsub.s32 %v3836, %v3838
      %v3840 = vrot.slane %v3826, %v3839
      %v3841 = vcombine.low %v3833, %v3840
      %v3842 = vcombine.low %v1576, %v1579
      %v3843 = vcombine.low %v1582, %v1585
      %v3845 = vunpack.c.l.s4 1983009808
      %v3846 = vunpack.c.0.s8 %v3845
      %v3847 = vlaneseq
      %v3848 = vshrl.u32 %v3847, 7
      %v3849 = vsub.s32 %v3846, %v3848
      %v3850 = vrot.slane %v3842, %v3849
      %v3852 = vunpack.c.l.s4 1983009808
      %v3853 = vunpack.c.0.s8 %v3852
      %v3854 = vlaneseq
      %v3855 = vshrl.u32 %v3854, 7
      %v3856 = vsub.s32 %v3853, %v3855
      %v3857 = vrot.slane %v3843, %v3856
      %v3858 = vcombine.low %v3850, %v3857
      %v3859 = vcombine.low %v1588, %v1592
      %v3860 = vcombine.low %v1595, %v1598
      %v3862 = vunpack.c.l.s4 1983009808
      %v3863 = vunpack.c.0.s8 %v3862
      %v3864 = vlaneseq
      %v3865 = vshrl.u32 %v3864, 7
      %v3866 = vsub.s32 %v3863, %v3865
      %v3867 = vrot.slane %v3859, %v3866
      %v3869 = vunpack.c.l.s4 1983009808
      %v3870 = vunpack.c.0.s8 %v3869
      %v3871 = vlaneseq
      %v3872 = vshrl.u32 %v3871, 7
      %v3873 = vsub.s32 %v3870, %v3872
      %v3874 = vrot.slane %v3860, %v3873
      %v3875 = vcombine.low %v3867, %v3874
      %v3876 = vcombine.low %v1601, %v1604
      %v3877 = vcombine.low %v1607, %v1610
      %v3879 = vunpack.c.l.s4 1983009808
      %v3880 = vunpack.c.0.s8 %v3879
      %v3881 = vlaneseq
      %v3882 = vshrl.u32 %v3881, 7
      %v3883 = vsub.s32 %v3880, %v3882
      %v3884 = vrot.slane %v3876, %v3883
      %v3886 = vunpack.c.l.s4 1983009808
      %v3887 = vunpack.c.0.s8 %v3886
      %v3888 = vlaneseq
      %v3889 = vshrl.u32 %v3888, 7
      %v3890 = vsub.s32 %v3887, %v3889
      %v3891 = vrot.slane %v3877, %v3890
      %v3892 = vcombine.low %v3884, %v3891
      %v3893 = vcombine.low %v1614, %v1617
      %v3894 = vcombine.low %v1620, %v1623
      %v3896 = vunpack.c.l.s4 1983009808
      %v3897 = vunpack.c.0.s8 %v3896
      %v3898 = vlaneseq
      %v3899 = vshrl.u32 %v3898, 7
      %v3900 = vsub.s32 %v3897, %v3899
      %v3901 = vrot.slane %v3893, %v3900
      %v3903 = vunpack.c.l.s4 1983009808
      %v3904 = vunpack.c.0.s8 %v3903
      %v3905 = vlaneseq
      %v3906 = vshrl.u32 %v3905, 7
      %v3907 = vsub.s32 %v3904, %v3906
      %v3908 = vrot.slane %v3894, %v3907
      %v3909 = vcombine.low %v3901, %v3908
      %v3910 = vcombine.low %v1626, %v1629
      %v3911 = vcombine.low %v1632, %v1636
      %v3913 = vunpack.c.l.s4 1983009808
      %v3914 = vunpack.c.0.s8 %v3913
      %v3915 = vlaneseq
      %v3916 = vshrl.u32 %v3915, 7
      %v3917 = vsub.s32 %v3914, %v3916
      %v3918 = vrot.slane %v3910, %v3917
      %v3920 = vunpack.c.l.s4 1983009808
      %v3921 = vunpack.c.0.s8 %v3920
      %v3922 = vlaneseq
      %v3923 = vshrl.u32 %v3922, 7
      %v3924 = vsub.s32 %v3921, %v3923
      %v3925 = vrot.slane %v3911, %v3924
      %v3926 = vcombine.low %v3918, %v3925
      %v3927 = vcombine.low %v1639, %v1642
      %v3928 = vcombine.low %v1645, %v1648
      %v3930 = vunpack.c.l.s4 1983009808
      %v3931 = vunpack.c.0.s8 %v3930
      %v3932 = vlaneseq
      %v3933 = vshrl.u32 %v3932, 7
      %v3934 = vsub.s32 %v3931, %v3933
      %v3935 = vrot.slane %v3927, %v3934
      %v3937 = vunpack.c.l.s4 1983009808
      %v3938 = vunpack.c.0.s8 %v3937
      %v3939 = vlaneseq
      %v3940 = vshrl.u32 %v3939, 7
      %v3941 = vsub.s32 %v3938, %v3940
      %v3942 = vrot.slane %v3928, %v3941
      %v3943 = vcombine.low %v3935, %v3942
      %v3944 = vcombine.low %v1651, %v1654
      %v3945 = vcombine.low %v1658, %v1661
      %v3947 = vunpack.c.l.s4 1983009808
      %v3948 = vunpack.c.0.s8 %v3947
      %v3949 = vlaneseq
      %v3950 = vshrl.u32 %v3949, 7
      %v3951 = vsub.s32 %v3948, %v3950
      %v3952 = vrot.slane %v3944, %v3951
      %v3954 = vunpack.c.l.s4 1983009808
      %v3955 = vunpack.c.0.s8 %v3954
      %v3956 = vlaneseq
      %v3957 = vshrl.u32 %v3956, 7
      %v3958 = vsub.s32 %v3955, %v3957
      %v3959 = vrot.slane %v3945, %v3958
      %v3960 = vcombine.low %v3952, %v3959
      %v3961 = vcombine.low %v1664, %v1667
      %v3962 = vcombine.low %v1670, %v1673
      %v3964 = vunpack.c.l.s4 1983009808
      %v3965 = vunpack.c.0.s8 %v3964
      %v3966 = vlaneseq
      %v3967 = vshrl.u32 %v3966, 7
      %v3968 = vsub.s32 %v3965, %v3967
      %v3969 = vrot.slane %v3961, %v3968
      %v3971 = vunpack.c.l.s4 1983009808
      %v3972 = vunpack.c.0.s8 %v3971
      %v3973 = vlaneseq
      %v3974 = vshrl.u32 %v3973, 7
      %v3975 = vsub.s32 %v3972, %v3974
      %v3976 = vrot.slane %v3962, %v3975
      %v3977 = vcombine.low %v3969, %v3976
      %v3978 = vcombine.low %v1676, %v1680
      %v3979 = vcombine.low %v1683, %v1686
      %v3981 = vunpack.c.l.s4 1983009808
      %v3982 = vunpack.c.0.s8 %v3981
      %v3983 = vlaneseq
      %v3984 = vshrl.u32 %v3983, 7
      %v3985 = vsub.s32 %v3982, %v3984
      %v3986 = vrot.slane %v3978, %v3985
      %v3988 = vunpack.c.l.s4 1983009808
      %v3989 = vunpack.c.0.s8 %v3988
      %v3990 = vlaneseq
      %v3991 = vshrl.u32 %v3990, 7
      %v3992 = vsub.s32 %v3989, %v3991
      %v3993 = vrot.slane %v3979, %v3992
      %v3994 = vcombine.low %v3986, %v3993
      %v3995 = vcombine.low %v1689, %v1692
      %v3996 = vcombine.low %v1695, %v1698
      %v3998 = vunpack.c.l.s4 1983009808
      %v3999 = vunpack.c.0.s8 %v3998
      %v4000 = vlaneseq
      %v4001 = vshrl.u32 %v4000, 7
      %v4002 = vsub.s32 %v3999, %v4001
      %v4003 = vrot.slane %v3995, %v4002
      %v4005 = vunpack.c.l.s4 1983009808
      %v4006 = vunpack.c.0.s8 %v4005
      %v4007 = vlaneseq
      %v4008 = vshrl.u32 %v4007, 7
      %v4009 = vsub.s32 %v4006, %v4008
      %v4010 = vrot.slane %v3996, %v4009
      %v4011 = vcombine.low %v4003, %v4010
      %v4012 = vcombine.low %v1702, %v1705
      %v4013 = vcombine.low %v1708, %v1711
      %v4015 = vunpack.c.l.s4 1983009808
      %v4016 = vunpack.c.0.s8 %v4015
      %v4017 = vlaneseq
      %v4018 = vshrl.u32 %v4017, 7
      %v4019 = vsub.s32 %v4016, %v4018
      %v4020 = vrot.slane %v4012, %v4019
      %v4022 = vunpack.c.l.s4 1983009808
      %v4023 = vunpack.c.0.s8 %v4022
      %v4024 = vlaneseq
      %v4025 = vshrl.u32 %v4024, 7
      %v4026 = vsub.s32 %v4023, %v4025
      %v4027 = vrot.slane %v4013, %v4026
      %v4028 = vcombine.low %v4020, %v4027
      %v4029 = vcombine.low %v1714, %v1717
      %v4030 = vcombine.low %v1720, %v3636
      %v4032 = vunpack.c.l.s4 1983009808
      %v4033 = vunpack.c.0.s8 %v4032
      %v4034 = vlaneseq
      %v4035 = vshrl.u32 %v4034, 7
      %v4036 = vsub.s32 %v4033, %v4035
      %v4037 = vrot.slane %v4029, %v4036
      %v4039 = vunpack.c.l.s4 1983009808
      %v4040 = vunpack.c.0.s8 %v4039
      %v4041 = vlaneseq
      %v4042 = vshrl.u32 %v4041, 7
      %v4043 = vsub.s32 %v4040, %v4042
      %v4044 = vrot.slane %v4030, %v4043
      %v4045 = vcombine.low %v4037, %v4044
      %v4046 = vcombine.low %v3639, %v3642
      %v4047 = vcombine.low %v3645, %v3648
      %v4049 = vunpack.c.l.s4 1983009808
      %v4050 = vunpack.c.0.s8 %v4049
      %v4051 = vlaneseq
      %v4052 = vshrl.u32 %v4051, 7
      %v4053 = vsub.s32 %v4050, %v4052
      %v4054 = vrot.slane %v4046, %v4053
      %v4056 = vunpack.c.l.s4 1983009808
      %v4057 = vunpack.c.0.s8 %v4056
      %v4058 = vlaneseq
      %v4059 = vshrl.u32 %v4058, 7
      %v4060 = vsub.s32 %v4057, %v4059
      %v4061 = vrot.slane %v4047, %v4060
      %v4062 = vcombine.low %v4054, %v4061
      %v4063 = vcombine.low %v3651, %v3654
      %v4065 = vunpack.c.l.s4 1983009808
      %v4066 = vunpack.c.0.s8 %v4065
      %v4067 = vlaneseq
      %v4068 = vshrl.u32 %v4067, 7
      %v4069 = vsub.s32 %v4066, %v4068
      %v4070 = vrot.slane %v4063, %v4069
      %v4096 = vpack.c.bf16 %v3688, %v3671
      %v4097 = vpack.c.bf16 %v3722, %v3705
      %v4098 = vpack.c.bf16 %v3756, %v3739
      %v4099 = vpack.c.bf16 %v3790, %v3773
      %v4100 = vpack.c.bf16 %v3824, %v3807
      %v4101 = vpack.c.bf16 %v3858, %v3841
      %v4102 = vpack.c.bf16 %v3892, %v3875
      %v4103 = vpack.c.bf16 %v3926, %v3909
      %v4104 = vpack.c.bf16 %v3960, %v3943
      %v4105 = vpack.c.bf16 %v3994, %v3977
      %v4106 = vpack.c.bf16 %v4028, %v4011
      %v4107 = vpack.c.bf16 %v4062, %v4045
      %v4108 = vpack.c.bf16 %v4070, %v4070
      %s4109 = scalar_lea.vmem %s1, 8
      %v4110 = vld [vmem:[%s4109] sm:$0x3]
      %v4112 = vsel %vm2177, %v4096, 0
      %v4115 = vsel %vm2177, %v4097, 0
      %v4118 = vsel %vm2177, %v4098, 0
      %v4121 = vsel %vm2177, %v4099, 0
      %v4124 = vsel %vm2177, %v4100, 0
      %v4127 = vsel %vm2177, %v4101, 0
      %v4130 = vsel %vm2177, %v4102, 0
      %v4133 = vsel %vm2177, %v4103, 0
      %v4136 = vsel %vm2177, %v4104, 0
      %v4139 = vsel %vm2177, %v4105, 0
      %v4142 = vsel %vm2177, %v4106, 0
      %v4145 = vsel %vm2177, %v4107, 0
      %v4148 = vsel %vm2177, %v4108, 0
      %v4151 = vsel %vm2217, %v4110, 0
      %4153 = vmatprep.subr.bf16.mxu0 0
      %4154 = vmatpush1.bf16.msra.mxu0 0
      %4155 = vmatprep.subr.bf16.mxu0 0
      %4156 = vmatpush1.bf16.msra.mxu0 0
      %4157 = vmatprep.subr.bf16.mxu0 0
      %4158 = vmatpush1.bf16.msra.mxu0 0
      %4159 = vmatprep.subr.bf16.mxu0 0
      %4160 = vmatpush1.bf16.msra.mxu0 0
      %4161 = vmatprep.subr.bf16.mxu0 0
      %4162 = vmatpush1.bf16.msra.mxu0 0
      %4163 = vmatprep.subr.bf16.mxu0 0
      %4164 = vmatpush1.bf16.msra.mxu0 0
      %4165 = vmatprep.subr.bf16.mxu0 0
      %4166 = vmatpush1.bf16.msra.mxu0 0
      %4167 = vmatprep.subr.bf16.mxu0 0
      %4168 = vmatpush1.bf16.msra.mxu0 %v4151
      %4169 = vmatprep.subr.bf16.mxu0 0
      %4170 = vmatpush2.bf16.msra.mxu0 0
      %4171 = vmatprep.subr.bf16.mxu0 0
      %4172 = vmatpush2.bf16.msra.mxu0 0
      %4173 = vmatprep.subr.bf16.mxu0 0
      %4174 = vmatpush2.bf16.msra.mxu0 0
      %4175 = vmatprep.subr.bf16.mxu0 0
      %4176 = vmatpush2.bf16.msra.mxu0 0
      %4177 = vmatprep.subr.bf16.mxu0 0
      %4178 = vmatpush2.bf16.msra.mxu0 0
      %4179 = vmatprep.subr.bf16.mxu0 0
      %4180 = vmatpush2.bf16.msra.mxu0 0
      %4181 = vmatprep.subr.bf16.mxu0 0
      %4182 = vmatpush2.bf16.msra.mxu0 0
      %4183 = vmatprep.subr.bf16.mxu0 0
      %4184 = vmatpush2.bf16.msra.mxu0 0
      %4185 = vmatprep.mubr.bf16.mxu0 0
      %4186 = vmatmul.mubr.bf16.gmra.mxu0 %v4112
      %v4187 = vpop.f32.mrf.mxu0
      %v4188 = vadd.f32 0.0, %v4187
      %v4189 = vpop.f32.mrf.mxu0
      %v4190 = vpop.f32.mrf.mxu0
      %v4191 = vadd.f32 0.0, %v4190
      %v4192 = vpop.f32.mrf.mxu0
      %4193 = vmatprep.mubr.bf16.mxu0 0
      %4194 = vmatmul.mubr.bf16.gmra.mxu0 %v4115
      %v4195 = vpop.f32.mrf.mxu0
      %v4196 = vadd.f32 0.0, %v4195
      %v4197 = vpop.f32.mrf.mxu0
      %v4198 = vpop.f32.mrf.mxu0
      %v4199 = vadd.f32 0.0, %v4198
      %v4200 = vpop.f32.mrf.mxu0
      %4201 = vmatprep.mubr.bf16.mxu0 0
      %4202 = vmatmul.mubr.bf16.gmra.mxu0 %v4118
      %v4203 = vpop.f32.mrf.mxu0
      %v4204 = vadd.f32 0.0, %v4203
      %v4205 = vpop.f32.mrf.mxu0
      %v4206 = vpop.f32.mrf.mxu0
      %v4207 = vadd.f32 0.0, %v4206
      %v4208 = vpop.f32.mrf.mxu0
      %4209 = vmatprep.mubr.bf16.mxu0 0
      %4210 = vmatmul.mubr.bf16.gmra.mxu0 %v4121
      %v4211 = vpop.f32.mrf.mxu0
      %v4212 = vadd.f32 0.0, %v4211
      %v4213 = vpop.f32.mrf.mxu0
      %v4214 = vpop.f32.mrf.mxu0
      %v4215 = vadd.f32 0.0, %v4214
      %v4216 = vpop.f32.mrf.mxu0
      %4217 = vmatprep.mubr.bf16.mxu0 0
      %4218 = vmatmul.mubr.bf16.gmra.mxu0 %v4124
      %v4219 = vpop.f32.mrf.mxu0
      %v4220 = vadd.f32 0.0, %v4219
      %v4221 = vpop.f32.mrf.mxu0
      %v4222 = vpop.f32.mrf.mxu0
      %v4223 = vadd.f32 0.0, %v4222
      %v4224 = vpop.f32.mrf.mxu0
      %4225 = vmatprep.mubr.bf16.mxu0 0
      %4226 = vmatmul.mubr.bf16.gmra.mxu0 %v4127
      %v4227 = vpop.f32.mrf.mxu0
      %v4228 = vadd.f32 0.0, %v4227
      %v4229 = vpop.f32.mrf.mxu0
      %v4230 = vpop.f32.mrf.mxu0
      %v4231 = vadd.f32 0.0, %v4230
      %v4232 = vpop.f32.mrf.mxu0
      %4233 = vmatprep.mubr.bf16.mxu0 0
      %4234 = vmatmul.mubr.bf16.gmra.mxu0 %v4130
      %v4235 = vpop.f32.mrf.mxu0
      %v4236 = vadd.f32 0.0, %v4235
      %v4237 = vpop.f32.mrf.mxu0
      %v4238 = vpop.f32.mrf.mxu0
      %v4239 = vadd.f32 0.0, %v4238
      %v4240 = vpop.f32.mrf.mxu0
      %4241 = vmatprep.mubr.bf16.mxu0 0
      %4242 = vmatmul.mubr.bf16.gmra.mxu0 %v4133
      %v4243 = vpop.f32.mrf.mxu0
      %v4244 = vadd.f32 0.0, %v4243
      %v4245 = vpop.f32.mrf.mxu0
      %v4246 = vpop.f32.mrf.mxu0
      %v4247 = vadd.f32 0.0, %v4246
      %v4248 = vpop.f32.mrf.mxu0
      %4249 = vmatprep.mubr.bf16.mxu0 0
      %4250 = vmatmul.mubr.bf16.gmra.mxu0 %v4136
      %v4251 = vpop.f32.mrf.mxu0
      %v4252 = vadd.f32 0.0, %v4251
      %v4253 = vpop.f32.mrf.mxu0
      %v4254 = vpop.f32.mrf.mxu0
      %v4255 = vadd.f32 0.0, %v4254
      %v4256 = vpop.f32.mrf.mxu0
      %4257 = vmatprep.mubr.bf16.mxu0 0
      %4258 = vmatmul.mubr.bf16.gmra.mxu0 %v4139
      %v4259 = vpop.f32.mrf.mxu0
      %v4260 = vadd.f32 0.0, %v4259
      %v4261 = vpop.f32.mrf.mxu0
      %v4262 = vpop.f32.mrf.mxu0
      %v4263 = vadd.f32 0.0, %v4262
      %v4264 = vpop.f32.mrf.mxu0
      %4265 = vmatprep.mubr.bf16.mxu0 0
      %4266 = vmatmul.mubr.bf16.gmra.mxu0 %v4142
      %v4267 = vpop.f32.mrf.mxu0
      %v4268 = vadd.f32 0.0, %v4267
      %v4269 = vpop.f32.mrf.mxu0
      %v4270 = vpop.f32.mrf.mxu0
      %v4271 = vadd.f32 0.0, %v4270
      %v4272 = vpop.f32.mrf.mxu0
      %4273 = vmatprep.mubr.bf16.mxu0 0
      %4274 = vmatmul.mubr.bf16.gmra.mxu0 %v4145
      %v4275 = vpop.f32.mrf.mxu0
      %v4276 = vadd.f32 0.0, %v4275
      %v4277 = vpop.f32.mrf.mxu0
      %v4278 = vpop.f32.mrf.mxu0
      %v4279 = vadd.f32 0.0, %v4278
      %v4280 = vpop.f32.mrf.mxu0
      %4281 = vmatprep.mubr.bf16.mxu0 0
      %4282 = vmatmul.mubr.bf16.gmra.mxu0 %v4148
      %v4283 = vpop.f32.mrf.mxu0
      %v4284 = vadd.f32 0.0, %v4283
      %v4285 = vpop.f32.mrf.mxu0
      %v4286 = vpop.f32.mrf.mxu0
      %v4287 = vpop.f32.mrf.mxu0
      %4288 = vdwg.mxu0
      %v4289 = vadd.f32 %v3607, %v4188
      %v4290 = vadd.f32 %v3608, %v4191
      %v4291 = vadd.f32 %v3609, %v4196
      %v4292 = vadd.f32 %v3610, %v4199
      %v4293 = vadd.f32 %v3611, %v4204
      %v4294 = vadd.f32 %v3612, %v4207
      %v4295 = vadd.f32 %v3613, %v4212
      %v4296 = vadd.f32 %v3614, %v4215
      %v4297 = vadd.f32 %v3615, %v4220
      %v4298 = vadd.f32 %v3616, %v4223
      %v4299 = vadd.f32 %v3617, %v4228
      %v4300 = vadd.f32 %v3618, %v4231
      %v4301 = vadd.f32 %v3619, %v4236
      %v4302 = vadd.f32 %v3620, %v4239
      %v4303 = vadd.f32 %v3621, %v4244
      %v4304 = vadd.f32 %v3622, %v4247
      %v4305 = vadd.f32 %v3623, %v4252
      %v4306 = vadd.f32 %v3624, %v4255
      %v4307 = vadd.f32 %v3625, %v4260
      %v4308 = vadd.f32 %v3626, %v4263
      %v4309 = vadd.f32 %v3627, %v4268
      %v4310 = vadd.f32 %v3628, %v4271
      %v4311 = vadd.f32 %v3629, %v4276
      %v4312 = vadd.f32 %v3630, %v4279
      %v4313 = vadd.f32 %v3631, %v4284
      %v4314 = vcombine.low %v1393, %v556
      %v4316 = vunpack.c.l.s4 1983009808
      %v4317 = vunpack.c.0.s8 %v4316
      %v4318 = vlaneseq
      %v4319 = vshrl.u32 %v4318, 7
      %v4320 = vsub.s32 %v4317, %v4319
      %v4321 = vrot.slane %v4314, %v4320
      %v4322 = vcombine.low %v996, %v4321
      %v4323 = vcombine.low %v572, %v1394
      %v4325 = vunpack.c.l.s4 1983009808
      %v4326 = vunpack.c.0.s8 %v4325
      %v4327 = vlaneseq
      %v4328 = vshrl.u32 %v4327, 7
      %v4329 = vsub.s32 %v4326, %v4328
      %v4330 = vrot.slane %v4323, %v4329
      %v4331 = vcombine.low %v4330, %v1037
      %v4332 = vcombine.low %v1395, %v622
      %v4334 = vunpack.c.l.s4 1983009808
      %v4335 = vunpack.c.0.s8 %v4334
      %v4336 = vlaneseq
      %v4337 = vshrl.u32 %v4336, 7
      %v4338 = vsub.s32 %v4335, %v4337
      %v4339 = vrot.slane %v4332, %v4338
      %v4340 = vcombine.low %v4339, %v1071
      %v4341 = vcombine.low %v638, %v1396
      %v4343 = vunpack.c.l.s4 1983009808
      %v4344 = vunpack.c.0.s8 %v4343
      %v4345 = vlaneseq
      %v4346 = vshrl.u32 %v4345, 7
      %v4347 = vsub.s32 %v4344, %v4346
      %v4348 = vrot.slane %v4341, %v4347
      %v4349 = vcombine.low %v1081, %v4348
      %v4350 = vcombine.low %v1397, %v688
      %v4352 = vunpack.c.l.s4 1983009808
      %v4353 = vunpack.c.0.s8 %v4352
      %v4354 = vlaneseq
      %v4355 = vshrl.u32 %v4354, 7
      %v4356 = vsub.s32 %v4353, %v4355
      %v4357 = vrot.slane %v4350, %v4356
      %v4358 = vcombine.low %v1115, %v4357
      %v4359 = vcombine.low %v704, %v1398
      %v4361 = vunpack.c.l.s4 1983009808
      %v4362 = vunpack.c.0.s8 %v4361
      %v4363 = vlaneseq
      %v4364 = vshrl.u32 %v4363, 7
      %v4365 = vsub.s32 %v4362, %v4364
      %v4366 = vrot.slane %v4359, %v4365
      %v4367 = vcombine.low %v4366, %v1156
      %v4368 = vcombine.low %v1399, %v754
      %v4370 = vunpack.c.l.s4 1983009808
      %v4371 = vunpack.c.0.s8 %v4370
      %v4372 = vlaneseq
      %v4373 = vshrl.u32 %v4372, 7
      %v4374 = vsub.s32 %v4371, %v4373
      %v4375 = vrot.slane %v4368, %v4374
      %v4376 = vcombine.low %v4375, %v1190
      %v4377 = vcombine.low %v770, %v1400
      %v4379 = vunpack.c.l.s4 1983009808
      %v4380 = vunpack.c.0.s8 %v4379
      %v4381 = vlaneseq
      %v4382 = vshrl.u32 %v4381, 7
      %v4383 = vsub.s32 %v4380, %v4382
      %v4384 = vrot.slane %v4377, %v4383
      %v4385 = vcombine.low %v1200, %v4384
      %v4386 = vcombine.low %v1401, %v820
      %v4388 = vunpack.c.l.s4 1983009808
      %v4389 = vunpack.c.0.s8 %v4388
      %v4390 = vlaneseq
      %v4391 = vshrl.u32 %v4390, 7
      %v4392 = vsub.s32 %v4389, %v4391
      %v4393 = vrot.slane %v4386, %v4392
      %v4394 = vcombine.low %v1234, %v4393
      %v4395 = vcombine.low %v836, %v1402
      %v4397 = vunpack.c.l.s4 1983009808
      %v4398 = vunpack.c.0.s8 %v4397
      %v4399 = vlaneseq
      %v4400 = vshrl.u32 %v4399, 7
      %v4401 = vsub.s32 %v4398, %v4400
      %v4402 = vrot.slane %v4395, %v4401
      %v4403 = vcombine.low %v4402, %v1275
      %v4404 = vcombine.low %v1403, %v886
      %v4406 = vunpack.c.l.s4 1983009808
      %v4407 = vunpack.c.0.s8 %v4406
      %v4408 = vlaneseq
      %v4409 = vshrl.u32 %v4408, 7
      %v4410 = vsub.s32 %v4407, %v4409
      %v4411 = vrot.slane %v4404, %v4410
      %v4412 = vcombine.low %v4411, %v1309
      %v4413 = vcombine.low %v902, %v1404
      %v4415 = vunpack.c.l.s4 1983009808
      %v4416 = vunpack.c.0.s8 %v4415
      %v4417 = vlaneseq
      %v4418 = vshrl.u32 %v4417, 7
      %v4419 = vsub.s32 %v4416, %v4418
      %v4420 = vrot.slane %v4413, %v4419
      %v4421 = vcombine.low %v1319, %v4420
      %v4422 = vcombine.low %v1405, %v3211
      %v4424 = vunpack.c.l.s4 1983009808
      %v4425 = vunpack.c.0.s8 %v4424
      %v4426 = vlaneseq
      %v4427 = vshrl.u32 %v4426, 7
      %v4428 = vsub.s32 %v4425, %v4427
      %v4429 = vrot.slane %v4422, %v4428
      %v4430 = vcombine.low %v1352, %v4429
      %v4431 = vcombine.low %v3210, %v3212
      %v4432 = vcombine.low %v3220, %v3228
      %v4434 = vunpack.c.l.s4 1983009808
      %v4435 = vunpack.c.0.s8 %v4434
      %v4436 = vlaneseq
      %v4437 = vshrl.u32 %v4436, 7
      %v4438 = vsub.s32 %v4435, %v4437
      %v4439 = vrot.slane %v4431, %v4438
      %v4441 = vunpack.c.l.s4 1983009808
      %v4442 = vunpack.c.0.s8 %v4441
      %v4443 = vlaneseq
      %v4444 = vshrl.u32 %v4443, 7
      %v4445 = vsub.s32 %v4442, %v4444
      %v4446 = vrot.slane %v4432, %v4445
      %v4447 = vcombine.low %v4439, %v4446
      %v4448 = vcombine.low %v3227, %v3632
      %v4450 = vunpack.c.l.s4 1983009808
      %v4451 = vunpack.c.0.s8 %v4450
      %v4452 = vlaneseq
      %v4453 = vshrl.u32 %v4452, 7
      %v4454 = vsub.s32 %v4451, %v4453
      %v4455 = vrot.slane %v4448, %v4454
      %v4471 = vpack.c.bf16 %v4322, %v987
      %v4472 = vpack.c.bf16 %v4331, %v1021
      %v4473 = vpack.c.bf16 %v4340, %v1055
      %v4474 = vpack.c.bf16 %v1106, %v4349
      %v4475 = vpack.c.bf16 %v1140, %v4358
      %v4476 = vpack.c.bf16 %v1174, %v4367
      %v4477 = vpack.c.bf16 %v4385, %v4376
      %v4478 = vpack.c.bf16 %v4394, %v1225
      %v4479 = vpack.c.bf16 %v4403, %v1259
      %v4480 = vpack.c.bf16 %v4412, %v1293
      %v4481 = vpack.c.bf16 %v1344, %v4421
      %v4482 = vpack.c.bf16 %v4447, %v4430
      %v4483 = vpack.c.bf16 %v4455, %v4455
      %s4484 = scalar_lea.vmem %s1, 10
      %v4485 = vld [vmem:[%s4484] sm:$0x3]
      %v4487 = vsel %vm2177, %v4471, 0
      %v4490 = vsel %vm2177, %v4472, 0
      %v4493 = vsel %vm2177, %v4473, 0
      %v4496 = vsel %vm2177, %v4474, 0
      %v4499 = vsel %vm2177, %v4475, 0
      %v4502 = vsel %vm2177, %v4476, 0
      %v4505 = vsel %vm2177, %v4477, 0
      %v4508 = vsel %vm2177, %v4478, 0
      %v4511 = vsel %vm2177, %v4479, 0
      %v4514 = vsel %vm2177, %v4480, 0
      %v4517 = vsel %vm2177, %v4481, 0
      %v4520 = vsel %vm2177, %v4482, 0
      %v4523 = vsel %vm2177, %v4483, 0
      %v4526 = vsel %vm2217, %v4485, 0
      %4528 = vmatprep.subr.bf16.mxu0 0
      %4529 = vmatpush1.bf16.msra.mxu0 0
      %4530 = vmatprep.subr.bf16.mxu0 0
      %4531 = vmatpush1.bf16.msra.mxu0 0
      %4532 = vmatprep.subr.bf16.mxu0 0
      %4533 = vmatpush1.bf16.msra.mxu0 0
      %4534 = vmatprep.subr.bf16.mxu0 0
      %4535 = vmatpush1.bf16.msra.mxu0 0
      %4536 = vmatprep.subr.bf16.mxu0 0
      %4537 = vmatpush1.bf16.msra.mxu0 0
      %4538 = vmatprep.subr.bf16.mxu0 0
      %4539 = vmatpush1.bf16.msra.mxu0 0
      %4540 = vmatprep.subr.bf16.mxu0 0
      %4541 = vmatpush1.bf16.msra.mxu0 0
      %4542 = vmatprep.subr.bf16.mxu0 0
      %4543 = vmatpush1.bf16.msra.mxu0 %v4526
      %4544 = vmatprep.subr.bf16.mxu0 0
      %4545 = vmatpush2.bf16.msra.mxu0 0
      %4546 = vmatprep.subr.bf16.mxu0 0
      %4547 = vmatpush2.bf16.msra.mxu0 0
      %4548 = vmatprep.subr.bf16.mxu0 0
      %4549 = vmatpush2.bf16.msra.mxu0 0
      %4550 = vmatprep.subr.bf16.mxu0 0
      %4551 = vmatpush2.bf16.msra.mxu0 0
      %4552 = vmatprep.subr.bf16.mxu0 0
      %4553 = vmatpush2.bf16.msra.mxu0 0
      %4554 = vmatprep.subr.bf16.mxu0 0
      %4555 = vmatpush2.bf16.msra.mxu0 0
      %4556 = vmatprep.subr.bf16.mxu0 0
      %4557 = vmatpush2.bf16.msra.mxu0 0
      %4558 = vmatprep.subr.bf16.mxu0 0
      %4559 = vmatpush2.bf16.msra.mxu0 0
      %4560 = vmatprep.mubr.bf16.mxu0 0
      %4561 = vmatmul.mubr.bf16.gmra.mxu0 %v4487
      %v4562 = vpop.f32.mrf.mxu0
      %v4563 = vadd.f32 0.0, %v4562
      %v4564 = vpop.f32.mrf.mxu0
      %v4565 = vpop.f32.mrf.mxu0
      %v4566 = vadd.f32 0.0, %v4565
      %v4567 = vpop.f32.mrf.mxu0
      %4568 = vmatprep.mubr.bf16.mxu0 0
      %4569 = vmatmul.mubr.bf16.gmra.mxu0 %v4490
      %v4570 = vpop.f32.mrf.mxu0
      %v4571 = vadd.f32 0.0, %v4570
      %v4572 = vpop.f32.mrf.mxu0
      %v4573 = vpop.f32.mrf.mxu0
      %v4574 = vadd.f32 0.0, %v4573
      %v4575 = vpop.f32.mrf.mxu0
      %4576 = vmatprep.mubr.bf16.mxu0 0
      %4577 = vmatmul.mubr.bf16.gmra.mxu0 %v4493
      %v4578 = vpop.f32.mrf.mxu0
      %v4579 = vadd.f32 0.0, %v4578
      %v4580 = vpop.f32.mrf.mxu0
      %v4581 = vpop.f32.mrf.mxu0
      %v4582 = vadd.f32 0.0, %v4581
      %v4583 = vpop.f32.mrf.mxu0
      %4584 = vmatprep.mubr.bf16.mxu0 0
      %4585 = vmatmul.mubr.bf16.gmra.mxu0 %v4496
      %v4586 = vpop.f32.mrf.mxu0
      %v4587 = vadd.f32 0.0, %v4586
      %v4588 = vpop.f32.mrf.mxu0
      %v4589 = vpop.f32.mrf.mxu0
      %v4590 = vadd.f32 0.0, %v4589
      %v4591 = vpop.f32.mrf.mxu0
      %4592 = vmatprep.mubr.bf16.mxu0 0
      %4593 = vmatmul.mubr.bf16.gmra.mxu0 %v4499
      %v4594 = vpop.f32.mrf.mxu0
      %v4595 = vadd.f32 0.0, %v4594
      %v4596 = vpop.f32.mrf.mxu0
      %v4597 = vpop.f32.mrf.mxu0
      %v4598 = vadd.f32 0.0, %v4597
      %v4599 = vpop.f32.mrf.mxu0
      %4600 = vmatprep.mubr.bf16.mxu0 0
      %4601 = vmatmul.mubr.bf16.gmra.mxu0 %v4502
      %v4602 = vpop.f32.mrf.mxu0
      %v4603 = vadd.f32 0.0, %v4602
      %v4604 = vpop.f32.mrf.mxu0
      %v4605 = vpop.f32.mrf.mxu0
      %v4606 = vadd.f32 0.0, %v4605
      %v4607 = vpop.f32.mrf.mxu0
      %4608 = vmatprep.mubr.bf16.mxu0 0
      %4609 = vmatmul.mubr.bf16.gmra.mxu0 %v4505
      %v4610 = vpop.f32.mrf.mxu0
      %v4611 = vadd.f32 0.0, %v4610
      %v4612 = vpop.f32.mrf.mxu0
      %v4613 = vpop.f32.mrf.mxu0
      %v4614 = vadd.f32 0.0, %v4613
      %v4615 = vpop.f32.mrf.mxu0
      %4616 = vmatprep.mubr.bf16.mxu0 0
      %4617 = vmatmul.mubr.bf16.gmra.mxu0 %v4508
      %v4618 = vpop.f32.mrf.mxu0
      %v4619 = vadd.f32 0.0, %v4618
      %v4620 = vpop.f32.mrf.mxu0
      %v4621 = vpop.f32.mrf.mxu0
      %v4622 = vadd.f32 0.0, %v4621
      %v4623 = vpop.f32.mrf.mxu0
      %4624 = vmatprep.mubr.bf16.mxu0 0
      %4625 = vmatmul.mubr.bf16.gmra.mxu0 %v4511
      %v4626 = vpop.f32.mrf.mxu0
      %v4627 = vadd.f32 0.0, %v4626
      %v4628 = vpop.f32.mrf.mxu0
      %v4629 = vpop.f32.mrf.mxu0
      %v4630 = vadd.f32 0.0, %v4629
      %v4631 = vpop.f32.mrf.mxu0
      %4632 = vmatprep.mubr.bf16.mxu0 0
      %4633 = vmatmul.mubr.bf16.gmra.mxu0 %v4514
      %v4634 = vpop.f32.mrf.mxu0
      %v4635 = vadd.f32 0.0, %v4634
      %v4636 = vpop.f32.mrf.mxu0
      %v4637 = vpop.f32.mrf.mxu0
      %v4638 = vadd.f32 0.0, %v4637
      %v4639 = vpop.f32.mrf.mxu0
      %4640 = vmatprep.mubr.bf16.mxu0 0
      %4641 = vmatmul.mubr.bf16.gmra.mxu0 %v4517
      %v4642 = vpop.f32.mrf.mxu0
      %v4643 = vadd.f32 0.0, %v4642
      %v4644 = vpop.f32.mrf.mxu0
      %v4645 = vpop.f32.mrf.mxu0
      %v4646 = vadd.f32 0.0, %v4645
      %v4647 = vpop.f32.mrf.mxu0
      %4648 = vmatprep.mubr.bf16.mxu0 0
      %4649 = vmatmul.mubr.bf16.gmra.mxu0 %v4520
      %v4650 = vpop.f32.mrf.mxu0
      %v4651 = vadd.f32 0.0, %v4650
      %v4652 = vpop.f32.mrf.mxu0
      %v4653 = vpop.f32.mrf.mxu0
      %v4654 = vadd.f32 0.0, %v4653
      %v4655 = vpop.f32.mrf.mxu0
      %4656 = vmatprep.mubr.bf16.mxu0 0
      %4657 = vmatmul.mubr.bf16.gmra.mxu0 %v4523
      %v4658 = vpop.f32.mrf.mxu0
      %v4659 = vadd.f32 0.0, %v4658
      %v4660 = vpop.f32.mrf.mxu0
      %v4661 = vpop.f32.mrf.mxu0
      %v4662 = vpop.f32.mrf.mxu0
      %4663 = vdwg.mxu0
      %v4664 = vadd.f32 %v4289, %v4563
      %v4665 = vadd.f32 %v4290, %v4566
      %v4666 = vadd.f32 %v4291, %v4571
      %v4667 = vadd.f32 %v4292, %v4574
      %v4668 = vadd.f32 %v4293, %v4579
      %v4669 = vadd.f32 %v4294, %v4582
      %v4670 = vadd.f32 %v4295, %v4587
      %v4671 = vadd.f32 %v4296, %v4590
      %v4672 = vadd.f32 %v4297, %v4595
      %v4673 = vadd.f32 %v4298, %v4598
      %v4674 = vadd.f32 %v4299, %v4603
      %v4675 = vadd.f32 %v4300, %v4606
      %v4676 = vadd.f32 %v4301, %v4611
      %v4677 = vadd.f32 %v4302, %v4614
      %v4678 = vadd.f32 %v4303, %v4619
      %v4679 = vadd.f32 %v4304, %v4622
      %v4680 = vadd.f32 %v4305, %v4627
      %v4681 = vadd.f32 %v4306, %v4630
      %v4682 = vadd.f32 %v4307, %v4635
      %v4683 = vadd.f32 %v4308, %v4638
      %v4684 = vadd.f32 %v4309, %v4643
      %v4685 = vadd.f32 %v4310, %v4646
      %v4686 = vadd.f32 %v4311, %v4651
      %v4687 = vadd.f32 %v4312, %v4654
      %v4688 = vadd.f32 %v4313, %v4659
      %v4691 = vcombine.high %v443, %v443
      %v4693 = vunpack.c.l.s4 1983009808
      %v4694 = vunpack.c.0.s8 %v4693
      %v4695 = vlaneseq
      %v4696 = vshrl.u32 %v4695, 7
      %v4697 = vsub.s32 %v4694, %v4696
      %v4698 = vrot.slane %v443, %v4697
      %v4700 = vunpack.c.l.s4 1983009808
      %v4701 = vunpack.c.0.s8 %v4700
      %v4702 = vlaneseq
      %v4703 = vshrl.u32 %v4702, 7
      %v4704 = vsub.s32 %v4701, %v4703
      %v4705 = vrot.slane %v4691, %v4704
      %v4706 = vcombine.high %v4698, %v4698
      %v4707 = vcombine.high %v4705, %v4705
      %v4708 = vcombine.high %v444, %v444
      %v4710 = vunpack.c.l.s4 1983009808
      %v4711 = vunpack.c.0.s8 %v4710
      %v4712 = vlaneseq
      %v4713 = vshrl.u32 %v4712, 7
      %v4714 = vsub.s32 %v4711, %v4713
      %v4715 = vrot.slane %v444, %v4714
      %v4717 = vunpack.c.l.s4 1983009808
      %v4718 = vunpack.c.0.s8 %v4717
      %v4719 = vlaneseq
      %v4720 = vshrl.u32 %v4719, 7
      %v4721 = vsub.s32 %v4718, %v4720
      %v4722 = vrot.slane %v4708, %v4721
      %v4723 = vcombine.high %v4715, %v4715
      %v4724 = vcombine.low %v1003, %v1013
      %v4725 = vcombine.low %v1020, %v1030
      %v4726 = vcombine.low %v1037, %v1047
      %v4727 = vcombine.low %v1054, %v1064
      %v4728 = vcombine.low %v1071, %v1081
      %v4729 = vcombine.low %v1088, %v1098
      %v4730 = vcombine.low %v1105, %v1115
      %v4731 = vcombine.low %v1122, %v1132
      %v4732 = vcombine.low %v1139, %v1149
      %v4733 = vcombine.low %v1156, %v1166
      %v4734 = vcombine.low %v1173, %v1183
      %v4735 = vcombine.low %v1190, %v1200
      %v4736 = vcombine.low %v1207, %v1217
      %v4737 = vcombine.low %v1224, %v1234
      %v4738 = vcombine.low %v1241, %v1251
      %v4739 = vcombine.low %v1258, %v1268
      %v4740 = vcombine.low %v1275, %v1285
      %v4741 = vcombine.low %v1292, %v1302
      %v4742 = vcombine.low %v1309, %v1319
      %v4743 = vcombine.low %v1326, %v1336
      %v4744 = vcombine.low %v1343, %v1352
      %v4745 = vcombine.low %v3203, %v3211
      %v4747 = vunpack.c.l.s4 1983009808
      %v4748 = vunpack.c.0.s8 %v4747
      %v4749 = vlaneseq
      %v4750 = vshrl.u32 %v4749, 7
      %v4751 = vsub.s32 %v4748, %v4750
      %v4752 = vrot.slane %v4745, %v4751
      %v4753 = vcombine.low %v4752, %v4439
      %v4754 = vcombine.low %v3227, %v4698
      %v4756 = vunpack.c.l.s4 1983009808
      %v4757 = vunpack.c.0.s8 %v4756
      %v4758 = vlaneseq
      %v4759 = vshrl.u32 %v4758, 7
      %v4760 = vsub.s32 %v4757, %v4759
      %v4761 = vrot.slane %v4754, %v4760
      %v4762 = vcombine.low %v4446, %v4761
      %v4763 = vcombine.low %v4706, %v4705
      %v4764 = vcombine.low %v4707, %v4715
      %v4766 = vunpack.c.l.s4 1983009808
      %v4767 = vunpack.c.0.s8 %v4766
      %v4768 = vlaneseq
      %v4769 = vshrl.u32 %v4768, 7
      %v4770 = vsub.s32 %v4767, %v4769
      %v4771 = vrot.slane %v4763, %v4770
      %v4773 = vunpack.c.l.s4 1983009808
      %v4774 = vunpack.c.0.s8 %v4773
      %v4775 = vlaneseq
      %v4776 = vshrl.u32 %v4775, 7
      %v4777 = vsub.s32 %v4774, %v4776
      %v4778 = vrot.slane %v4764, %v4777
      %v4779 = vcombine.low %v4771, %v4778
      %v4780 = vcombine.low %v4723, %v4722
      %v4782 = vunpack.c.l.s4 1983009808
      %v4783 = vunpack.c.0.s8 %v4782
      %v4784 = vlaneseq
      %v4785 = vshrl.u32 %v4784, 7
      %v4786 = vsub.s32 %v4783, %v4785
      %v4787 = vrot.slane %v4780, %v4786
      %v4813 = vpack.c.bf16 %v4725, %v4724
      %v4814 = vpack.c.bf16 %v4727, %v4726
      %v4815 = vpack.c.bf16 %v4729, %v4728
      %v4816 = vpack.c.bf16 %v4731, %v4730
      %v4817 = vpack.c.bf16 %v4733, %v4732
      %v4818 = vpack.c.bf16 %v4735, %v4734
      %v4819 = vpack.c.bf16 %v4737, %v4736
      %v4820 = vpack.c.bf16 %v4739, %v4738
      %v4821 = vpack.c.bf16 %v4741, %v4740
      %v4822 = vpack.c.bf16 %v4743, %v4742
      %v4823 = vpack.c.bf16 %v4753, %v4744
      %v4824 = vpack.c.bf16 %v4779, %v4762
      %v4825 = vpack.c.bf16 %v4787, %v4787
      %s4826 = scalar_lea.vmem %s1, 12
      %v4827 = vld [vmem:[%s4826] sm:$0x3]
      %v4829 = vsel %vm2177, %v4813, 0
      %v4832 = vsel %vm2177, %v4814, 0
      %v4835 = vsel %vm2177, %v4815, 0
      %v4838 = vsel %vm2177, %v4816, 0
      %v4841 = vsel %vm2177, %v4817, 0
      %v4844 = vsel %vm2177, %v4818, 0
      %v4847 = vsel %vm2177, %v4819, 0
      %v4850 = vsel %vm2177, %v4820, 0
      %v4853 = vsel %vm2177, %v4821, 0
      %v4856 = vsel %vm2177, %v4822, 0
      %v4859 = vsel %vm2177, %v4823, 0
      %v4862 = vsel %vm2177, %v4824, 0
      %v4865 = vsel %vm2177, %v4825, 0
      %v4868 = vsel %vm2217, %v4827, 0
      %4870 = vmatprep.subr.bf16.mxu0 0
      %4871 = vmatpush1.bf16.msra.mxu0 0
      %4872 = vmatprep.subr.bf16.mxu0 0
      %4873 = vmatpush1.bf16.msra.mxu0 0
      %4874 = vmatprep.subr.bf16.mxu0 0
      %4875 = vmatpush1.bf16.msra.mxu0 0
      %4876 = vmatprep.subr.bf16.mxu0 0
      %4877 = vmatpush1.bf16.msra.mxu0 0
      %4878 = vmatprep.subr.bf16.mxu0 0
      %4879 = vmatpush1.bf16.msra.mxu0 0
      %4880 = vmatprep.subr.bf16.mxu0 0
      %4881 = vmatpush1.bf16.msra.mxu0 0
      %4882 = vmatprep.subr.bf16.mxu0 0
      %4883 = vmatpush1.bf16.msra.mxu0 0
      %4884 = vmatprep.subr.bf16.mxu0 0
      %4885 = vmatpush1.bf16.msra.mxu0 %v4868
      %4886 = vmatprep.subr.bf16.mxu0 0
      %4887 = vmatpush2.bf16.msra.mxu0 0
      %4888 = vmatprep.subr.bf16.mxu0 0
      %4889 = vmatpush2.bf16.msra.mxu0 0
      %4890 = vmatprep.subr.bf16.mxu0 0
      %4891 = vmatpush2.bf16.msra.mxu0 0
      %4892 = vmatprep.subr.bf16.mxu0 0
      %4893 = vmatpush2.bf16.msra.mxu0 0
      %4894 = vmatprep.subr.bf16.mxu0 0
      %4895 = vmatpush2.bf16.msra.mxu0 0
      %4896 = vmatprep.subr.bf16.mxu0 0
      %4897 = vmatpush2.bf16.msra.mxu0 0
      %4898 = vmatprep.subr.bf16.mxu0 0
      %4899 = vmatpush2.bf16.msra.mxu0 0
      %4900 = vmatprep.subr.bf16.mxu0 0
      %4901 = vmatpush2.bf16.msra.mxu0 0
      %4902 = vmatprep.mubr.bf16.mxu0 0
      %4903 = vmatmul.mubr.bf16.gmra.mxu0 %v4829
      %v4904 = vpop.f32.mrf.mxu0
      %v4905 = vadd.f32 0.0, %v4904
      %v4906 = vpop.f32.mrf.mxu0
      %v4907 = vpop.f32.mrf.mxu0
      %v4908 = vadd.f32 0.0, %v4907
      %v4909 = vpop.f32.mrf.mxu0
      %4910 = vmatprep.mubr.bf16.mxu0 0
      %4911 = vmatmul.mubr.bf16.gmra.mxu0 %v4832
      %v4912 = vpop.f32.mrf.mxu0
      %v4913 = vadd.f32 0.0, %v4912
      %v4914 = vpop.f32.mrf.mxu0
      %v4915 = vpop.f32.mrf.mxu0
      %v4916 = vadd.f32 0.0, %v4915
      %v4917 = vpop.f32.mrf.mxu0
      %4918 = vmatprep.mubr.bf16.mxu0 0
      %4919 = vmatmul.mubr.bf16.gmra.mxu0 %v4835
      %v4920 = vpop.f32.mrf.mxu0
      %v4921 = vadd.f32 0.0, %v4920
      %v4922 = vpop.f32.mrf.mxu0
      %v4923 = vpop.f32.mrf.mxu0
      %v4924 = vadd.f32 0.0, %v4923
      %v4925 = vpop.f32.mrf.mxu0
      %4926 = vmatprep.mubr.bf16.mxu0 0
      %4927 = vmatmul.mubr.bf16.gmra.mxu0 %v4838
      %v4928 = vpop.f32.mrf.mxu0
      %v4929 = vadd.f32 0.0, %v4928
      %v4930 = vpop.f32.mrf.mxu0
      %v4931 = vpop.f32.mrf.mxu0
      %v4932 = vadd.f32 0.0, %v4931
      %v4933 = vpop.f32.mrf.mxu0
      %4934 = vmatprep.mubr.bf16.mxu0 0
      %4935 = vmatmul.mubr.bf16.gmra.mxu0 %v4841
      %v4936 = vpop.f32.mrf.mxu0
      %v4937 = vadd.f32 0.0, %v4936
      %v4938 = vpop.f32.mrf.mxu0
      %v4939 = vpop.f32.mrf.mxu0
      %v4940 = vadd.f32 0.0, %v4939
      %v4941 = vpop.f32.mrf.mxu0
      %4942 = vmatprep.mubr.bf16.mxu0 0
      %4943 = vmatmul.mubr.bf16.gmra.mxu0 %v4844
      %v4944 = vpop.f32.mrf.mxu0
      %v4945 = vadd.f32 0.0, %v4944
      %v4946 = vpop.f32.mrf.mxu0
      %v4947 = vpop.f32.mrf.mxu0
      %v4948 = vadd.f32 0.0, %v4947
      %v4949 = vpop.f32.mrf.mxu0
      %4950 = vmatprep.mubr.bf16.mxu0 0
      %4951 = vmatmul.mubr.bf16.gmra.mxu0 %v4847
      %v4952 = vpop.f32.mrf.mxu0
      %v4953 = vadd.f32 0.0, %v4952
      %v4954 = vpop.f32.mrf.mxu0
      %v4955 = vpop.f32.mrf.mxu0
      %v4956 = vadd.f32 0.0, %v4955
      %v4957 = vpop.f32.mrf.mxu0
      %4958 = vmatprep.mubr.bf16.mxu0 0
      %4959 = vmatmul.mubr.bf16.gmra.mxu0 %v4850
      %v4960 = vpop.f32.mrf.mxu0
      %v4961 = vadd.f32 0.0, %v4960
      %v4962 = vpop.f32.mrf.mxu0
      %v4963 = vpop.f32.mrf.mxu0
      %v4964 = vadd.f32 0.0, %v4963
      %v4965 = vpop.f32.mrf.mxu0
      %4966 = vmatprep.mubr.bf16.mxu0 0
      %4967 = vmatmul.mubr.bf16.gmra.mxu0 %v4853
      %v4968 = vpop.f32.mrf.mxu0
      %v4969 = vadd.f32 0.0, %v4968
      %v4970 = vpop.f32.mrf.mxu0
      %v4971 = vpop.f32.mrf.mxu0
      %v4972 = vadd.f32 0.0, %v4971
      %v4973 = vpop.f32.mrf.mxu0
      %4974 = vmatprep.mubr.bf16.mxu0 0
      %4975 = vmatmul.mubr.bf16.gmra.mxu0 %v4856
      %v4976 = vpop.f32.mrf.mxu0
      %v4977 = vadd.f32 0.0, %v4976
      %v4978 = vpop.f32.mrf.mxu0
      %v4979 = vpop.f32.mrf.mxu0
      %v4980 = vadd.f32 0.0, %v4979
      %v4981 = vpop.f32.mrf.mxu0
      %4982 = vmatprep.mubr.bf16.mxu0 0
      %4983 = vmatmul.mubr.bf16.gmra.mxu0 %v4859
      %v4984 = vpop.f32.mrf.mxu0
      %v4985 = vadd.f32 0.0, %v4984
      %v4986 = vpop.f32.mrf.mxu0
      %v4987 = vpop.f32.mrf.mxu0
      %v4988 = vadd.f32 0.0, %v4987
      %v4989 = vpop.f32.mrf.mxu0
      %4990 = vmatprep.mubr.bf16.mxu0 0
      %4991 = vmatmul.mubr.bf16.gmra.mxu0 %v4862
      %v4992 = vpop.f32.mrf.mxu0
      %v4993 = vadd.f32 0.0, %v4992
      %v4994 = vpop.f32.mrf.mxu0
      %v4995 = vpop.f32.mrf.mxu0
      %v4996 = vadd.f32 0.0, %v4995
      %v4997 = vpop.f32.mrf.mxu0
      %4998 = vmatprep.mubr.bf16.mxu0 0
      %4999 = vmatmul.mubr.bf16.gmra.mxu0 %v4865
      %v5000 = vpop.f32.mrf.mxu0
      %v5001 = vadd.f32 0.0, %v5000
      %v5002 = vpop.f32.mrf.mxu0
      %v5003 = vpop.f32.mrf.mxu0
      %v5004 = vpop.f32.mrf.mxu0
      %5005 = vdwg.mxu0
      %v5006 = vadd.f32 %v4664, %v4905
      %v5007 = vadd.f32 %v4665, %v4908
      %v5008 = vadd.f32 %v4666, %v4913
      %v5009 = vadd.f32 %v4667, %v4916
      %v5010 = vadd.f32 %v4668, %v4921
      %v5011 = vadd.f32 %v4669, %v4924
      %v5012 = vadd.f32 %v4670, %v4929
      %v5013 = vadd.f32 %v4671, %v4932
      %v5014 = vadd.f32 %v4672, %v4937
      %v5015 = vadd.f32 %v4673, %v4940
      %v5016 = vadd.f32 %v4674, %v4945
      %v5017 = vadd.f32 %v4675, %v4948
      %v5018 = vadd.f32 %v4676, %v4953
      %v5019 = vadd.f32 %v4677, %v4956
      %v5020 = vadd.f32 %v4678, %v4961
      %v5021 = vadd.f32 %v4679, %v4964
      %v5022 = vadd.f32 %v4680, %v4969
      %v5023 = vadd.f32 %v4681, %v4972
      %v5024 = vadd.f32 %v4682, %v4977
      %v5025 = vadd.f32 %v4683, %v4980
      %v5026 = vadd.f32 %v4684, %v4985
      %v5027 = vadd.f32 %v4685, %v4988
      %v5028 = vadd.f32 %v4686, %v4993
      %v5029 = vadd.f32 %v4687, %v4996
      %v5030 = vadd.f32 %v4688, %v5001
      %v5031 = vcombine.high %v4722, %v4722
      %v5032 = vrot.slane %v4698, 7
      %v5033 = vrot.slane %v5032, 2
      %v5034 = vrot.slane %v4706, 7
      %v5035 = vsel %vm1412, %v5033, %v5034
      %v5036 = vrot.slane %v5034, 2
      %v5037 = vrot.slane %v4705, 7
      %v5038 = vsel %vm1412, %v5036, %v5037
      %v5039 = vrot.slane %v5037, 2
      %v5040 = vrot.slane %v4707, 7
      %v5041 = vsel %vm1412, %v5039, %v5040
      %v5042 = vrot.slane %v5040, 2
      %v5043 = vrot.slane %v4715, 7
      %v5044 = vsel %vm1412, %v5042, %v5043
      %v5045 = vrot.slane %v5043, 2
      %v5046 = vrot.slane %v4723, 7
      %v5047 = vsel %vm1412, %v5045, %v5046
      %v5048 = vrot.slane %v5046, 2
      %v5049 = vrot.slane %v4722, 7
      %v5050 = vsel %vm1412, %v5048, %v5049
      %v5051 = vrot.slane %v5049, 2
      %v5052 = vrot.slane %v5031, 7
      %v5053 = vsel %vm1412, %v5051, %v5052
      %v5054 = vcombine.low %v1787, %v1797
      %v5055 = vcombine.low %v1804, %v1814
      %v5056 = vcombine.low %v1821, %v1831
      %v5057 = vcombine.low %v1838, %v1848
      %v5058 = vcombine.low %v1855, %v1865
      %v5059 = vcombine.low %v1872, %v1882
      %v5060 = vcombine.low %v1889, %v1899
      %v5061 = vcombine.low %v1906, %v1916
      %v5062 = vcombine.low %v1923, %v1933
      %v5063 = vcombine.low %v1940, %v1950
      %v5064 = vcombine.low %v1957, %v1967
      %v5065 = vcombine.low %v1974, %v1984
      %v5066 = vcombine.low %v1991, %v2001
      %v5067 = vcombine.low %v2008, %v2018
      %v5068 = vcombine.low %v2025, %v2035
      %v5069 = vcombine.low %v2042, %v2052
      %v5070 = vcombine.low %v2059, %v2069
      %v5071 = vcombine.low %v2076, %v2086
      %v5072 = vcombine.low %v2093, %v2103
      %v5073 = vcombine.low %v2110, %v2120
      %v5074 = vcombine.low %v2127, %v2136
      %v5075 = vcombine.low %v3636, %v3639
      %v5076 = vcombine.low %v3642, %v3645
      %v5078 = vunpack.c.l.s4 1983009808
      %v5079 = vunpack.c.0.s8 %v5078
      %v5080 = vlaneseq
      %v5081 = vshrl.u32 %v5080, 7
      %v5082 = vsub.s32 %v5079, %v5081
      %v5083 = vrot.slane %v5075, %v5082
      %v5085 = vunpack.c.l.s4 1983009808
      %v5086 = vunpack.c.0.s8 %v5085
      %v5087 = vlaneseq
      %v5088 = vshrl.u32 %v5087, 7
      %v5089 = vsub.s32 %v5086, %v5088
      %v5090 = vrot.slane %v5076, %v5089
      %v5091 = vcombine.low %v5083, %v5090
      %v5092 = vcombine.low %v3648, %v3651
      %v5093 = vcombine.low %v3654, %v5035
      %v5095 = vunpack.c.l.s4 1983009808
      %v5096 = vunpack.c.0.s8 %v5095
      %v5097 = vlaneseq
      %v5098 = vshrl.u32 %v5097, 7
      %v5099 = vsub.s32 %v5096, %v5098
      %v5100 = vrot.slane %v5092, %v5099
      %v5102 = vunpack.c.l.s4 1983009808
      %v5103 = vunpack.c.0.s8 %v5102
      %v5104 = vlaneseq
      %v5105 = vshrl.u32 %v5104, 7
      %v5106 = vsub.s32 %v5103, %v5105
      %v5107 = vrot.slane %v5093, %v5106
      %v5108 = vcombine.low %v5100, %v5107
      %v5109 = vcombine.low %v5038, %v5041
      %v5110 = vcombine.low %v5044, %v5047
      %v5112 = vunpack.c.l.s4 1983009808
      %v5113 = vunpack.c.0.s8 %v5112
      %v5114 = vlaneseq
      %v5115 = vshrl.u32 %v5114, 7
      %v5116 = vsub.s32 %v5113, %v5115
      %v5117 = vrot.slane %v5109, %v5116
      %v5119 = vunpack.c.l.s4 1983009808
      %v5120 = vunpack.c.0.s8 %v5119
      %v5121 = vlaneseq
      %v5122 = vshrl.u32 %v5121, 7
      %v5123 = vsub.s32 %v5120, %v5122
      %v5124 = vrot.slane %v5110, %v5123
      %v5125 = vcombine.low %v5117, %v5124
      %v5126 = vcombine.low %v5050, %v5053
      %v5128 = vunpack.c.l.s4 1983009808
      %v5129 = vunpack.c.0.s8 %v5128
      %v5130 = vlaneseq
      %v5131 = vshrl.u32 %v5130, 7
      %v5132 = vsub.s32 %v5129, %v5131
      %v5133 = vrot.slane %v5126, %v5132
      %v5159 = vpack.c.bf16 %v5055, %v5054
      %v5160 = vpack.c.bf16 %v5057, %v5056
      %v5161 = vpack.c.bf16 %v5059, %v5058
      %v5162 = vpack.c.bf16 %v5061, %v5060
      %v5163 = vpack.c.bf16 %v5063, %v5062
      %v5164 = vpack.c.bf16 %v5065, %v5064
      %v5165 = vpack.c.bf16 %v5067, %v5066
      %v5166 = vpack.c.bf16 %v5069, %v5068
      %v5167 = vpack.c.bf16 %v5071, %v5070
      %v5168 = vpack.c.bf16 %v5073, %v5072
      %v5169 = vpack.c.bf16 %v5091, %v5074
      %v5170 = vpack.c.bf16 %v5125, %v5108
      %v5171 = vpack.c.bf16 %v5133, %v5133
      %s5172 = scalar_lea.vmem %s1, 14
      %v5173 = vld [vmem:[%s5172] sm:$0x3]
      %v5175 = vsel %vm2177, %v5159, 0
      %v5178 = vsel %vm2177, %v5160, 0
      %v5181 = vsel %vm2177, %v5161, 0
      %v5184 = vsel %vm2177, %v5162, 0
      %v5187 = vsel %vm2177, %v5163, 0
      %v5190 = vsel %vm2177, %v5164, 0
      %v5193 = vsel %vm2177, %v5165, 0
      %v5196 = vsel %vm2177, %v5166, 0
      %v5199 = vsel %vm2177, %v5167, 0
      %v5202 = vsel %vm2177, %v5168, 0
      %v5205 = vsel %vm2177, %v5169, 0
      %v5208 = vsel %vm2177, %v5170, 0
      %v5211 = vsel %vm2177, %v5171, 0
      %v5214 = vsel %vm2217, %v5173, 0
      %5216 = vmatprep.subr.bf16.mxu0 0
      %5217 = vmatpush1.bf16.msra.mxu0 0
      %5218 = vmatprep.subr.bf16.mxu0 0
      %5219 = vmatpush1.bf16.msra.mxu0 0
      %5220 = vmatprep.subr.bf16.mxu0 0
      %5221 = vmatpush1.bf16.msra.mxu0 0
      %5222 = vmatprep.subr.bf16.mxu0 0
      %5223 = vmatpush1.bf16.msra.mxu0 0
      %5224 = vmatprep.subr.bf16.mxu0 0
      %5225 = vmatpush1.bf16.msra.mxu0 0
      %5226 = vmatprep.subr.bf16.mxu0 0
      %5227 = vmatpush1.bf16.msra.mxu0 0
      %5228 = vmatprep.subr.bf16.mxu0 0
      %5229 = vmatpush1.bf16.msra.mxu0 0
      %5230 = vmatprep.subr.bf16.mxu0 0
      %5231 = vmatpush1.bf16.msra.mxu0 %v5214
      %5232 = vmatprep.subr.bf16.mxu0 0
      %5233 = vmatpush2.bf16.msra.mxu0 0
      %5234 = vmatprep.subr.bf16.mxu0 0
      %5235 = vmatpush2.bf16.msra.mxu0 0
      %5236 = vmatprep.subr.bf16.mxu0 0
      %5237 = vmatpush2.bf16.msra.mxu0 0
      %5238 = vmatprep.subr.bf16.mxu0 0
      %5239 = vmatpush2.bf16.msra.mxu0 0
      %5240 = vmatprep.subr.bf16.mxu0 0
      %5241 = vmatpush2.bf16.msra.mxu0 0
      %5242 = vmatprep.subr.bf16.mxu0 0
      %5243 = vmatpush2.bf16.msra.mxu0 0
      %5244 = vmatprep.subr.bf16.mxu0 0
      %5245 = vmatpush2.bf16.msra.mxu0 0
      %5246 = vmatprep.subr.bf16.mxu0 0
      %5247 = vmatpush2.bf16.msra.mxu0 0
      %5248 = vmatprep.mubr.bf16.mxu0 0
      %5249 = vmatmul.mubr.bf16.gmra.mxu0 %v5175
      %v5250 = vpop.f32.mrf.mxu0
      %v5251 = vadd.f32 0.0, %v5250
      %v5252 = vpop.f32.mrf.mxu0
      %v5253 = vpop.f32.mrf.mxu0
      %v5254 = vadd.f32 0.0, %v5253
      %v5255 = vpop.f32.mrf.mxu0
      %5256 = vmatprep.mubr.bf16.mxu0 0
      %5257 = vmatmul.mubr.bf16.gmra.mxu0 %v5178
      %v5258 = vpop.f32.mrf.mxu0
      %v5259 = vadd.f32 0.0, %v5258
      %v5260 = vpop.f32.mrf.mxu0
      %v5261 = vpop.f32.mrf.mxu0
      %v5262 = vadd.f32 0.0, %v5261
      %v5263 = vpop.f32.mrf.mxu0
      %5264 = vmatprep.mubr.bf16.mxu0 0
      %5265 = vmatmul.mubr.bf16.gmra.mxu0 %v5181
      %v5266 = vpop.f32.mrf.mxu0
      %v5267 = vadd.f32 0.0, %v5266
      %v5268 = vpop.f32.mrf.mxu0
      %v5269 = vpop.f32.mrf.mxu0
      %v5270 = vadd.f32 0.0, %v5269
      %v5271 = vpop.f32.mrf.mxu0
      %5272 = vmatprep.mubr.bf16.mxu0 0
      %5273 = vmatmul.mubr.bf16.gmra.mxu0 %v5184
      %v5274 = vpop.f32.mrf.mxu0
      %v5275 = vadd.f32 0.0, %v5274
      %v5276 = vpop.f32.mrf.mxu0
      %v5277 = vpop.f32.mrf.mxu0
      %v5278 = vadd.f32 0.0, %v5277
      %v5279 = vpop.f32.mrf.mxu0
      %5280 = vmatprep.mubr.bf16.mxu0 0
      %5281 = vmatmul.mubr.bf16.gmra.mxu0 %v5187
      %v5282 = vpop.f32.mrf.mxu0
      %v5283 = vadd.f32 0.0, %v5282
      %v5284 = vpop.f32.mrf.mxu0
      %v5285 = vpop.f32.mrf.mxu0
      %v5286 = vadd.f32 0.0, %v5285
      %v5287 = vpop.f32.mrf.mxu0
      %5288 = vmatprep.mubr.bf16.mxu0 0
      %5289 = vmatmul.mubr.bf16.gmra.mxu0 %v5190
      %v5290 = vpop.f32.mrf.mxu0
      %v5291 = vadd.f32 0.0, %v5290
      %v5292 = vpop.f32.mrf.mxu0
      %v5293 = vpop.f32.mrf.mxu0
      %v5294 = vadd.f32 0.0, %v5293
      %v5295 = vpop.f32.mrf.mxu0
      %5296 = vmatprep.mubr.bf16.mxu0 0
      %5297 = vmatmul.mubr.bf16.gmra.mxu0 %v5193
      %v5298 = vpop.f32.mrf.mxu0
      %v5299 = vadd.f32 0.0, %v5298
      %v5300 = vpop.f32.mrf.mxu0
      %v5301 = vpop.f32.mrf.mxu0
      %v5302 = vadd.f32 0.0, %v5301
      %v5303 = vpop.f32.mrf.mxu0
      %5304 = vmatprep.mubr.bf16.mxu0 0
      %5305 = vmatmul.mubr.bf16.gmra.mxu0 %v5196
      %v5306 = vpop.f32.mrf.mxu0
      %v5307 = vadd.f32 0.0, %v5306
      %v5308 = vpop.f32.mrf.mxu0
      %v5309 = vpop.f32.mrf.mxu0
      %v5310 = vadd.f32 0.0, %v5309
      %v5311 = vpop.f32.mrf.mxu0
      %5312 = vmatprep.mubr.bf16.mxu0 0
      %5313 = vmatmul.mubr.bf16.gmra.mxu0 %v5199
      %v5314 = vpop.f32.mrf.mxu0
      %v5315 = vadd.f32 0.0, %v5314
      %v5316 = vpop.f32.mrf.mxu0
      %v5317 = vpop.f32.mrf.mxu0
      %v5318 = vadd.f32 0.0, %v5317
      %v5319 = vpop.f32.mrf.mxu0
      %5320 = vmatprep.mubr.bf16.mxu0 0
      %5321 = vmatmul.mubr.bf16.gmra.mxu0 %v5202
      %v5322 = vpop.f32.mrf.mxu0
      %v5323 = vadd.f32 0.0, %v5322
      %v5324 = vpop.f32.mrf.mxu0
      %v5325 = vpop.f32.mrf.mxu0
      %v5326 = vadd.f32 0.0, %v5325
      %v5327 = vpop.f32.mrf.mxu0
      %5328 = vmatprep.mubr.bf16.mxu0 0
      %5329 = vmatmul.mubr.bf16.gmra.mxu0 %v5205
      %v5330 = vpop.f32.mrf.mxu0
      %v5331 = vadd.f32 0.0, %v5330
      %v5332 = vpop.f32.mrf.mxu0
      %v5333 = vpop.f32.mrf.mxu0
      %v5334 = vadd.f32 0.0, %v5333
      %v5335 = vpop.f32.mrf.mxu0
      %5336 = vmatprep.mubr.bf16.mxu0 0
      %5337 = vmatmul.mubr.bf16.gmra.mxu0 %v5208
      %v5338 = vpop.f32.mrf.mxu0
      %v5339 = vadd.f32 0.0, %v5338
      %v5340 = vpop.f32.mrf.mxu0
      %v5341 = vpop.f32.mrf.mxu0
      %v5342 = vadd.f32 0.0, %v5341
      %v5343 = vpop.f32.mrf.mxu0
      %5344 = vmatprep.mubr.bf16.mxu0 0
      %5345 = vmatmul.mubr.bf16.gmra.mxu0 %v5211
      %v5346 = vpop.f32.mrf.mxu0
      %v5347 = vadd.f32 0.0, %v5346
      %v5348 = vpop.f32.mrf.mxu0
      %v5349 = vpop.f32.mrf.mxu0
      %v5350 = vpop.f32.mrf.mxu0
      %5351 = vdwg.mxu0
      %v5352 = vadd.f32 %v5006, %v5251
      %v5353 = vadd.f32 %v5007, %v5254
      %v5354 = vadd.f32 %v5008, %v5259
      %v5355 = vadd.f32 %v5009, %v5262
      %v5356 = vadd.f32 %v5010, %v5267
      %v5357 = vadd.f32 %v5011, %v5270
      %v5358 = vadd.f32 %v5012, %v5275
      %v5359 = vadd.f32 %v5013, %v5278
      %v5360 = vadd.f32 %v5014, %v5283
      %v5361 = vadd.f32 %v5015, %v5286
      %v5362 = vadd.f32 %v5016, %v5291
      %v5363 = vadd.f32 %v5017, %v5294
      %v5364 = vadd.f32 %v5018, %v5299
      %v5365 = vadd.f32 %v5019, %v5302
      %v5366 = vadd.f32 %v5020, %v5307
      %v5367 = vadd.f32 %v5021, %v5310
      %v5368 = vadd.f32 %v5022, %v5315
      %v5369 = vadd.f32 %v5023, %v5318
      %v5370 = vadd.f32 %v5024, %v5323
      %v5371 = vadd.f32 %v5025, %v5326
      %v5372 = vadd.f32 %v5026, %v5331
      %v5373 = vadd.f32 %v5027, %v5334
      %v5374 = vadd.f32 %v5028, %v5339
      %v5375 = vadd.f32 %v5029, %v5342
      %v5376 = vadd.f32 %v5030, %v5347
      %v5377 = vcombine.low %v2618, %v2628
      %v5378 = vcombine.low %v2652, %v2662
      %v5379 = vcombine.low %v2686, %v2696
      %v5380 = vcombine.low %v2703, %v2713
      %v5381 = vcombine.low %v2737, %v2747
      %v5382 = vcombine.low %v2771, %v2781
      %v5383 = vcombine.low %v2805, %v2815
      %v5384 = vcombine.low %v2822, %v2832
      %v5385 = vcombine.low %v2856, %v2866
      %v5386 = vcombine.low %v2890, %v2900
      %v5387 = vcombine.low %v2924, %v2934
      %v5388 = vcombine.low %v2941, %v2950
      %v5389 = vcombine.low %v3632, %v4706
      %v5391 = vunpack.c.l.s4 1983009808
      %v5392 = vunpack.c.0.s8 %v5391
      %v5393 = vlaneseq
      %v5394 = vshrl.u32 %v5393, 7
      %v5395 = vsub.s32 %v5392, %v5394
      %v5396 = vrot.slane %v5389, %v5395
      %v5397 = vcombine.low %v3388, %v5396
      %v5398 = vcombine.low %v4705, %v4707
      %v5399 = vcombine.low %v4715, %v4723
      %v5401 = vunpack.c.l.s4 1983009808
      %v5402 = vunpack.c.0.s8 %v5401
      %v5403 = vlaneseq
      %v5404 = vshrl.u32 %v5403, 7
      %v5405 = vsub.s32 %v5402, %v5404
      %v5406 = vrot.slane %v5398, %v5405
      %v5408 = vunpack.c.l.s4 1983009808
      %v5409 = vunpack.c.0.s8 %v5408
      %v5410 = vlaneseq
      %v5411 = vshrl.u32 %v5410, 7
      %v5412 = vsub.s32 %v5409, %v5411
      %v5413 = vrot.slane %v5399, %v5412
      %v5414 = vcombine.low %v5406, %v5413
      %v5415 = vcombine.low %v4722, %v5031
      %v5417 = vunpack.c.l.s4 1983009808
      %v5418 = vunpack.c.0.s8 %v5417
      %v5419 = vlaneseq
      %v5420 = vshrl.u32 %v5419, 7
      %v5421 = vsub.s32 %v5418, %v5420
      %v5422 = vrot.slane %v5415, %v5421
      %v5438 = vpack.c.bf16 %v5377, %v3247
      %v5439 = vpack.c.bf16 %v5378, %v3257
      %v5440 = vpack.c.bf16 %v5379, %v3267
      %v5441 = vpack.c.bf16 %v3286, %v5380
      %v5442 = vpack.c.bf16 %v3296, %v5381
      %v5443 = vpack.c.bf16 %v3306, %v5382
      %v5444 = vpack.c.bf16 %v5384, %v5383
      %v5445 = vpack.c.bf16 %v5385, %v3325
      %v5446 = vpack.c.bf16 %v5386, %v3335
      %v5447 = vpack.c.bf16 %v5387, %v3345
      %v5448 = vpack.c.bf16 %v3380, %v5388
      %v5449 = vpack.c.bf16 %v5414, %v5397
      %v5450 = vpack.c.bf16 %v5422, %v5422
      %s5451 = scalar_lea.vmem %s1, 16
      %v5452 = vld [vmem:[%s5451] sm:$0x3]
      %v5454 = vsel %vm2177, %v5438, 0
      %v5457 = vsel %vm2177, %v5439, 0
      %v5460 = vsel %vm2177, %v5440, 0
      %v5463 = vsel %vm2177, %v5441, 0
      %v5466 = vsel %vm2177, %v5442, 0
      %v5469 = vsel %vm2177, %v5443, 0
      %v5472 = vsel %vm2177, %v5444, 0
      %v5475 = vsel %vm2177, %v5445, 0
      %v5478 = vsel %vm2177, %v5446, 0
      %v5481 = vsel %vm2177, %v5447, 0
      %v5484 = vsel %vm2177, %v5448, 0
      %v5487 = vsel %vm2177, %v5449, 0
      %v5490 = vsel %vm2177, %v5450, 0
      %v5493 = vsel %vm2217, %v5452, 0
      %5495 = vmatprep.subr.bf16.mxu0 0
      %5496 = vmatpush1.bf16.msra.mxu0 0
      %5497 = vmatprep.subr.bf16.mxu0 0
      %5498 = vmatpush1.bf16.msra.mxu0 0
      %5499 = vmatprep.subr.bf16.mxu0 0
      %5500 = vmatpush1.bf16.msra.mxu0 0
      %5501 = vmatprep.subr.bf16.mxu0 0
      %5502 = vmatpush1.bf16.msra.mxu0 0
      %5503 = vmatprep.subr.bf16.mxu0 0
      %5504 = vmatpush1.bf16.msra.mxu0 0
      %5505 = vmatprep.subr.bf16.mxu0 0
      %5506 = vmatpush1.bf16.msra.mxu0 0
      %5507 = vmatprep.subr.bf16.mxu0 0
      %5508 = vmatpush1.bf16.msra.mxu0 0
      %5509 = vmatprep.subr.bf16.mxu0 0
      %5510 = vmatpush1.bf16.msra.mxu0 %v5493
      %5511 = vmatprep.subr.bf16.mxu0 0
      %5512 = vmatpush2.bf16.msra.mxu0 0
      %5513 = vmatprep.subr.bf16.mxu0 0
      %5514 = vmatpush2.bf16.msra.mxu0 0
      %5515 = vmatprep.subr.bf16.mxu0 0
      %5516 = vmatpush2.bf16.msra.mxu0 0
      %5517 = vmatprep.subr.bf16.mxu0 0
      %5518 = vmatpush2.bf16.msra.mxu0 0
      %5519 = vmatprep.subr.bf16.mxu0 0
      %5520 = vmatpush2.bf16.msra.mxu0 0
      %5521 = vmatprep.subr.bf16.mxu0 0
      %5522 = vmatpush2.bf16.msra.mxu0 0
      %5523 = vmatprep.subr.bf16.mxu0 0
      %5524 = vmatpush2.bf16.msra.mxu0 0
      %5525 = vmatprep.subr.bf16.mxu0 0
      %5526 = vmatpush2.bf16.msra.mxu0 0
      %5527 = vmatprep.mubr.bf16.mxu0 0
      %5528 = vmatmul.mubr.bf16.gmra.mxu0 %v5454
      %v5529 = vpop.f32.mrf.mxu0
      %v5530 = vadd.f32 0.0, %v5529
      %v5531 = vpop.f32.mrf.mxu0
      %v5532 = vpop.f32.mrf.mxu0
      %v5533 = vadd.f32 0.0, %v5532
      %v5534 = vpop.f32.mrf.mxu0
      %5535 = vmatprep.mubr.bf16.mxu0 0
      %5536 = vmatmul.mubr.bf16.gmra.mxu0 %v5457
      %v5537 = vpop.f32.mrf.mxu0
      %v5538 = vadd.f32 0.0, %v5537
      %v5539 = vpop.f32.mrf.mxu0
      %v5540 = vpop.f32.mrf.mxu0
      %v5541 = vadd.f32 0.0, %v5540
      %v5542 = vpop.f32.mrf.mxu0
      %5543 = vmatprep.mubr.bf16.mxu0 0
      %5544 = vmatmul.mubr.bf16.gmra.mxu0 %v5460
      %v5545 = vpop.f32.mrf.mxu0
      %v5546 = vadd.f32 0.0, %v5545
      %v5547 = vpop.f32.mrf.mxu0
      %v5548 = vpop.f32.mrf.mxu0
      %v5549 = vadd.f32 0.0, %v5548
      %v5550 = vpop.f32.mrf.mxu0
      %5551 = vmatprep.mubr.bf16.mxu0 0
      %5552 = vmatmul.mubr.bf16.gmra.mxu0 %v5463
      %v5553 = vpop.f32.mrf.mxu0
      %v5554 = vadd.f32 0.0, %v5553
      %v5555 = vpop.f32.mrf.mxu0
      %v5556 = vpop.f32.mrf.mxu0
      %v5557 = vadd.f32 0.0, %v5556
      %v5558 = vpop.f32.mrf.mxu0
      %5559 = vmatprep.mubr.bf16.mxu0 0
      %5560 = vmatmul.mubr.bf16.gmra.mxu0 %v5466
      %v5561 = vpop.f32.mrf.mxu0
      %v5562 = vadd.f32 0.0, %v5561
      %v5563 = vpop.f32.mrf.mxu0
      %v5564 = vpop.f32.mrf.mxu0
      %v5565 = vadd.f32 0.0, %v5564
      %v5566 = vpop.f32.mrf.mxu0
      %5567 = vmatprep.mubr.bf16.mxu0 0
      %5568 = vmatmul.mubr.bf16.gmra.mxu0 %v5469
      %v5569 = vpop.f32.mrf.mxu0
      %v5570 = vadd.f32 0.0, %v5569
      %v5571 = vpop.f32.mrf.mxu0
      %v5572 = vpop.f32.mrf.mxu0
      %v5573 = vadd.f32 0.0, %v5572
      %v5574 = vpop.f32.mrf.mxu0
      %5575 = vmatprep.mubr.bf16.mxu0 0
      %5576 = vmatmul.mubr.bf16.gmra.mxu0 %v5472
      %v5577 = vpop.f32.mrf.mxu0
      %v5578 = vadd.f32 0.0, %v5577
      %v5579 = vpop.f32.mrf.mxu0
      %v5580 = vpop.f32.mrf.mxu0
      %v5581 = vadd.f32 0.0, %v5580
      %v5582 = vpop.f32.mrf.mxu0
      %5583 = vmatprep.mubr.bf16.mxu0 0
      %5584 = vmatmul.mubr.bf16.gmra.mxu0 %v5475
      %v5585 = vpop.f32.mrf.mxu0
      %v5586 = vadd.f32 0.0, %v5585
      %v5587 = vpop.f32.mrf.mxu0
      %v5588 = vpop.f32.mrf.mxu0
      %v5589 = vadd.f32 0.0, %v5588
      %v5590 = vpop.f32.mrf.mxu0
      %5591 = vmatprep.mubr.bf16.mxu0 0
      %5592 = vmatmul.mubr.bf16.gmra.mxu0 %v5478
      %v5593 = vpop.f32.mrf.mxu0
      %v5594 = vadd.f32 0.0, %v5593
      %v5595 = vpop.f32.mrf.mxu0
      %v5596 = vpop.f32.mrf.mxu0
      %v5597 = vadd.f32 0.0, %v5596
      %v5598 = vpop.f32.mrf.mxu0
      %5599 = vmatprep.mubr.bf16.mxu0 0
      %5600 = vmatmul.mubr.bf16.gmra.mxu0 %v5481
      %v5601 = vpop.f32.mrf.mxu0
      %v5602 = vadd.f32 0.0, %v5601
      %v5603 = vpop.f32.mrf.mxu0
      %v5604 = vpop.f32.mrf.mxu0
      %v5605 = vadd.f32 0.0, %v5604
      %v5606 = vpop.f32.mrf.mxu0
      %5607 = vmatprep.mubr.bf16.mxu0 0
      %5608 = vmatmul.mubr.bf16.gmra.mxu0 %v5484
      %v5609 = vpop.f32.mrf.mxu0
      %v5610 = vadd.f32 0.0, %v5609
      %v5611 = vpop.f32.mrf.mxu0
      %v5612 = vpop.f32.mrf.mxu0
      %v5613 = vadd.f32 0.0, %v5612
      %v5614 = vpop.f32.mrf.mxu0
      %5615 = vmatprep.mubr.bf16.mxu0 0
      %5616 = vmatmul.mubr.bf16.gmra.mxu0 %v5487
      %v5617 = vpop.f32.mrf.mxu0
      %v5618 = vadd.f32 0.0, %v5617
      %v5619 = vpop.f32.mrf.mxu0
      %v5620 = vpop.f32.mrf.mxu0
      %v5621 = vadd.f32 0.0, %v5620
      %v5622 = vpop.f32.mrf.mxu0
      %5623 = vmatprep.mubr.bf16.mxu0 0
      %5624 = vmatmul.mubr.bf16.gmra.mxu0 %v5490
      %v5625 = vpop.f32.mrf.mxu0
      %v5626 = vadd.f32 0.0, %v5625
      %v5627 = vpop.f32.mrf.mxu0
      %v5628 = vpop.f32.mrf.mxu0
      %v5629 = vpop.f32.mrf.mxu0
      %5630 = vdwg.mxu0
      %v5631 = vadd.f32 %v5352, %v5530
      %v5632 = vadd.f32 %v5353, %v5533
      %v5633 = vadd.f32 %v5354, %v5538
      %v5634 = vadd.f32 %v5355, %v5541
      %v5635 = vadd.f32 %v5356, %v5546
      %v5636 = vadd.f32 %v5357, %v5549
      %v5637 = vadd.f32 %v5358, %v5554
      %v5638 = vadd.f32 %v5359, %v5557
      %v5639 = vadd.f32 %v5360, %v5562
      %v5640 = vadd.f32 %v5361, %v5565
      %v5641 = vadd.f32 %v5362, %v5570
      %v5642 = vadd.f32 %v5363, %v5573
      %v5643 = vadd.f32 %v5364, %v5578
      %v5644 = vadd.f32 %v5365, %v5581
      %v5645 = vadd.f32 %v5366, %v5586
      %v5646 = vadd.f32 %v5367, %v5589
      %v5647 = vadd.f32 %v5368, %v5594
      %v5648 = vadd.f32 %v5369, %v5597
      %v5649 = vadd.f32 %v5370, %v5602
      %v5650 = vadd.f32 %v5371, %v5605
      %v5651 = vadd.f32 %v5372, %v5610
      %v5652 = vadd.f32 %v5373, %v5613
      %v5653 = vadd.f32 %v5374, %v5618
      %v5654 = vadd.f32 %v5375, %v5621
      %v5655 = vadd.f32 %v5376, %v5626
      %v5681 = vcombine.high %v5631, %v5631
      %v5683 = vunpack.c.l.s4 1983009808
      %v5684 = vunpack.c.0.s8 %v5683
      %v5685 = vlaneseq
      %v5686 = vshrl.u32 %v5685, 7
      %v5687 = vsub.s32 %v5684, %v5686
      %v5688 = vrot.slane %v5631, %v5687
      %v5690 = vunpack.c.l.s4 1983009808
      %v5691 = vunpack.c.0.s8 %v5690
      %v5692 = vlaneseq
      %v5693 = vshrl.u32 %v5692, 7
      %v5694 = vsub.s32 %v5691, %v5693
      %v5695 = vrot.slane %v5681, %v5694
      %v5696 = vcombine.high %v5688, %v5688
      %v5697 = vcombine.high %v5695, %v5695
      %v5698 = vcombine.high %v5632, %v5632
      %v5700 = vunpack.c.l.s4 1983009808
      %v5701 = vunpack.c.0.s8 %v5700
      %v5702 = vlaneseq
      %v5703 = vshrl.u32 %v5702, 7
      %v5704 = vsub.s32 %v5701, %v5703
      %v5705 = vrot.slane %v5632, %v5704
      %v5707 = vunpack.c.l.s4 1983009808
      %v5708 = vunpack.c.0.s8 %v5707
      %v5709 = vlaneseq
      %v5710 = vshrl.u32 %v5709, 7
      %v5711 = vsub.s32 %v5708, %v5710
      %v5712 = vrot.slane %v5698, %v5711
      %v5713 = vcombine.high %v5705, %v5705
      %v5714 = vcombine.high %v5712, %v5712
      %v5715 = vcombine.high %v5633, %v5633
      %v5717 = vunpack.c.l.s4 1983009808
      %v5718 = vunpack.c.0.s8 %v5717
      %v5719 = vlaneseq
      %v5720 = vshrl.u32 %v5719, 7
      %v5721 = vsub.s32 %v5718, %v5720
      %v5722 = vrot.slane %v5633, %v5721
      %v5724 = vunpack.c.l.s4 1983009808
      %v5725 = vunpack.c.0.s8 %v5724
      %v5726 = vlaneseq
      %v5727 = vshrl.u32 %v5726, 7
      %v5728 = vsub.s32 %v5725, %v5727
      %v5729 = vrot.slane %v5715, %v5728
      %v5730 = vcombine.high %v5722, %v5722
      %v5731 = vcombine.high %v5729, %v5729
      %v5732 = vcombine.high %v5634, %v5634
      %v5734 = vunpack.c.l.s4 1983009808
      %v5735 = vunpack.c.0.s8 %v5734
      %v5736 = vlaneseq
      %v5737 = vshrl.u32 %v5736, 7
      %v5738 = vsub.s32 %v5735, %v5737
      %v5739 = vrot.slane %v5634, %v5738
      %v5741 = vunpack.c.l.s4 1983009808
      %v5742 = vunpack.c.0.s8 %v5741
      %v5743 = vlaneseq
      %v5744 = vshrl.u32 %v5743, 7
      %v5745 = vsub.s32 %v5742, %v5744
      %v5746 = vrot.slane %v5732, %v5745
      %v5747 = vcombine.high %v5739, %v5739
      %v5748 = vcombine.high %v5746, %v5746
      %v5749 = vcombine.high %v5635, %v5635
      %v5751 = vunpack.c.l.s4 1983009808
      %v5752 = vunpack.c.0.s8 %v5751
      %v5753 = vlaneseq
      %v5754 = vshrl.u32 %v5753, 7
      %v5755 = vsub.s32 %v5752, %v5754
      %v5756 = vrot.slane %v5635, %v5755
      %v5758 = vunpack.c.l.s4 1983009808
      %v5759 = vunpack.c.0.s8 %v5758
      %v5760 = vlaneseq
      %v5761 = vshrl.u32 %v5760, 7
      %v5762 = vsub.s32 %v5759, %v5761
      %v5763 = vrot.slane %v5749, %v5762
      %v5764 = vcombine.high %v5756, %v5756
      %v5765 = vcombine.high %v5763, %v5763
      %v5766 = vcombine.high %v5636, %v5636
      %v5768 = vunpack.c.l.s4 1983009808
      %v5769 = vunpack.c.0.s8 %v5768
      %v5770 = vlaneseq
      %v5771 = vshrl.u32 %v5770, 7
      %v5772 = vsub.s32 %v5769, %v5771
      %v5773 = vrot.slane %v5636, %v5772
      %v5775 = vunpack.c.l.s4 1983009808
      %v5776 = vunpack.c.0.s8 %v5775
      %v5777 = vlaneseq
      %v5778 = vshrl.u32 %v5777, 7
      %v5779 = vsub.s32 %v5776, %v5778
      %v5780 = vrot.slane %v5766, %v5779
      %v5781 = vcombine.high %v5773, %v5773
      %v5782 = vcombine.high %v5780, %v5780
      %v5783 = vcombine.high %v5637, %v5637
      %v5785 = vunpack.c.l.s4 1983009808
      %v5786 = vunpack.c.0.s8 %v5785
      %v5787 = vlaneseq
      %v5788 = vshrl.u32 %v5787, 7
      %v5789 = vsub.s32 %v5786, %v5788
      %v5790 = vrot.slane %v5637, %v5789
      %v5792 = vunpack.c.l.s4 1983009808
      %v5793 = vunpack.c.0.s8 %v5792
      %v5794 = vlaneseq
      %v5795 = vshrl.u32 %v5794, 7
      %v5796 = vsub.s32 %v5793, %v5795
      %v5797 = vrot.slane %v5783, %v5796
      %v5798 = vcombine.high %v5790, %v5790
      %v5799 = vcombine.high %v5797, %v5797
      %v5800 = vcombine.high %v5638, %v5638
      %v5802 = vunpack.c.l.s4 1983009808
      %v5803 = vunpack.c.0.s8 %v5802
      %v5804 = vlaneseq
      %v5805 = vshrl.u32 %v5804, 7
      %v5806 = vsub.s32 %v5803, %v5805
      %v5807 = vrot.slane %v5638, %v5806
      %v5809 = vunpack.c.l.s4 1983009808
      %v5810 = vunpack.c.0.s8 %v5809
      %v5811 = vlaneseq
      %v5812 = vshrl.u32 %v5811, 7
      %v5813 = vsub.s32 %v5810, %v5812
      %v5814 = vrot.slane %v5800, %v5813
      %v5815 = vcombine.high %v5807, %v5807
      %v5816 = vcombine.high %v5814, %v5814
      %v5817 = vcombine.high %v5639, %v5639
      %v5819 = vunpack.c.l.s4 1983009808
      %v5820 = vunpack.c.0.s8 %v5819
      %v5821 = vlaneseq
      %v5822 = vshrl.u32 %v5821, 7
      %v5823 = vsub.s32 %v5820, %v5822
      %v5824 = vrot.slane %v5639, %v5823
      %v5826 = vunpack.c.l.s4 1983009808
      %v5827 = vunpack.c.0.s8 %v5826
      %v5828 = vlaneseq
      %v5829 = vshrl.u32 %v5828, 7
      %v5830 = vsub.s32 %v5827, %v5829
      %v5831 = vrot.slane %v5817, %v5830
      %v5832 = vcombine.high %v5824, %v5824
      %v5833 = vcombine.high %v5831, %v5831
      %v5834 = vcombine.high %v5640, %v5640
      %v5836 = vunpack.c.l.s4 1983009808
      %v5837 = vunpack.c.0.s8 %v5836
      %v5838 = vlaneseq
      %v5839 = vshrl.u32 %v5838, 7
      %v5840 = vsub.s32 %v5837, %v5839
      %v5841 = vrot.slane %v5640, %v5840
      %v5843 = vunpack.c.l.s4 1983009808
      %v5844 = vunpack.c.0.s8 %v5843
      %v5845 = vlaneseq
      %v5846 = vshrl.u32 %v5845, 7
      %v5847 = vsub.s32 %v5844, %v5846
      %v5848 = vrot.slane %v5834, %v5847
      %v5849 = vcombine.high %v5841, %v5841
      %v5850 = vcombine.high %v5848, %v5848
      %v5851 = vcombine.high %v5641, %v5641
      %v5853 = vunpack.c.l.s4 1983009808
      %v5854 = vunpack.c.0.s8 %v5853
      %v5855 = vlaneseq
      %v5856 = vshrl.u32 %v5855, 7
      %v5857 = vsub.s32 %v5854, %v5856
      %v5858 = vrot.slane %v5641, %v5857
      %v5860 = vunpack.c.l.s4 1983009808
      %v5861 = vunpack.c.0.s8 %v5860
      %v5862 = vlaneseq
      %v5863 = vshrl.u32 %v5862, 7
      %v5864 = vsub.s32 %v5861, %v5863
      %v5865 = vrot.slane %v5851, %v5864
      %v5866 = vcombine.high %v5858, %v5858
      %v5867 = vcombine.high %v5865, %v5865
      %v5868 = vcombine.high %v5642, %v5642
      %v5870 = vunpack.c.l.s4 1983009808
      %v5871 = vunpack.c.0.s8 %v5870
      %v5872 = vlaneseq
      %v5873 = vshrl.u32 %v5872, 7
      %v5874 = vsub.s32 %v5871, %v5873
      %v5875 = vrot.slane %v5642, %v5874
      %v5877 = vunpack.c.l.s4 1983009808
      %v5878 = vunpack.c.0.s8 %v5877
      %v5879 = vlaneseq
      %v5880 = vshrl.u32 %v5879, 7
      %v5881 = vsub.s32 %v5878, %v5880
      %v5882 = vrot.slane %v5868, %v5881
      %v5883 = vcombine.high %v5875, %v5875
      %v5884 = vcombine.high %v5882, %v5882
      %v5885 = vcombine.high %v5643, %v5643
      %v5887 = vunpack.c.l.s4 1983009808
      %v5888 = vunpack.c.0.s8 %v5887
      %v5889 = vlaneseq
      %v5890 = vshrl.u32 %v5889, 7
      %v5891 = vsub.s32 %v5888, %v5890
      %v5892 = vrot.slane %v5643, %v5891
      %v5894 = vunpack.c.l.s4 1983009808
      %v5895 = vunpack.c.0.s8 %v5894
      %v5896 = vlaneseq
      %v5897 = vshrl.u32 %v5896, 7
      %v5898 = vsub.s32 %v5895, %v5897
      %v5899 = vrot.slane %v5885, %v5898
      %v5900 = vcombine.high %v5892, %v5892
      %v5901 = vcombine.high %v5899, %v5899
      %v5902 = vcombine.high %v5644, %v5644
      %v5904 = vunpack.c.l.s4 1983009808
      %v5905 = vunpack.c.0.s8 %v5904
      %v5906 = vlaneseq
      %v5907 = vshrl.u32 %v5906, 7
      %v5908 = vsub.s32 %v5905, %v5907
      %v5909 = vrot.slane %v5644, %v5908
      %v5911 = vunpack.c.l.s4 1983009808
      %v5912 = vunpack.c.0.s8 %v5911
      %v5913 = vlaneseq
      %v5914 = vshrl.u32 %v5913, 7
      %v5915 = vsub.s32 %v5912, %v5914
      %v5916 = vrot.slane %v5902, %v5915
      %v5917 = vcombine.high %v5909, %v5909
      %v5918 = vcombine.high %v5916, %v5916
      %v5919 = vcombine.high %v5645, %v5645
      %v5921 = vunpack.c.l.s4 1983009808
      %v5922 = vunpack.c.0.s8 %v5921
      %v5923 = vlaneseq
      %v5924 = vshrl.u32 %v5923, 7
      %v5925 = vsub.s32 %v5922, %v5924
      %v5926 = vrot.slane %v5645, %v5925
      %v5928 = vunpack.c.l.s4 1983009808
      %v5929 = vunpack.c.0.s8 %v5928
      %v5930 = vlaneseq
      %v5931 = vshrl.u32 %v5930, 7
      %v5932 = vsub.s32 %v5929, %v5931
      %v5933 = vrot.slane %v5919, %v5932
      %v5934 = vcombine.high %v5926, %v5926
      %v5935 = vcombine.high %v5933, %v5933
      %v5936 = vcombine.high %v5646, %v5646
      %v5938 = vunpack.c.l.s4 1983009808
      %v5939 = vunpack.c.0.s8 %v5938
      %v5940 = vlaneseq
      %v5941 = vshrl.u32 %v5940, 7
      %v5942 = vsub.s32 %v5939, %v5941
      %v5943 = vrot.slane %v5646, %v5942
      %v5945 = vunpack.c.l.s4 1983009808
      %v5946 = vunpack.c.0.s8 %v5945
      %v5947 = vlaneseq
      %v5948 = vshrl.u32 %v5947, 7
      %v5949 = vsub.s32 %v5946, %v5948
      %v5950 = vrot.slane %v5936, %v5949
      %v5951 = vcombine.high %v5943, %v5943
      %v5952 = vcombine.high %v5950, %v5950
      %v5953 = vcombine.high %v5647, %v5647
      %v5955 = vunpack.c.l.s4 1983009808
      %v5956 = vunpack.c.0.s8 %v5955
      %v5957 = vlaneseq
      %v5958 = vshrl.u32 %v5957, 7
      %v5959 = vsub.s32 %v5956, %v5958
      %v5960 = vrot.slane %v5647, %v5959
      %v5962 = vunpack.c.l.s4 1983009808
      %v5963 = vunpack.c.0.s8 %v5962
      %v5964 = vlaneseq
      %v5965 = vshrl.u32 %v5964, 7
      %v5966 = vsub.s32 %v5963, %v5965
      %v5967 = vrot.slane %v5953, %v5966
      %v5968 = vcombine.high %v5960, %v5960
      %v5969 = vcombine.high %v5967, %v5967
      %v5970 = vcombine.high %v5648, %v5648
      %v5972 = vunpack.c.l.s4 1983009808
      %v5973 = vunpack.c.0.s8 %v5972
      %v5974 = vlaneseq
      %v5975 = vshrl.u32 %v5974, 7
      %v5976 = vsub.s32 %v5973, %v5975
      %v5977 = vrot.slane %v5648, %v5976
      %v5979 = vunpack.c.l.s4 1983009808
      %v5980 = vunpack.c.0.s8 %v5979
      %v5981 = vlaneseq
      %v5982 = vshrl.u32 %v5981, 7
      %v5983 = vsub.s32 %v5980, %v5982
      %v5984 = vrot.slane %v5970, %v5983
      %v5985 = vcombine.high %v5977, %v5977
      %v5986 = vcombine.high %v5984, %v5984
      %v5987 = vcombine.high %v5649, %v5649
      %v5989 = vunpack.c.l.s4 1983009808
      %v5990 = vunpack.c.0.s8 %v5989
      %v5991 = vlaneseq
      %v5992 = vshrl.u32 %v5991, 7
      %v5993 = vsub.s32 %v5990, %v5992
      %v5994 = vrot.slane %v5649, %v5993
      %v5996 = vunpack.c.l.s4 1983009808
      %v5997 = vunpack.c.0.s8 %v5996
      %v5998 = vlaneseq
      %v5999 = vshrl.u32 %v5998, 7
      %v6000 = vsub.s32 %v5997, %v5999
      %v6001 = vrot.slane %v5987, %v6000
      %v6002 = vcombine.high %v5994, %v5994
      %v6003 = vcombine.high %v6001, %v6001
      %v6004 = vcombine.high %v5650, %v5650
      %v6006 = vunpack.c.l.s4 1983009808
      %v6007 = vunpack.c.0.s8 %v6006
      %v6008 = vlaneseq
      %v6009 = vshrl.u32 %v6008, 7
      %v6010 = vsub.s32 %v6007, %v6009
      %v6011 = vrot.slane %v5650, %v6010
      %v6013 = vunpack.c.l.s4 1983009808
      %v6014 = vunpack.c.0.s8 %v6013
      %v6015 = vlaneseq
      %v6016 = vshrl.u32 %v6015, 7
      %v6017 = vsub.s32 %v6014, %v6016
      %v6018 = vrot.slane %v6004, %v6017
      %v6019 = vcombine.high %v6011, %v6011
      %v6020 = vcombine.high %v6018, %v6018
      %v6021 = vcombine.high %v5651, %v5651
      %v6023 = vunpack.c.l.s4 1983009808
      %v6024 = vunpack.c.0.s8 %v6023
      %v6025 = vlaneseq
      %v6026 = vshrl.u32 %v6025, 7
      %v6027 = vsub.s32 %v6024, %v6026
      %v6028 = vrot.slane %v5651, %v6027
      %v6030 = vunpack.c.l.s4 1983009808
      %v6031 = vunpack.c.0.s8 %v6030
      %v6032 = vlaneseq
      %v6033 = vshrl.u32 %v6032, 7
      %v6034 = vsub.s32 %v6031, %v6033
      %v6035 = vrot.slane %v6021, %v6034
      %v6036 = vcombine.high %v6028, %v6028
      %v6037 = vcombine.high %v6035, %v6035
      %v6038 = vcombine.high %v5652, %v5652
      %v6040 = vunpack.c.l.s4 1983009808
      %v6041 = vunpack.c.0.s8 %v6040
      %v6042 = vlaneseq
      %v6043 = vshrl.u32 %v6042, 7
      %v6044 = vsub.s32 %v6041, %v6043
      %v6045 = vrot.slane %v5652, %v6044
      %v6047 = vunpack.c.l.s4 1983009808
      %v6048 = vunpack.c.0.s8 %v6047
      %v6049 = vlaneseq
      %v6050 = vshrl.u32 %v6049, 7
      %v6051 = vsub.s32 %v6048, %v6050
      %v6052 = vrot.slane %v6038, %v6051
      %v6053 = vcombine.high %v6045, %v6045
      %v6054 = vcombine.high %v6052, %v6052
      %v6055 = vcombine.high %v5653, %v5653
      %v6057 = vunpack.c.l.s4 1983009808
      %v6058 = vunpack.c.0.s8 %v6057
      %v6059 = vlaneseq
      %v6060 = vshrl.u32 %v6059, 7
      %v6061 = vsub.s32 %v6058, %v6060
      %v6062 = vrot.slane %v5653, %v6061
      %v6064 = vunpack.c.l.s4 1983009808
      %v6065 = vunpack.c.0.s8 %v6064
      %v6066 = vlaneseq
      %v6067 = vshrl.u32 %v6066, 7
      %v6068 = vsub.s32 %v6065, %v6067
      %v6069 = vrot.slane %v6055, %v6068
      %v6070 = vcombine.high %v6062, %v6062
      %v6071 = vcombine.high %v6069, %v6069
      %v6072 = vcombine.high %v5654, %v5654
      %v6074 = vunpack.c.l.s4 1983009808
      %v6075 = vunpack.c.0.s8 %v6074
      %v6076 = vlaneseq
      %v6077 = vshrl.u32 %v6076, 7
      %v6078 = vsub.s32 %v6075, %v6077
      %v6079 = vrot.slane %v5654, %v6078
      %v6081 = vunpack.c.l.s4 1983009808
      %v6082 = vunpack.c.0.s8 %v6081
      %v6083 = vlaneseq
      %v6084 = vshrl.u32 %v6083, 7
      %v6085 = vsub.s32 %v6082, %v6084
      %v6086 = vrot.slane %v6072, %v6085
      %v6087 = vcombine.high %v6079, %v6079
      %v6088 = vcombine.high %v6086, %v6086
      %v6090 = vunpack.c.l.s4 1983009808
      %v6091 = vunpack.c.0.s8 %v6090
      %v6092 = vlaneseq
      %v6093 = vshrl.u32 %v6092, 7
      %v6094 = vsub.s32 %v6091, %v6093
      %v6095 = vrot.slane %v5655, %v6094
      %v6096 = vcombine.high %v6095, %v6095
      %v6196 = vlaneseq
      %v6197 = vshrl.u32 %v6196, 7
      %v6198 = vsub.s32 0, %v6197
      %v6199 = vrot.slane %v445, %v6198
      %v6200 = vcombine.high %v6199, %v6199
      %v6202 = vunpack.c.l.s4 1983009808
      %v6203 = vunpack.c.0.s8 %v6202
      %v6204 = vlaneseq
      %v6205 = vshrl.u32 %v6204, 7
      %v6206 = vsub.s32 %v6203, %v6205
      %v6207 = vrot.slane %v6199, %v6206
      %v6209 = vunpack.c.l.s4 1983009808
      %v6210 = vunpack.c.0.s8 %v6209
      %v6211 = vlaneseq
      %v6212 = vshrl.u32 %v6211, 7
      %v6213 = vsub.s32 %v6210, %v6212
      %v6214 = vrot.slane %v6200, %v6213
      %v6215 = vcombine.high %v6207, %v6207
      %v6216 = vcombine.high %v6214, %v6214
      %v6221 = vmul.f32 %v5688, %v6207
      %v6222 = vmul.f32 %v5696, %v6215
      %v6223 = vmul.f32 %v5695, %v6214
      %v6224 = vmul.f32 %v5697, %v6216
      %v6225 = vmul.f32 %v5705, %v6207
      %v6226 = vmul.f32 %v5713, %v6215
      %v6227 = vmul.f32 %v5712, %v6214
      %v6228 = vmul.f32 %v5714, %v6207
      %v6229 = vmul.f32 %v5722, %v6215
      %v6230 = vmul.f32 %v5730, %v6214
      %v6231 = vmul.f32 %v5729, %v6216
      %v6232 = vmul.f32 %v5731, %v6207
      %v6233 = vmul.f32 %v5739, %v6215
      %v6234 = vmul.f32 %v5747, %v6214
      %v6235 = vmul.f32 %v5746, %v6207
      %v6236 = vmul.f32 %v5748, %v6215
      %v6237 = vmul.f32 %v5756, %v6214
      %v6238 = vmul.f32 %v5764, %v6216
      %v6239 = vmul.f32 %v5763, %v6207
      %v6240 = vmul.f32 %v5765, %v6215
      %v6241 = vmul.f32 %v5773, %v6214
      %v6242 = vmul.f32 %v5781, %v6207
      %v6243 = vmul.f32 %v5780, %v6215
      %v6244 = vmul.f32 %v5782, %v6214
      %v6245 = vmul.f32 %v5790, %v6216
      %v6246 = vmul.f32 %v5798, %v6207
      %v6247 = vmul.f32 %v5797, %v6215
      %v6248 = vmul.f32 %v5799, %v6214
      %v6249 = vmul.f32 %v5807, %v6207
      %v6250 = vmul.f32 %v5815, %v6215
      %v6251 = vmul.f32 %v5814, %v6214
      %v6252 = vmul.f32 %v5816, %v6216
      %v6253 = vmul.f32 %v5824, %v6207
      %v6254 = vmul.f32 %v5832, %v6215
      %v6255 = vmul.f32 %v5831, %v6214
      %v6256 = vmul.f32 %v5833, %v6207
      %v6257 = vmul.f32 %v5841, %v6215
      %v6258 = vmul.f32 %v5849, %v6214
      %v6259 = vmul.f32 %v5848, %v6216
      %v6260 = vmul.f32 %v5850, %v6207
      %v6261 = vmul.f32 %v5858, %v6215
      %v6262 = vmul.f32 %v5866, %v6214
      %v6263 = vmul.f32 %v5865, %v6207
      %v6264 = vmul.f32 %v5867, %v6215
      %v6265 = vmul.f32 %v5875, %v6214
      %v6266 = vmul.f32 %v5883, %v6216
      %v6267 = vmul.f32 %v5882, %v6207
      %v6268 = vmul.f32 %v5884, %v6215
      %v6269 = vmul.f32 %v5892, %v6214
      %v6270 = vmul.f32 %v5900, %v6207
      %v6271 = vmul.f32 %v5899, %v6215
      %v6272 = vmul.f32 %v5901, %v6214
      %v6273 = vmul.f32 %v5909, %v6216
      %v6274 = vmul.f32 %v5917, %v6207
      %v6275 = vmul.f32 %v5916, %v6215
      %v6276 = vmul.f32 %v5918, %v6214
      %v6277 = vmul.f32 %v5926, %v6207
      %v6278 = vmul.f32 %v5934, %v6215
      %v6279 = vmul.f32 %v5933, %v6214
      %v6280 = vmul.f32 %v5935, %v6216
      %v6281 = vmul.f32 %v5943, %v6207
      %v6282 = vmul.f32 %v5951, %v6215
      %v6283 = vmul.f32 %v5950, %v6214
      %v6284 = vmul.f32 %v5952, %v6207
      %v6285 = vmul.f32 %v5960, %v6215
      %v6286 = vmul.f32 %v5968, %v6214
      %v6287 = vmul.f32 %v5967, %v6216
      %v6288 = vmul.f32 %v5969, %v6207
      %v6289 = vmul.f32 %v5977, %v6215
      %v6290 = vmul.f32 %v5985, %v6214
      %v6291 = vmul.f32 %v5984, %v6207
      %v6292 = vmul.f32 %v5986, %v6215
      %v6293 = vmul.f32 %v5994, %v6214
      %v6294 = vmul.f32 %v6002, %v6216
      %v6295 = vmul.f32 %v6001, %v6207
      %v6296 = vmul.f32 %v6003, %v6215
      %v6297 = vmul.f32 %v6011, %v6214
      %v6298 = vmul.f32 %v6019, %v6207
      %v6299 = vmul.f32 %v6018, %v6215
      %v6300 = vmul.f32 %v6020, %v6214
      %v6301 = vmul.f32 %v6028, %v6216
      %v6302 = vmul.f32 %v6036, %v6207
      %v6303 = vmul.f32 %v6035, %v6215
      %v6304 = vmul.f32 %v6037, %v6214
      %v6305 = vmul.f32 %v6045, %v6207
      %v6306 = vmul.f32 %v6053, %v6215
      %v6307 = vmul.f32 %v6052, %v6214
      %v6308 = vmul.f32 %v6054, %v6216
      %v6309 = vmul.f32 %v6062, %v6207
      %v6310 = vmul.f32 %v6070, %v6215
      %v6311 = vmul.f32 %v6069, %v6214
      %v6312 = vmul.f32 %v6071, %v6207
      %v6313 = vmul.f32 %v6079, %v6215
      %v6314 = vmul.f32 %v6087, %v6214
      %v6315 = vmul.f32 %v6086, %v6216
      %v6316 = vmul.f32 %v6088, %v6207
      %v6317 = vmul.f32 %v6095, %v6215
      %v6318 = vmul.f32 %v6096, %v6214
      %v6320 = vlaneseq
      %v6321 = vshrl.u32 %v6320, 7
      %v6322 = vsub.s32 0, %v6321
      %v6323 = vrot.slane %v446, %v6322
      %v6324 = vcombine.high %v6323, %v6323
      %v6326 = vunpack.c.l.s4 1983009808
      %v6327 = vunpack.c.0.s8 %v6326
      %v6328 = vlaneseq
      %v6329 = vshrl.u32 %v6328, 7
      %v6330 = vsub.s32 %v6327, %v6329
      %v6331 = vrot.slane %v6323, %v6330
      %v6333 = vunpack.c.l.s4 1983009808
      %v6334 = vunpack.c.0.s8 %v6333
      %v6335 = vlaneseq
      %v6336 = vshrl.u32 %v6335, 7
      %v6337 = vsub.s32 %v6334, %v6336
      %v6338 = vrot.slane %v6324, %v6337
      %v6339 = vcombine.high %v6331, %v6331
      %v6340 = vcombine.high %v6338, %v6338
      %v6345 = vadd.f32 %v6221, %v6331
      %v6346 = vadd.f32 %v6222, %v6339
      %v6347 = vadd.f32 %v6223, %v6338
      %v6348 = vadd.f32 %v6224, %v6340
      %v6349 = vadd.f32 %v6225, %v6331
      %v6350 = vadd.f32 %v6226, %v6339
      %v6351 = vadd.f32 %v6227, %v6338
      %v6352 = vadd.f32 %v6228, %v6331
      %v6353 = vadd.f32 %v6229, %v6339
      %v6354 = vadd.f32 %v6230, %v6338
      %v6355 = vadd.f32 %v6231, %v6340
      %v6356 = vadd.f32 %v6232, %v6331
      %v6357 = vadd.f32 %v6233, %v6339
      %v6358 = vadd.f32 %v6234, %v6338
      %v6359 = vadd.f32 %v6235, %v6331
      %v6360 = vadd.f32 %v6236, %v6339
      %v6361 = vadd.f32 %v6237, %v6338
      %v6362 = vadd.f32 %v6238, %v6340
      %v6363 = vadd.f32 %v6239, %v6331
      %v6364 = vadd.f32 %v6240, %v6339
      %v6365 = vadd.f32 %v6241, %v6338
      %v6366 = vadd.f32 %v6242, %v6331
      %v6367 = vadd.f32 %v6243, %v6339
      %v6368 = vadd.f32 %v6244, %v6338
      %v6369 = vadd.f32 %v6245, %v6340
      %v6370 = vadd.f32 %v6246, %v6331
      %v6371 = vadd.f32 %v6247, %v6339
      %v6372 = vadd.f32 %v6248, %v6338
      %v6373 = vadd.f32 %v6249, %v6331
      %v6374 = vadd.f32 %v6250, %v6339
      %v6375 = vadd.f32 %v6251, %v6338
      %v6376 = vadd.f32 %v6252, %v6340
      %v6377 = vadd.f32 %v6253, %v6331
      %v6378 = vadd.f32 %v6254, %v6339
      %v6379 = vadd.f32 %v6255, %v6338
      %v6380 = vadd.f32 %v6256, %v6331
      %v6381 = vadd.f32 %v6257, %v6339
      %v6382 = vadd.f32 %v6258, %v6338
      %v6383 = vadd.f32 %v6259, %v6340
      %v6384 = vadd.f32 %v6260, %v6331
      %v6385 = vadd.f32 %v6261, %v6339
      %v6386 = vadd.f32 %v6262, %v6338
      %v6387 = vadd.f32 %v6263, %v6331
      %v6388 = vadd.f32 %v6264, %v6339
      %v6389 = vadd.f32 %v6265, %v6338
      %v6390 = vadd.f32 %v6266, %v6340
      %v6391 = vadd.f32 %v6267, %v6331
      %v6392 = vadd.f32 %v6268, %v6339
      %v6393 = vadd.f32 %v6269, %v6338
      %v6394 = vadd.f32 %v6270, %v6331
      %v6395 = vadd.f32 %v6271, %v6339
      %v6396 = vadd.f32 %v6272, %v6338
      %v6397 = vadd.f32 %v6273, %v6340
      %v6398 = vadd.f32 %v6274, %v6331
      %v6399 = vadd.f32 %v6275, %v6339
      %v6400 = vadd.f32 %v6276, %v6338
      %v6401 = vadd.f32 %v6277, %v6331
      %v6402 = vadd.f32 %v6278, %v6339
      %v6403 = vadd.f32 %v6279, %v6338
      %v6404 = vadd.f32 %v6280, %v6340
      %v6405 = vadd.f32 %v6281, %v6331
      %v6406 = vadd.f32 %v6282, %v6339
      %v6407 = vadd.f32 %v6283, %v6338
      %v6408 = vadd.f32 %v6284, %v6331
      %v6409 = vadd.f32 %v6285, %v6339
      %v6410 = vadd.f32 %v6286, %v6338
      %v6411 = vadd.f32 %v6287, %v6340
      %v6412 = vadd.f32 %v6288, %v6331
      %v6413 = vadd.f32 %v6289, %v6339
      %v6414 = vadd.f32 %v6290, %v6338
      %v6415 = vadd.f32 %v6291, %v6331
      %v6416 = vadd.f32 %v6292, %v6339
      %v6417 = vadd.f32 %v6293, %v6338
      %v6418 = vadd.f32 %v6294, %v6340
      %v6419 = vadd.f32 %v6295, %v6331
      %v6420 = vadd.f32 %v6296, %v6339
      %v6421 = vadd.f32 %v6297, %v6338
      %v6422 = vadd.f32 %v6298, %v6331
      %v6423 = vadd.f32 %v6299, %v6339
      %v6424 = vadd.f32 %v6300, %v6338
      %v6425 = vadd.f32 %v6301, %v6340
      %v6426 = vadd.f32 %v6302, %v6331
      %v6427 = vadd.f32 %v6303, %v6339
      %v6428 = vadd.f32 %v6304, %v6338
      %v6429 = vadd.f32 %v6305, %v6331
      %v6430 = vadd.f32 %v6306, %v6339
      %v6431 = vadd.f32 %v6307, %v6338
      %v6432 = vadd.f32 %v6308, %v6340
      %v6433 = vadd.f32 %v6309, %v6331
      %v6434 = vadd.f32 %v6310, %v6339
      %v6435 = vadd.f32 %v6311, %v6338
      %v6436 = vadd.f32 %v6312, %v6331
      %v6437 = vadd.f32 %v6313, %v6339
      %v6438 = vadd.f32 %v6314, %v6338
      %v6439 = vadd.f32 %v6315, %v6340
      %v6440 = vadd.f32 %v6316, %v6331
      %v6441 = vadd.f32 %v6317, %v6339
      %v6442 = vadd.f32 %v6318, %v6338
      %v6443 = vmax.f32 %v6345, 0.0
      %v6444 = vmax.f32 %v6346, 0.0
      %v6445 = vmax.f32 %v6347, 0.0
      %v6446 = vmax.f32 %v6348, 0.0
      %v6447 = vmax.f32 %v6349, 0.0
      %v6448 = vmax.f32 %v6350, 0.0
      %v6449 = vmax.f32 %v6351, 0.0
      %v6450 = vmax.f32 %v6352, 0.0
      %v6451 = vmax.f32 %v6353, 0.0
      %v6452 = vmax.f32 %v6354, 0.0
      %v6453 = vmax.f32 %v6355, 0.0
      %v6454 = vmax.f32 %v6356, 0.0
      %v6455 = vmax.f32 %v6357, 0.0
      %v6456 = vmax.f32 %v6358, 0.0
      %v6457 = vmax.f32 %v6359, 0.0
      %v6458 = vmax.f32 %v6360, 0.0
      %v6459 = vmax.f32 %v6361, 0.0
      %v6460 = vmax.f32 %v6362, 0.0
      %v6461 = vmax.f32 %v6363, 0.0
      %v6462 = vmax.f32 %v6364, 0.0
      %v6463 = vmax.f32 %v6365, 0.0
      %v6464 = vmax.f32 %v6366, 0.0
      %v6465 = vmax.f32 %v6367, 0.0
      %v6466 = vmax.f32 %v6368, 0.0
      %v6467 = vmax.f32 %v6369, 0.0
      %v6468 = vmax.f32 %v6370, 0.0
      %v6469 = vmax.f32 %v6371, 0.0
      %v6470 = vmax.f32 %v6372, 0.0
      %v6471 = vmax.f32 %v6373, 0.0
      %v6472 = vmax.f32 %v6374, 0.0
      %v6473 = vmax.f32 %v6375, 0.0
      %v6474 = vmax.f32 %v6376, 0.0
      %v6475 = vmax.f32 %v6377, 0.0
      %v6476 = vmax.f32 %v6378, 0.0
      %v6477 = vmax.f32 %v6379, 0.0
      %v6478 = vmax.f32 %v6380, 0.0
      %v6479 = vmax.f32 %v6381, 0.0
      %v6480 = vmax.f32 %v6382, 0.0
      %v6481 = vmax.f32 %v6383, 0.0
      %v6482 = vmax.f32 %v6384, 0.0
      %v6483 = vmax.f32 %v6385, 0.0
      %v6484 = vmax.f32 %v6386, 0.0
      %v6485 = vmax.f32 %v6387, 0.0
      %v6486 = vmax.f32 %v6388, 0.0
      %v6487 = vmax.f32 %v6389, 0.0
      %v6488 = vmax.f32 %v6390, 0.0
      %v6489 = vmax.f32 %v6391, 0.0
      %v6490 = vmax.f32 %v6392, 0.0
      %v6491 = vmax.f32 %v6393, 0.0
      %v6492 = vmax.f32 %v6394, 0.0
      %v6493 = vmax.f32 %v6395, 0.0
      %v6494 = vmax.f32 %v6396, 0.0
      %v6495 = vmax.f32 %v6397, 0.0
      %v6496 = vmax.f32 %v6398, 0.0
      %v6497 = vmax.f32 %v6399, 0.0
      %v6498 = vmax.f32 %v6400, 0.0
      %v6499 = vmax.f32 %v6401, 0.0
      %v6500 = vmax.f32 %v6402, 0.0
      %v6501 = vmax.f32 %v6403, 0.0
      %v6502 = vmax.f32 %v6404, 0.0
      %v6503 = vmax.f32 %v6405, 0.0
      %v6504 = vmax.f32 %v6406, 0.0
      %v6505 = vmax.f32 %v6407, 0.0
      %v6506 = vmax.f32 %v6408, 0.0
      %v6507 = vmax.f32 %v6409, 0.0
      %v6508 = vmax.f32 %v6410, 0.0
      %v6509 = vmax.f32 %v6411, 0.0
      %v6510 = vmax.f32 %v6412, 0.0
      %v6511 = vmax.f32 %v6413, 0.0
      %v6512 = vmax.f32 %v6414, 0.0
      %v6513 = vmax.f32 %v6415, 0.0
      %v6514 = vmax.f32 %v6416, 0.0
      %v6515 = vmax.f32 %v6417, 0.0
      %v6516 = vmax.f32 %v6418, 0.0
      %v6517 = vmax.f32 %v6419, 0.0
      %v6518 = vmax.f32 %v6420, 0.0
      %v6519 = vmax.f32 %v6421, 0.0
      %v6520 = vmax.f32 %v6422, 0.0
      %v6521 = vmax.f32 %v6423, 0.0
      %v6522 = vmax.f32 %v6424, 0.0
      %v6523 = vmax.f32 %v6425, 0.0
      %v6524 = vmax.f32 %v6426, 0.0
      %v6525 = vmax.f32 %v6427, 0.0
      %v6526 = vmax.f32 %v6428, 0.0
      %v6527 = vmax.f32 %v6429, 0.0
      %v6528 = vmax.f32 %v6430, 0.0
      %v6529 = vmax.f32 %v6431, 0.0
      %v6530 = vmax.f32 %v6432, 0.0
      %v6531 = vmax.f32 %v6433, 0.0
      %v6532 = vmax.f32 %v6434, 0.0
      %v6533 = vmax.f32 %v6435, 0.0
      %v6534 = vmax.f32 %v6436, 0.0
      %v6535 = vmax.f32 %v6437, 0.0
      %v6536 = vmax.f32 %v6438, 0.0
      %v6537 = vmax.f32 %v6439, 0.0
      %v6538 = vmax.f32 %v6440, 0.0
      %v6539 = vmax.f32 %v6441, 0.0
      %v6540 = vmax.f32 %v6442, 0.0
      %v6541 = vld [vmem:[%s5] sm:$0x1]
      %v6542 = vld [vmem:[%s6] sm:$0x1]
      %v6615 = vcombine.low %v6443, %v6444
      %v6616 = vcombine.low %v6445, %v6446
      %v6618 = vunpack.c.l.s4 1983009808
      %v6619 = vunpack.c.0.s8 %v6618
      %v6620 = vlaneseq
      %v6621 = vshrl.u32 %v6620, 7
      %v6622 = vsub.s32 %v6619, %v6621
      %v6623 = vrot.slane %v6615, %v6622
      %v6625 = vunpack.c.l.s4 1983009808
      %v6626 = vunpack.c.0.s8 %v6625
      %v6627 = vlaneseq
      %v6628 = vshrl.u32 %v6627, 7
      %v6629 = vsub.s32 %v6626, %v6628
      %v6630 = vrot.slane %v6616, %v6629
      %v6631 = vcombine.low %v6623, %v6630
      %v6632 = vcombine.low %v6447, %v6448
      %v6634 = vunpack.c.l.s4 1983009808
      %v6635 = vunpack.c.0.s8 %v6634
      %v6636 = vlaneseq
      %v6637 = vshrl.u32 %v6636, 7
      %v6638 = vsub.s32 %v6635, %v6637
      %v6639 = vrot.slane %v6632, %v6638
      %v6640 = vcombine.low %v6450, %v6451
      %v6641 = vcombine.low %v6452, %v6453
      %v6643 = vunpack.c.l.s4 1983009808
      %v6644 = vunpack.c.0.s8 %v6643
      %v6645 = vlaneseq
      %v6646 = vshrl.u32 %v6645, 7
      %v6647 = vsub.s32 %v6644, %v6646
      %v6648 = vrot.slane %v6640, %v6647
      %v6650 = vunpack.c.l.s4 1983009808
      %v6651 = vunpack.c.0.s8 %v6650
      %v6652 = vlaneseq
      %v6653 = vshrl.u32 %v6652, 7
      %v6654 = vsub.s32 %v6651, %v6653
      %v6655 = vrot.slane %v6641, %v6654
      %v6656 = vcombine.low %v6648, %v6655
      %v6657 = vcombine.low %v6454, %v6455
      %v6659 = vunpack.c.l.s4 1983009808
      %v6660 = vunpack.c.0.s8 %v6659
      %v6661 = vlaneseq
      %v6662 = vshrl.u32 %v6661, 7
      %v6663 = vsub.s32 %v6660, %v6662
      %v6664 = vrot.slane %v6657, %v6663
      %v6665 = vcombine.low %v6457, %v6458
      %v6666 = vcombine.low %v6459, %v6460
      %v6668 = vunpack.c.l.s4 1983009808
      %v6669 = vunpack.c.0.s8 %v6668
      %v6670 = vlaneseq
      %v6671 = vshrl.u32 %v6670, 7
      %v6672 = vsub.s32 %v6669, %v6671
      %v6673 = vrot.slane %v6665, %v6672
      %v6675 = vunpack.c.l.s4 1983009808
      %v6676 = vunpack.c.0.s8 %v6675
      %v6677 = vlaneseq
      %v6678 = vshrl.u32 %v6677, 7
      %v6679 = vsub.s32 %v6676, %v6678
      %v6680 = vrot.slane %v6666, %v6679
      %v6681 = vcombine.low %v6673, %v6680
      %v6682 = vcombine.low %v6461, %v6462
      %v6684 = vunpack.c.l.s4 1983009808
      %v6685 = vunpack.c.0.s8 %v6684
      %v6686 = vlaneseq
      %v6687 = vshrl.u32 %v6686, 7
      %v6688 = vsub.s32 %v6685, %v6687
      %v6689 = vrot.slane %v6682, %v6688
      %v6690 = vcombine.low %v6464, %v6465
      %v6691 = vcombine.low %v6466, %v6467
      %v6693 = vunpack.c.l.s4 1983009808
      %v6694 = vunpack.c.0.s8 %v6693
      %v6695 = vlaneseq
      %v6696 = vshrl.u32 %v6695, 7
      %v6697 = vsub.s32 %v6694, %v6696
      %v6698 = vrot.slane %v6690, %v6697
      %v6700 = vunpack.c.l.s4 1983009808
      %v6701 = vunpack.c.0.s8 %v6700
      %v6702 = vlaneseq
      %v6703 = vshrl.u32 %v6702, 7
      %v6704 = vsub.s32 %v6701, %v6703
      %v6705 = vrot.slane %v6691, %v6704
      %v6706 = vcombine.low %v6698, %v6705
      %v6707 = vcombine.low %v6468, %v6469
      %v6709 = vunpack.c.l.s4 1983009808
      %v6710 = vunpack.c.0.s8 %v6709
      %v6711 = vlaneseq
      %v6712 = vshrl.u32 %v6711, 7
      %v6713 = vsub.s32 %v6710, %v6712
      %v6714 = vrot.slane %v6707, %v6713
      %v6715 = vcombine.low %v6471, %v6472
      %v6716 = vcombine.low %v6473, %v6474
      %v6718 = vunpack.c.l.s4 1983009808
      %v6719 = vunpack.c.0.s8 %v6718
      %v6720 = vlaneseq
      %v6721 = vshrl.u32 %v6720, 7
      %v6722 = vsub.s32 %v6719, %v6721
      %v6723 = vrot.slane %v6715, %v6722
      %v6725 = vunpack.c.l.s4 1983009808
      %v6726 = vunpack.c.0.s8 %v6725
      %v6727 = vlaneseq
      %v6728 = vshrl.u32 %v6727, 7
      %v6729 = vsub.s32 %v6726, %v6728
      %v6730 = vrot.slane %v6716, %v6729
      %v6731 = vcombine.low %v6723, %v6730
      %v6732 = vcombine.low %v6475, %v6476
      %v6734 = vunpack.c.l.s4 1983009808
      %v6735 = vunpack.c.0.s8 %v6734
      %v6736 = vlaneseq
      %v6737 = vshrl.u32 %v6736, 7
      %v6738 = vsub.s32 %v6735, %v6737
      %v6739 = vrot.slane %v6732, %v6738
      %v6740 = vcombine.low %v6478, %v6479
      %v6741 = vcombine.low %v6480, %v6481
      %v6743 = vunpack.c.l.s4 1983009808
      %v6744 = vunpack.c.0.s8 %v6743
      %v6745 = vlaneseq
      %v6746 = vshrl.u32 %v6745, 7
      %v6747 = vsub.s32 %v6744, %v6746
      %v6748 = vrot.slane %v6740, %v6747
      %v6750 = vunpack.c.l.s4 1983009808
      %v6751 = vunpack.c.0.s8 %v6750
      %v6752 = vlaneseq
      %v6753 = vshrl.u32 %v6752, 7
      %v6754 = vsub.s32 %v6751, %v6753
      %v6755 = vrot.slane %v6741, %v6754
      %v6756 = vcombine.low %v6748, %v6755
      %v6757 = vcombine.low %v6482, %v6483
      %v6759 = vunpack.c.l.s4 1983009808
      %v6760 = vunpack.c.0.s8 %v6759
      %v6761 = vlaneseq
      %v6762 = vshrl.u32 %v6761, 7
      %v6763 = vsub.s32 %v6760, %v6762
      %v6764 = vrot.slane %v6757, %v6763
      %v6765 = vcombine.low %v6485, %v6486
      %v6766 = vcombine.low %v6487, %v6488
      %v6768 = vunpack.c.l.s4 1983009808
      %v6769 = vunpack.c.0.s8 %v6768
      %v6770 = vlaneseq
      %v6771 = vshrl.u32 %v6770, 7
      %v6772 = vsub.s32 %v6769, %v6771
      %v6773 = vrot.slane %v6765, %v6772
      %v6775 = vunpack.c.l.s4 1983009808
      %v6776 = vunpack.c.0.s8 %v6775
      %v6777 = vlaneseq
      %v6778 = vshrl.u32 %v6777, 7
      %v6779 = vsub.s32 %v6776, %v6778
      %v6780 = vrot.slane %v6766, %v6779
      %v6781 = vcombine.low %v6773, %v6780
      %v6782 = vcombine.low %v6489, %v6490
      %v6784 = vunpack.c.l.s4 1983009808
      %v6785 = vunpack.c.0.s8 %v6784
      %v6786 = vlaneseq
      %v6787 = vshrl.u32 %v6786, 7
      %v6788 = vsub.s32 %v6785, %v6787
      %v6789 = vrot.slane %v6782, %v6788
      %v6790 = vcombine.low %v6492, %v6493
      %v6791 = vcombine.low %v6494, %v6495
      %v6793 = vunpack.c.l.s4 1983009808
      %v6794 = vunpack.c.0.s8 %v6793
      %v6795 = vlaneseq
      %v6796 = vshrl.u32 %v6795, 7
      %v6797 = vsub.s32 %v6794, %v6796
      %v6798 = vrot.slane %v6790, %v6797
      %v6800 = vunpack.c.l.s4 1983009808
      %v6801 = vunpack.c.0.s8 %v6800
      %v6802 = vlaneseq
      %v6803 = vshrl.u32 %v6802, 7
      %v6804 = vsub.s32 %v6801, %v6803
      %v6805 = vrot.slane %v6791, %v6804
      %v6806 = vcombine.low %v6798, %v6805
      %v6807 = vcombine.low %v6496, %v6497
      %v6809 = vunpack.c.l.s4 1983009808
      %v6810 = vunpack.c.0.s8 %v6809
      %v6811 = vlaneseq
      %v6812 = vshrl.u32 %v6811, 7
      %v6813 = vsub.s32 %v6810, %v6812
      %v6814 = vrot.slane %v6807, %v6813
      %v6815 = vcombine.low %v6499, %v6500
      %v6816 = vcombine.low %v6501, %v6502
      %v6818 = vunpack.c.l.s4 1983009808
      %v6819 = vunpack.c.0.s8 %v6818
      %v6820 = vlaneseq
      %v6821 = vshrl.u32 %v6820, 7
      %v6822 = vsub.s32 %v6819, %v6821
      %v6823 = vrot.slane %v6815, %v6822
      %v6825 = vunpack.c.l.s4 1983009808
      %v6826 = vunpack.c.0.s8 %v6825
      %v6827 = vlaneseq
      %v6828 = vshrl.u32 %v6827, 7
      %v6829 = vsub.s32 %v6826, %v6828
      %v6830 = vrot.slane %v6816, %v6829
      %v6831 = vcombine.low %v6823, %v6830
      %v6832 = vcombine.low %v6503, %v6504
      %v6834 = vunpack.c.l.s4 1983009808
      %v6835 = vunpack.c.0.s8 %v6834
      %v6836 = vlaneseq
      %v6837 = vshrl.u32 %v6836, 7
      %v6838 = vsub.s32 %v6835, %v6837
      %v6839 = vrot.slane %v6832, %v6838
      %v6840 = vcombine.low %v6506, %v6507
      %v6841 = vcombine.low %v6508, %v6509
      %v6843 = vunpack.c.l.s4 1983009808
      %v6844 = vunpack.c.0.s8 %v6843
      %v6845 = vlaneseq
      %v6846 = vshrl.u32 %v6845, 7
      %v6847 = vsub.s32 %v6844, %v6846
      %v6848 = vrot.slane %v6840, %v6847
      %v6850 = vunpack.c.l.s4 1983009808
      %v6851 = vunpack.c.0.s8 %v6850
      %v6852 = vlaneseq
      %v6853 = vshrl.u32 %v6852, 7
      %v6854 = vsub.s32 %v6851, %v6853
      %v6855 = vrot.slane %v6841, %v6854
      %v6856 = vcombine.low %v6848, %v6855
      %v6857 = vcombine.low %v6510, %v6511
      %v6859 = vunpack.c.l.s4 1983009808
      %v6860 = vunpack.c.0.s8 %v6859
      %v6861 = vlaneseq
      %v6862 = vshrl.u32 %v6861, 7
      %v6863 = vsub.s32 %v6860, %v6862
      %v6864 = vrot.slane %v6857, %v6863
      %v6865 = vcombine.low %v6513, %v6514
      %v6866 = vcombine.low %v6515, %v6516
      %v6868 = vunpack.c.l.s4 1983009808
      %v6869 = vunpack.c.0.s8 %v6868
      %v6870 = vlaneseq
      %v6871 = vshrl.u32 %v6870, 7
      %v6872 = vsub.s32 %v6869, %v6871
      %v6873 = vrot.slane %v6865, %v6872
      %v6875 = vunpack.c.l.s4 1983009808
      %v6876 = vunpack.c.0.s8 %v6875
      %v6877 = vlaneseq
      %v6878 = vshrl.u32 %v6877, 7
      %v6879 = vsub.s32 %v6876, %v6878
      %v6880 = vrot.slane %v6866, %v6879
      %v6881 = vcombine.low %v6873, %v6880
      %v6882 = vcombine.low %v6517, %v6518
      %v6884 = vunpack.c.l.s4 1983009808
      %v6885 = vunpack.c.0.s8 %v6884
      %v6886 = vlaneseq
      %v6887 = vshrl.u32 %v6886, 7
      %v6888 = vsub.s32 %v6885, %v6887
      %v6889 = vrot.slane %v6882, %v6888
      %v6890 = vcombine.low %v6520, %v6521
      %v6891 = vcombine.low %v6522, %v6523
      %v6893 = vunpack.c.l.s4 1983009808
      %v6894 = vunpack.c.0.s8 %v6893
      %v6895 = vlaneseq
      %v6896 = vshrl.u32 %v6895, 7
      %v6897 = vsub.s32 %v6894, %v6896
      %v6898 = vrot.slane %v6890, %v6897
      %v6900 = vunpack.c.l.s4 1983009808
      %v6901 = vunpack.c.0.s8 %v6900
      %v6902 = vlaneseq
      %v6903 = vshrl.u32 %v6902, 7
      %v6904 = vsub.s32 %v6901, %v6903
      %v6905 = vrot.slane %v6891, %v6904
      %v6906 = vcombine.low %v6898, %v6905
      %v6907 = vcombine.low %v6524, %v6525
      %v6909 = vunpack.c.l.s4 1983009808
      %v6910 = vunpack.c.0.s8 %v6909
      %v6911 = vlaneseq
      %v6912 = vshrl.u32 %v6911, 7
      %v6913 = vsub.s32 %v6910, %v6912
      %v6914 = vrot.slane %v6907, %v6913
      %v6952 = vunpack.c.l.s4 1983009808
      %v6953 = vunpack.c.0.s8 %v6952
      %v6954 = vlaneseq
      %v6955 = vshrl.u32 %v6954, 7
      %v6956 = vsub.s32 %v6953, %v6955
      %v6957 = vrot.slane %v6449, %v6956
      %v6958 = vcombine.low %v6639, %v6957
      %v6960 = vunpack.c.l.s4 1983009808
      %v6961 = vunpack.c.0.s8 %v6960
      %v6962 = vlaneseq
      %v6963 = vshrl.u32 %v6962, 7
      %v6964 = vsub.s32 %v6961, %v6963
      %v6965 = vrot.slane %v6456, %v6964
      %v6966 = vcombine.low %v6664, %v6965
      %v6968 = vunpack.c.l.s4 1983009808
      %v6969 = vunpack.c.0.s8 %v6968
      %v6970 = vlaneseq
      %v6971 = vshrl.u32 %v6970, 7
      %v6972 = vsub.s32 %v6969, %v6971
      %v6973 = vrot.slane %v6463, %v6972
      %v6974 = vcombine.low %v6689, %v6973
      %v6976 = vunpack.c.l.s4 1983009808
      %v6977 = vunpack.c.0.s8 %v6976
      %v6978 = vlaneseq
      %v6979 = vshrl.u32 %v6978, 7
      %v6980 = vsub.s32 %v6977, %v6979
      %v6981 = vrot.slane %v6470, %v6980
      %v6982 = vcombine.low %v6714, %v6981
      %v6984 = vunpack.c.l.s4 1983009808
      %v6985 = vunpack.c.0.s8 %v6984
      %v6986 = vlaneseq
      %v6987 = vshrl.u32 %v6986, 7
      %v6988 = vsub.s32 %v6985, %v6987
      %v6989 = vrot.slane %v6477, %v6988
      %v6990 = vcombine.low %v6739, %v6989
      %v6992 = vunpack.c.l.s4 1983009808
      %v6993 = vunpack.c.0.s8 %v6992
      %v6994 = vlaneseq
      %v6995 = vshrl.u32 %v6994, 7
      %v6996 = vsub.s32 %v6993, %v6995
      %v6997 = vrot.slane %v6484, %v6996
      %v6998 = vcombine.low %v6764, %v6997
      %v7000 = vunpack.c.l.s4 1983009808
      %v7001 = vunpack.c.0.s8 %v7000
      %v7002 = vlaneseq
      %v7003 = vshrl.u32 %v7002, 7
      %v7004 = vsub.s32 %v7001, %v7003
      %v7005 = vrot.slane %v6491, %v7004
      %v7006 = vcombine.low %v6789, %v7005
      %v7008 = vunpack.c.l.s4 1983009808
      %v7009 = vunpack.c.0.s8 %v7008
      %v7010 = vlaneseq
      %v7011 = vshrl.u32 %v7010, 7
      %v7012 = vsub.s32 %v7009, %v7011
      %v7013 = vrot.slane %v6498, %v7012
      %v7014 = vcombine.low %v6814, %v7013
      %v7016 = vunpack.c.l.s4 1983009808
      %v7017 = vunpack.c.0.s8 %v7016
      %v7018 = vlaneseq
      %v7019 = vshrl.u32 %v7018, 7
      %v7020 = vsub.s32 %v7017, %v7019
      %v7021 = vrot.slane %v6505, %v7020
      %v7022 = vcombine.low %v6839, %v7021
      %v7024 = vunpack.c.l.s4 1983009808
      %v7025 = vunpack.c.0.s8 %v7024
      %v7026 = vlaneseq
      %v7027 = vshrl.u32 %v7026, 7
      %v7028 = vsub.s32 %v7025, %v7027
      %v7029 = vrot.slane %v6512, %v7028
      %v7030 = vcombine.low %v6864, %v7029
      %v7032 = vunpack.c.l.s4 1983009808
      %v7033 = vunpack.c.0.s8 %v7032
      %v7034 = vlaneseq
      %v7035 = vshrl.u32 %v7034, 7
      %v7036 = vsub.s32 %v7033, %v7035
      %v7037 = vrot.slane %v6519, %v7036
      %v7038 = vcombine.low %v6889, %v7037
      %v7040 = vunpack.c.l.s4 1983009808
      %v7041 = vunpack.c.0.s8 %v7040
      %v7042 = vlaneseq
      %v7043 = vshrl.u32 %v7042, 7
      %v7044 = vsub.s32 %v7041, %v7043
      %v7045 = vrot.slane %v6526, %v7044
      %v7046 = vcombine.low %v6914, %v7045
      %vm7047 = vcmask 1046528
      %v7048 = vrot.slane %v6631, 1
      %v7049 = vrot.slane %v6958, 1
      %v7050 = vsel %vm7047, %v7048, %v7049
      %v7051 = vrot.slane %v6656, 1
      %v7052 = vrot.slane %v6966, 1
      %v7053 = vsel %vm7047, %v7051, %v7052
      %v7054 = vrot.slane %v6681, 1
      %v7055 = vrot.slane %v6974, 1
      %v7056 = vsel %vm7047, %v7054, %v7055
      %v7057 = vrot.slane %v6706, 1
      %v7058 = vrot.slane %v6982, 1
      %v7059 = vsel %vm7047, %v7057, %v7058
      %v7060 = vrot.slane %v6731, 1
      %v7061 = vrot.slane %v6990, 1
      %v7062 = vsel %vm7047, %v7060, %v7061
      %v7063 = vrot.slane %v6756, 1
      %v7064 = vrot.slane %v6998, 1
      %v7065 = vsel %vm7047, %v7063, %v7064
      %v7066 = vrot.slane %v6781, 1
      %v7067 = vrot.slane %v7006, 1
      %v7068 = vsel %vm7047, %v7066, %v7067
      %v7069 = vrot.slane %v6806, 1
      %v7070 = vrot.slane %v7014, 1
      %v7071 = vsel %vm7047, %v7069, %v7070
      %v7072 = vrot.slane %v6831, 1
      %v7073 = vrot.slane %v7022, 1
      %v7074 = vsel %vm7047, %v7072, %v7073
      %v7075 = vrot.slane %v6856, 1
      %v7076 = vrot.slane %v7030, 1
      %v7077 = vsel %vm7047, %v7075, %v7076
      %v7078 = vrot.slane %v6881, 1
      %v7079 = vrot.slane %v7038, 1
      %v7080 = vsel %vm7047, %v7078, %v7079
      %v7081 = vrot.slane %v6906, 1
      %v7082 = vrot.slane %v7046, 1
      %v7083 = vsel %vm7047, %v7081, %v7082
      %7084 = vrot.lane.b32.xlu0 %v7050, 64
      %v7085 = vpop.permute.xlu0 %7084
      %7086 = vrot.lane.b32.xlu0 %v7049, 64
      %v7087 = vpop.permute.xlu0 %7086
      %7088 = vrot.lane.b32.xlu0 %v7053, 64
      %v7089 = vpop.permute.xlu0 %7088
      %7090 = vrot.lane.b32.xlu0 %v7052, 64
      %v7091 = vpop.permute.xlu0 %7090
      %7092 = vrot.lane.b32.xlu0 %v7056, 64
      %v7093 = vpop.permute.xlu0 %7092
      %7094 = vrot.lane.b32.xlu0 %v7055, 64
      %v7095 = vpop.permute.xlu0 %7094
      %7096 = vrot.lane.b32.xlu0 %v7059, 64
      %v7097 = vpop.permute.xlu0 %7096
      %7098 = vrot.lane.b32.xlu0 %v7058, 64
      %v7099 = vpop.permute.xlu0 %7098
      %7100 = vrot.lane.b32.xlu0 %v7062, 64
      %v7101 = vpop.permute.xlu0 %7100
      %7102 = vrot.lane.b32.xlu0 %v7061, 64
      %v7103 = vpop.permute.xlu0 %7102
      %7104 = vrot.lane.b32.xlu0 %v7065, 64
      %v7105 = vpop.permute.xlu0 %7104
      %7106 = vrot.lane.b32.xlu0 %v7064, 64
      %v7107 = vpop.permute.xlu0 %7106
      %7108 = vrot.lane.b32.xlu0 %v7068, 64
      %v7109 = vpop.permute.xlu0 %7108
      %7110 = vrot.lane.b32.xlu0 %v7067, 64
      %v7111 = vpop.permute.xlu0 %7110
      %7112 = vrot.lane.b32.xlu0 %v7071, 64
      %v7113 = vpop.permute.xlu0 %7112
      %7114 = vrot.lane.b32.xlu0 %v7070, 64
      %v7115 = vpop.permute.xlu0 %7114
      %7116 = vrot.lane.b32.xlu0 %v7074, 64
      %v7117 = vpop.permute.xlu0 %7116
      %7118 = vrot.lane.b32.xlu0 %v7073, 64
      %v7119 = vpop.permute.xlu0 %7118
      %7120 = vrot.lane.b32.xlu0 %v7077, 64
      %v7121 = vpop.permute.xlu0 %7120
      %7122 = vrot.lane.b32.xlu0 %v7076, 64
      %v7123 = vpop.permute.xlu0 %7122
      %7124 = vrot.lane.b32.xlu0 %v7080, 64
      %v7125 = vpop.permute.xlu0 %7124
      %7126 = vrot.lane.b32.xlu0 %v7079, 64
      %v7127 = vpop.permute.xlu0 %7126
      %7128 = vrot.lane.b32.xlu0 %v7083, 64
      %v7129 = vpop.permute.xlu0 %7128
      %7130 = vrot.lane.b32.xlu0 %v7082, 64
      %v7131 = vpop.permute.xlu0 %7130
      %v7156 = vcombine.low %v6444, %v6445
      %v7157 = vcombine.low %v6446, %v6447
      %v7159 = vunpack.c.l.s4 1983009808
      %v7160 = vunpack.c.0.s8 %v7159
      %v7161 = vlaneseq
      %v7162 = vshrl.u32 %v7161, 7
      %v7163 = vsub.s32 %v7160, %v7162
      %v7164 = vrot.slane %v7156, %v7163
      %v7166 = vunpack.c.l.s4 1983009808
      %v7167 = vunpack.c.0.s8 %v7166
      %v7168 = vlaneseq
      %v7169 = vshrl.u32 %v7168, 7
      %v7170 = vsub.s32 %v7167, %v7169
      %v7171 = vrot.slane %v7157, %v7170
      %v7172 = vcombine.low %v7164, %v7171
      %v7173 = vcombine.low %v6448, %v6449
      %v7175 = vunpack.c.l.s4 1983009808
      %v7176 = vunpack.c.0.s8 %v7175
      %v7177 = vlaneseq
      %v7178 = vshrl.u32 %v7177, 7
      %v7179 = vsub.s32 %v7176, %v7178
      %v7180 = vrot.slane %v7173, %v7179
      %v7181 = vcombine.low %v6451, %v6452
      %v7182 = vcombine.low %v6453, %v6454
      %v7184 = vunpack.c.l.s4 1983009808
      %v7185 = vunpack.c.0.s8 %v7184
      %v7186 = vlaneseq
      %v7187 = vshrl.u32 %v7186, 7
      %v7188 = vsub.s32 %v7185, %v7187
      %v7189 = vrot.slane %v7181, %v7188
      %v7191 = vunpack.c.l.s4 1983009808
      %v7192 = vunpack.c.0.s8 %v7191
      %v7193 = vlaneseq
      %v7194 = vshrl.u32 %v7193, 7
      %v7195 = vsub.s32 %v7192, %v7194
      %v7196 = vrot.slane %v7182, %v7195
      %v7197 = vcombine.low %v7189, %v7196
      %v7198 = vcombine.low %v6455, %v6456
      %v7200 = vunpack.c.l.s4 1983009808
      %v7201 = vunpack.c.0.s8 %v7200
      %v7202 = vlaneseq
      %v7203 = vshrl.u32 %v7202, 7
      %v7204 = vsub.s32 %v7201, %v7203
      %v7205 = vrot.slane %v7198, %v7204
      %v7206 = vcombine.low %v6458, %v6459
      %v7207 = vcombine.low %v6460, %v6461
      %v7209 = vunpack.c.l.s4 1983009808
      %v7210 = vunpack.c.0.s8 %v7209
      %v7211 = vlaneseq
      %v7212 = vshrl.u32 %v7211, 7
      %v7213 = vsub.s32 %v7210, %v7212
      %v7214 = vrot.slane %v7206, %v7213
      %v7216 = vunpack.c.l.s4 1983009808
      %v7217 = vunpack.c.0.s8 %v7216
      %v7218 = vlaneseq
      %v7219 = vshrl.u32 %v7218, 7
      %v7220 = vsub.s32 %v7217, %v7219
      %v7221 = vrot.slane %v7207, %v7220
      %v7222 = vcombine.low %v7214, %v7221
      %v7223 = vcombine.low %v6462, %v6463
      %v7225 = vunpack.c.l.s4 1983009808
      %v7226 = vunpack.c.0.s8 %v7225
      %v7227 = vlaneseq
      %v7228 = vshrl.u32 %v7227, 7
      %v7229 = vsub.s32 %v7226, %v7228
      %v7230 = vrot.slane %v7223, %v7229
      %v7231 = vcombine.low %v6465, %v6466
      %v7232 = vcombine.low %v6467, %v6468
      %v7234 = vunpack.c.l.s4 1983009808
      %v7235 = vunpack.c.0.s8 %v7234
      %v7236 = vlaneseq
      %v7237 = vshrl.u32 %v7236, 7
      %v7238 = vsub.s32 %v7235, %v7237
      %v7239 = vrot.slane %v7231, %v7238
      %v7241 = vunpack.c.l.s4 1983009808
      %v7242 = vunpack.c.0.s8 %v7241
      %v7243 = vlaneseq
      %v7244 = vshrl.u32 %v7243, 7
      %v7245 = vsub.s32 %v7242, %v7244
      %v7246 = vrot.slane %v7232, %v7245
      %v7247 = vcombine.low %v7239, %v7246
      %v7248 = vcombine.low %v6469, %v6470
      %v7250 = vunpack.c.l.s4 1983009808
      %v7251 = vunpack.c.0.s8 %v7250
      %v7252 = vlaneseq
      %v7253 = vshrl.u32 %v7252, 7
      %v7254 = vsub.s32 %v7251, %v7253
      %v7255 = vrot.slane %v7248, %v7254
      %v7256 = vcombine.low %v6472, %v6473
      %v7257 = vcombine.low %v6474, %v6475
      %v7259 = vunpack.c.l.s4 1983009808
      %v7260 = vunpack.c.0.s8 %v7259
      %v7261 = vlaneseq
      %v7262 = vshrl.u32 %v7261, 7
      %v7263 = vsub.s32 %v7260, %v7262
      %v7264 = vrot.slane %v7256, %v7263
      %v7266 = vunpack.c.l.s4 1983009808
      %v7267 = vunpack.c.0.s8 %v7266
      %v7268 = vlaneseq
      %v7269 = vshrl.u32 %v7268, 7
      %v7270 = vsub.s32 %v7267, %v7269
      %v7271 = vrot.slane %v7257, %v7270
      %v7272 = vcombine.low %v7264, %v7271
      %v7273 = vcombine.low %v6476, %v6477
      %v7275 = vunpack.c.l.s4 1983009808
      %v7276 = vunpack.c.0.s8 %v7275
      %v7277 = vlaneseq
      %v7278 = vshrl.u32 %v7277, 7
      %v7279 = vsub.s32 %v7276, %v7278
      %v7280 = vrot.slane %v7273, %v7279
      %v7281 = vcombine.low %v6479, %v6480
      %v7282 = vcombine.low %v6481, %v6482
      %v7284 = vunpack.c.l.s4 1983009808
      %v7285 = vunpack.c.0.s8 %v7284
      %v7286 = vlaneseq
      %v7287 = vshrl.u32 %v7286, 7
      %v7288 = vsub.s32 %v7285, %v7287
      %v7289 = vrot.slane %v7281, %v7288
      %v7291 = vunpack.c.l.s4 1983009808
      %v7292 = vunpack.c.0.s8 %v7291
      %v7293 = vlaneseq
      %v7294 = vshrl.u32 %v7293, 7
      %v7295 = vsub.s32 %v7292, %v7294
      %v7296 = vrot.slane %v7282, %v7295
      %v7297 = vcombine.low %v7289, %v7296
      %v7298 = vcombine.low %v6483, %v6484
      %v7300 = vunpack.c.l.s4 1983009808
      %v7301 = vunpack.c.0.s8 %v7300
      %v7302 = vlaneseq
      %v7303 = vshrl.u32 %v7302, 7
      %v7304 = vsub.s32 %v7301, %v7303
      %v7305 = vrot.slane %v7298, %v7304
      %v7306 = vcombine.low %v6486, %v6487
      %v7307 = vcombine.low %v6488, %v6489
      %v7309 = vunpack.c.l.s4 1983009808
      %v7310 = vunpack.c.0.s8 %v7309
      %v7311 = vlaneseq
      %v7312 = vshrl.u32 %v7311, 7
      %v7313 = vsub.s32 %v7310, %v7312
      %v7314 = vrot.slane %v7306, %v7313
      %v7316 = vunpack.c.l.s4 1983009808
      %v7317 = vunpack.c.0.s8 %v7316
      %v7318 = vlaneseq
      %v7319 = vshrl.u32 %v7318, 7
      %v7320 = vsub.s32 %v7317, %v7319
      %v7321 = vrot.slane %v7307, %v7320
      %v7322 = vcombine.low %v7314, %v7321
      %v7323 = vcombine.low %v6490, %v6491
      %v7325 = vunpack.c.l.s4 1983009808
      %v7326 = vunpack.c.0.s8 %v7325
      %v7327 = vlaneseq
      %v7328 = vshrl.u32 %v7327, 7
      %v7329 = vsub.s32 %v7326, %v7328
      %v7330 = vrot.slane %v7323, %v7329
      %v7331 = vcombine.low %v6493, %v6494
      %v7332 = vcombine.low %v6495, %v6496
      %v7334 = vunpack.c.l.s4 1983009808
      %v7335 = vunpack.c.0.s8 %v7334
      %v7336 = vlaneseq
      %v7337 = vshrl.u32 %v7336, 7
      %v7338 = vsub.s32 %v7335, %v7337
      %v7339 = vrot.slane %v7331, %v7338
      %v7341 = vunpack.c.l.s4 1983009808
      %v7342 = vunpack.c.0.s8 %v7341
      %v7343 = vlaneseq
      %v7344 = vshrl.u32 %v7343, 7
      %v7345 = vsub.s32 %v7342, %v7344
      %v7346 = vrot.slane %v7332, %v7345
      %v7347 = vcombine.low %v7339, %v7346
      %v7348 = vcombine.low %v6497, %v6498
      %v7350 = vunpack.c.l.s4 1983009808
      %v7351 = vunpack.c.0.s8 %v7350
      %v7352 = vlaneseq
      %v7353 = vshrl.u32 %v7352, 7
      %v7354 = vsub.s32 %v7351, %v7353
      %v7355 = vrot.slane %v7348, %v7354
      %v7356 = vcombine.low %v6500, %v6501
      %v7357 = vcombine.low %v6502, %v6503
      %v7359 = vunpack.c.l.s4 1983009808
      %v7360 = vunpack.c.0.s8 %v7359
      %v7361 = vlaneseq
      %v7362 = vshrl.u32 %v7361, 7
      %v7363 = vsub.s32 %v7360, %v7362
      %v7364 = vrot.slane %v7356, %v7363
      %v7366 = vunpack.c.l.s4 1983009808
      %v7367 = vunpack.c.0.s8 %v7366
      %v7368 = vlaneseq
      %v7369 = vshrl.u32 %v7368, 7
      %v7370 = vsub.s32 %v7367, %v7369
      %v7371 = vrot.slane %v7357, %v7370
      %v7372 = vcombine.low %v7364, %v7371
      %v7373 = vcombine.low %v6504, %v6505
      %v7375 = vunpack.c.l.s4 1983009808
      %v7376 = vunpack.c.0.s8 %v7375
      %v7377 = vlaneseq
      %v7378 = vshrl.u32 %v7377, 7
      %v7379 = vsub.s32 %v7376, %v7378
      %v7380 = vrot.slane %v7373, %v7379
      %v7381 = vcombine.low %v6507, %v6508
      %v7382 = vcombine.low %v6509, %v6510
      %v7384 = vunpack.c.l.s4 1983009808
      %v7385 = vunpack.c.0.s8 %v7384
      %v7386 = vlaneseq
      %v7387 = vshrl.u32 %v7386, 7
      %v7388 = vsub.s32 %v7385, %v7387
      %v7389 = vrot.slane %v7381, %v7388
      %v7391 = vunpack.c.l.s4 1983009808
      %v7392 = vunpack.c.0.s8 %v7391
      %v7393 = vlaneseq
      %v7394 = vshrl.u32 %v7393, 7
      %v7395 = vsub.s32 %v7392, %v7394
      %v7396 = vrot.slane %v7382, %v7395
      %v7397 = vcombine.low %v7389, %v7396
      %v7398 = vcombine.low %v6511, %v6512
      %v7400 = vunpack.c.l.s4 1983009808
      %v7401 = vunpack.c.0.s8 %v7400
      %v7402 = vlaneseq
      %v7403 = vshrl.u32 %v7402, 7
      %v7404 = vsub.s32 %v7401, %v7403
      %v7405 = vrot.slane %v7398, %v7404
      %v7406 = vcombine.low %v6514, %v6515
      %v7407 = vcombine.low %v6516, %v6517
      %v7409 = vunpack.c.l.s4 1983009808
      %v7410 = vunpack.c.0.s8 %v7409
      %v7411 = vlaneseq
      %v7412 = vshrl.u32 %v7411, 7
      %v7413 = vsub.s32 %v7410, %v7412
      %v7414 = vrot.slane %v7406, %v7413
      %v7416 = vunpack.c.l.s4 1983009808
      %v7417 = vunpack.c.0.s8 %v7416
      %v7418 = vlaneseq
      %v7419 = vshrl.u32 %v7418, 7
      %v7420 = vsub.s32 %v7417, %v7419
      %v7421 = vrot.slane %v7407, %v7420
      %v7422 = vcombine.low %v7414, %v7421
      %v7423 = vcombine.low %v6518, %v6519
      %v7425 = vunpack.c.l.s4 1983009808
      %v7426 = vunpack.c.0.s8 %v7425
      %v7427 = vlaneseq
      %v7428 = vshrl.u32 %v7427, 7
      %v7429 = vsub.s32 %v7426, %v7428
      %v7430 = vrot.slane %v7423, %v7429
      %v7431 = vcombine.low %v6521, %v6522
      %v7432 = vcombine.low %v6523, %v6524
      %v7434 = vunpack.c.l.s4 1983009808
      %v7435 = vunpack.c.0.s8 %v7434
      %v7436 = vlaneseq
      %v7437 = vshrl.u32 %v7436, 7
      %v7438 = vsub.s32 %v7435, %v7437
      %v7439 = vrot.slane %v7431, %v7438
      %v7441 = vunpack.c.l.s4 1983009808
      %v7442 = vunpack.c.0.s8 %v7441
      %v7443 = vlaneseq
      %v7444 = vshrl.u32 %v7443, 7
      %v7445 = vsub.s32 %v7442, %v7444
      %v7446 = vrot.slane %v7432, %v7445
      %v7447 = vcombine.low %v7439, %v7446
      %v7448 = vcombine.low %v6525, %v6526
      %v7450 = vunpack.c.l.s4 1983009808
      %v7451 = vunpack.c.0.s8 %v7450
      %v7452 = vlaneseq
      %v7453 = vshrl.u32 %v7452, 7
      %v7454 = vsub.s32 %v7451, %v7453
      %v7455 = vrot.slane %v7448, %v7454
      %vm7456 = vcmask 523264
      %v7457 = vsel %vm7456, %v6631, %v7085
      %v7458 = vsel %vm7456, %v6639, %v7087
      %v7459 = vsel %vm7456, %v6656, %v7089
      %v7460 = vsel %vm7456, %v6664, %v7091
      %v7461 = vsel %vm7456, %v6681, %v7093
      %v7462 = vsel %vm7456, %v6689, %v7095
      %v7463 = vsel %vm7456, %v6706, %v7097
      %v7464 = vsel %vm7456, %v6714, %v7099
      %v7465 = vsel %vm7456, %v6731, %v7101
      %v7466 = vsel %vm7456, %v6739, %v7103
      %v7467 = vsel %vm7456, %v6756, %v7105
      %v7468 = vsel %vm7456, %v6764, %v7107
      %v7469 = vsel %vm7456, %v6781, %v7109
      %v7470 = vsel %vm7456, %v6789, %v7111
      %v7471 = vsel %vm7456, %v6806, %v7113
      %v7472 = vsel %vm7456, %v6814, %v7115
      %v7473 = vsel %vm7456, %v6831, %v7117
      %v7474 = vsel %vm7456, %v6839, %v7119
      %v7475 = vsel %vm7456, %v6856, %v7121
      %v7476 = vsel %vm7456, %v6864, %v7123
      %v7477 = vsel %vm7456, %v6881, %v7125
      %v7478 = vsel %vm7456, %v6889, %v7127
      %v7479 = vsel %vm7456, %v6906, %v7129
      %v7480 = vsel %vm7456, %v6914, %v7131
      %v7505 = vcombine.low %v7457, %v7172
      %v7506 = vcombine.high %v7457, %v7172
      %v7507 = vcombine.low %v7458, %v7180
      %v7508 = vcombine.low %v7459, %v7197
      %v7509 = vcombine.high %v7459, %v7197
      %v7510 = vcombine.low %v7460, %v7205
      %v7511 = vcombine.low %v7461, %v7222
      %v7512 = vcombine.high %v7461, %v7222
      %v7513 = vcombine.low %v7462, %v7230
      %v7514 = vcombine.low %v7463, %v7247
      %v7515 = vcombine.high %v7463, %v7247
      %v7516 = vcombine.low %v7464, %v7255
      %v7517 = vcombine.low %v7465, %v7272
      %v7518 = vcombine.high %v7465, %v7272
      %v7519 = vcombine.low %v7466, %v7280
      %v7520 = vcombine.low %v7467, %v7297
      %v7521 = vcombine.high %v7467, %v7297
      %v7522 = vcombine.low %v7468, %v7305
      %v7523 = vcombine.low %v7469, %v7322
      %v7524 = vcombine.high %v7469, %v7322
      %v7525 = vcombine.low %v7470, %v7330
      %v7526 = vcombine.low %v7471, %v7347
      %v7527 = vcombine.high %v7471, %v7347
      %v7528 = vcombine.low %v7472, %v7355
      %v7529 = vcombine.low %v7473, %v7372
      %v7530 = vcombine.high %v7473, %v7372
      %v7531 = vcombine.low %v7474, %v7380
      %v7532 = vcombine.low %v7475, %v7397
      %v7533 = vcombine.high %v7475, %v7397
      %v7534 = vcombine.low %v7476, %v7405
      %v7535 = vcombine.low %v7477, %v7422
      %v7536 = vcombine.high %v7477, %v7422
      %v7537 = vcombine.low %v7478, %v7430
      %v7538 = vcombine.low %v7479, %v7447
      %v7539 = vcombine.high %v7479, %v7447
      %v7540 = vcombine.low %v7480, %v7455
      %v7541 = vcombine.low %v7505, %v7506
      %v7542 = vcombine.high %v7505, %v7506
      %v7543 = vcombine.low %v7507, %v7508
      %v7544 = vcombine.high %v7507, %v7508
      %v7545 = vcombine.low %v7509, %v7510
      %v7546 = vcombine.high %v7509, %v7510
      %v7547 = vcombine.low %v7511, %v7512
      %v7548 = vcombine.high %v7511, %v7512
      %v7549 = vcombine.low %v7513, %v7514
      %v7550 = vcombine.high %v7513, %v7514
      %v7551 = vcombine.low %v7515, %v7516
      %v7552 = vcombine.high %v7515, %v7516
      %v7553 = vcombine.low %v7517, %v7518
      %v7554 = vcombine.high %v7517, %v7518
      %v7555 = vcombine.low %v7519, %v7520
      %v7556 = vcombine.high %v7519, %v7520
      %v7557 = vcombine.low %v7521, %v7522
      %v7558 = vcombine.high %v7521, %v7522
      %v7559 = vcombine.low %v7523, %v7524
      %v7560 = vcombine.high %v7523, %v7524
      %v7561 = vcombine.low %v7525, %v7526
      %v7562 = vcombine.high %v7525, %v7526
      %v7563 = vcombine.low %v7527, %v7528
      %v7564 = vcombine.high %v7527, %v7528
      %v7565 = vcombine.low %v7529, %v7530
      %v7566 = vcombine.high %v7529, %v7530
      %v7567 = vcombine.low %v7531, %v7532
      %v7568 = vcombine.high %v7531, %v7532
      %v7569 = vcombine.low %v7533, %v7534
      %v7570 = vcombine.high %v7533, %v7534
      %v7571 = vcombine.low %v7535, %v7536
      %v7572 = vcombine.high %v7535, %v7536
      %v7573 = vcombine.low %v7537, %v7538
      %v7574 = vcombine.high %v7537, %v7538
      %v7575 = vcombine.low %v7539, %v7540
      %v7576 = vcombine.high %v7539, %v7540
      %v7613 = vpack.c.bf16 %v7543, %v7541
      %v7614 = vpack.c.bf16 %v7544, %v7542
      %v7615 = vpack.c.bf16 %v7547, %v7545
      %v7616 = vpack.c.bf16 %v7548, %v7546
      %v7617 = vpack.c.bf16 %v7551, %v7549
      %v7618 = vpack.c.bf16 %v7552, %v7550
      %v7619 = vpack.c.bf16 %v7555, %v7553
      %v7620 = vpack.c.bf16 %v7556, %v7554
      %v7621 = vpack.c.bf16 %v7559, %v7557
      %v7622 = vpack.c.bf16 %v7560, %v7558
      %v7623 = vpack.c.bf16 %v7563, %v7561
      %v7624 = vpack.c.bf16 %v7564, %v7562
      %v7625 = vpack.c.bf16 %v7567, %v7565
      %v7626 = vpack.c.bf16 %v7568, %v7566
      %v7627 = vpack.c.bf16 %v7571, %v7569
      %v7628 = vpack.c.bf16 %v7572, %v7570
      %v7629 = vpack.c.bf16 %v7575, %v7573
      %v7630 = vpack.c.bf16 %v7576, %v7574
      %v7631 = vld [vmem:[%s4] sm:$0xf]
      %v7632 = vld [vmem:[%s4 + $0x4] sm:$0xf]
      %v7633 = vld [vmem:[%s4 + $0x8] sm:$0xf]
      %v7634 = vld [vmem:[%s4 + $0xc] sm:$0xf]
      %v7635 = vld [vmem:[%s4 + $0x10] sm:$0xf]
      %v7636 = vld [vmem:[%s4 + $0x14] sm:$0xf]
      %v7637 = vld [vmem:[%s4 + $0x18] sm:$0xf]
      %v7638 = vld [vmem:[%s4 + $0x1c] sm:$0xf]
      %v7639 = vld [vmem:[%s4 + $0x20] sm:$0xf]
      %v7640 = vld [vmem:[%s4 + $0x24] sm:$0xf]
      %v7641 = vld [vmem:[%s4 + $0x28] sm:$0xf]
      %v7642 = vld [vmem:[%s4 + $0x2c] sm:$0xf]
      %v7643 = vld [vmem:[%s4 + $0x30] sm:$0xf]
      %v7644 = vld [vmem:[%s4 + $0x34] sm:$0xf]
      %v7645 = vld [vmem:[%s4 + $0x38] sm:$0xf]
      %v7646 = vld [vmem:[%s4 + $0x3c] sm:$0xf]
      %v7647 = vld [vmem:[%s4 + $0x40] sm:$0xf]
      %v7648 = vld [vmem:[%s4 + $0x44] sm:$0xf]
      %v7649 = vld [vmem:[%s4 + $0x48] sm:$0xf]
      %v7650 = vld [vmem:[%s4 + $0x4c] sm:$0xf]
      %v7651 = vld [vmem:[%s4 + $0x50] sm:$0xf]
      %v7652 = vld [vmem:[%s4 + $0x54] sm:$0xf]
      %v7653 = vld [vmem:[%s4 + $0x58] sm:$0xf]
      %v7654 = vld [vmem:[%s4 + $0x5c] sm:$0xf]
      %v7661 = vcombine.low %v6527, %v6528
      %v7662 = vcombine.low %v6529, %v6530
      %v7664 = vunpack.c.l.s4 1983009808
      %v7665 = vunpack.c.0.s8 %v7664
      %v7666 = vlaneseq
      %v7667 = vshrl.u32 %v7666, 7
      %v7668 = vsub.s32 %v7665, %v7667
      %v7669 = vrot.slane %v7661, %v7668
      %v7671 = vunpack.c.l.s4 1983009808
      %v7672 = vunpack.c.0.s8 %v7671
      %v7673 = vlaneseq
      %v7674 = vshrl.u32 %v7673, 7
      %v7675 = vsub.s32 %v7672, %v7674
      %v7676 = vrot.slane %v7662, %v7675
      %v7677 = vcombine.low %v7669, %v7676
      %v7678 = vcombine.low %v6531, %v6532
      %v7680 = vunpack.c.l.s4 1983009808
      %v7681 = vunpack.c.0.s8 %v7680
      %v7682 = vlaneseq
      %v7683 = vshrl.u32 %v7682, 7
      %v7684 = vsub.s32 %v7681, %v7683
      %v7685 = vrot.slane %v7678, %v7684
      %v7690 = vunpack.c.l.s4 1983009808
      %v7691 = vunpack.c.0.s8 %v7690
      %v7692 = vlaneseq
      %v7693 = vshrl.u32 %v7692, 7
      %v7694 = vsub.s32 %v7691, %v7693
      %v7695 = vrot.slane %v6533, %v7694
      %v7696 = vcombine.low %v7685, %v7695
      %v7697 = vrot.slane %v7677, 1
      %v7698 = vrot.slane %v7696, 1
      %v7699 = vsel %vm7047, %v7697, %v7698
      %7700 = vrot.lane.b32.xlu0 %v7699, 64
      %v7701 = vpop.permute.xlu0 %7700
      %7702 = vrot.lane.b32.xlu0 %v7698, 64
      %v7703 = vpop.permute.xlu0 %7702
      %v7706 = vcombine.low %v6528, %v6529
      %v7707 = vcombine.low %v6530, %v6531
      %v7709 = vunpack.c.l.s4 1983009808
      %v7710 = vunpack.c.0.s8 %v7709
      %v7711 = vlaneseq
      %v7712 = vshrl.u32 %v7711, 7
      %v7713 = vsub.s32 %v7710, %v7712
      %v7714 = vrot.slane %v7706, %v7713
      %v7716 = vunpack.c.l.s4 1983009808
      %v7717 = vunpack.c.0.s8 %v7716
      %v7718 = vlaneseq
      %v7719 = vshrl.u32 %v7718, 7
      %v7720 = vsub.s32 %v7717, %v7719
      %v7721 = vrot.slane %v7707, %v7720
      %v7722 = vcombine.low %v7714, %v7721
      %v7723 = vcombine.low %v6532, %v6533
      %v7725 = vunpack.c.l.s4 1983009808
      %v7726 = vunpack.c.0.s8 %v7725
      %v7727 = vlaneseq
      %v7728 = vshrl.u32 %v7727, 7
      %v7729 = vsub.s32 %v7726, %v7728
      %v7730 = vrot.slane %v7723, %v7729
      %v7731 = vsel %vm7456, %v7677, %v7701
      %v7732 = vsel %vm7456, %v7685, %v7703
      %v7735 = vcombine.low %v7731, %v7722
      %v7736 = vcombine.high %v7731, %v7722
      %v7737 = vcombine.low %v7732, %v7730
      %v7738 = vcombine.low %v7508, %v7509
      %v7739 = vcombine.high %v7508, %v7509
      %v7740 = vcombine.low %v7510, %v7511
      %v7741 = vcombine.high %v7510, %v7511
      %v7742 = vcombine.low %v7512, %v7513
      %v7743 = vcombine.high %v7512, %v7513
      %v7744 = vcombine.low %v7514, %v7515
      %v7745 = vcombine.high %v7514, %v7515
      %v7746 = vcombine.low %v7516, %v7517
      %v7747 = vcombine.high %v7516, %v7517
      %v7748 = vcombine.low %v7518, %v7519
      %v7749 = vcombine.high %v7518, %v7519
      %v7750 = vcombine.low %v7520, %v7521
      %v7751 = vcombine.high %v7520, %v7521
      %v7752 = vcombine.low %v7522, %v7523
      %v7753 = vcombine.high %v7522, %v7523
      %v7754 = vcombine.low %v7524, %v7525
      %v7755 = vcombine.high %v7524, %v7525
      %v7756 = vcombine.low %v7526, %v7527
      %v7757 = vcombine.high %v7526, %v7527
      %v7758 = vcombine.low %v7528, %v7529
      %v7759 = vcombine.high %v7528, %v7529
      %v7760 = vcombine.low %v7530, %v7531
      %v7761 = vcombine.high %v7530, %v7531
      %v7762 = vcombine.low %v7532, %v7533
      %v7763 = vcombine.high %v7532, %v7533
      %v7764 = vcombine.low %v7534, %v7535
      %v7765 = vcombine.high %v7534, %v7535
      %v7766 = vcombine.low %v7536, %v7537
      %v7767 = vcombine.high %v7536, %v7537
      %v7768 = vcombine.low %v7538, %v7539
      %v7769 = vcombine.high %v7538, %v7539
      %v7770 = vcombine.low %v7540, %v7735
      %v7771 = vcombine.high %v7540, %v7735
      %v7772 = vcombine.low %v7736, %v7737
      %v7773 = vcombine.high %v7736, %v7737
      %v7810 = vpack.c.bf16 %v7740, %v7738
      %v7811 = vpack.c.bf16 %v7741, %v7739
      %v7812 = vpack.c.bf16 %v7744, %v7742
      %v7813 = vpack.c.bf16 %v7745, %v7743
      %v7814 = vpack.c.bf16 %v7748, %v7746
      %v7815 = vpack.c.bf16 %v7749, %v7747
      %v7816 = vpack.c.bf16 %v7752, %v7750
      %v7817 = vpack.c.bf16 %v7753, %v7751
      %v7818 = vpack.c.bf16 %v7756, %v7754
      %v7819 = vpack.c.bf16 %v7757, %v7755
      %v7820 = vpack.c.bf16 %v7760, %v7758
      %v7821 = vpack.c.bf16 %v7761, %v7759
      %v7822 = vpack.c.bf16 %v7764, %v7762
      %v7823 = vpack.c.bf16 %v7765, %v7763
      %v7824 = vpack.c.bf16 %v7768, %v7766
      %v7825 = vpack.c.bf16 %v7769, %v7767
      %v7826 = vpack.c.bf16 %v7772, %v7770
      %v7827 = vpack.c.bf16 %v7773, %v7771
      %s7828 = scalar_lea.vmem %s4, 96
      %v7829 = vld [vmem:[%s7828] sm:$0xf]
      %v7830 = vld [vmem:[%s7828 + $0x4] sm:$0xf]
      %v7831 = vld [vmem:[%s7828 + $0x8] sm:$0xf]
      %v7832 = vld [vmem:[%s7828 + $0xc] sm:$0xf]
      %v7833 = vld [vmem:[%s7828 + $0x10] sm:$0xf]
      %v7834 = vld [vmem:[%s7828 + $0x14] sm:$0xf]
      %v7835 = vld [vmem:[%s7828 + $0x18] sm:$0xf]
      %v7836 = vld [vmem:[%s7828 + $0x1c] sm:$0xf]
      %v7837 = vld [vmem:[%s7828 + $0x20] sm:$0xf]
      %v7838 = vld [vmem:[%s7828 + $0x24] sm:$0xf]
      %v7839 = vld [vmem:[%s7828 + $0x28] sm:$0xf]
      %v7840 = vld [vmem:[%s7828 + $0x2c] sm:$0xf]
      %v7841 = vld [vmem:[%s7828 + $0x30] sm:$0xf]
      %v7842 = vld [vmem:[%s7828 + $0x34] sm:$0xf]
      %v7843 = vld [vmem:[%s7828 + $0x38] sm:$0xf]
      %v7844 = vld [vmem:[%s7828 + $0x3c] sm:$0xf]
      %v7845 = vld [vmem:[%s7828 + $0x40] sm:$0xf]
      %v7846 = vld [vmem:[%s7828 + $0x44] sm:$0xf]
      %v7847 = vld [vmem:[%s7828 + $0x48] sm:$0xf]
      %v7848 = vld [vmem:[%s7828 + $0x4c] sm:$0xf]
      %v7849 = vld [vmem:[%s7828 + $0x50] sm:$0xf]
      %v7850 = vld [vmem:[%s7828 + $0x54] sm:$0xf]
      %v7851 = vld [vmem:[%s7828 + $0x58] sm:$0xf]
      %v7852 = vld [vmem:[%s7828 + $0x5c] sm:$0xf]
      %v7877 = vunpack.c.l.b16 %v7829
      %v7878 = vunpack.c.l.b16 %v7830
      %v7879 = vunpack.c.l.b16 %v7831
      %v7880 = vunpack.c.l.b16 %v7832
      %v7881 = vunpack.c.l.b16 %v7833
      %v7882 = vunpack.c.l.b16 %v7834
      %v7883 = vunpack.c.l.b16 %v7835
      %v7884 = vunpack.c.l.b16 %v7836
      %v7885 = vunpack.c.l.b16 %v7837
      %v7886 = vunpack.c.l.b16 %v7838
      %v7887 = vunpack.c.l.b16 %v7839
      %v7888 = vunpack.c.l.b16 %v7840
      %v7889 = vunpack.c.l.b16 %v7841
      %v7890 = vunpack.c.l.b16 %v7842
      %v7891 = vunpack.c.l.b16 %v7843
      %v7892 = vunpack.c.l.b16 %v7844
      %v7893 = vunpack.c.l.b16 %v7845
      %v7894 = vunpack.c.l.b16 %v7846
      %v7895 = vunpack.c.l.b16 %v7847
      %v7896 = vunpack.c.l.b16 %v7848
      %v7897 = vunpack.c.l.b16 %v7849
      %v7898 = vunpack.c.l.b16 %v7850
      %v7899 = vunpack.c.l.b16 %v7851
      %v7900 = vunpack.c.l.b16 %v7852
      %v7901 = vpack.c.b16 %v7878, %v7877
      %v7902 = vpack.c.b16 %v7880, %v7879
      %v7903 = vpack.c.b16 %v7882, %v7881
      %v7904 = vpack.c.b16 %v7884, %v7883
      %v7905 = vpack.c.b16 %v7886, %v7885
      %v7906 = vpack.c.b16 %v7888, %v7887
      %v7907 = vpack.c.b16 %v7890, %v7889
      %v7908 = vpack.c.b16 %v7892, %v7891
      %v7909 = vpack.c.b16 %v7894, %v7893
      %v7910 = vpack.c.b16 %v7896, %v7895
      %v7911 = vpack.c.b16 %v7898, %v7897
      %v7912 = vpack.c.b16 %v7900, %v7899
      %v7926 = vsel %vm7456, %v7811, 0
      %v7929 = vsel %vm7456, %v7813, 0
      %v7932 = vsel %vm7456, %v7815, 0
      %v7935 = vsel %vm7456, %v7817, 0
      %v7938 = vsel %vm7456, %v7819, 0
      %v7941 = vsel %vm7456, %v7821, 0
      %v7944 = vsel %vm7456, %v7823, 0
      %v7947 = vsel %vm7456, %v7825, 0
      %v7950 = vsel %vm7456, %v7827, 0
      %7952 = vmatprep.subr.bf16.mxu0 0
      %7953 = vmatpush1.bf16.msra.mxu0 %v7908
      %7954 = vmatprep.subr.bf16.mxu0 0
      %7955 = vmatpush1.bf16.msra.mxu0 %v7907
      %7956 = vmatprep.subr.bf16.mxu0 0
      %7957 = vmatpush1.bf16.msra.mxu0 %v7906
      %7958 = vmatprep.subr.bf16.mxu0 0
      %7959 = vmatpush1.bf16.msra.mxu0 %v7905
      %7960 = vmatprep.subr.bf16.mxu0 0
      %7961 = vmatpush1.bf16.msra.mxu0 %v7904
      %7962 = vmatprep.subr.bf16.mxu0 0
      %7963 = vmatpush1.bf16.msra.mxu0 %v7903
      %7964 = vmatprep.subr.bf16.mxu0 0
      %7965 = vmatpush1.bf16.msra.mxu0 %v7902
      %7966 = vmatprep.subr.bf16.mxu0 0
      %7967 = vmatpush1.bf16.msra.mxu0 %v7901
      %7968 = vmatprep.subr.bf16.mxu0 0
      %7969 = vmatpush2.bf16.msra.mxu0 0
      %7970 = vmatprep.subr.bf16.mxu0 0
      %7971 = vmatpush2.bf16.msra.mxu0 0
      %7972 = vmatprep.subr.bf16.mxu0 0
      %7973 = vmatpush2.bf16.msra.mxu0 0
      %7974 = vmatprep.subr.bf16.mxu0 0
      %7975 = vmatpush2.bf16.msra.mxu0 0
      %7976 = vmatprep.subr.bf16.mxu0 0
      %7977 = vmatpush2.bf16.msra.mxu0 %v7912
      %7978 = vmatprep.subr.bf16.mxu0 0
      %7979 = vmatpush2.bf16.msra.mxu0 %v7911
      %7980 = vmatprep.subr.bf16.mxu0 0
      %7981 = vmatpush2.bf16.msra.mxu0 %v7910
      %7982 = vmatprep.subr.bf16.mxu0 0
      %7983 = vmatpush2.bf16.msra.mxu0 %v7909
      %7984 = vmatprep.mubr.bf16.mxu0 %v7926
      %7985 = vmatmul.mubr.bf16.gmra.mxu0 %v7810
      %v7986 = vpop.f32.mrf.mxu0
      %v7987 = vadd.f32 0.0, %v7986
      %v7988 = vpop.f32.mrf.mxu0
      %v7989 = vpop.f32.mrf.mxu0
      %v7990 = vadd.f32 0.0, %v7989
      %v7991 = vpop.f32.mrf.mxu0
      %7992 = vmatprep.mubr.bf16.mxu0 %v7929
      %7993 = vmatmul.mubr.bf16.gmra.mxu0 %v7812
      %v7994 = vpop.f32.mrf.mxu0
      %v7995 = vadd.f32 0.0, %v7994
      %v7996 = vpop.f32.mrf.mxu0
      %v7997 = vpop.f32.mrf.mxu0
      %v7998 = vadd.f32 0.0, %v7997
      %v7999 = vpop.f32.mrf.mxu0
      %8000 = vmatprep.mubr.bf16.mxu0 %v7932
      %8001 = vmatmul.mubr.bf16.gmra.mxu0 %v7814
      %v8002 = vpop.f32.mrf.mxu0
      %v8003 = vadd.f32 0.0, %v8002
      %v8004 = vpop.f32.mrf.mxu0
      %v8005 = vpop.f32.mrf.mxu0
      %v8006 = vadd.f32 0.0, %v8005
      %v8007 = vpop.f32.mrf.mxu0
      %8008 = vmatprep.mubr.bf16.mxu0 %v7935
      %8009 = vmatmul.mubr.bf16.gmra.mxu0 %v7816
      %v8010 = vpop.f32.mrf.mxu0
      %v8011 = vadd.f32 0.0, %v8010
      %v8012 = vpop.f32.mrf.mxu0
      %v8013 = vpop.f32.mrf.mxu0
      %v8014 = vadd.f32 0.0, %v8013
      %v8015 = vpop.f32.mrf.mxu0
      %8016 = vmatprep.mubr.bf16.mxu0 %v7938
      %8017 = vmatmul.mubr.bf16.gmra.mxu0 %v7818
      %v8018 = vpop.f32.mrf.mxu0
      %v8019 = vadd.f32 0.0, %v8018
      %v8020 = vpop.f32.mrf.mxu0
      %v8021 = vpop.f32.mrf.mxu0
      %v8022 = vadd.f32 0.0, %v8021
      %v8023 = vpop.f32.mrf.mxu0
      %8024 = vmatprep.mubr.bf16.mxu0 %v7941
      %8025 = vmatmul.mubr.bf16.gmra.mxu0 %v7820
      %v8026 = vpop.f32.mrf.mxu0
      %v8027 = vadd.f32 0.0, %v8026
      %v8028 = vpop.f32.mrf.mxu0
      %v8029 = vpop.f32.mrf.mxu0
      %v8030 = vadd.f32 0.0, %v8029
      %v8031 = vpop.f32.mrf.mxu0
      %8032 = vmatprep.mubr.bf16.mxu0 %v7944
      %8033 = vmatmul.mubr.bf16.gmra.mxu0 %v7822
      %v8034 = vpop.f32.mrf.mxu0
      %v8035 = vadd.f32 0.0, %v8034
      %v8036 = vpop.f32.mrf.mxu0
      %v8037 = vpop.f32.mrf.mxu0
      %v8038 = vadd.f32 0.0, %v8037
      %v8039 = vpop.f32.mrf.mxu0
      %8040 = vmatprep.mubr.bf16.mxu0 %v7947
      %8041 = vmatmul.mubr.bf16.gmra.mxu0 %v7824
      %v8042 = vpop.f32.mrf.mxu0
      %v8043 = vadd.f32 0.0, %v8042
      %v8044 = vpop.f32.mrf.mxu0
      %v8045 = vpop.f32.mrf.mxu0
      %v8046 = vadd.f32 0.0, %v8045
      %v8047 = vpop.f32.mrf.mxu0
      %8048 = vmatprep.mubr.bf16.mxu0 %v7950
      %8049 = vmatmul.mubr.bf16.gmra.mxu0 %v7826
      %v8050 = vpop.f32.mrf.mxu0
      %v8051 = vadd.f32 0.0, %v8050
      %v8052 = vpop.f32.mrf.mxu0
      %v8053 = vpop.f32.mrf.mxu0
      %v8054 = vadd.f32 0.0, %v8053
      %v8055 = vpop.f32.mrf.mxu0
      %8056 = vdwg.mxu0
      %v8081 = vunpack.c.l.b16 %v7631
      %v8082 = vunpack.c.l.b16 %v7632
      %v8083 = vunpack.c.l.b16 %v7633
      %v8084 = vunpack.c.l.b16 %v7634
      %v8085 = vunpack.c.l.b16 %v7635
      %v8086 = vunpack.c.l.b16 %v7636
      %v8087 = vunpack.c.l.b16 %v7637
      %v8088 = vunpack.c.l.b16 %v7638
      %v8089 = vunpack.c.l.b16 %v7639
      %v8090 = vunpack.c.l.b16 %v7640
      %v8091 = vunpack.c.l.b16 %v7641
      %v8092 = vunpack.c.l.b16 %v7642
      %v8093 = vunpack.c.l.b16 %v7643
      %v8094 = vunpack.c.l.b16 %v7644
      %v8095 = vunpack.c.l.b16 %v7645
      %v8096 = vunpack.c.l.b16 %v7646
      %v8097 = vunpack.c.l.b16 %v7647
      %v8098 = vunpack.c.l.b16 %v7648
      %v8099 = vunpack.c.l.b16 %v7649
      %v8100 = vunpack.c.l.b16 %v7650
      %v8101 = vunpack.c.l.b16 %v7651
      %v8102 = vunpack.c.l.b16 %v7652
      %v8103 = vunpack.c.l.b16 %v7653
      %v8104 = vunpack.c.l.b16 %v7654
      %v8105 = vpack.c.b16 %v8082, %v8081
      %v8106 = vpack.c.b16 %v8084, %v8083
      %v8107 = vpack.c.b16 %v8086, %v8085
      %v8108 = vpack.c.b16 %v8088, %v8087
      %v8109 = vpack.c.b16 %v8090, %v8089
      %v8110 = vpack.c.b16 %v8092, %v8091
      %v8111 = vpack.c.b16 %v8094, %v8093
      %v8112 = vpack.c.b16 %v8096, %v8095
      %v8113 = vpack.c.b16 %v8098, %v8097
      %v8114 = vpack.c.b16 %v8100, %v8099
      %v8115 = vpack.c.b16 %v8102, %v8101
      %v8116 = vpack.c.b16 %v8104, %v8103
      %v8130 = vsel %vm7456, %v7614, 0
      %v8133 = vsel %vm7456, %v7616, 0
      %v8136 = vsel %vm7456, %v7618, 0
      %v8139 = vsel %vm7456, %v7620, 0
      %v8142 = vsel %vm7456, %v7622, 0
      %v8145 = vsel %vm7456, %v7624, 0
      %v8148 = vsel %vm7456, %v7626, 0
      %v8151 = vsel %vm7456, %v7628, 0
      %v8154 = vsel %vm7456, %v7630, 0
      %8156 = vmatprep.subr.bf16.mxu0 0
      %8157 = vmatpush1.bf16.msra.mxu0 %v8112
      %8158 = vmatprep.subr.bf16.mxu0 0
      %8159 = vmatpush1.bf16.msra.mxu0 %v8111
      %8160 = vmatprep.subr.bf16.mxu0 0
      %8161 = vmatpush1.bf16.msra.mxu0 %v8110
      %8162 = vmatprep.subr.bf16.mxu0 0
      %8163 = vmatpush1.bf16.msra.mxu0 %v8109
      %8164 = vmatprep.subr.bf16.mxu0 0
      %8165 = vmatpush1.bf16.msra.mxu0 %v8108
      %8166 = vmatprep.subr.bf16.mxu0 0
      %8167 = vmatpush1.bf16.msra.mxu0 %v8107
      %8168 = vmatprep.subr.bf16.mxu0 0
      %8169 = vmatpush1.bf16.msra.mxu0 %v8106
      %8170 = vmatprep.subr.bf16.mxu0 0
      %8171 = vmatpush1.bf16.msra.mxu0 %v8105
      %8172 = vmatprep.subr.bf16.mxu0 0
      %8173 = vmatpush2.bf16.msra.mxu0 0
      %8174 = vmatprep.subr.bf16.mxu0 0
      %8175 = vmatpush2.bf16.msra.mxu0 0
      %8176 = vmatprep.subr.bf16.mxu0 0
      %8177 = vmatpush2.bf16.msra.mxu0 0
      %8178 = vmatprep.subr.bf16.mxu0 0
      %8179 = vmatpush2.bf16.msra.mxu0 0
      %8180 = vmatprep.subr.bf16.mxu0 0
      %8181 = vmatpush2.bf16.msra.mxu0 %v8116
      %8182 = vmatprep.subr.bf16.mxu0 0
      %8183 = vmatpush2.bf16.msra.mxu0 %v8115
      %8184 = vmatprep.subr.bf16.mxu0 0
      %8185 = vmatpush2.bf16.msra.mxu0 %v8114
      %8186 = vmatprep.subr.bf16.mxu0 0
      %8187 = vmatpush2.bf16.msra.mxu0 %v8113
      %8188 = vmatprep.mubr.bf16.mxu0 %v8130
      %8189 = vmatmul.mubr.bf16.gmra.mxu0 %v7613
      %v8190 = vpop.f32.mrf.mxu0
      %v8191 = vadd.f32 %v7987, %v8190
      %v8192 = vpop.f32.mrf.mxu0
      %v8193 = vpop.f32.mrf.mxu0
      %v8194 = vadd.f32 %v7990, %v8193
      %v8195 = vpop.f32.mrf.mxu0
      %8196 = vmatprep.mubr.bf16.mxu0 %v8133
      %8197 = vmatmul.mubr.bf16.gmra.mxu0 %v7615
      %v8198 = vpop.f32.mrf.mxu0
      %v8199 = vadd.f32 %v7995, %v8198
      %v8200 = vpop.f32.mrf.mxu0
      %v8201 = vpop.f32.mrf.mxu0
      %v8202 = vadd.f32 %v7998, %v8201
      %v8203 = vpop.f32.mrf.mxu0
      %8204 = vmatprep.mubr.bf16.mxu0 %v8136
      %8205 = vmatmul.mubr.bf16.gmra.mxu0 %v7617
      %v8206 = vpop.f32.mrf.mxu0
      %v8207 = vadd.f32 %v8003, %v8206
      %v8208 = vpop.f32.mrf.mxu0
      %v8209 = vpop.f32.mrf.mxu0
      %v8210 = vadd.f32 %v8006, %v8209
      %v8211 = vpop.f32.mrf.mxu0
      %8212 = vmatprep.mubr.bf16.mxu0 %v8139
      %8213 = vmatmul.mubr.bf16.gmra.mxu0 %v7619
      %v8214 = vpop.f32.mrf.mxu0
      %v8215 = vadd.f32 %v8011, %v8214
      %v8216 = vpop.f32.mrf.mxu0
      %v8217 = vpop.f32.mrf.mxu0
      %v8218 = vadd.f32 %v8014, %v8217
      %v8219 = vpop.f32.mrf.mxu0
      %8220 = vmatprep.mubr.bf16.mxu0 %v8142
      %8221 = vmatmul.mubr.bf16.gmra.mxu0 %v7621
      %v8222 = vpop.f32.mrf.mxu0
      %v8223 = vadd.f32 %v8019, %v8222
      %v8224 = vpop.f32.mrf.mxu0
      %v8225 = vpop.f32.mrf.mxu0
      %v8226 = vadd.f32 %v8022, %v8225
      %v8227 = vpop.f32.mrf.mxu0
      %8228 = vmatprep.mubr.bf16.mxu0 %v8145
      %8229 = vmatmul.mubr.bf16.gmra.mxu0 %v7623
      %v8230 = vpop.f32.mrf.mxu0
      %v8231 = vadd.f32 %v8027, %v8230
      %v8232 = vpop.f32.mrf.mxu0
      %v8233 = vpop.f32.mrf.mxu0
      %v8234 = vadd.f32 %v8030, %v8233
      %v8235 = vpop.f32.mrf.mxu0
      %8236 = vmatprep.mubr.bf16.mxu0 %v8148
      %8237 = vmatmul.mubr.bf16.gmra.mxu0 %v7625
      %v8238 = vpop.f32.mrf.mxu0
      %v8239 = vadd.f32 %v8035, %v8238
      %v8240 = vpop.f32.mrf.mxu0
      %v8241 = vpop.f32.mrf.mxu0
      %v8242 = vadd.f32 %v8038, %v8241
      %v8243 = vpop.f32.mrf.mxu0
      %8244 = vmatprep.mubr.bf16.mxu0 %v8151
      %8245 = vmatmul.mubr.bf16.gmra.mxu0 %v7627
      %v8246 = vpop.f32.mrf.mxu0
      %v8247 = vadd.f32 %v8043, %v8246
      %v8248 = vpop.f32.mrf.mxu0
      %v8249 = vpop.f32.mrf.mxu0
      %v8250 = vadd.f32 %v8046, %v8249
      %v8251 = vpop.f32.mrf.mxu0
      %8252 = vmatprep.mubr.bf16.mxu0 %v8154
      %8253 = vmatmul.mubr.bf16.gmra.mxu0 %v7629
      %v8254 = vpop.f32.mrf.mxu0
      %v8255 = vadd.f32 %v8051, %v8254
      %v8256 = vpop.f32.mrf.mxu0
      %v8257 = vpop.f32.mrf.mxu0
      %v8258 = vadd.f32 %v8054, %v8257
      %v8259 = vpop.f32.mrf.mxu0
      %8260 = vdwg.mxu0
      %v8267 = vcombine.low %v6534, %v6535
      %v8268 = vcombine.low %v6536, %v6537
      %v8270 = vunpack.c.l.s4 1983009808
      %v8271 = vunpack.c.0.s8 %v8270
      %v8272 = vlaneseq
      %v8273 = vshrl.u32 %v8272, 7
      %v8274 = vsub.s32 %v8271, %v8273
      %v8275 = vrot.slane %v8267, %v8274
      %v8277 = vunpack.c.l.s4 1983009808
      %v8278 = vunpack.c.0.s8 %v8277
      %v8279 = vlaneseq
      %v8280 = vshrl.u32 %v8279, 7
      %v8281 = vsub.s32 %v8278, %v8280
      %v8282 = vrot.slane %v8268, %v8281
      %v8283 = vcombine.low %v8275, %v8282
      %v8284 = vcombine.low %v6538, %v6539
      %v8286 = vunpack.c.l.s4 1983009808
      %v8287 = vunpack.c.0.s8 %v8286
      %v8288 = vlaneseq
      %v8289 = vshrl.u32 %v8288, 7
      %v8290 = vsub.s32 %v8287, %v8289
      %v8291 = vrot.slane %v8284, %v8290
      %v8296 = vunpack.c.l.s4 1983009808
      %v8297 = vunpack.c.0.s8 %v8296
      %v8298 = vlaneseq
      %v8299 = vshrl.u32 %v8298, 7
      %v8300 = vsub.s32 %v8297, %v8299
      %v8301 = vrot.slane %v6540, %v8300
      %v8302 = vcombine.low %v8291, %v8301
      %v8303 = vrot.slane %v8283, 1
      %v8304 = vrot.slane %v8302, 1
      %v8305 = vsel %vm7047, %v8303, %v8304
      %8306 = vrot.lane.b32.xlu0 %v8305, 64
      %v8307 = vpop.permute.xlu0 %8306
      %8308 = vrot.lane.b32.xlu0 %v8304, 64
      %v8309 = vpop.permute.xlu0 %8308
      %v8312 = vcombine.low %v6535, %v6536
      %v8313 = vcombine.low %v6537, %v6538
      %v8315 = vunpack.c.l.s4 1983009808
      %v8316 = vunpack.c.0.s8 %v8315
      %v8317 = vlaneseq
      %v8318 = vshrl.u32 %v8317, 7
      %v8319 = vsub.s32 %v8316, %v8318
      %v8320 = vrot.slane %v8312, %v8319
      %v8322 = vunpack.c.l.s4 1983009808
      %v8323 = vunpack.c.0.s8 %v8322
      %v8324 = vlaneseq
      %v8325 = vshrl.u32 %v8324, 7
      %v8326 = vsub.s32 %v8323, %v8325
      %v8327 = vrot.slane %v8313, %v8326
      %v8328 = vcombine.low %v8320, %v8327
      %v8329 = vcombine.low %v6539, %v6540
      %v8331 = vunpack.c.l.s4 1983009808
      %v8332 = vunpack.c.0.s8 %v8331
      %v8333 = vlaneseq
      %v8334 = vshrl.u32 %v8333, 7
      %v8335 = vsub.s32 %v8332, %v8334
      %v8336 = vrot.slane %v8329, %v8335
      %v8337 = vsel %vm7456, %v8283, %v8307
      %v8338 = vsel %vm7456, %v8291, %v8309
      %v8341 = vcombine.low %v8337, %v8328
      %v8342 = vcombine.high %v8337, %v8328
      %v8343 = vcombine.low %v8338, %v8336
      %v8344 = vcombine.low %v7735, %v7736
      %v8345 = vcombine.high %v7735, %v7736
      %v8346 = vcombine.low %v7737, %v8341
      %v8347 = vcombine.high %v7737, %v8341
      %v8348 = vcombine.low %v8342, %v8343
      %v8349 = vcombine.high %v8342, %v8343
      %v8356 = vpack.c.bf16 %v7549, %v7547
      %v8357 = vpack.c.bf16 %v7550, %v7548
      %v8358 = vpack.c.bf16 %v7553, %v7551
      %v8359 = vpack.c.bf16 %v7554, %v7552
      %v8360 = vpack.c.bf16 %v7557, %v7555
      %v8361 = vpack.c.bf16 %v7558, %v7556
      %v8362 = vpack.c.bf16 %v7561, %v7559
      %v8363 = vpack.c.bf16 %v7562, %v7560
      %v8364 = vpack.c.bf16 %v7565, %v7563
      %v8365 = vpack.c.bf16 %v7566, %v7564
      %v8366 = vpack.c.bf16 %v7569, %v7567
      %v8367 = vpack.c.bf16 %v7570, %v7568
      %v8368 = vpack.c.bf16 %v7573, %v7571
      %v8369 = vpack.c.bf16 %v7574, %v7572
      %v8370 = vpack.c.bf16 %v8344, %v7575
      %v8371 = vpack.c.bf16 %v8345, %v7576
      %v8372 = vpack.c.bf16 %v8348, %v8346
      %v8373 = vpack.c.bf16 %v8349, %v8347
      %s8374 = scalar_lea.vmem %s4, 192
      %v8375 = vld [vmem:[%s8374] sm:$0xf]
      %v8376 = vld [vmem:[%s8374 + $0x4] sm:$0xf]
      %v8377 = vld [vmem:[%s8374 + $0x8] sm:$0xf]
      %v8378 = vld [vmem:[%s8374 + $0xc] sm:$0xf]
      %v8379 = vld [vmem:[%s8374 + $0x10] sm:$0xf]
      %v8380 = vld [vmem:[%s8374 + $0x14] sm:$0xf]
      %v8381 = vld [vmem:[%s8374 + $0x18] sm:$0xf]
      %v8382 = vld [vmem:[%s8374 + $0x1c] sm:$0xf]
      %v8383 = vld [vmem:[%s8374 + $0x20] sm:$0xf]
      %v8384 = vld [vmem:[%s8374 + $0x24] sm:$0xf]
      %v8385 = vld [vmem:[%s8374 + $0x28] sm:$0xf]
      %v8386 = vld [vmem:[%s8374 + $0x2c] sm:$0xf]
      %v8387 = vld [vmem:[%s8374 + $0x30] sm:$0xf]
      %v8388 = vld [vmem:[%s8374 + $0x34] sm:$0xf]
      %v8389 = vld [vmem:[%s8374 + $0x38] sm:$0xf]
      %v8390 = vld [vmem:[%s8374 + $0x3c] sm:$0xf]
      %v8391 = vld [vmem:[%s8374 + $0x40] sm:$0xf]
      %v8392 = vld [vmem:[%s8374 + $0x44] sm:$0xf]
      %v8393 = vld [vmem:[%s8374 + $0x48] sm:$0xf]
      %v8394 = vld [vmem:[%s8374 + $0x4c] sm:$0xf]
      %v8395 = vld [vmem:[%s8374 + $0x50] sm:$0xf]
      %v8396 = vld [vmem:[%s8374 + $0x54] sm:$0xf]
      %v8397 = vld [vmem:[%s8374 + $0x58] sm:$0xf]
      %v8398 = vld [vmem:[%s8374 + $0x5c] sm:$0xf]
      %v8423 = vunpack.c.l.b16 %v8375
      %v8424 = vunpack.c.l.b16 %v8376
      %v8425 = vunpack.c.l.b16 %v8377
      %v8426 = vunpack.c.l.b16 %v8378
      %v8427 = vunpack.c.l.b16 %v8379
      %v8428 = vunpack.c.l.b16 %v8380
      %v8429 = vunpack.c.l.b16 %v8381
      %v8430 = vunpack.c.l.b16 %v8382
      %v8431 = vunpack.c.l.b16 %v8383
      %v8432 = vunpack.c.l.b16 %v8384
      %v8433 = vunpack.c.l.b16 %v8385
      %v8434 = vunpack.c.l.b16 %v8386
      %v8435 = vunpack.c.l.b16 %v8387
      %v8436 = vunpack.c.l.b16 %v8388
      %v8437 = vunpack.c.l.b16 %v8389
      %v8438 = vunpack.c.l.b16 %v8390
      %v8439 = vunpack.c.l.b16 %v8391
      %v8440 = vunpack.c.l.b16 %v8392
      %v8441 = vunpack.c.l.b16 %v8393
      %v8442 = vunpack.c.l.b16 %v8394
      %v8443 = vunpack.c.l.b16 %v8395
      %v8444 = vunpack.c.l.b16 %v8396
      %v8445 = vunpack.c.l.b16 %v8397
      %v8446 = vunpack.c.l.b16 %v8398
      %v8447 = vpack.c.b16 %v8424, %v8423
      %v8448 = vpack.c.b16 %v8426, %v8425
      %v8449 = vpack.c.b16 %v8428, %v8427
      %v8450 = vpack.c.b16 %v8430, %v8429
      %v8451 = vpack.c.b16 %v8432, %v8431
      %v8452 = vpack.c.b16 %v8434, %v8433
      %v8453 = vpack.c.b16 %v8436, %v8435
      %v8454 = vpack.c.b16 %v8438, %v8437
      %v8455 = vpack.c.b16 %v8440, %v8439
      %v8456 = vpack.c.b16 %v8442, %v8441
      %v8457 = vpack.c.b16 %v8444, %v8443
      %v8458 = vpack.c.b16 %v8446, %v8445
      %v8472 = vsel %vm7456, %v8357, 0
      %v8475 = vsel %vm7456, %v8359, 0
      %v8478 = vsel %vm7456, %v8361, 0
      %v8481 = vsel %vm7456, %v8363, 0
      %v8484 = vsel %vm7456, %v8365, 0
      %v8487 = vsel %vm7456, %v8367, 0
      %v8490 = vsel %vm7456, %v8369, 0
      %v8493 = vsel %vm7456, %v8371, 0
      %v8496 = vsel %vm7456, %v8373, 0
      %8498 = vmatprep.subr.bf16.mxu0 0
      %8499 = vmatpush1.bf16.msra.mxu0 %v8454
      %8500 = vmatprep.subr.bf16.mxu0 0
      %8501 = vmatpush1.bf16.msra.mxu0 %v8453
      %8502 = vmatprep.subr.bf16.mxu0 0
      %8503 = vmatpush1.bf16.msra.mxu0 %v8452
      %8504 = vmatprep.subr.bf16.mxu0 0
      %8505 = vmatpush1.bf16.msra.mxu0 %v8451
      %8506 = vmatprep.subr.bf16.mxu0 0
      %8507 = vmatpush1.bf16.msra.mxu0 %v8450
      %8508 = vmatprep.subr.bf16.mxu0 0
      %8509 = vmatpush1.bf16.msra.mxu0 %v8449
      %8510 = vmatprep.subr.bf16.mxu0 0
      %8511 = vmatpush1.bf16.msra.mxu0 %v8448
      %8512 = vmatprep.subr.bf16.mxu0 0
      %8513 = vmatpush1.bf16.msra.mxu0 %v8447
      %8514 = vmatprep.subr.bf16.mxu0 0
      %8515 = vmatpush2.bf16.msra.mxu0 0
      %8516 = vmatprep.subr.bf16.mxu0 0
      %8517 = vmatpush2.bf16.msra.mxu0 0
      %8518 = vmatprep.subr.bf16.mxu0 0
      %8519 = vmatpush2.bf16.msra.mxu0 0
      %8520 = vmatprep.subr.bf16.mxu0 0
      %8521 = vmatpush2.bf16.msra.mxu0 0
      %8522 = vmatprep.subr.bf16.mxu0 0
      %8523 = vmatpush2.bf16.msra.mxu0 %v8458
      %8524 = vmatprep.subr.bf16.mxu0 0
      %8525 = vmatpush2.bf16.msra.mxu0 %v8457
      %8526 = vmatprep.subr.bf16.mxu0 0
      %8527 = vmatpush2.bf16.msra.mxu0 %v8456
      %8528 = vmatprep.subr.bf16.mxu0 0
      %8529 = vmatpush2.bf16.msra.mxu0 %v8455
      %8530 = vmatprep.mubr.bf16.mxu0 %v8472
      %8531 = vmatmul.mubr.bf16.gmra.mxu0 %v8356
      %v8532 = vpop.f32.mrf.mxu0
      %v8533 = vadd.f32 0.0, %v8532
      %v8534 = vpop.f32.mrf.mxu0
      %v8535 = vpop.f32.mrf.mxu0
      %v8536 = vadd.f32 0.0, %v8535
      %v8537 = vpop.f32.mrf.mxu0
      %8538 = vmatprep.mubr.bf16.mxu0 %v8475
      %8539 = vmatmul.mubr.bf16.gmra.mxu0 %v8358
      %v8540 = vpop.f32.mrf.mxu0
      %v8541 = vadd.f32 0.0, %v8540
      %v8542 = vpop.f32.mrf.mxu0
      %v8543 = vpop.f32.mrf.mxu0
      %v8544 = vadd.f32 0.0, %v8543
      %v8545 = vpop.f32.mrf.mxu0
      %8546 = vmatprep.mubr.bf16.mxu0 %v8478
      %8547 = vmatmul.mubr.bf16.gmra.mxu0 %v8360
      %v8548 = vpop.f32.mrf.mxu0
      %v8549 = vadd.f32 0.0, %v8548
      %v8550 = vpop.f32.mrf.mxu0
      %v8551 = vpop.f32.mrf.mxu0
      %v8552 = vadd.f32 0.0, %v8551
      %v8553 = vpop.f32.mrf.mxu0
      %8554 = vmatprep.mubr.bf16.mxu0 %v8481
      %8555 = vmatmul.mubr.bf16.gmra.mxu0 %v8362
      %v8556 = vpop.f32.mrf.mxu0
      %v8557 = vadd.f32 0.0, %v8556
      %v8558 = vpop.f32.mrf.mxu0
      %v8559 = vpop.f32.mrf.mxu0
      %v8560 = vadd.f32 0.0, %v8559
      %v8561 = vpop.f32.mrf.mxu0
      %8562 = vmatprep.mubr.bf16.mxu0 %v8484
      %8563 = vmatmul.mubr.bf16.gmra.mxu0 %v8364
      %v8564 = vpop.f32.mrf.mxu0
      %v8565 = vadd.f32 0.0, %v8564
      %v8566 = vpop.f32.mrf.mxu0
      %v8567 = vpop.f32.mrf.mxu0
      %v8568 = vadd.f32 0.0, %v8567
      %v8569 = vpop.f32.mrf.mxu0
      %8570 = vmatprep.mubr.bf16.mxu0 %v8487
      %8571 = vmatmul.mubr.bf16.gmra.mxu0 %v8366
      %v8572 = vpop.f32.mrf.mxu0
      %v8573 = vadd.f32 0.0, %v8572
      %v8574 = vpop.f32.mrf.mxu0
      %v8575 = vpop.f32.mrf.mxu0
      %v8576 = vadd.f32 0.0, %v8575
      %v8577 = vpop.f32.mrf.mxu0
      %8578 = vmatprep.mubr.bf16.mxu0 %v8490
      %8579 = vmatmul.mubr.bf16.gmra.mxu0 %v8368
      %v8580 = vpop.f32.mrf.mxu0
      %v8581 = vadd.f32 0.0, %v8580
      %v8582 = vpop.f32.mrf.mxu0
      %v8583 = vpop.f32.mrf.mxu0
      %v8584 = vadd.f32 0.0, %v8583
      %v8585 = vpop.f32.mrf.mxu0
      %8586 = vmatprep.mubr.bf16.mxu0 %v8493
      %8587 = vmatmul.mubr.bf16.gmra.mxu0 %v8370
      %v8588 = vpop.f32.mrf.mxu0
      %v8589 = vadd.f32 0.0, %v8588
      %v8590 = vpop.f32.mrf.mxu0
      %v8591 = vpop.f32.mrf.mxu0
      %v8592 = vadd.f32 0.0, %v8591
      %v8593 = vpop.f32.mrf.mxu0
      %8594 = vmatprep.mubr.bf16.mxu0 %v8496
      %8595 = vmatmul.mubr.bf16.gmra.mxu0 %v8372
      %v8596 = vpop.f32.mrf.mxu0
      %v8597 = vadd.f32 0.0, %v8596
      %v8598 = vpop.f32.mrf.mxu0
      %v8599 = vpop.f32.mrf.mxu0
      %v8600 = vadd.f32 0.0, %v8599
      %v8601 = vpop.f32.mrf.mxu0
      %8602 = vdwg.mxu0
      %v8603 = vadd.f32 %v8191, %v8533
      %v8604 = vadd.f32 %v8194, %v8536
      %v8605 = vadd.f32 %v8199, %v8541
      %v8606 = vadd.f32 %v8202, %v8544
      %v8607 = vadd.f32 %v8207, %v8549
      %v8608 = vadd.f32 %v8210, %v8552
      %v8609 = vadd.f32 %v8215, %v8557
      %v8610 = vadd.f32 %v8218, %v8560
      %v8611 = vadd.f32 %v8223, %v8565
      %v8612 = vadd.f32 %v8226, %v8568
      %v8613 = vadd.f32 %v8231, %v8573
      %v8614 = vadd.f32 %v8234, %v8576
      %v8615 = vadd.f32 %v8239, %v8581
      %v8616 = vadd.f32 %v8242, %v8584
      %v8617 = vadd.f32 %v8247, %v8589
      %v8618 = vadd.f32 %v8250, %v8592
      %v8619 = vadd.f32 %v8255, %v8597
      %v8620 = vadd.f32 %v8258, %v8600
      %v8639 = vcombine.high %v8603, %v8603
      %v8640 = vcombine.high %v8604, %v8604
      %v8641 = vcombine.high %v8605, %v8605
      %v8642 = vcombine.high %v8606, %v8606
      %v8643 = vcombine.high %v8607, %v8607
      %v8644 = vcombine.high %v8608, %v8608
      %v8645 = vcombine.high %v8609, %v8609
      %v8646 = vcombine.high %v8610, %v8610
      %v8647 = vcombine.high %v8611, %v8611
      %v8648 = vcombine.high %v8612, %v8612
      %v8649 = vcombine.high %v8613, %v8613
      %v8650 = vcombine.high %v8614, %v8614
      %v8651 = vcombine.high %v8615, %v8615
      %v8652 = vcombine.high %v8616, %v8616
      %v8653 = vcombine.high %v8617, %v8617
      %v8654 = vcombine.high %v8618, %v8618
      %v8655 = vcombine.high %v8619, %v8619
      %v8656 = vcombine.high %v8620, %v8620
      %v8676 = vlaneseq
      %v8677 = vshrl.u32 %v8676, 7
      %v8678 = vsub.s32 0, %v8677
      %v8679 = vrot.slane %v6541, %v8678
      %v8681 = vcombine.high %v8679, %v8679
      %v8683 = vmul.f32 %v8603, %v8679
      %v8684 = vmul.f32 %v8639, %v8681
      %v8685 = vmul.f32 %v8604, %v8679
      %v8686 = vmul.f32 %v8640, %v8679
      %v8687 = vmul.f32 %v8605, %v8681
      %v8688 = vmul.f32 %v8641, %v8679
      %v8689 = vmul.f32 %v8606, %v8679
      %v8690 = vmul.f32 %v8642, %v8681
      %v8691 = vmul.f32 %v8607, %v8679
      %v8692 = vmul.f32 %v8643, %v8679
      %v8693 = vmul.f32 %v8608, %v8681
      %v8694 = vmul.f32 %v8644, %v8679
      %v8695 = vmul.f32 %v8609, %v8679
      %v8696 = vmul.f32 %v8645, %v8681
      %v8697 = vmul.f32 %v8610, %v8679
      %v8698 = vmul.f32 %v8646, %v8679
      %v8699 = vmul.f32 %v8611, %v8681
      %v8700 = vmul.f32 %v8647, %v8679
      %v8701 = vmul.f32 %v8612, %v8679
      %v8702 = vmul.f32 %v8648, %v8681
      %v8703 = vmul.f32 %v8613, %v8679
      %v8704 = vmul.f32 %v8649, %v8679
      %v8705 = vmul.f32 %v8614, %v8681
      %v8706 = vmul.f32 %v8650, %v8679
      %v8707 = vmul.f32 %v8615, %v8679
      %v8708 = vmul.f32 %v8651, %v8681
      %v8709 = vmul.f32 %v8616, %v8679
      %v8710 = vmul.f32 %v8652, %v8679
      %v8711 = vmul.f32 %v8617, %v8681
      %v8712 = vmul.f32 %v8653, %v8679
      %v8713 = vmul.f32 %v8618, %v8679
      %v8714 = vmul.f32 %v8654, %v8681
      %v8715 = vmul.f32 %v8619, %v8679
      %v8716 = vmul.f32 %v8655, %v8679
      %v8717 = vmul.f32 %v8620, %v8681
      %v8718 = vmul.f32 %v8656, %v8679
      %v8720 = vlaneseq
      %v8721 = vshrl.u32 %v8720, 7
      %v8722 = vsub.s32 0, %v8721
      %v8723 = vrot.slane %v6542, %v8722
      %v8725 = vcombine.high %v8723, %v8723
      %v8727 = vadd.f32 %v8683, %v8723
      %v8728 = vadd.f32 %v8684, %v8725
      %v8729 = vadd.f32 %v8685, %v8723
      %v8730 = vadd.f32 %v8686, %v8723
      %v8731 = vadd.f32 %v8687, %v8725
      %v8732 = vadd.f32 %v8688, %v8723
      %v8733 = vadd.f32 %v8689, %v8723
      %v8734 = vadd.f32 %v8690, %v8725
      %v8735 = vadd.f32 %v8691, %v8723
      %v8736 = vadd.f32 %v8692, %v8723
      %v8737 = vadd.f32 %v8693, %v8725
      %v8738 = vadd.f32 %v8694, %v8723
      %v8739 = vadd.f32 %v8695, %v8723
      %v8740 = vadd.f32 %v8696, %v8725
      %v8741 = vadd.f32 %v8697, %v8723
      %v8742 = vadd.f32 %v8698, %v8723
      %v8743 = vadd.f32 %v8699, %v8725
      %v8744 = vadd.f32 %v8700, %v8723
      %v8745 = vadd.f32 %v8701, %v8723
      %v8746 = vadd.f32 %v8702, %v8725
      %v8747 = vadd.f32 %v8703, %v8723
      %v8748 = vadd.f32 %v8704, %v8723
      %v8749 = vadd.f32 %v8705, %v8725
      %v8750 = vadd.f32 %v8706, %v8723
      %v8751 = vadd.f32 %v8707, %v8723
      %v8752 = vadd.f32 %v8708, %v8725
      %v8753 = vadd.f32 %v8709, %v8723
      %v8754 = vadd.f32 %v8710, %v8723
      %v8755 = vadd.f32 %v8711, %v8725
      %v8756 = vadd.f32 %v8712, %v8723
      %v8757 = vadd.f32 %v8713, %v8723
      %v8758 = vadd.f32 %v8714, %v8725
      %v8759 = vadd.f32 %v8715, %v8723
      %v8760 = vadd.f32 %v8716, %v8723
      %v8761 = vadd.f32 %v8717, %v8725
      %v8762 = vadd.f32 %v8718, %v8723
      %v8763 = vmax.f32 %v8727, 0.0
      %v8764 = vmax.f32 %v8728, 0.0
      %v8765 = vmax.f32 %v8729, 0.0
      %v8766 = vmax.f32 %v8730, 0.0
      %v8767 = vmax.f32 %v8731, 0.0
      %v8768 = vmax.f32 %v8732, 0.0
      %v8769 = vmax.f32 %v8733, 0.0
      %v8770 = vmax.f32 %v8734, 0.0
      %v8771 = vmax.f32 %v8735, 0.0
      %v8772 = vmax.f32 %v8736, 0.0
      %v8773 = vmax.f32 %v8737, 0.0
      %v8774 = vmax.f32 %v8738, 0.0
      %v8775 = vmax.f32 %v8739, 0.0
      %v8776 = vmax.f32 %v8740, 0.0
      %v8777 = vmax.f32 %v8741, 0.0
      %v8778 = vmax.f32 %v8742, 0.0
      %v8779 = vmax.f32 %v8743, 0.0
      %v8780 = vmax.f32 %v8744, 0.0
      %v8781 = vmax.f32 %v8745, 0.0
      %v8782 = vmax.f32 %v8746, 0.0
      %v8783 = vmax.f32 %v8747, 0.0
      %v8784 = vmax.f32 %v8748, 0.0
      %v8785 = vmax.f32 %v8749, 0.0
      %v8786 = vmax.f32 %v8750, 0.0
      %v8787 = vmax.f32 %v8751, 0.0
      %v8788 = vmax.f32 %v8752, 0.0
      %v8789 = vmax.f32 %v8753, 0.0
      %v8790 = vmax.f32 %v8754, 0.0
      %v8791 = vmax.f32 %v8755, 0.0
      %v8792 = vmax.f32 %v8756, 0.0
      %v8793 = vmax.f32 %v8757, 0.0
      %v8794 = vmax.f32 %v8758, 0.0
      %v8795 = vmax.f32 %v8759, 0.0
      %v8796 = vmax.f32 %v8760, 0.0
      %v8797 = vmax.f32 %v8761, 0.0
      %v8798 = vmax.f32 %v8762, 0.0
      %v8799 = vld [vmem:[%s8] sm:$0x1]
      %v8800 = vld [vmem:[%s9] sm:$0x1]
      %v8831 = vcombine.low %v8763, %v8764
      %v8832 = vcombine.low %v8766, %v8767
      %v8833 = vcombine.low %v8769, %v8770
      %v8834 = vcombine.low %v8772, %v8773
      %v8835 = vcombine.low %v8775, %v8776
      %v8836 = vcombine.low %v8778, %v8779
      %v8837 = vcombine.low %v8781, %v8782
      %v8838 = vcombine.low %v8784, %v8785
      %v8839 = vcombine.low %v8787, %v8788
      %v8840 = vcombine.low %v8790, %v8791
      %v8851 = vrot.slane %v8831, 1
      %v8852 = vrot.slane %v8765, 1
      %v8853 = vsel %vm7047, %v8851, %v8852
      %v8854 = vrot.slane %v8832, 1
      %v8855 = vrot.slane %v8768, 1
      %v8856 = vsel %vm7047, %v8854, %v8855
      %v8857 = vrot.slane %v8833, 1
      %v8858 = vrot.slane %v8771, 1
      %v8859 = vsel %vm7047, %v8857, %v8858
      %v8860 = vrot.slane %v8834, 1
      %v8861 = vrot.slane %v8774, 1
      %v8862 = vsel %vm7047, %v8860, %v8861
      %v8863 = vrot.slane %v8835, 1
      %v8864 = vrot.slane %v8777, 1
      %v8865 = vsel %vm7047, %v8863, %v8864
      %v8866 = vrot.slane %v8836, 1
      %v8867 = vrot.slane %v8780, 1
      %v8868 = vsel %vm7047, %v8866, %v8867
      %v8869 = vrot.slane %v8837, 1
      %v8870 = vrot.slane %v8783, 1
      %v8871 = vsel %vm7047, %v8869, %v8870
      %v8872 = vrot.slane %v8838, 1
      %v8873 = vrot.slane %v8786, 1
      %v8874 = vsel %vm7047, %v8872, %v8873
      %v8875 = vrot.slane %v8839, 1
      %v8876 = vrot.slane %v8789, 1
      %v8877 = vsel %vm7047, %v8875, %v8876
      %v8878 = vrot.slane %v8840, 1
      %v8879 = vrot.slane %v8792, 1
      %v8880 = vsel %vm7047, %v8878, %v8879
      %8881 = vrot.lane.b32.xlu0 %v8853, 64
      %v8882 = vpop.permute.xlu0 %8881
      %8883 = vrot.lane.b32.xlu0 %v8852, 64
      %v8884 = vpop.permute.xlu0 %8883
      %8885 = vrot.lane.b32.xlu0 %v8856, 64
      %v8886 = vpop.permute.xlu0 %8885
      %8887 = vrot.lane.b32.xlu0 %v8855, 64
      %v8888 = vpop.permute.xlu0 %8887
      %8889 = vrot.lane.b32.xlu0 %v8859, 64
      %v8890 = vpop.permute.xlu0 %8889
      %8891 = vrot.lane.b32.xlu0 %v8858, 64
      %v8892 = vpop.permute.xlu0 %8891
      %8893 = vrot.lane.b32.xlu0 %v8862, 64
      %v8894 = vpop.permute.xlu0 %8893
      %8895 = vrot.lane.b32.xlu0 %v8861, 64
      %v8896 = vpop.permute.xlu0 %8895
      %8897 = vrot.lane.b32.xlu0 %v8865, 64
      %v8898 = vpop.permute.xlu0 %8897
      %8899 = vrot.lane.b32.xlu0 %v8864, 64
      %v8900 = vpop.permute.xlu0 %8899
      %8901 = vrot.lane.b32.xlu0 %v8868, 64
      %v8902 = vpop.permute.xlu0 %8901
      %8903 = vrot.lane.b32.xlu0 %v8867, 64
      %v8904 = vpop.permute.xlu0 %8903
      %8905 = vrot.lane.b32.xlu0 %v8871, 64
      %v8906 = vpop.permute.xlu0 %8905
      %8907 = vrot.lane.b32.xlu0 %v8870, 64
      %v8908 = vpop.permute.xlu0 %8907
      %8909 = vrot.lane.b32.xlu0 %v8874, 64
      %v8910 = vpop.permute.xlu0 %8909
      %8911 = vrot.lane.b32.xlu0 %v8873, 64
      %v8912 = vpop.permute.xlu0 %8911
      %8913 = vrot.lane.b32.xlu0 %v8877, 64
      %v8914 = vpop.permute.xlu0 %8913
      %8915 = vrot.lane.b32.xlu0 %v8876, 64
      %v8916 = vpop.permute.xlu0 %8915
      %8917 = vrot.lane.b32.xlu0 %v8880, 64
      %v8918 = vpop.permute.xlu0 %8917
      %8919 = vrot.lane.b32.xlu0 %v8879, 64
      %v8920 = vpop.permute.xlu0 %8919
      %vm8941 = vcmask 1045504
      %v8942 = vrot.slane %v8831, 2
      %v8943 = vrot.slane %v8765, 2
      %v8944 = vsel %vm8941, %v8942, %v8943
      %v8945 = vrot.slane %v8832, 2
      %v8946 = vrot.slane %v8768, 2
      %v8947 = vsel %vm8941, %v8945, %v8946
      %v8948 = vrot.slane %v8833, 2
      %v8949 = vrot.slane %v8771, 2
      %v8950 = vsel %vm8941, %v8948, %v8949
      %v8951 = vrot.slane %v8834, 2
      %v8952 = vrot.slane %v8774, 2
      %v8953 = vsel %vm8941, %v8951, %v8952
      %v8954 = vrot.slane %v8835, 2
      %v8955 = vrot.slane %v8777, 2
      %v8956 = vsel %vm8941, %v8954, %v8955
      %v8957 = vrot.slane %v8836, 2
      %v8958 = vrot.slane %v8780, 2
      %v8959 = vsel %vm8941, %v8957, %v8958
      %v8960 = vrot.slane %v8837, 2
      %v8961 = vrot.slane %v8783, 2
      %v8962 = vsel %vm8941, %v8960, %v8961
      %v8963 = vrot.slane %v8838, 2
      %v8964 = vrot.slane %v8786, 2
      %v8965 = vsel %vm8941, %v8963, %v8964
      %v8966 = vrot.slane %v8839, 2
      %v8967 = vrot.slane %v8789, 2
      %v8968 = vsel %vm8941, %v8966, %v8967
      %v8969 = vrot.slane %v8840, 2
      %v8970 = vrot.slane %v8792, 2
      %v8971 = vsel %vm8941, %v8969, %v8970
      %v8972 = vsel %vm7456, %v8831, %v8882
      %v8973 = vsel %vm7456, %v8765, %v8884
      %v8974 = vsel %vm7456, %v8832, %v8886
      %v8975 = vsel %vm7456, %v8768, %v8888
      %v8976 = vsel %vm7456, %v8833, %v8890
      %v8977 = vsel %vm7456, %v8771, %v8892
      %v8978 = vsel %vm7456, %v8834, %v8894
      %v8979 = vsel %vm7456, %v8774, %v8896
      %v8980 = vsel %vm7456, %v8835, %v8898
      %v8981 = vsel %vm7456, %v8777, %v8900
      %v8982 = vsel %vm7456, %v8836, %v8902
      %v8983 = vsel %vm7456, %v8780, %v8904
      %v8984 = vsel %vm7456, %v8837, %v8906
      %v8985 = vsel %vm7456, %v8783, %v8908
      %v8986 = vsel %vm7456, %v8838, %v8910
      %v8987 = vsel %vm7456, %v8786, %v8912
      %v8988 = vsel %vm7456, %v8839, %v8914
      %v8989 = vsel %vm7456, %v8789, %v8916
      %v8990 = vsel %vm7456, %v8840, %v8918
      %v8991 = vsel %vm7456, %v8792, %v8920
      %v9012 = vcombine.low %v8972, %v8944
      %v9013 = vcombine.high %v8972, %v8944
      %v9015 = vunpack.c.l.s4 1983009808
      %v9016 = vunpack.c.0.s8 %v9015
      %v9017 = vlaneseq
      %v9018 = vshrl.u32 %v9017, 7
      %v9019 = vsub.s32 %v9016, %v9018
      %v9020 = vrot.slane %v9012, %v9019
      %v9022 = vunpack.c.l.s4 1983009808
      %v9023 = vunpack.c.0.s8 %v9022
      %v9024 = vlaneseq
      %v9025 = vshrl.u32 %v9024, 7
      %v9026 = vsub.s32 %v9023, %v9025
      %v9027 = vrot.slane %v9013, %v9026
      %v9028 = vcombine.high %v9020, %v9020
      %v9029 = vcombine.high %v9027, %v9027
      %v9030 = vcombine.low %v8973, %v8943
      %v9032 = vunpack.c.l.s4 1983009808
      %v9033 = vunpack.c.0.s8 %v9032
      %v9034 = vlaneseq
      %v9035 = vshrl.u32 %v9034, 7
      %v9036 = vsub.s32 %v9033, %v9035
      %v9037 = vrot.slane %v9030, %v9036
      %v9038 = vcombine.low %v8974, %v8947
      %v9039 = vcombine.high %v8974, %v8947
      %v9041 = vunpack.c.l.s4 1983009808
      %v9042 = vunpack.c.0.s8 %v9041
      %v9043 = vlaneseq
      %v9044 = vshrl.u32 %v9043, 7
      %v9045 = vsub.s32 %v9042, %v9044
      %v9046 = vrot.slane %v9038, %v9045
      %v9048 = vunpack.c.l.s4 1983009808
      %v9049 = vunpack.c.0.s8 %v9048
      %v9050 = vlaneseq
      %v9051 = vshrl.u32 %v9050, 7
      %v9052 = vsub.s32 %v9049, %v9051
      %v9053 = vrot.slane %v9039, %v9052
      %v9054 = vcombine.high %v9046, %v9046
      %v9055 = vcombine.high %v9053, %v9053
      %v9056 = vcombine.low %v8975, %v8946
      %v9058 = vunpack.c.l.s4 1983009808
      %v9059 = vunpack.c.0.s8 %v9058
      %v9060 = vlaneseq
      %v9061 = vshrl.u32 %v9060, 7
      %v9062 = vsub.s32 %v9059, %v9061
      %v9063 = vrot.slane %v9056, %v9062
      %v9064 = vcombine.low %v8976, %v8950
      %v9065 = vcombine.high %v8976, %v8950
      %v9067 = vunpack.c.l.s4 1983009808
      %v9068 = vunpack.c.0.s8 %v9067
      %v9069 = vlaneseq
      %v9070 = vshrl.u32 %v9069, 7
      %v9071 = vsub.s32 %v9068, %v9070
      %v9072 = vrot.slane %v9064, %v9071
      %v9074 = vunpack.c.l.s4 1983009808
      %v9075 = vunpack.c.0.s8 %v9074
      %v9076 = vlaneseq
      %v9077 = vshrl.u32 %v9076, 7
      %v9078 = vsub.s32 %v9075, %v9077
      %v9079 = vrot.slane %v9065, %v9078
      %v9080 = vcombine.high %v9072, %v9072
      %v9081 = vcombine.high %v9079, %v9079
      %v9082 = vcombine.low %v8977, %v8949
      %v9084 = vunpack.c.l.s4 1983009808
      %v9085 = vunpack.c.0.s8 %v9084
      %v9086 = vlaneseq
      %v9087 = vshrl.u32 %v9086, 7
      %v9088 = vsub.s32 %v9085, %v9087
      %v9089 = vrot.slane %v9082, %v9088
      %v9090 = vcombine.low %v8978, %v8953
      %v9091 = vcombine.high %v8978, %v8953
      %v9093 = vunpack.c.l.s4 1983009808
      %v9094 = vunpack.c.0.s8 %v9093
      %v9095 = vlaneseq
      %v9096 = vshrl.u32 %v9095, 7
      %v9097 = vsub.s32 %v9094, %v9096
      %v9098 = vrot.slane %v9090, %v9097
      %v9100 = vunpack.c.l.s4 1983009808
      %v9101 = vunpack.c.0.s8 %v9100
      %v9102 = vlaneseq
      %v9103 = vshrl.u32 %v9102, 7
      %v9104 = vsub.s32 %v9101, %v9103
      %v9105 = vrot.slane %v9091, %v9104
      %v9106 = vcombine.high %v9098, %v9098
      %v9107 = vcombine.high %v9105, %v9105
      %v9108 = vcombine.low %v8979, %v8952
      %v9110 = vunpack.c.l.s4 1983009808
      %v9111 = vunpack.c.0.s8 %v9110
      %v9112 = vlaneseq
      %v9113 = vshrl.u32 %v9112, 7
      %v9114 = vsub.s32 %v9111, %v9113
      %v9115 = vrot.slane %v9108, %v9114
      %v9116 = vcombine.low %v8980, %v8956
      %v9117 = vcombine.high %v8980, %v8956
      %v9119 = vunpack.c.l.s4 1983009808
      %v9120 = vunpack.c.0.s8 %v9119
      %v9121 = vlaneseq
      %v9122 = vshrl.u32 %v9121, 7
      %v9123 = vsub.s32 %v9120, %v9122
      %v9124 = vrot.slane %v9116, %v9123
      %v9126 = vunpack.c.l.s4 1983009808
      %v9127 = vunpack.c.0.s8 %v9126
      %v9128 = vlaneseq
      %v9129 = vshrl.u32 %v9128, 7
      %v9130 = vsub.s32 %v9127, %v9129
      %v9131 = vrot.slane %v9117, %v9130
      %v9132 = vcombine.high %v9124, %v9124
      %v9133 = vcombine.high %v9131, %v9131
      %v9134 = vcombine.low %v8981, %v8955
      %v9136 = vunpack.c.l.s4 1983009808
      %v9137 = vunpack.c.0.s8 %v9136
      %v9138 = vlaneseq
      %v9139 = vshrl.u32 %v9138, 7
      %v9140 = vsub.s32 %v9137, %v9139
      %v9141 = vrot.slane %v9134, %v9140
      %v9142 = vcombine.low %v8982, %v8959
      %v9143 = vcombine.high %v8982, %v8959
      %v9145 = vunpack.c.l.s4 1983009808
      %v9146 = vunpack.c.0.s8 %v9145
      %v9147 = vlaneseq
      %v9148 = vshrl.u32 %v9147, 7
      %v9149 = vsub.s32 %v9146, %v9148
      %v9150 = vrot.slane %v9142, %v9149
      %v9152 = vunpack.c.l.s4 1983009808
      %v9153 = vunpack.c.0.s8 %v9152
      %v9154 = vlaneseq
      %v9155 = vshrl.u32 %v9154, 7
      %v9156 = vsub.s32 %v9153, %v9155
      %v9157 = vrot.slane %v9143, %v9156
      %v9158 = vcombine.high %v9150, %v9150
      %v9159 = vcombine.high %v9157, %v9157
      %v9160 = vcombine.low %v8983, %v8958
      %v9162 = vunpack.c.l.s4 1983009808
      %v9163 = vunpack.c.0.s8 %v9162
      %v9164 = vlaneseq
      %v9165 = vshrl.u32 %v9164, 7
      %v9166 = vsub.s32 %v9163, %v9165
      %v9167 = vrot.slane %v9160, %v9166
      %v9168 = vcombine.low %v8984, %v8962
      %v9169 = vcombine.high %v8984, %v8962
      %v9171 = vunpack.c.l.s4 1983009808
      %v9172 = vunpack.c.0.s8 %v9171
      %v9173 = vlaneseq
      %v9174 = vshrl.u32 %v9173, 7
      %v9175 = vsub.s32 %v9172, %v9174
      %v9176 = vrot.slane %v9168, %v9175
      %v9178 = vunpack.c.l.s4 1983009808
      %v9179 = vunpack.c.0.s8 %v9178
      %v9180 = vlaneseq
      %v9181 = vshrl.u32 %v9180, 7
      %v9182 = vsub.s32 %v9179, %v9181
      %v9183 = vrot.slane %v9169, %v9182
      %v9184 = vcombine.high %v9176, %v9176
      %v9185 = vcombine.high %v9183, %v9183
      %v9186 = vcombine.low %v8985, %v8961
      %v9188 = vunpack.c.l.s4 1983009808
      %v9189 = vunpack.c.0.s8 %v9188
      %v9190 = vlaneseq
      %v9191 = vshrl.u32 %v9190, 7
      %v9192 = vsub.s32 %v9189, %v9191
      %v9193 = vrot.slane %v9186, %v9192
      %v9194 = vcombine.low %v8986, %v8965
      %v9195 = vcombine.high %v8986, %v8965
      %v9197 = vunpack.c.l.s4 1983009808
      %v9198 = vunpack.c.0.s8 %v9197
      %v9199 = vlaneseq
      %v9200 = vshrl.u32 %v9199, 7
      %v9201 = vsub.s32 %v9198, %v9200
      %v9202 = vrot.slane %v9194, %v9201
      %v9204 = vunpack.c.l.s4 1983009808
      %v9205 = vunpack.c.0.s8 %v9204
      %v9206 = vlaneseq
      %v9207 = vshrl.u32 %v9206, 7
      %v9208 = vsub.s32 %v9205, %v9207
      %v9209 = vrot.slane %v9195, %v9208
      %v9210 = vcombine.high %v9202, %v9202
      %v9211 = vcombine.high %v9209, %v9209
      %v9212 = vcombine.low %v8987, %v8964
      %v9214 = vunpack.c.l.s4 1983009808
      %v9215 = vunpack.c.0.s8 %v9214
      %v9216 = vlaneseq
      %v9217 = vshrl.u32 %v9216, 7
      %v9218 = vsub.s32 %v9215, %v9217
      %v9219 = vrot.slane %v9212, %v9218
      %v9220 = vcombine.low %v8988, %v8968
      %v9221 = vcombine.high %v8988, %v8968
      %v9223 = vunpack.c.l.s4 1983009808
      %v9224 = vunpack.c.0.s8 %v9223
      %v9225 = vlaneseq
      %v9226 = vshrl.u32 %v9225, 7
      %v9227 = vsub.s32 %v9224, %v9226
      %v9228 = vrot.slane %v9220, %v9227
      %v9230 = vunpack.c.l.s4 1983009808
      %v9231 = vunpack.c.0.s8 %v9230
      %v9232 = vlaneseq
      %v9233 = vshrl.u32 %v9232, 7
      %v9234 = vsub.s32 %v9231, %v9233
      %v9235 = vrot.slane %v9221, %v9234
      %v9236 = vcombine.high %v9228, %v9228
      %v9237 = vcombine.high %v9235, %v9235
      %v9238 = vcombine.low %v8989, %v8967
      %v9240 = vunpack.c.l.s4 1983009808
      %v9241 = vunpack.c.0.s8 %v9240
      %v9242 = vlaneseq
      %v9243 = vshrl.u32 %v9242, 7
      %v9244 = vsub.s32 %v9241, %v9243
      %v9245 = vrot.slane %v9238, %v9244
      %v9246 = vcombine.low %v8990, %v8971
      %v9247 = vcombine.high %v8990, %v8971
      %v9249 = vunpack.c.l.s4 1983009808
      %v9250 = vunpack.c.0.s8 %v9249
      %v9251 = vlaneseq
      %v9252 = vshrl.u32 %v9251, 7
      %v9253 = vsub.s32 %v9250, %v9252
      %v9254 = vrot.slane %v9246, %v9253
      %v9256 = vunpack.c.l.s4 1983009808
      %v9257 = vunpack.c.0.s8 %v9256
      %v9258 = vlaneseq
      %v9259 = vshrl.u32 %v9258, 7
      %v9260 = vsub.s32 %v9257, %v9259
      %v9261 = vrot.slane %v9247, %v9260
      %v9262 = vcombine.high %v9254, %v9254
      %v9263 = vcombine.high %v9261, %v9261
      %v9264 = vcombine.low %v8991, %v8970
      %v9266 = vunpack.c.l.s4 1983009808
      %v9267 = vunpack.c.0.s8 %v9266
      %v9268 = vlaneseq
      %v9269 = vshrl.u32 %v9268, 7
      %v9270 = vsub.s32 %v9267, %v9269
      %v9271 = vrot.slane %v9264, %v9270
      %v9272 = vcombine.low %v9020, %v9028
      %v9273 = vcombine.low %v9027, %v9029
      %v9275 = vunpack.c.l.s4 1983009808
      %v9276 = vunpack.c.0.s8 %v9275
      %v9277 = vlaneseq
      %v9278 = vshrl.u32 %v9277, 7
      %v9279 = vsub.s32 %v9276, %v9278
      %v9280 = vrot.slane %v9272, %v9279
      %v9282 = vunpack.c.l.s4 1983009808
      %v9283 = vunpack.c.0.s8 %v9282
      %v9284 = vlaneseq
      %v9285 = vshrl.u32 %v9284, 7
      %v9286 = vsub.s32 %v9283, %v9285
      %v9287 = vrot.slane %v9273, %v9286
      %v9288 = vcombine.low %v9280, %v9287
      %v9289 = vcombine.high %v9280, %v9287
      %v9290 = vcombine.low %v9037, %v9046
      %v9291 = vcombine.low %v9054, %v9053
      %v9293 = vunpack.c.l.s4 1983009808
      %v9294 = vunpack.c.0.s8 %v9293
      %v9295 = vlaneseq
      %v9296 = vshrl.u32 %v9295, 7
      %v9297 = vsub.s32 %v9294, %v9296
      %v9298 = vrot.slane %v9290, %v9297
      %v9300 = vunpack.c.l.s4 1983009808
      %v9301 = vunpack.c.0.s8 %v9300
      %v9302 = vlaneseq
      %v9303 = vshrl.u32 %v9302, 7
      %v9304 = vsub.s32 %v9301, %v9303
      %v9305 = vrot.slane %v9291, %v9304
      %v9306 = vcombine.low %v9298, %v9305
      %v9307 = vcombine.high %v9298, %v9305
      %v9308 = vcombine.low %v9055, %v9063
      %v9309 = vcombine.low %v9072, %v9080
      %v9311 = vunpack.c.l.s4 1983009808
      %v9312 = vunpack.c.0.s8 %v9311
      %v9313 = vlaneseq
      %v9314 = vshrl.u32 %v9313, 7
      %v9315 = vsub.s32 %v9312, %v9314
      %v9316 = vrot.slane %v9308, %v9315
      %v9318 = vunpack.c.l.s4 1983009808
      %v9319 = vunpack.c.0.s8 %v9318
      %v9320 = vlaneseq
      %v9321 = vshrl.u32 %v9320, 7
      %v9322 = vsub.s32 %v9319, %v9321
      %v9323 = vrot.slane %v9309, %v9322
      %v9324 = vcombine.low %v9316, %v9323
      %v9325 = vcombine.high %v9316, %v9323
      %v9326 = vcombine.low %v9079, %v9081
      %v9327 = vcombine.low %v9089, %v9098
      %v9329 = vunpack.c.l.s4 1983009808
      %v9330 = vunpack.c.0.s8 %v9329
      %v9331 = vlaneseq
      %v9332 = vshrl.u32 %v9331, 7
      %v9333 = vsub.s32 %v9330, %v9332
      %v9334 = vrot.slane %v9326, %v9333
      %v9336 = vunpack.c.l.s4 1983009808
      %v9337 = vunpack.c.0.s8 %v9336
      %v9338 = vlaneseq
      %v9339 = vshrl.u32 %v9338, 7
      %v9340 = vsub.s32 %v9337, %v9339
      %v9341 = vrot.slane %v9327, %v9340
      %v9342 = vcombine.low %v9334, %v9341
      %v9343 = vcombine.high %v9334, %v9341
      %v9344 = vcombine.low %v9106, %v9105
      %v9345 = vcombine.low %v9107, %v9115
      %v9347 = vunpack.c.l.s4 1983009808
      %v9348 = vunpack.c.0.s8 %v9347
      %v9349 = vlaneseq
      %v9350 = vshrl.u32 %v9349, 7
      %v9351 = vsub.s32 %v9348, %v9350
      %v9352 = vrot.slane %v9344, %v9351
      %v9354 = vunpack.c.l.s4 1983009808
      %v9355 = vunpack.c.0.s8 %v9354
      %v9356 = vlaneseq
      %v9357 = vshrl.u32 %v9356, 7
      %v9358 = vsub.s32 %v9355, %v9357
      %v9359 = vrot.slane %v9345, %v9358
      %v9360 = vcombine.low %v9352, %v9359
      %v9361 = vcombine.high %v9352, %v9359
      %v9362 = vcombine.low %v9124, %v9132
      %v9363 = vcombine.low %v9131, %v9133
      %v9365 = vunpack.c.l.s4 1983009808
      %v9366 = vunpack.c.0.s8 %v9365
      %v9367 = vlaneseq
      %v9368 = vshrl.u32 %v9367, 7
      %v9369 = vsub.s32 %v9366, %v9368
      %v9370 = vrot.slane %v9362, %v9369
      %v9372 = vunpack.c.l.s4 1983009808
      %v9373 = vunpack.c.0.s8 %v9372
      %v9374 = vlaneseq
      %v9375 = vshrl.u32 %v9374, 7
      %v9376 = vsub.s32 %v9373, %v9375
      %v9377 = vrot.slane %v9363, %v9376
      %v9378 = vcombine.low %v9370, %v9377
      %v9379 = vcombine.high %v9370, %v9377
      %v9380 = vcombine.low %v9141, %v9150
      %v9381 = vcombine.low %v9158, %v9157
      %v9383 = vunpack.c.l.s4 1983009808
      %v9384 = vunpack.c.0.s8 %v9383
      %v9385 = vlaneseq
      %v9386 = vshrl.u32 %v9385, 7
      %v9387 = vsub.s32 %v9384, %v9386
      %v9388 = vrot.slane %v9380, %v9387
      %v9390 = vunpack.c.l.s4 1983009808
      %v9391 = vunpack.c.0.s8 %v9390
      %v9392 = vlaneseq
      %v9393 = vshrl.u32 %v9392, 7
      %v9394 = vsub.s32 %v9391, %v9393
      %v9395 = vrot.slane %v9381, %v9394
      %v9396 = vcombine.low %v9388, %v9395
      %v9397 = vcombine.high %v9388, %v9395
      %v9398 = vcombine.low %v9159, %v9167
      %v9399 = vcombine.low %v9176, %v9184
      %v9401 = vunpack.c.l.s4 1983009808
      %v9402 = vunpack.c.0.s8 %v9401
      %v9403 = vlaneseq
      %v9404 = vshrl.u32 %v9403, 7
      %v9405 = vsub.s32 %v9402, %v9404
      %v9406 = vrot.slane %v9398, %v9405
      %v9408 = vunpack.c.l.s4 1983009808
      %v9409 = vunpack.c.0.s8 %v9408
      %v9410 = vlaneseq
      %v9411 = vshrl.u32 %v9410, 7
      %v9412 = vsub.s32 %v9409, %v9411
      %v9413 = vrot.slane %v9399, %v9412
      %v9414 = vcombine.low %v9406, %v9413
      %v9415 = vcombine.high %v9406, %v9413
      %v9416 = vcombine.low %v9183, %v9185
      %v9417 = vcombine.low %v9193, %v9202
      %v9419 = vunpack.c.l.s4 1983009808
      %v9420 = vunpack.c.0.s8 %v9419
      %v9421 = vlaneseq
      %v9422 = vshrl.u32 %v9421, 7
      %v9423 = vsub.s32 %v9420, %v9422
      %v9424 = vrot.slane %v9416, %v9423
      %v9426 = vunpack.c.l.s4 1983009808
      %v9427 = vunpack.c.0.s8 %v9426
      %v9428 = vlaneseq
      %v9429 = vshrl.u32 %v9428, 7
      %v9430 = vsub.s32 %v9427, %v9429
      %v9431 = vrot.slane %v9417, %v9430
      %v9432 = vcombine.low %v9424, %v9431
      %v9433 = vcombine.high %v9424, %v9431
      %v9434 = vcombine.low %v9210, %v9209
      %v9435 = vcombine.low %v9211, %v9219
      %v9437 = vunpack.c.l.s4 1983009808
      %v9438 = vunpack.c.0.s8 %v9437
      %v9439 = vlaneseq
      %v9440 = vshrl.u32 %v9439, 7
      %v9441 = vsub.s32 %v9438, %v9440
      %v9442 = vrot.slane %v9434, %v9441
      %v9444 = vunpack.c.l.s4 1983009808
      %v9445 = vunpack.c.0.s8 %v9444
      %v9446 = vlaneseq
      %v9447 = vshrl.u32 %v9446, 7
      %v9448 = vsub.s32 %v9445, %v9447
      %v9449 = vrot.slane %v9435, %v9448
      %v9450 = vcombine.low %v9442, %v9449
      %v9451 = vcombine.high %v9442, %v9449
      %v9452 = vcombine.low %v9228, %v9236
      %v9453 = vcombine.low %v9235, %v9237
      %v9455 = vunpack.c.l.s4 1983009808
      %v9456 = vunpack.c.0.s8 %v9455
      %v9457 = vlaneseq
      %v9458 = vshrl.u32 %v9457, 7
      %v9459 = vsub.s32 %v9456, %v9458
      %v9460 = vrot.slane %v9452, %v9459
      %v9462 = vunpack.c.l.s4 1983009808
      %v9463 = vunpack.c.0.s8 %v9462
      %v9464 = vlaneseq
      %v9465 = vshrl.u32 %v9464, 7
      %v9466 = vsub.s32 %v9463, %v9465
      %v9467 = vrot.slane %v9453, %v9466
      %v9468 = vcombine.low %v9460, %v9467
      %v9469 = vcombine.high %v9460, %v9467
      %v9470 = vcombine.low %v9245, %v9254
      %v9471 = vcombine.low %v9262, %v9261
      %v9473 = vunpack.c.l.s4 1983009808
      %v9474 = vunpack.c.0.s8 %v9473
      %v9475 = vlaneseq
      %v9476 = vshrl.u32 %v9475, 7
      %v9477 = vsub.s32 %v9474, %v9476
      %v9478 = vrot.slane %v9470, %v9477
      %v9480 = vunpack.c.l.s4 1983009808
      %v9481 = vunpack.c.0.s8 %v9480
      %v9482 = vlaneseq
      %v9483 = vshrl.u32 %v9482, 7
      %v9484 = vsub.s32 %v9481, %v9483
      %v9485 = vrot.slane %v9471, %v9484
      %v9486 = vcombine.low %v9478, %v9485
      %v9487 = vcombine.high %v9478, %v9485
      %v9488 = vcombine.low %v9263, %v9271
      %v9490 = vunpack.c.l.s4 1983009808
      %v9491 = vunpack.c.0.s8 %v9490
      %v9492 = vlaneseq
      %v9493 = vshrl.u32 %v9492, 7
      %v9494 = vsub.s32 %v9491, %v9493
      %v9495 = vrot.slane %v9488, %v9494
      %v9496 = vcombine.high %v9495, %v9495
      %v9523 = vpack.c.bf16 %v9306, %v9288
      %v9524 = vpack.c.bf16 %v9307, %v9289
      %v9525 = vpack.c.bf16 %v9342, %v9324
      %v9526 = vpack.c.bf16 %v9343, %v9325
      %v9527 = vpack.c.bf16 %v9378, %v9360
      %v9528 = vpack.c.bf16 %v9379, %v9361
      %v9529 = vpack.c.bf16 %v9414, %v9396
      %v9530 = vpack.c.bf16 %v9415, %v9397
      %v9531 = vpack.c.bf16 %v9450, %v9432
      %v9532 = vpack.c.bf16 %v9451, %v9433
      %v9533 = vpack.c.bf16 %v9486, %v9468
      %v9534 = vpack.c.bf16 %v9487, %v9469
      %v9535 = vpack.c.bf16 %v9495, %v9495
      %v9536 = vpack.c.bf16 %v9496, %v9496
      %v9537 = vld [vmem:[%s7] sm:$0xf]
      %v9538 = vld [vmem:[%s7 + $0x4] sm:$0xf]
      %v9539 = vld [vmem:[%s7 + $0x8] sm:$0xf]
      %v9540 = vld [vmem:[%s7 + $0xc] sm:$0xf]
      %v9541 = vld [vmem:[%s7 + $0x10] sm:$0xf]
      %v9542 = vld [vmem:[%s7 + $0x14] sm:$0xf]
      %v9543 = vld [vmem:[%s7 + $0x18] sm:$0xf]
      %v9544 = vld [vmem:[%s7 + $0x1c] sm:$0xf]
      %v9545 = vld [vmem:[%s7 + $0x20] sm:$0xf]
      %v9546 = vld [vmem:[%s7 + $0x24] sm:$0xf]
      %v9547 = vld [vmem:[%s7 + $0x28] sm:$0xf]
      %v9548 = vld [vmem:[%s7 + $0x2c] sm:$0xf]
      %v9549 = vld [vmem:[%s7 + $0x30] sm:$0xf]
      %v9550 = vld [vmem:[%s7 + $0x34] sm:$0xf]
      %v9551 = vld [vmem:[%s7 + $0x38] sm:$0xf]
      %v9552 = vld [vmem:[%s7 + $0x3c] sm:$0xf]
      %v9553 = vld [vmem:[%s7 + $0x40] sm:$0xf]
      %v9554 = vld [vmem:[%s7 + $0x44] sm:$0xf]
      %v9555 = vld [vmem:[%s7 + $0x48] sm:$0xf]
      %v9556 = vld [vmem:[%s7 + $0x4c] sm:$0xf]
      %v9557 = vld [vmem:[%s7 + $0x50] sm:$0xf]
      %v9558 = vld [vmem:[%s7 + $0x54] sm:$0xf]
      %v9559 = vld [vmem:[%s7 + $0x58] sm:$0xf]
      %v9560 = vld [vmem:[%s7 + $0x5c] sm:$0xf]
      %v9564 = vcombine.low %v8793, %v8794
      %v9566 = vrot.slane %v9564, 1
      %v9567 = vrot.slane %v8795, 1
      %v9568 = vsel %vm7047, %v9566, %v9567
      %9569 = vrot.lane.b32.xlu0 %v9568, 64
      %v9570 = vpop.permute.xlu0 %9569
      %9571 = vrot.lane.b32.xlu0 %v9567, 64
      %v9572 = vpop.permute.xlu0 %9571
      %v9575 = vrot.slane %v9564, 2
      %v9576 = vrot.slane %v8795, 2
      %v9577 = vsel %vm8941, %v9575, %v9576
      %v9578 = vsel %vm7456, %v9564, %v9570
      %v9579 = vsel %vm7456, %v8795, %v9572
      %v9582 = vcombine.low %v9578, %v9577
      %v9583 = vcombine.high %v9578, %v9577
      %v9585 = vunpack.c.l.s4 1983009808
      %v9586 = vunpack.c.0.s8 %v9585
      %v9587 = vlaneseq
      %v9588 = vshrl.u32 %v9587, 7
      %v9589 = vsub.s32 %v9586, %v9588
      %v9590 = vrot.slane %v9582, %v9589
      %v9592 = vunpack.c.l.s4 1983009808
      %v9593 = vunpack.c.0.s8 %v9592
      %v9594 = vlaneseq
      %v9595 = vshrl.u32 %v9594, 7
      %v9596 = vsub.s32 %v9593, %v9595
      %v9597 = vrot.slane %v9583, %v9596
      %v9598 = vcombine.high %v9590, %v9590
      %v9599 = vcombine.high %v9597, %v9597
      %v9600 = vcombine.low %v9579, %v9576
      %v9602 = vunpack.c.l.s4 1983009808
      %v9603 = vunpack.c.0.s8 %v9602
      %v9604 = vlaneseq
      %v9605 = vshrl.u32 %v9604, 7
      %v9606 = vsub.s32 %v9603, %v9605
      %v9607 = vrot.slane %v9600, %v9606
      %v9608 = vcombine.low %v9046, %v9054
      %v9609 = vcombine.low %v9053, %v9055
      %v9611 = vunpack.c.l.s4 1983009808
      %v9612 = vunpack.c.0.s8 %v9611
      %v9613 = vlaneseq
      %v9614 = vshrl.u32 %v9613, 7
      %v9615 = vsub.s32 %v9612, %v9614
      %v9616 = vrot.slane %v9608, %v9615
      %v9618 = vunpack.c.l.s4 1983009808
      %v9619 = vunpack.c.0.s8 %v9618
      %v9620 = vlaneseq
      %v9621 = vshrl.u32 %v9620, 7
      %v9622 = vsub.s32 %v9619, %v9621
      %v9623 = vrot.slane %v9609, %v9622
      %v9624 = vcombine.low %v9616, %v9623
      %v9625 = vcombine.high %v9616, %v9623
      %v9626 = vcombine.low %v9063, %v9072
      %v9627 = vcombine.low %v9080, %v9079
      %v9629 = vunpack.c.l.s4 1983009808
      %v9630 = vunpack.c.0.s8 %v9629
      %v9631 = vlaneseq
      %v9632 = vshrl.u32 %v9631, 7
      %v9633 = vsub.s32 %v9630, %v9632
      %v9634 = vrot.slane %v9626, %v9633
      %v9636 = vunpack.c.l.s4 1983009808
      %v9637 = vunpack.c.0.s8 %v9636
      %v9638 = vlaneseq
      %v9639 = vshrl.u32 %v9638, 7
      %v9640 = vsub.s32 %v9637, %v9639
      %v9641 = vrot.slane %v9627, %v9640
      %v9642 = vcombine.low %v9634, %v9641
      %v9643 = vcombine.high %v9634, %v9641
      %v9644 = vcombine.low %v9081, %v9089
      %v9645 = vcombine.low %v9098, %v9106
      %v9647 = vunpack.c.l.s4 1983009808
      %v9648 = vunpack.c.0.s8 %v9647
      %v9649 = vlaneseq
      %v9650 = vshrl.u32 %v9649, 7
      %v9651 = vsub.s32 %v9648, %v9650
      %v9652 = vrot.slane %v9644, %v9651
      %v9654 = vunpack.c.l.s4 1983009808
      %v9655 = vunpack.c.0.s8 %v9654
      %v9656 = vlaneseq
      %v9657 = vshrl.u32 %v9656, 7
      %v9658 = vsub.s32 %v9655, %v9657
      %v9659 = vrot.slane %v9645, %v9658
      %v9660 = vcombine.low %v9652, %v9659
      %v9661 = vcombine.high %v9652, %v9659
      %v9662 = vcombine.low %v9105, %v9107
      %v9663 = vcombine.low %v9115, %v9124
      %v9665 = vunpack.c.l.s4 1983009808
      %v9666 = vunpack.c.0.s8 %v9665
      %v9667 = vlaneseq
      %v9668 = vshrl.u32 %v9667, 7
      %v9669 = vsub.s32 %v9666, %v9668
      %v9670 = vrot.slane %v9662, %v9669
      %v9672 = vunpack.c.l.s4 1983009808
      %v9673 = vunpack.c.0.s8 %v9672
      %v9674 = vlaneseq
      %v9675 = vshrl.u32 %v9674, 7
      %v9676 = vsub.s32 %v9673, %v9675
      %v9677 = vrot.slane %v9663, %v9676
      %v9678 = vcombine.low %v9670, %v9677
      %v9679 = vcombine.high %v9670, %v9677
      %v9680 = vcombine.low %v9132, %v9131
      %v9681 = vcombine.low %v9133, %v9141
      %v9683 = vunpack.c.l.s4 1983009808
      %v9684 = vunpack.c.0.s8 %v9683
      %v9685 = vlaneseq
      %v9686 = vshrl.u32 %v9685, 7
      %v9687 = vsub.s32 %v9684, %v9686
      %v9688 = vrot.slane %v9680, %v9687
      %v9690 = vunpack.c.l.s4 1983009808
      %v9691 = vunpack.c.0.s8 %v9690
      %v9692 = vlaneseq
      %v9693 = vshrl.u32 %v9692, 7
      %v9694 = vsub.s32 %v9691, %v9693
      %v9695 = vrot.slane %v9681, %v9694
      %v9696 = vcombine.low %v9688, %v9695
      %v9697 = vcombine.high %v9688, %v9695
      %v9698 = vcombine.low %v9150, %v9158
      %v9699 = vcombine.low %v9157, %v9159
      %v9701 = vunpack.c.l.s4 1983009808
      %v9702 = vunpack.c.0.s8 %v9701
      %v9703 = vlaneseq
      %v9704 = vshrl.u32 %v9703, 7
      %v9705 = vsub.s32 %v9702, %v9704
      %v9706 = vrot.slane %v9698, %v9705
      %v9708 = vunpack.c.l.s4 1983009808
      %v9709 = vunpack.c.0.s8 %v9708
      %v9710 = vlaneseq
      %v9711 = vshrl.u32 %v9710, 7
      %v9712 = vsub.s32 %v9709, %v9711
      %v9713 = vrot.slane %v9699, %v9712
      %v9714 = vcombine.low %v9706, %v9713
      %v9715 = vcombine.high %v9706, %v9713
      %v9716 = vcombine.low %v9167, %v9176
      %v9717 = vcombine.low %v9184, %v9183
      %v9719 = vunpack.c.l.s4 1983009808
      %v9720 = vunpack.c.0.s8 %v9719
      %v9721 = vlaneseq
      %v9722 = vshrl.u32 %v9721, 7
      %v9723 = vsub.s32 %v9720, %v9722
      %v9724 = vrot.slane %v9716, %v9723
      %v9726 = vunpack.c.l.s4 1983009808
      %v9727 = vunpack.c.0.s8 %v9726
      %v9728 = vlaneseq
      %v9729 = vshrl.u32 %v9728, 7
      %v9730 = vsub.s32 %v9727, %v9729
      %v9731 = vrot.slane %v9717, %v9730
      %v9732 = vcombine.low %v9724, %v9731
      %v9733 = vcombine.high %v9724, %v9731
      %v9734 = vcombine.low %v9185, %v9193
      %v9735 = vcombine.low %v9202, %v9210
      %v9737 = vunpack.c.l.s4 1983009808
      %v9738 = vunpack.c.0.s8 %v9737
      %v9739 = vlaneseq
      %v9740 = vshrl.u32 %v9739, 7
      %v9741 = vsub.s32 %v9738, %v9740
      %v9742 = vrot.slane %v9734, %v9741
      %v9744 = vunpack.c.l.s4 1983009808
      %v9745 = vunpack.c.0.s8 %v9744
      %v9746 = vlaneseq
      %v9747 = vshrl.u32 %v9746, 7
      %v9748 = vsub.s32 %v9745, %v9747
      %v9749 = vrot.slane %v9735, %v9748
      %v9750 = vcombine.low %v9742, %v9749
      %v9751 = vcombine.high %v9742, %v9749
      %v9752 = vcombine.low %v9209, %v9211
      %v9753 = vcombine.low %v9219, %v9228
      %v9755 = vunpack.c.l.s4 1983009808
      %v9756 = vunpack.c.0.s8 %v9755
      %v9757 = vlaneseq
      %v9758 = vshrl.u32 %v9757, 7
      %v9759 = vsub.s32 %v9756, %v9758
      %v9760 = vrot.slane %v9752, %v9759
      %v9762 = vunpack.c.l.s4 1983009808
      %v9763 = vunpack.c.0.s8 %v9762
      %v9764 = vlaneseq
      %v9765 = vshrl.u32 %v9764, 7
      %v9766 = vsub.s32 %v9763, %v9765
      %v9767 = vrot.slane %v9753, %v9766
      %v9768 = vcombine.low %v9760, %v9767
      %v9769 = vcombine.high %v9760, %v9767
      %v9770 = vcombine.low %v9236, %v9235
      %v9771 = vcombine.low %v9237, %v9245
      %v9773 = vunpack.c.l.s4 1983009808
      %v9774 = vunpack.c.0.s8 %v9773
      %v9775 = vlaneseq
      %v9776 = vshrl.u32 %v9775, 7
      %v9777 = vsub.s32 %v9774, %v9776
      %v9778 = vrot.slane %v9770, %v9777
      %v9780 = vunpack.c.l.s4 1983009808
      %v9781 = vunpack.c.0.s8 %v9780
      %v9782 = vlaneseq
      %v9783 = vshrl.u32 %v9782, 7
      %v9784 = vsub.s32 %v9781, %v9783
      %v9785 = vrot.slane %v9771, %v9784
      %v9786 = vcombine.low %v9778, %v9785
      %v9787 = vcombine.high %v9778, %v9785
      %v9788 = vcombine.low %v9254, %v9262
      %v9789 = vcombine.low %v9261, %v9263
      %v9791 = vunpack.c.l.s4 1983009808
      %v9792 = vunpack.c.0.s8 %v9791
      %v9793 = vlaneseq
      %v9794 = vshrl.u32 %v9793, 7
      %v9795 = vsub.s32 %v9792, %v9794
      %v9796 = vrot.slane %v9788, %v9795
      %v9798 = vunpack.c.l.s4 1983009808
      %v9799 = vunpack.c.0.s8 %v9798
      %v9800 = vlaneseq
      %v9801 = vshrl.u32 %v9800, 7
      %v9802 = vsub.s32 %v9799, %v9801
      %v9803 = vrot.slane %v9789, %v9802
      %v9804 = vcombine.low %v9796, %v9803
      %v9805 = vcombine.high %v9796, %v9803
      %v9806 = vcombine.low %v9271, %v9590
      %v9807 = vcombine.low %v9598, %v9597
      %v9809 = vunpack.c.l.s4 1983009808
      %v9810 = vunpack.c.0.s8 %v9809
      %v9811 = vlaneseq
      %v9812 = vshrl.u32 %v9811, 7
      %v9813 = vsub.s32 %v9810, %v9812
      %v9814 = vrot.slane %v9806, %v9813
      %v9816 = vunpack.c.l.s4 1983009808
      %v9817 = vunpack.c.0.s8 %v9816
      %v9818 = vlaneseq
      %v9819 = vshrl.u32 %v9818, 7
      %v9820 = vsub.s32 %v9817, %v9819
      %v9821 = vrot.slane %v9807, %v9820
      %v9822 = vcombine.low %v9814, %v9821
      %v9823 = vcombine.high %v9814, %v9821
      %v9824 = vcombine.low %v9599, %v9607
      %v9826 = vunpack.c.l.s4 1983009808
      %v9827 = vunpack.c.0.s8 %v9826
      %v9828 = vlaneseq
      %v9829 = vshrl.u32 %v9828, 7
      %v9830 = vsub.s32 %v9827, %v9829
      %v9831 = vrot.slane %v9824, %v9830
      %v9832 = vcombine.high %v9831, %v9831
      %v9859 = vpack.c.bf16 %v9642, %v9624
      %v9860 = vpack.c.bf16 %v9643, %v9625
      %v9861 = vpack.c.bf16 %v9678, %v9660
      %v9862 = vpack.c.bf16 %v9679, %v9661
      %v9863 = vpack.c.bf16 %v9714, %v9696
      %v9864 = vpack.c.bf16 %v9715, %v9697
      %v9865 = vpack.c.bf16 %v9750, %v9732
      %v9866 = vpack.c.bf16 %v9751, %v9733
      %v9867 = vpack.c.bf16 %v9786, %v9768
      %v9868 = vpack.c.bf16 %v9787, %v9769
      %v9869 = vpack.c.bf16 %v9822, %v9804
      %v9870 = vpack.c.bf16 %v9823, %v9805
      %v9871 = vpack.c.bf16 %v9831, %v9831
      %v9872 = vpack.c.bf16 %v9832, %v9832
      %s9873 = scalar_lea.vmem %s7, 96
      %v9874 = vld [vmem:[%s9873] sm:$0xf]
      %v9875 = vld [vmem:[%s9873 + $0x4] sm:$0xf]
      %v9876 = vld [vmem:[%s9873 + $0x8] sm:$0xf]
      %v9877 = vld [vmem:[%s9873 + $0xc] sm:$0xf]
      %v9878 = vld [vmem:[%s9873 + $0x10] sm:$0xf]
      %v9879 = vld [vmem:[%s9873 + $0x14] sm:$0xf]
      %v9880 = vld [vmem:[%s9873 + $0x18] sm:$0xf]
      %v9881 = vld [vmem:[%s9873 + $0x1c] sm:$0xf]
      %v9882 = vld [vmem:[%s9873 + $0x20] sm:$0xf]
      %v9883 = vld [vmem:[%s9873 + $0x24] sm:$0xf]
      %v9884 = vld [vmem:[%s9873 + $0x28] sm:$0xf]
      %v9885 = vld [vmem:[%s9873 + $0x2c] sm:$0xf]
      %v9886 = vld [vmem:[%s9873 + $0x30] sm:$0xf]
      %v9887 = vld [vmem:[%s9873 + $0x34] sm:$0xf]
      %v9888 = vld [vmem:[%s9873 + $0x38] sm:$0xf]
      %v9889 = vld [vmem:[%s9873 + $0x3c] sm:$0xf]
      %v9890 = vld [vmem:[%s9873 + $0x40] sm:$0xf]
      %v9891 = vld [vmem:[%s9873 + $0x44] sm:$0xf]
      %v9892 = vld [vmem:[%s9873 + $0x48] sm:$0xf]
      %v9893 = vld [vmem:[%s9873 + $0x4c] sm:$0xf]
      %v9894 = vld [vmem:[%s9873 + $0x50] sm:$0xf]
      %v9895 = vld [vmem:[%s9873 + $0x54] sm:$0xf]
      %v9896 = vld [vmem:[%s9873 + $0x58] sm:$0xf]
      %v9897 = vld [vmem:[%s9873 + $0x5c] sm:$0xf]
      %v9922 = vunpack.c.l.b16 %v9874
      %v9923 = vunpack.c.l.b16 %v9875
      %v9924 = vunpack.c.l.b16 %v9876
      %v9925 = vunpack.c.l.b16 %v9877
      %v9926 = vunpack.c.l.b16 %v9878
      %v9927 = vunpack.c.l.b16 %v9879
      %v9928 = vunpack.c.l.b16 %v9880
      %v9929 = vunpack.c.l.b16 %v9881
      %v9930 = vunpack.c.l.b16 %v9882
      %v9931 = vunpack.c.l.b16 %v9883
      %v9932 = vunpack.c.l.b16 %v9884
      %v9933 = vunpack.c.l.b16 %v9885
      %v9934 = vunpack.c.l.b16 %v9886
      %v9935 = vunpack.c.l.b16 %v9887
      %v9936 = vunpack.c.l.b16 %v9888
      %v9937 = vunpack.c.l.b16 %v9889
      %v9938 = vunpack.c.l.b16 %v9890
      %v9939 = vunpack.c.l.b16 %v9891
      %v9940 = vunpack.c.l.b16 %v9892
      %v9941 = vunpack.c.l.b16 %v9893
      %v9942 = vunpack.c.l.b16 %v9894
      %v9943 = vunpack.c.l.b16 %v9895
      %v9944 = vunpack.c.l.b16 %v9896
      %v9945 = vunpack.c.l.b16 %v9897
      %v9946 = vpack.c.b16 %v9923, %v9922
      %v9947 = vpack.c.b16 %v9925, %v9924
      %v9948 = vpack.c.b16 %v9927, %v9926
      %v9949 = vpack.c.b16 %v9929, %v9928
      %v9950 = vpack.c.b16 %v9931, %v9930
      %v9951 = vpack.c.b16 %v9933, %v9932
      %v9952 = vpack.c.b16 %v9935, %v9934
      %v9953 = vpack.c.b16 %v9937, %v9936
      %v9954 = vpack.c.b16 %v9939, %v9938
      %v9955 = vpack.c.b16 %v9941, %v9940
      %v9956 = vpack.c.b16 %v9943, %v9942
      %v9957 = vpack.c.b16 %v9945, %v9944
      %v9971 = vsel %vm7456, %v9860, 0
      %v9974 = vsel %vm7456, %v9862, 0
      %v9977 = vsel %vm7456, %v9864, 0
      %v9980 = vsel %vm7456, %v9866, 0
      %v9983 = vsel %vm7456, %v9868, 0
      %v9986 = vsel %vm7456, %v9870, 0
      %v9989 = vsel %vm7456, %v9872, 0
      %9991 = vmatprep.subr.bf16.mxu0 0
      %9992 = vmatpush1.bf16.msra.mxu0 %v9953
      %9993 = vmatprep.subr.bf16.mxu0 0
      %9994 = vmatpush1.bf16.msra.mxu0 %v9952
      %9995 = vmatprep.subr.bf16.mxu0 0
      %9996 = vmatpush1.bf16.msra.mxu0 %v9951
      %9997 = vmatprep.subr.bf16.mxu0 0
      %9998 = vmatpush1.bf16.msra.mxu0 %v9950
      %9999 = vmatprep.subr.bf16.mxu0 0
      %10000 = vmatpush1.bf16.msra.mxu0 %v9949
      %10001 = vmatprep.subr.bf16.mxu0 0
      %10002 = vmatpush1.bf16.msra.mxu0 %v9948
      %10003 = vmatprep.subr.bf16.mxu0 0
      %10004 = vmatpush1.bf16.msra.mxu0 %v9947
      %10005 = vmatprep.subr.bf16.mxu0 0
      %10006 = vmatpush1.bf16.msra.mxu0 %v9946
      %10007 = vmatprep.subr.bf16.mxu0 0
      %10008 = vmatpush2.bf16.msra.mxu0 0
      %10009 = vmatprep.subr.bf16.mxu0 0
      %10010 = vmatpush2.bf16.msra.mxu0 0
      %10011 = vmatprep.subr.bf16.mxu0 0
      %10012 = vmatpush2.bf16.msra.mxu0 0
      %10013 = vmatprep.subr.bf16.mxu0 0
      %10014 = vmatpush2.bf16.msra.mxu0 0
      %10015 = vmatprep.subr.bf16.mxu0 0
      %10016 = vmatpush2.bf16.msra.mxu0 %v9957
      %10017 = vmatprep.subr.bf16.mxu0 0
      %10018 = vmatpush2.bf16.msra.mxu0 %v9956
      %10019 = vmatprep.subr.bf16.mxu0 0
      %10020 = vmatpush2.bf16.msra.mxu0 %v9955
      %10021 = vmatprep.subr.bf16.mxu0 0
      %10022 = vmatpush2.bf16.msra.mxu0 %v9954
      %10023 = vmatprep.mubr.bf16.mxu0 %v9971
      %10024 = vmatmul.mubr.bf16.gmra.mxu0 %v9859
      %v10025 = vpop.f32.mrf.mxu0
      %v10026 = vadd.f32 0.0, %v10025
      %v10027 = vpop.f32.mrf.mxu0
      %v10028 = vpop.f32.mrf.mxu0
      %v10029 = vadd.f32 0.0, %v10028
      %v10030 = vpop.f32.mrf.mxu0
      %10031 = vmatprep.mubr.bf16.mxu0 %v9974
      %10032 = vmatmul.mubr.bf16.gmra.mxu0 %v9861
      %v10033 = vpop.f32.mrf.mxu0
      %v10034 = vadd.f32 0.0, %v10033
      %v10035 = vpop.f32.mrf.mxu0
      %v10036 = vpop.f32.mrf.mxu0
      %v10037 = vadd.f32 0.0, %v10036
      %v10038 = vpop.f32.mrf.mxu0
      %10039 = vmatprep.mubr.bf16.mxu0 %v9977
      %10040 = vmatmul.mubr.bf16.gmra.mxu0 %v9863
      %v10041 = vpop.f32.mrf.mxu0
      %v10042 = vadd.f32 0.0, %v10041
      %v10043 = vpop.f32.mrf.mxu0
      %v10044 = vpop.f32.mrf.mxu0
      %v10045 = vadd.f32 0.0, %v10044
      %v10046 = vpop.f32.mrf.mxu0
      %10047 = vmatprep.mubr.bf16.mxu0 %v9980
      %10048 = vmatmul.mubr.bf16.gmra.mxu0 %v9865
      %v10049 = vpop.f32.mrf.mxu0
      %v10050 = vadd.f32 0.0, %v10049
      %v10051 = vpop.f32.mrf.mxu0
      %v10052 = vpop.f32.mrf.mxu0
      %v10053 = vadd.f32 0.0, %v10052
      %v10054 = vpop.f32.mrf.mxu0
      %10055 = vmatprep.mubr.bf16.mxu0 %v9983
      %10056 = vmatmul.mubr.bf16.gmra.mxu0 %v9867
      %v10057 = vpop.f32.mrf.mxu0
      %v10058 = vadd.f32 0.0, %v10057
      %v10059 = vpop.f32.mrf.mxu0
      %v10060 = vpop.f32.mrf.mxu0
      %v10061 = vadd.f32 0.0, %v10060
      %v10062 = vpop.f32.mrf.mxu0
      %10063 = vmatprep.mubr.bf16.mxu0 %v9986
      %10064 = vmatmul.mubr.bf16.gmra.mxu0 %v9869
      %v10065 = vpop.f32.mrf.mxu0
      %v10066 = vadd.f32 0.0, %v10065
      %v10067 = vpop.f32.mrf.mxu0
      %v10068 = vpop.f32.mrf.mxu0
      %v10069 = vadd.f32 0.0, %v10068
      %v10070 = vpop.f32.mrf.mxu0
      %10071 = vmatprep.mubr.bf16.mxu0 %v9989
      %10072 = vmatmul.mubr.bf16.gmra.mxu0 %v9871
      %v10073 = vpop.f32.mrf.mxu0
      %v10074 = vadd.f32 0.0, %v10073
      %v10075 = vpop.f32.mrf.mxu0
      %v10076 = vpop.f32.mrf.mxu0
      %v10077 = vpop.f32.mrf.mxu0
      %10078 = vdwg.mxu0
      %v10103 = vunpack.c.l.b16 %v9537
      %v10104 = vunpack.c.l.b16 %v9538
      %v10105 = vunpack.c.l.b16 %v9539
      %v10106 = vunpack.c.l.b16 %v9540
      %v10107 = vunpack.c.l.b16 %v9541
      %v10108 = vunpack.c.l.b16 %v9542
      %v10109 = vunpack.c.l.b16 %v9543
      %v10110 = vunpack.c.l.b16 %v9544
      %v10111 = vunpack.c.l.b16 %v9545
      %v10112 = vunpack.c.l.b16 %v9546
      %v10113 = vunpack.c.l.b16 %v9547
      %v10114 = vunpack.c.l.b16 %v9548
      %v10115 = vunpack.c.l.b16 %v9549
      %v10116 = vunpack.c.l.b16 %v9550
      %v10117 = vunpack.c.l.b16 %v9551
      %v10118 = vunpack.c.l.b16 %v9552
      %v10119 = vunpack.c.l.b16 %v9553
      %v10120 = vunpack.c.l.b16 %v9554
      %v10121 = vunpack.c.l.b16 %v9555
      %v10122 = vunpack.c.l.b16 %v9556
      %v10123 = vunpack.c.l.b16 %v9557
      %v10124 = vunpack.c.l.b16 %v9558
      %v10125 = vunpack.c.l.b16 %v9559
      %v10126 = vunpack.c.l.b16 %v9560
      %v10127 = vpack.c.b16 %v10104, %v10103
      %v10128 = vpack.c.b16 %v10106, %v10105
      %v10129 = vpack.c.b16 %v10108, %v10107
      %v10130 = vpack.c.b16 %v10110, %v10109
      %v10131 = vpack.c.b16 %v10112, %v10111
      %v10132 = vpack.c.b16 %v10114, %v10113
      %v10133 = vpack.c.b16 %v10116, %v10115
      %v10134 = vpack.c.b16 %v10118, %v10117
      %v10135 = vpack.c.b16 %v10120, %v10119
      %v10136 = vpack.c.b16 %v10122, %v10121
      %v10137 = vpack.c.b16 %v10124, %v10123
      %v10138 = vpack.c.b16 %v10126, %v10125
      %v10152 = vsel %vm7456, %v9524, 0
      %v10155 = vsel %vm7456, %v9526, 0
      %v10158 = vsel %vm7456, %v9528, 0
      %v10161 = vsel %vm7456, %v9530, 0
      %v10164 = vsel %vm7456, %v9532, 0
      %v10167 = vsel %vm7456, %v9534, 0
      %v10170 = vsel %vm7456, %v9536, 0
      %10172 = vmatprep.subr.bf16.mxu0 0
      %10173 = vmatpush1.bf16.msra.mxu0 %v10134
      %10174 = vmatprep.subr.bf16.mxu0 0
      %10175 = vmatpush1.bf16.msra.mxu0 %v10133
      %10176 = vmatprep.subr.bf16.mxu0 0
      %10177 = vmatpush1.bf16.msra.mxu0 %v10132
      %10178 = vmatprep.subr.bf16.mxu0 0
      %10179 = vmatpush1.bf16.msra.mxu0 %v10131
      %10180 = vmatprep.subr.bf16.mxu0 0
      %10181 = vmatpush1.bf16.msra.mxu0 %v10130
      %10182 = vmatprep.subr.bf16.mxu0 0
      %10183 = vmatpush1.bf16.msra.mxu0 %v10129
      %10184 = vmatprep.subr.bf16.mxu0 0
      %10185 = vmatpush1.bf16.msra.mxu0 %v10128
      %10186 = vmatprep.subr.bf16.mxu0 0
      %10187 = vmatpush1.bf16.msra.mxu0 %v10127
      %10188 = vmatprep.subr.bf16.mxu0 0
      %10189 = vmatpush2.bf16.msra.mxu0 0
      %10190 = vmatprep.subr.bf16.mxu0 0
      %10191 = vmatpush2.bf16.msra.mxu0 0
      %10192 = vmatprep.subr.bf16.mxu0 0
      %10193 = vmatpush2.bf16.msra.mxu0 0
      %10194 = vmatprep.subr.bf16.mxu0 0
      %10195 = vmatpush2.bf16.msra.mxu0 0
      %10196 = vmatprep.subr.bf16.mxu0 0
      %10197 = vmatpush2.bf16.msra.mxu0 %v10138
      %10198 = vmatprep.subr.bf16.mxu0 0
      %10199 = vmatpush2.bf16.msra.mxu0 %v10137
      %10200 = vmatprep.subr.bf16.mxu0 0
      %10201 = vmatpush2.bf16.msra.mxu0 %v10136
      %10202 = vmatprep.subr.bf16.mxu0 0
      %10203 = vmatpush2.bf16.msra.mxu0 %v10135
      %10204 = vmatprep.mubr.bf16.mxu0 %v10152
      %10205 = vmatmul.mubr.bf16.gmra.mxu0 %v9523
      %v10206 = vpop.f32.mrf.mxu0
      %v10207 = vadd.f32 %v10026, %v10206
      %v10208 = vpop.f32.mrf.mxu0
      %v10209 = vpop.f32.mrf.mxu0
      %v10210 = vadd.f32 %v10029, %v10209
      %v10211 = vpop.f32.mrf.mxu0
      %10212 = vmatprep.mubr.bf16.mxu0 %v10155
      %10213 = vmatmul.mubr.bf16.gmra.mxu0 %v9525
      %v10214 = vpop.f32.mrf.mxu0
      %v10215 = vadd.f32 %v10034, %v10214
      %v10216 = vpop.f32.mrf.mxu0
      %v10217 = vpop.f32.mrf.mxu0
      %v10218 = vadd.f32 %v10037, %v10217
      %v10219 = vpop.f32.mrf.mxu0
      %10220 = vmatprep.mubr.bf16.mxu0 %v10158
      %10221 = vmatmul.mubr.bf16.gmra.mxu0 %v9527
      %v10222 = vpop.f32.mrf.mxu0
      %v10223 = vadd.f32 %v10042, %v10222
      %v10224 = vpop.f32.mrf.mxu0
      %v10225 = vpop.f32.mrf.mxu0
      %v10226 = vadd.f32 %v10045, %v10225
      %v10227 = vpop.f32.mrf.mxu0
      %10228 = vmatprep.mubr.bf16.mxu0 %v10161
      %10229 = vmatmul.mubr.bf16.gmra.mxu0 %v9529
      %v10230 = vpop.f32.mrf.mxu0
      %v10231 = vadd.f32 %v10050, %v10230
      %v10232 = vpop.f32.mrf.mxu0
      %v10233 = vpop.f32.mrf.mxu0
      %v10234 = vadd.f32 %v10053, %v10233
      %v10235 = vpop.f32.mrf.mxu0
      %10236 = vmatprep.mubr.bf16.mxu0 %v10164
      %10237 = vmatmul.mubr.bf16.gmra.mxu0 %v9531
      %v10238 = vpop.f32.mrf.mxu0
      %v10239 = vadd.f32 %v10058, %v10238
      %v10240 = vpop.f32.mrf.mxu0
      %v10241 = vpop.f32.mrf.mxu0
      %v10242 = vadd.f32 %v10061, %v10241
      %v10243 = vpop.f32.mrf.mxu0
      %10244 = vmatprep.mubr.bf16.mxu0 %v10167
      %10245 = vmatmul.mubr.bf16.gmra.mxu0 %v9533
      %v10246 = vpop.f32.mrf.mxu0
      %v10247 = vadd.f32 %v10066, %v10246
      %v10248 = vpop.f32.mrf.mxu0
      %v10249 = vpop.f32.mrf.mxu0
      %v10250 = vadd.f32 %v10069, %v10249
      %v10251 = vpop.f32.mrf.mxu0
      %10252 = vmatprep.mubr.bf16.mxu0 %v10170
      %10253 = vmatmul.mubr.bf16.gmra.mxu0 %v9535
      %v10254 = vpop.f32.mrf.mxu0
      %v10255 = vadd.f32 %v10074, %v10254
      %v10256 = vpop.f32.mrf.mxu0
      %v10257 = vpop.f32.mrf.mxu0
      %v10258 = vpop.f32.mrf.mxu0
      %10259 = vdwg.mxu0
      %v10263 = vcombine.low %v8796, %v8797
      %v10265 = vrot.slane %v10263, 1
      %v10266 = vrot.slane %v8798, 1
      %v10267 = vsel %vm7047, %v10265, %v10266
      %10268 = vrot.lane.b32.xlu0 %v10267, 64
      %v10269 = vpop.permute.xlu0 %10268
      %10270 = vrot.lane.b32.xlu0 %v10266, 64
      %v10271 = vpop.permute.xlu0 %10270
      %v10274 = vrot.slane %v10263, 2
      %v10275 = vrot.slane %v8798, 2
      %v10276 = vsel %vm8941, %v10274, %v10275
      %v10277 = vsel %vm7456, %v10263, %v10269
      %v10278 = vsel %vm7456, %v8798, %v10271
      %v10281 = vcombine.low %v10277, %v10276
      %v10282 = vcombine.high %v10277, %v10276
      %v10284 = vunpack.c.l.s4 1983009808
      %v10285 = vunpack.c.0.s8 %v10284
      %v10286 = vlaneseq
      %v10287 = vshrl.u32 %v10286, 7
      %v10288 = vsub.s32 %v10285, %v10287
      %v10289 = vrot.slane %v10281, %v10288
      %v10291 = vunpack.c.l.s4 1983009808
      %v10292 = vunpack.c.0.s8 %v10291
      %v10293 = vlaneseq
      %v10294 = vshrl.u32 %v10293, 7
      %v10295 = vsub.s32 %v10292, %v10294
      %v10296 = vrot.slane %v10282, %v10295
      %v10297 = vcombine.high %v10289, %v10289
      %v10298 = vcombine.high %v10296, %v10296
      %v10299 = vcombine.low %v10278, %v10275
      %v10301 = vunpack.c.l.s4 1983009808
      %v10302 = vunpack.c.0.s8 %v10301
      %v10303 = vlaneseq
      %v10304 = vshrl.u32 %v10303, 7
      %v10305 = vsub.s32 %v10302, %v10304
      %v10306 = vrot.slane %v10299, %v10305
      %v10307 = vcombine.low %v9323, %v9334
      %v10308 = vcombine.high %v9323, %v9334
      %v10309 = vcombine.low %v9341, %v9352
      %v10310 = vcombine.high %v9341, %v9352
      %v10311 = vcombine.low %v9359, %v9370
      %v10312 = vcombine.high %v9359, %v9370
      %v10313 = vcombine.low %v9377, %v9388
      %v10314 = vcombine.high %v9377, %v9388
      %v10315 = vcombine.low %v9395, %v9406
      %v10316 = vcombine.high %v9395, %v9406
      %v10317 = vcombine.low %v9413, %v9424
      %v10318 = vcombine.high %v9413, %v9424
      %v10319 = vcombine.low %v9431, %v9442
      %v10320 = vcombine.high %v9431, %v9442
      %v10321 = vcombine.low %v9449, %v9460
      %v10322 = vcombine.high %v9449, %v9460
      %v10323 = vcombine.low %v9467, %v9478
      %v10324 = vcombine.high %v9467, %v9478
      %v10325 = vcombine.low %v9485, %v9495
      %v10326 = vcombine.high %v9485, %v9495
      %v10327 = vcombine.low %v9590, %v9598
      %v10328 = vcombine.low %v9597, %v9599
      %v10330 = vunpack.c.l.s4 1983009808
      %v10331 = vunpack.c.0.s8 %v10330
      %v10332 = vlaneseq
      %v10333 = vshrl.u32 %v10332, 7
      %v10334 = vsub.s32 %v10331, %v10333
      %v10335 = vrot.slane %v10327, %v10334
      %v10337 = vunpack.c.l.s4 1983009808
      %v10338 = vunpack.c.0.s8 %v10337
      %v10339 = vlaneseq
      %v10340 = vshrl.u32 %v10339, 7
      %v10341 = vsub.s32 %v10338, %v10340
      %v10342 = vrot.slane %v10328, %v10341
      %v10343 = vcombine.low %v10335, %v10342
      %v10344 = vcombine.high %v10335, %v10342
      %v10345 = vcombine.low %v9607, %v10289
      %v10346 = vcombine.low %v10297, %v10296
      %v10348 = vunpack.c.l.s4 1983009808
      %v10349 = vunpack.c.0.s8 %v10348
      %v10350 = vlaneseq
      %v10351 = vshrl.u32 %v10350, 7
      %v10352 = vsub.s32 %v10349, %v10351
      %v10353 = vrot.slane %v10345, %v10352
      %v10355 = vunpack.c.l.s4 1983009808
      %v10356 = vunpack.c.0.s8 %v10355
      %v10357 = vlaneseq
      %v10358 = vshrl.u32 %v10357, 7
      %v10359 = vsub.s32 %v10356, %v10358
      %v10360 = vrot.slane %v10346, %v10359
      %v10361 = vcombine.low %v10353, %v10360
      %v10362 = vcombine.high %v10353, %v10360
      %v10363 = vcombine.low %v10298, %v10306
      %v10365 = vunpack.c.l.s4 1983009808
      %v10366 = vunpack.c.0.s8 %v10365
      %v10367 = vlaneseq
      %v10368 = vshrl.u32 %v10367, 7
      %v10369 = vsub.s32 %v10366, %v10368
      %v10370 = vrot.slane %v10363, %v10369
      %v10371 = vcombine.high %v10370, %v10370
      %v10398 = vpack.c.bf16 %v10309, %v10307
      %v10399 = vpack.c.bf16 %v10310, %v10308
      %v10400 = vpack.c.bf16 %v10313, %v10311
      %v10401 = vpack.c.bf16 %v10314, %v10312
      %v10402 = vpack.c.bf16 %v10317, %v10315
      %v10403 = vpack.c.bf16 %v10318, %v10316
      %v10404 = vpack.c.bf16 %v10321, %v10319
      %v10405 = vpack.c.bf16 %v10322, %v10320
      %v10406 = vpack.c.bf16 %v10325, %v10323
      %v10407 = vpack.c.bf16 %v10326, %v10324
      %v10408 = vpack.c.bf16 %v10361, %v10343
      %v10409 = vpack.c.bf16 %v10362, %v10344
      %v10410 = vpack.c.bf16 %v10370, %v10370
      %v10411 = vpack.c.bf16 %v10371, %v10371
      %s10412 = scalar_lea.vmem %s7, 192
      %v10413 = vld [vmem:[%s10412] sm:$0xf]
      %v10414 = vld [vmem:[%s10412 + $0x4] sm:$0xf]
      %v10415 = vld [vmem:[%s10412 + $0x8] sm:$0xf]
      %v10416 = vld [vmem:[%s10412 + $0xc] sm:$0xf]
      %v10417 = vld [vmem:[%s10412 + $0x10] sm:$0xf]
      %v10418 = vld [vmem:[%s10412 + $0x14] sm:$0xf]
      %v10419 = vld [vmem:[%s10412 + $0x18] sm:$0xf]
      %v10420 = vld [vmem:[%s10412 + $0x1c] sm:$0xf]
      %v10421 = vld [vmem:[%s10412 + $0x20] sm:$0xf]
      %v10422 = vld [vmem:[%s10412 + $0x24] sm:$0xf]
      %v10423 = vld [vmem:[%s10412 + $0x28] sm:$0xf]
      %v10424 = vld [vmem:[%s10412 + $0x2c] sm:$0xf]
      %v10425 = vld [vmem:[%s10412 + $0x30] sm:$0xf]
      %v10426 = vld [vmem:[%s10412 + $0x34] sm:$0xf]
      %v10427 = vld [vmem:[%s10412 + $0x38] sm:$0xf]
      %v10428 = vld [vmem:[%s10412 + $0x3c] sm:$0xf]
      %v10429 = vld [vmem:[%s10412 + $0x40] sm:$0xf]
      %v10430 = vld [vmem:[%s10412 + $0x44] sm:$0xf]
      %v10431 = vld [vmem:[%s10412 + $0x48] sm:$0xf]
      %v10432 = vld [vmem:[%s10412 + $0x4c] sm:$0xf]
      %v10433 = vld [vmem:[%s10412 + $0x50] sm:$0xf]
      %v10434 = vld [vmem:[%s10412 + $0x54] sm:$0xf]
      %v10435 = vld [vmem:[%s10412 + $0x58] sm:$0xf]
      %v10436 = vld [vmem:[%s10412 + $0x5c] sm:$0xf]
      %v10461 = vunpack.c.l.b16 %v10413
      %v10462 = vunpack.c.l.b16 %v10414
      %v10463 = vunpack.c.l.b16 %v10415
      %v10464 = vunpack.c.l.b16 %v10416
      %v10465 = vunpack.c.l.b16 %v10417
      %v10466 = vunpack.c.l.b16 %v10418
      %v10467 = vunpack.c.l.b16 %v10419
      %v10468 = vunpack.c.l.b16 %v10420
      %v10469 = vunpack.c.l.b16 %v10421
      %v10470 = vunpack.c.l.b16 %v10422
      %v10471 = vunpack.c.l.b16 %v10423
      %v10472 = vunpack.c.l.b16 %v10424
      %v10473 = vunpack.c.l.b16 %v10425
      %v10474 = vunpack.c.l.b16 %v10426
      %v10475 = vunpack.c.l.b16 %v10427
      %v10476 = vunpack.c.l.b16 %v10428
      %v10477 = vunpack.c.l.b16 %v10429
      %v10478 = vunpack.c.l.b16 %v10430
      %v10479 = vunpack.c.l.b16 %v10431
      %v10480 = vunpack.c.l.b16 %v10432
      %v10481 = vunpack.c.l.b16 %v10433
      %v10482 = vunpack.c.l.b16 %v10434
      %v10483 = vunpack.c.l.b16 %v10435
      %v10484 = vunpack.c.l.b16 %v10436
      %v10485 = vpack.c.b16 %v10462, %v10461
      %v10486 = vpack.c.b16 %v10464, %v10463
      %v10487 = vpack.c.b16 %v10466, %v10465
      %v10488 = vpack.c.b16 %v10468, %v10467
      %v10489 = vpack.c.b16 %v10470, %v10469
      %v10490 = vpack.c.b16 %v10472, %v10471
      %v10491 = vpack.c.b16 %v10474, %v10473
      %v10492 = vpack.c.b16 %v10476, %v10475
      %v10493 = vpack.c.b16 %v10478, %v10477
      %v10494 = vpack.c.b16 %v10480, %v10479
      %v10495 = vpack.c.b16 %v10482, %v10481
      %v10496 = vpack.c.b16 %v10484, %v10483
      %v10510 = vsel %vm7456, %v10399, 0
      %v10513 = vsel %vm7456, %v10401, 0
      %v10516 = vsel %vm7456, %v10403, 0
      %v10519 = vsel %vm7456, %v10405, 0
      %v10522 = vsel %vm7456, %v10407, 0
      %v10525 = vsel %vm7456, %v10409, 0
      %v10528 = vsel %vm7456, %v10411, 0
      %10530 = vmatprep.subr.bf16.mxu0 0
      %10531 = vmatpush1.bf16.msra.mxu0 %v10492
      %10532 = vmatprep.subr.bf16.mxu0 0
      %10533 = vmatpush1.bf16.msra.mxu0 %v10491
      %10534 = vmatprep.subr.bf16.mxu0 0
      %10535 = vmatpush1.bf16.msra.mxu0 %v10490
      %10536 = vmatprep.subr.bf16.mxu0 0
      %10537 = vmatpush1.bf16.msra.mxu0 %v10489
      %10538 = vmatprep.subr.bf16.mxu0 0
      %10539 = vmatpush1.bf16.msra.mxu0 %v10488
      %10540 = vmatprep.subr.bf16.mxu0 0
      %10541 = vmatpush1.bf16.msra.mxu0 %v10487
      %10542 = vmatprep.subr.bf16.mxu0 0
      %10543 = vmatpush1.bf16.msra.mxu0 %v10486
      %10544 = vmatprep.subr.bf16.mxu0 0
      %10545 = vmatpush1.bf16.msra.mxu0 %v10485
      %10546 = vmatprep.subr.bf16.mxu0 0
      %10547 = vmatpush2.bf16.msra.mxu0 0
      %10548 = vmatprep.subr.bf16.mxu0 0
      %10549 = vmatpush2.bf16.msra.mxu0 0
      %10550 = vmatprep.subr.bf16.mxu0 0
      %10551 = vmatpush2.bf16.msra.mxu0 0
      %10552 = vmatprep.subr.bf16.mxu0 0
      %10553 = vmatpush2.bf16.msra.mxu0 0
      %10554 = vmatprep.subr.bf16.mxu0 0
      %10555 = vmatpush2.bf16.msra.mxu0 %v10496
      %10556 = vmatprep.subr.bf16.mxu0 0
      %10557 = vmatpush2.bf16.msra.mxu0 %v10495
      %10558 = vmatprep.subr.bf16.mxu0 0
      %10559 = vmatpush2.bf16.msra.mxu0 %v10494
      %10560 = vmatprep.subr.bf16.mxu0 0
      %10561 = vmatpush2.bf16.msra.mxu0 %v10493
      %10562 = vmatprep.mubr.bf16.mxu0 %v10510
      %10563 = vmatmul.mubr.bf16.gmra.mxu0 %v10398
      %v10564 = vpop.f32.mrf.mxu0
      %v10565 = vadd.f32 0.0, %v10564
      %v10566 = vpop.f32.mrf.mxu0
      %v10567 = vpop.f32.mrf.mxu0
      %v10568 = vadd.f32 0.0, %v10567
      %v10569 = vpop.f32.mrf.mxu0
      %10570 = vmatprep.mubr.bf16.mxu0 %v10513
      %10571 = vmatmul.mubr.bf16.gmra.mxu0 %v10400
      %v10572 = vpop.f32.mrf.mxu0
      %v10573 = vadd.f32 0.0, %v10572
      %v10574 = vpop.f32.mrf.mxu0
      %v10575 = vpop.f32.mrf.mxu0
      %v10576 = vadd.f32 0.0, %v10575
      %v10577 = vpop.f32.mrf.mxu0
      %10578 = vmatprep.mubr.bf16.mxu0 %v10516
      %10579 = vmatmul.mubr.bf16.gmra.mxu0 %v10402
      %v10580 = vpop.f32.mrf.mxu0
      %v10581 = vadd.f32 0.0, %v10580
      %v10582 = vpop.f32.mrf.mxu0
      %v10583 = vpop.f32.mrf.mxu0
      %v10584 = vadd.f32 0.0, %v10583
      %v10585 = vpop.f32.mrf.mxu0
      %10586 = vmatprep.mubr.bf16.mxu0 %v10519
      %10587 = vmatmul.mubr.bf16.gmra.mxu0 %v10404
      %v10588 = vpop.f32.mrf.mxu0
      %v10589 = vadd.f32 0.0, %v10588
      %v10590 = vpop.f32.mrf.mxu0
      %v10591 = vpop.f32.mrf.mxu0
      %v10592 = vadd.f32 0.0, %v10591
      %v10593 = vpop.f32.mrf.mxu0
      %10594 = vmatprep.mubr.bf16.mxu0 %v10522
      %10595 = vmatmul.mubr.bf16.gmra.mxu0 %v10406
      %v10596 = vpop.f32.mrf.mxu0
      %v10597 = vadd.f32 0.0, %v10596
      %v10598 = vpop.f32.mrf.mxu0
      %v10599 = vpop.f32.mrf.mxu0
      %v10600 = vadd.f32 0.0, %v10599
      %v10601 = vpop.f32.mrf.mxu0
      %10602 = vmatprep.mubr.bf16.mxu0 %v10525
      %10603 = vmatmul.mubr.bf16.gmra.mxu0 %v10408
      %v10604 = vpop.f32.mrf.mxu0
      %v10605 = vadd.f32 0.0, %v10604
      %v10606 = vpop.f32.mrf.mxu0
      %v10607 = vpop.f32.mrf.mxu0
      %v10608 = vadd.f32 0.0, %v10607
      %v10609 = vpop.f32.mrf.mxu0
      %10610 = vmatprep.mubr.bf16.mxu0 %v10528
      %10611 = vmatmul.mubr.bf16.gmra.mxu0 %v10410
      %v10612 = vpop.f32.mrf.mxu0
      %v10613 = vadd.f32 0.0, %v10612
      %v10614 = vpop.f32.mrf.mxu0
      %v10615 = vpop.f32.mrf.mxu0
      %v10616 = vpop.f32.mrf.mxu0
      %10617 = vdwg.mxu0
      %v10618 = vadd.f32 %v10207, %v10565
      %v10619 = vadd.f32 %v10210, %v10568
      %v10620 = vadd.f32 %v10215, %v10573
      %v10621 = vadd.f32 %v10218, %v10576
      %v10622 = vadd.f32 %v10223, %v10581
      %v10623 = vadd.f32 %v10226, %v10584
      %v10624 = vadd.f32 %v10231, %v10589
      %v10625 = vadd.f32 %v10234, %v10592
      %v10626 = vadd.f32 %v10239, %v10597
      %v10627 = vadd.f32 %v10242, %v10600
      %v10628 = vadd.f32 %v10247, %v10605
      %v10629 = vadd.f32 %v10250, %v10608
      %v10630 = vadd.f32 %v10255, %v10613
      %v10644 = vcombine.high %v10618, %v10618
      %v10646 = vunpack.c.l.s4 1983009808
      %v10647 = vunpack.c.0.s8 %v10646
      %v10648 = vlaneseq
      %v10649 = vshrl.u32 %v10648, 7
      %v10650 = vsub.s32 %v10647, %v10649
      %v10651 = vrot.slane %v10618, %v10650
      %v10653 = vunpack.c.l.s4 1983009808
      %v10654 = vunpack.c.0.s8 %v10653
      %v10655 = vlaneseq
      %v10656 = vshrl.u32 %v10655, 7
      %v10657 = vsub.s32 %v10654, %v10656
      %v10658 = vrot.slane %v10644, %v10657
      %v10659 = vcombine.high %v10651, %v10651
      %v10660 = vcombine.high %v10658, %v10658
      %v10661 = vcombine.high %v10619, %v10619
      %v10663 = vunpack.c.l.s4 1983009808
      %v10664 = vunpack.c.0.s8 %v10663
      %v10665 = vlaneseq
      %v10666 = vshrl.u32 %v10665, 7
      %v10667 = vsub.s32 %v10664, %v10666
      %v10668 = vrot.slane %v10619, %v10667
      %v10670 = vunpack.c.l.s4 1983009808
      %v10671 = vunpack.c.0.s8 %v10670
      %v10672 = vlaneseq
      %v10673 = vshrl.u32 %v10672, 7
      %v10674 = vsub.s32 %v10671, %v10673
      %v10675 = vrot.slane %v10661, %v10674
      %v10676 = vcombine.high %v10668, %v10668
      %v10677 = vcombine.high %v10675, %v10675
      %v10678 = vcombine.high %v10620, %v10620
      %v10680 = vunpack.c.l.s4 1983009808
      %v10681 = vunpack.c.0.s8 %v10680
      %v10682 = vlaneseq
      %v10683 = vshrl.u32 %v10682, 7
      %v10684 = vsub.s32 %v10681, %v10683
      %v10685 = vrot.slane %v10620, %v10684
      %v10687 = vunpack.c.l.s4 1983009808
      %v10688 = vunpack.c.0.s8 %v10687
      %v10689 = vlaneseq
      %v10690 = vshrl.u32 %v10689, 7
      %v10691 = vsub.s32 %v10688, %v10690
      %v10692 = vrot.slane %v10678, %v10691
      %v10693 = vcombine.high %v10685, %v10685
      %v10694 = vcombine.high %v10692, %v10692
      %v10695 = vcombine.high %v10621, %v10621
      %v10697 = vunpack.c.l.s4 1983009808
      %v10698 = vunpack.c.0.s8 %v10697
      %v10699 = vlaneseq
      %v10700 = vshrl.u32 %v10699, 7
      %v10701 = vsub.s32 %v10698, %v10700
      %v10702 = vrot.slane %v10621, %v10701
      %v10704 = vunpack.c.l.s4 1983009808
      %v10705 = vunpack.c.0.s8 %v10704
      %v10706 = vlaneseq
      %v10707 = vshrl.u32 %v10706, 7
      %v10708 = vsub.s32 %v10705, %v10707
      %v10709 = vrot.slane %v10695, %v10708
      %v10710 = vcombine.high %v10702, %v10702
      %v10711 = vcombine.high %v10709, %v10709
      %v10712 = vcombine.high %v10622, %v10622
      %v10714 = vunpack.c.l.s4 1983009808
      %v10715 = vunpack.c.0.s8 %v10714
      %v10716 = vlaneseq
      %v10717 = vshrl.u32 %v10716, 7
      %v10718 = vsub.s32 %v10715, %v10717
      %v10719 = vrot.slane %v10622, %v10718
      %v10721 = vunpack.c.l.s4 1983009808
      %v10722 = vunpack.c.0.s8 %v10721
      %v10723 = vlaneseq
      %v10724 = vshrl.u32 %v10723, 7
      %v10725 = vsub.s32 %v10722, %v10724
      %v10726 = vrot.slane %v10712, %v10725
      %v10727 = vcombine.high %v10719, %v10719
      %v10728 = vcombine.high %v10726, %v10726
      %v10729 = vcombine.high %v10623, %v10623
      %v10731 = vunpack.c.l.s4 1983009808
      %v10732 = vunpack.c.0.s8 %v10731
      %v10733 = vlaneseq
      %v10734 = vshrl.u32 %v10733, 7
      %v10735 = vsub.s32 %v10732, %v10734
      %v10736 = vrot.slane %v10623, %v10735
      %v10738 = vunpack.c.l.s4 1983009808
      %v10739 = vunpack.c.0.s8 %v10738
      %v10740 = vlaneseq
      %v10741 = vshrl.u32 %v10740, 7
      %v10742 = vsub.s32 %v10739, %v10741
      %v10743 = vrot.slane %v10729, %v10742
      %v10744 = vcombine.high %v10736, %v10736
      %v10745 = vcombine.high %v10743, %v10743
      %v10746 = vcombine.high %v10624, %v10624
      %v10748 = vunpack.c.l.s4 1983009808
      %v10749 = vunpack.c.0.s8 %v10748
      %v10750 = vlaneseq
      %v10751 = vshrl.u32 %v10750, 7
      %v10752 = vsub.s32 %v10749, %v10751
      %v10753 = vrot.slane %v10624, %v10752
      %v10755 = vunpack.c.l.s4 1983009808
      %v10756 = vunpack.c.0.s8 %v10755
      %v10757 = vlaneseq
      %v10758 = vshrl.u32 %v10757, 7
      %v10759 = vsub.s32 %v10756, %v10758
      %v10760 = vrot.slane %v10746, %v10759
      %v10761 = vcombine.high %v10753, %v10753
      %v10762 = vcombine.high %v10760, %v10760
      %v10763 = vcombine.high %v10625, %v10625
      %v10765 = vunpack.c.l.s4 1983009808
      %v10766 = vunpack.c.0.s8 %v10765
      %v10767 = vlaneseq
      %v10768 = vshrl.u32 %v10767, 7
      %v10769 = vsub.s32 %v10766, %v10768
      %v10770 = vrot.slane %v10625, %v10769
      %v10772 = vunpack.c.l.s4 1983009808
      %v10773 = vunpack.c.0.s8 %v10772
      %v10774 = vlaneseq
      %v10775 = vshrl.u32 %v10774, 7
      %v10776 = vsub.s32 %v10773, %v10775
      %v10777 = vrot.slane %v10763, %v10776
      %v10778 = vcombine.high %v10770, %v10770
      %v10779 = vcombine.high %v10777, %v10777
      %v10780 = vcombine.high %v10626, %v10626
      %v10782 = vunpack.c.l.s4 1983009808
      %v10783 = vunpack.c.0.s8 %v10782
      %v10784 = vlaneseq
      %v10785 = vshrl.u32 %v10784, 7
      %v10786 = vsub.s32 %v10783, %v10785
      %v10787 = vrot.slane %v10626, %v10786
      %v10789 = vunpack.c.l.s4 1983009808
      %v10790 = vunpack.c.0.s8 %v10789
      %v10791 = vlaneseq
      %v10792 = vshrl.u32 %v10791, 7
      %v10793 = vsub.s32 %v10790, %v10792
      %v10794 = vrot.slane %v10780, %v10793
      %v10795 = vcombine.high %v10787, %v10787
      %v10796 = vcombine.high %v10794, %v10794
      %v10797 = vcombine.high %v10627, %v10627
      %v10799 = vunpack.c.l.s4 1983009808
      %v10800 = vunpack.c.0.s8 %v10799
      %v10801 = vlaneseq
      %v10802 = vshrl.u32 %v10801, 7
      %v10803 = vsub.s32 %v10800, %v10802
      %v10804 = vrot.slane %v10627, %v10803
      %v10806 = vunpack.c.l.s4 1983009808
      %v10807 = vunpack.c.0.s8 %v10806
      %v10808 = vlaneseq
      %v10809 = vshrl.u32 %v10808, 7
      %v10810 = vsub.s32 %v10807, %v10809
      %v10811 = vrot.slane %v10797, %v10810
      %v10812 = vcombine.high %v10804, %v10804
      %v10813 = vcombine.high %v10811, %v10811
      %v10814 = vcombine.high %v10628, %v10628
      %v10816 = vunpack.c.l.s4 1983009808
      %v10817 = vunpack.c.0.s8 %v10816
      %v10818 = vlaneseq
      %v10819 = vshrl.u32 %v10818, 7
      %v10820 = vsub.s32 %v10817, %v10819
      %v10821 = vrot.slane %v10628, %v10820
      %v10823 = vunpack.c.l.s4 1983009808
      %v10824 = vunpack.c.0.s8 %v10823
      %v10825 = vlaneseq
      %v10826 = vshrl.u32 %v10825, 7
      %v10827 = vsub.s32 %v10824, %v10826
      %v10828 = vrot.slane %v10814, %v10827
      %v10829 = vcombine.high %v10821, %v10821
      %v10830 = vcombine.high %v10828, %v10828
      %v10831 = vcombine.high %v10629, %v10629
      %v10833 = vunpack.c.l.s4 1983009808
      %v10834 = vunpack.c.0.s8 %v10833
      %v10835 = vlaneseq
      %v10836 = vshrl.u32 %v10835, 7
      %v10837 = vsub.s32 %v10834, %v10836
      %v10838 = vrot.slane %v10629, %v10837
      %v10840 = vunpack.c.l.s4 1983009808
      %v10841 = vunpack.c.0.s8 %v10840
      %v10842 = vlaneseq
      %v10843 = vshrl.u32 %v10842, 7
      %v10844 = vsub.s32 %v10841, %v10843
      %v10845 = vrot.slane %v10831, %v10844
      %v10846 = vcombine.high %v10838, %v10838
      %v10847 = vcombine.high %v10845, %v10845
      %v10849 = vunpack.c.l.s4 1983009808
      %v10850 = vunpack.c.0.s8 %v10849
      %v10851 = vlaneseq
      %v10852 = vshrl.u32 %v10851, 7
      %v10853 = vsub.s32 %v10850, %v10852
      %v10854 = vrot.slane %v10630, %v10853
      %v10855 = vcombine.high %v10854, %v10854
      %v10907 = vlaneseq
      %v10908 = vshrl.u32 %v10907, 7
      %v10909 = vsub.s32 0, %v10908
      %v10910 = vrot.slane %v8799, %v10909
      %v10911 = vcombine.high %v10910, %v10910
      %v10913 = vunpack.c.l.s4 1983009808
      %v10914 = vunpack.c.0.s8 %v10913
      %v10915 = vlaneseq
      %v10916 = vshrl.u32 %v10915, 7
      %v10917 = vsub.s32 %v10914, %v10916
      %v10918 = vrot.slane %v10910, %v10917
      %v10920 = vunpack.c.l.s4 1983009808
      %v10921 = vunpack.c.0.s8 %v10920
      %v10922 = vlaneseq
      %v10923 = vshrl.u32 %v10922, 7
      %v10924 = vsub.s32 %v10921, %v10923
      %v10925 = vrot.slane %v10911, %v10924
      %v10926 = vcombine.high %v10918, %v10918
      %v10927 = vcombine.high %v10925, %v10925
      %v10932 = vmul.f32 %v10651, %v10918
      %v10933 = vmul.f32 %v10659, %v10926
      %v10934 = vmul.f32 %v10658, %v10925
      %v10935 = vmul.f32 %v10660, %v10927
      %v10936 = vmul.f32 %v10668, %v10918
      %v10937 = vmul.f32 %v10676, %v10918
      %v10938 = vmul.f32 %v10675, %v10926
      %v10939 = vmul.f32 %v10677, %v10925
      %v10940 = vmul.f32 %v10685, %v10927
      %v10941 = vmul.f32 %v10693, %v10918
      %v10942 = vmul.f32 %v10692, %v10918
      %v10943 = vmul.f32 %v10694, %v10926
      %v10944 = vmul.f32 %v10702, %v10925
      %v10945 = vmul.f32 %v10710, %v10927
      %v10946 = vmul.f32 %v10709, %v10918
      %v10947 = vmul.f32 %v10711, %v10918
      %v10948 = vmul.f32 %v10719, %v10926
      %v10949 = vmul.f32 %v10727, %v10925
      %v10950 = vmul.f32 %v10726, %v10927
      %v10951 = vmul.f32 %v10728, %v10918
      %v10952 = vmul.f32 %v10736, %v10918
      %v10953 = vmul.f32 %v10744, %v10926
      %v10954 = vmul.f32 %v10743, %v10925
      %v10955 = vmul.f32 %v10745, %v10927
      %v10956 = vmul.f32 %v10753, %v10918
      %v10957 = vmul.f32 %v10761, %v10918
      %v10958 = vmul.f32 %v10760, %v10926
      %v10959 = vmul.f32 %v10762, %v10925
      %v10960 = vmul.f32 %v10770, %v10927
      %v10961 = vmul.f32 %v10778, %v10918
      %v10962 = vmul.f32 %v10777, %v10918
      %v10963 = vmul.f32 %v10779, %v10926
      %v10964 = vmul.f32 %v10787, %v10925
      %v10965 = vmul.f32 %v10795, %v10927
      %v10966 = vmul.f32 %v10794, %v10918
      %v10967 = vmul.f32 %v10796, %v10918
      %v10968 = vmul.f32 %v10804, %v10926
      %v10969 = vmul.f32 %v10812, %v10925
      %v10970 = vmul.f32 %v10811, %v10927
      %v10971 = vmul.f32 %v10813, %v10918
      %v10972 = vmul.f32 %v10821, %v10918
      %v10973 = vmul.f32 %v10829, %v10926
      %v10974 = vmul.f32 %v10828, %v10925
      %v10975 = vmul.f32 %v10830, %v10927
      %v10976 = vmul.f32 %v10838, %v10918
      %v10977 = vmul.f32 %v10846, %v10918
      %v10978 = vmul.f32 %v10845, %v10926
      %v10979 = vmul.f32 %v10847, %v10925
      %v10980 = vmul.f32 %v10854, %v10927
      %v10981 = vmul.f32 %v10855, %v10918
      %v10983 = vlaneseq
      %v10984 = vshrl.u32 %v10983, 7
      %v10985 = vsub.s32 0, %v10984
      %v10986 = vrot.slane %v8800, %v10985
      %v10987 = vcombine.high %v10986, %v10986
      %v10989 = vunpack.c.l.s4 1983009808
      %v10990 = vunpack.c.0.s8 %v10989
      %v10991 = vlaneseq
      %v10992 = vshrl.u32 %v10991, 7
      %v10993 = vsub.s32 %v10990, %v10992
      %v10994 = vrot.slane %v10986, %v10993
      %v10996 = vunpack.c.l.s4 1983009808
      %v10997 = vunpack.c.0.s8 %v10996
      %v10998 = vlaneseq
      %v10999 = vshrl.u32 %v10998, 7
      %v11000 = vsub.s32 %v10997, %v10999
      %v11001 = vrot.slane %v10987, %v11000
      %v11002 = vcombine.high %v10994, %v10994
      %v11003 = vcombine.high %v11001, %v11001
      %v11008 = vadd.f32 %v10932, %v10994
      %v11009 = vadd.f32 %v10933, %v11002
      %v11010 = vadd.f32 %v10934, %v11001
      %v11011 = vadd.f32 %v10935, %v11003
      %v11012 = vadd.f32 %v10936, %v10994
      %v11013 = vadd.f32 %v10937, %v10994
      %v11014 = vadd.f32 %v10938, %v11002
      %v11015 = vadd.f32 %v10939, %v11001
      %v11016 = vadd.f32 %v10940, %v11003
      %v11017 = vadd.f32 %v10941, %v10994
      %v11018 = vadd.f32 %v10942, %v10994
      %v11019 = vadd.f32 %v10943, %v11002
      %v11020 = vadd.f32 %v10944, %v11001
      %v11021 = vadd.f32 %v10945, %v11003
      %v11022 = vadd.f32 %v10946, %v10994
      %v11023 = vadd.f32 %v10947, %v10994
      %v11024 = vadd.f32 %v10948, %v11002
      %v11025 = vadd.f32 %v10949, %v11001
      %v11026 = vadd.f32 %v10950, %v11003
      %v11027 = vadd.f32 %v10951, %v10994
      %v11028 = vadd.f32 %v10952, %v10994
      %v11029 = vadd.f32 %v10953, %v11002
      %v11030 = vadd.f32 %v10954, %v11001
      %v11031 = vadd.f32 %v10955, %v11003
      %v11032 = vadd.f32 %v10956, %v10994
      %v11033 = vadd.f32 %v10957, %v10994
      %v11034 = vadd.f32 %v10958, %v11002
      %v11035 = vadd.f32 %v10959, %v11001
      %v11036 = vadd.f32 %v10960, %v11003
      %v11037 = vadd.f32 %v10961, %v10994
      %v11038 = vadd.f32 %v10962, %v10994
      %v11039 = vadd.f32 %v10963, %v11002
      %v11040 = vadd.f32 %v10964, %v11001
      %v11041 = vadd.f32 %v10965, %v11003
      %v11042 = vadd.f32 %v10966, %v10994
      %v11043 = vadd.f32 %v10967, %v10994
      %v11044 = vadd.f32 %v10968, %v11002
      %v11045 = vadd.f32 %v10969, %v11001
      %v11046 = vadd.f32 %v10970, %v11003
      %v11047 = vadd.f32 %v10971, %v10994
      %v11048 = vadd.f32 %v10972, %v10994
      %v11049 = vadd.f32 %v10973, %v11002
      %v11050 = vadd.f32 %v10974, %v11001
      %v11051 = vadd.f32 %v10975, %v11003
      %v11052 = vadd.f32 %v10976, %v10994
      %v11053 = vadd.f32 %v10977, %v10994
      %v11054 = vadd.f32 %v10978, %v11002
      %v11055 = vadd.f32 %v10979, %v11001
      %v11056 = vadd.f32 %v10980, %v11003
      %v11057 = vadd.f32 %v10981, %v10994
      %v11058 = vmax.f32 %v11008, 0.0
      %v11059 = vmax.f32 %v11009, 0.0
      %v11060 = vmax.f32 %v11010, 0.0
      %v11061 = vmax.f32 %v11011, 0.0
      %v11062 = vmax.f32 %v11012, 0.0
      %v11063 = vmax.f32 %v11013, 0.0
      %v11064 = vmax.f32 %v11014, 0.0
      %v11065 = vmax.f32 %v11015, 0.0
      %v11066 = vmax.f32 %v11016, 0.0
      %v11067 = vmax.f32 %v11017, 0.0
      %v11068 = vmax.f32 %v11018, 0.0
      %v11069 = vmax.f32 %v11019, 0.0
      %v11070 = vmax.f32 %v11020, 0.0
      %v11071 = vmax.f32 %v11021, 0.0
      %v11072 = vmax.f32 %v11022, 0.0
      %v11073 = vmax.f32 %v11023, 0.0
      %v11074 = vmax.f32 %v11024, 0.0
      %v11075 = vmax.f32 %v11025, 0.0
      %v11076 = vmax.f32 %v11026, 0.0
      %v11077 = vmax.f32 %v11027, 0.0
      %v11078 = vmax.f32 %v11028, 0.0
      %v11079 = vmax.f32 %v11029, 0.0
      %v11080 = vmax.f32 %v11030, 0.0
      %v11081 = vmax.f32 %v11031, 0.0
      %v11082 = vmax.f32 %v11032, 0.0
      %v11083 = vmax.f32 %v11033, 0.0
      %v11084 = vmax.f32 %v11034, 0.0
      %v11085 = vmax.f32 %v11035, 0.0
      %v11086 = vmax.f32 %v11036, 0.0
      %v11087 = vmax.f32 %v11037, 0.0
      %v11088 = vmax.f32 %v11038, 0.0
      %v11089 = vmax.f32 %v11039, 0.0
      %v11090 = vmax.f32 %v11040, 0.0
      %v11091 = vmax.f32 %v11041, 0.0
      %v11092 = vmax.f32 %v11042, 0.0
      %v11093 = vmax.f32 %v11043, 0.0
      %v11094 = vmax.f32 %v11044, 0.0
      %v11095 = vmax.f32 %v11045, 0.0
      %v11096 = vmax.f32 %v11046, 0.0
      %v11097 = vmax.f32 %v11047, 0.0
      %v11098 = vmax.f32 %v11048, 0.0
      %v11099 = vmax.f32 %v11049, 0.0
      %v11100 = vmax.f32 %v11050, 0.0
      %v11101 = vmax.f32 %v11051, 0.0
      %v11102 = vmax.f32 %v11052, 0.0
      %v11103 = vmax.f32 %v11053, 0.0
      %v11104 = vmax.f32 %v11054, 0.0
      %v11105 = vmax.f32 %v11055, 0.0
      %v11106 = vmax.f32 %v11056, 0.0
      %v11107 = vmax.f32 %v11057, 0.0
      %v11158 = vcombine.low %v11058, %v11059
      %v11159 = vcombine.low %v11060, %v11061
      %v11161 = vunpack.c.l.s4 1983009808
      %v11162 = vunpack.c.0.s8 %v11161
      %v11163 = vlaneseq
      %v11164 = vshrl.u32 %v11163, 7
      %v11165 = vsub.s32 %v11162, %v11164
      %v11166 = vrot.slane %v11158, %v11165
      %v11168 = vunpack.c.l.s4 1983009808
      %v11169 = vunpack.c.0.s8 %v11168
      %v11170 = vlaneseq
      %v11171 = vshrl.u32 %v11170, 7
      %v11172 = vsub.s32 %v11169, %v11171
      %v11173 = vrot.slane %v11159, %v11172
      %v11174 = vcombine.low %v11166, %v11173
      %v11176 = vunpack.c.l.s4 1983009808
      %v11177 = vunpack.c.0.s8 %v11176
      %v11178 = vlaneseq
      %v11179 = vshrl.u32 %v11178, 7
      %v11180 = vsub.s32 %v11177, %v11179
      %v11181 = vrot.slane %v11062, %v11180
      %v11182 = vcombine.low %v11063, %v11064
      %v11183 = vcombine.low %v11065, %v11066
      %v11185 = vunpack.c.l.s4 1983009808
      %v11186 = vunpack.c.0.s8 %v11185
      %v11187 = vlaneseq
      %v11188 = vshrl.u32 %v11187, 7
      %v11189 = vsub.s32 %v11186, %v11188
      %v11190 = vrot.slane %v11182, %v11189
      %v11192 = vunpack.c.l.s4 1983009808
      %v11193 = vunpack.c.0.s8 %v11192
      %v11194 = vlaneseq
      %v11195 = vshrl.u32 %v11194, 7
      %v11196 = vsub.s32 %v11193, %v11195
      %v11197 = vrot.slane %v11183, %v11196
      %v11198 = vcombine.low %v11190, %v11197
      %v11200 = vunpack.c.l.s4 1983009808
      %v11201 = vunpack.c.0.s8 %v11200
      %v11202 = vlaneseq
      %v11203 = vshrl.u32 %v11202, 7
      %v11204 = vsub.s32 %v11201, %v11203
      %v11205 = vrot.slane %v11067, %v11204
      %v11206 = vcombine.low %v11068, %v11069
      %v11207 = vcombine.low %v11070, %v11071
      %v11209 = vunpack.c.l.s4 1983009808
      %v11210 = vunpack.c.0.s8 %v11209
      %v11211 = vlaneseq
      %v11212 = vshrl.u32 %v11211, 7
      %v11213 = vsub.s32 %v11210, %v11212
      %v11214 = vrot.slane %v11206, %v11213
      %v11216 = vunpack.c.l.s4 1983009808
      %v11217 = vunpack.c.0.s8 %v11216
      %v11218 = vlaneseq
      %v11219 = vshrl.u32 %v11218, 7
      %v11220 = vsub.s32 %v11217, %v11219
      %v11221 = vrot.slane %v11207, %v11220
      %v11222 = vcombine.low %v11214, %v11221
      %v11224 = vunpack.c.l.s4 1983009808
      %v11225 = vunpack.c.0.s8 %v11224
      %v11226 = vlaneseq
      %v11227 = vshrl.u32 %v11226, 7
      %v11228 = vsub.s32 %v11225, %v11227
      %v11229 = vrot.slane %v11072, %v11228
      %v11230 = vcombine.low %v11073, %v11074
      %v11231 = vcombine.low %v11075, %v11076
      %v11233 = vunpack.c.l.s4 1983009808
      %v11234 = vunpack.c.0.s8 %v11233
      %v11235 = vlaneseq
      %v11236 = vshrl.u32 %v11235, 7
      %v11237 = vsub.s32 %v11234, %v11236
      %v11238 = vrot.slane %v11230, %v11237
      %v11240 = vunpack.c.l.s4 1983009808
      %v11241 = vunpack.c.0.s8 %v11240
      %v11242 = vlaneseq
      %v11243 = vshrl.u32 %v11242, 7
      %v11244 = vsub.s32 %v11241, %v11243
      %v11245 = vrot.slane %v11231, %v11244
      %v11246 = vcombine.low %v11238, %v11245
      %v11248 = vunpack.c.l.s4 1983009808
      %v11249 = vunpack.c.0.s8 %v11248
      %v11250 = vlaneseq
      %v11251 = vshrl.u32 %v11250, 7
      %v11252 = vsub.s32 %v11249, %v11251
      %v11253 = vrot.slane %v11077, %v11252
      %v11254 = vcombine.low %v11078, %v11079
      %v11255 = vcombine.low %v11080, %v11081
      %v11257 = vunpack.c.l.s4 1983009808
      %v11258 = vunpack.c.0.s8 %v11257
      %v11259 = vlaneseq
      %v11260 = vshrl.u32 %v11259, 7
      %v11261 = vsub.s32 %v11258, %v11260
      %v11262 = vrot.slane %v11254, %v11261
      %v11264 = vunpack.c.l.s4 1983009808
      %v11265 = vunpack.c.0.s8 %v11264
      %v11266 = vlaneseq
      %v11267 = vshrl.u32 %v11266, 7
      %v11268 = vsub.s32 %v11265, %v11267
      %v11269 = vrot.slane %v11255, %v11268
      %v11270 = vcombine.low %v11262, %v11269
      %v11272 = vunpack.c.l.s4 1983009808
      %v11273 = vunpack.c.0.s8 %v11272
      %v11274 = vlaneseq
      %v11275 = vshrl.u32 %v11274, 7
      %v11276 = vsub.s32 %v11273, %v11275
      %v11277 = vrot.slane %v11082, %v11276
      %v11278 = vcombine.low %v11083, %v11084
      %v11279 = vcombine.low %v11085, %v11086
      %v11281 = vunpack.c.l.s4 1983009808
      %v11282 = vunpack.c.0.s8 %v11281
      %v11283 = vlaneseq
      %v11284 = vshrl.u32 %v11283, 7
      %v11285 = vsub.s32 %v11282, %v11284
      %v11286 = vrot.slane %v11278, %v11285
      %v11288 = vunpack.c.l.s4 1983009808
      %v11289 = vunpack.c.0.s8 %v11288
      %v11290 = vlaneseq
      %v11291 = vshrl.u32 %v11290, 7
      %v11292 = vsub.s32 %v11289, %v11291
      %v11293 = vrot.slane %v11279, %v11292
      %v11294 = vcombine.low %v11286, %v11293
      %v11296 = vunpack.c.l.s4 1983009808
      %v11297 = vunpack.c.0.s8 %v11296
      %v11298 = vlaneseq
      %v11299 = vshrl.u32 %v11298, 7
      %v11300 = vsub.s32 %v11297, %v11299
      %v11301 = vrot.slane %v11087, %v11300
      %v11302 = vcombine.low %v11088, %v11089
      %v11303 = vcombine.low %v11090, %v11091
      %v11305 = vunpack.c.l.s4 1983009808
      %v11306 = vunpack.c.0.s8 %v11305
      %v11307 = vlaneseq
      %v11308 = vshrl.u32 %v11307, 7
      %v11309 = vsub.s32 %v11306, %v11308
      %v11310 = vrot.slane %v11302, %v11309
      %v11312 = vunpack.c.l.s4 1983009808
      %v11313 = vunpack.c.0.s8 %v11312
      %v11314 = vlaneseq
      %v11315 = vshrl.u32 %v11314, 7
      %v11316 = vsub.s32 %v11313, %v11315
      %v11317 = vrot.slane %v11303, %v11316
      %v11318 = vcombine.low %v11310, %v11317
      %v11320 = vunpack.c.l.s4 1983009808
      %v11321 = vunpack.c.0.s8 %v11320
      %v11322 = vlaneseq
      %v11323 = vshrl.u32 %v11322, 7
      %v11324 = vsub.s32 %v11321, %v11323
      %v11325 = vrot.slane %v11092, %v11324
      %v11326 = vcombine.low %v11093, %v11094
      %v11327 = vcombine.low %v11095, %v11096
      %v11329 = vunpack.c.l.s4 1983009808
      %v11330 = vunpack.c.0.s8 %v11329
      %v11331 = vlaneseq
      %v11332 = vshrl.u32 %v11331, 7
      %v11333 = vsub.s32 %v11330, %v11332
      %v11334 = vrot.slane %v11326, %v11333
      %v11336 = vunpack.c.l.s4 1983009808
      %v11337 = vunpack.c.0.s8 %v11336
      %v11338 = vlaneseq
      %v11339 = vshrl.u32 %v11338, 7
      %v11340 = vsub.s32 %v11337, %v11339
      %v11341 = vrot.slane %v11327, %v11340
      %v11342 = vcombine.low %v11334, %v11341
      %v11344 = vunpack.c.l.s4 1983009808
      %v11345 = vunpack.c.0.s8 %v11344
      %v11346 = vlaneseq
      %v11347 = vshrl.u32 %v11346, 7
      %v11348 = vsub.s32 %v11345, %v11347
      %v11349 = vrot.slane %v11097, %v11348
      %v11350 = vcombine.low %v11098, %v11099
      %v11351 = vcombine.low %v11100, %v11101
      %v11353 = vunpack.c.l.s4 1983009808
      %v11354 = vunpack.c.0.s8 %v11353
      %v11355 = vlaneseq
      %v11356 = vshrl.u32 %v11355, 7
      %v11357 = vsub.s32 %v11354, %v11356
      %v11358 = vrot.slane %v11350, %v11357
      %v11360 = vunpack.c.l.s4 1983009808
      %v11361 = vunpack.c.0.s8 %v11360
      %v11362 = vlaneseq
      %v11363 = vshrl.u32 %v11362, 7
      %v11364 = vsub.s32 %v11361, %v11363
      %v11365 = vrot.slane %v11351, %v11364
      %v11366 = vcombine.low %v11358, %v11365
      %v11368 = vunpack.c.l.s4 1983009808
      %v11369 = vunpack.c.0.s8 %v11368
      %v11370 = vlaneseq
      %v11371 = vshrl.u32 %v11370, 7
      %v11372 = vsub.s32 %v11369, %v11371
      %v11373 = vrot.slane %v11102, %v11372
      %v11374 = vcombine.low %v11103, %v11104
      %v11375 = vcombine.low %v11105, %v11106
      %v11377 = vunpack.c.l.s4 1983009808
      %v11378 = vunpack.c.0.s8 %v11377
      %v11379 = vlaneseq
      %v11380 = vshrl.u32 %v11379, 7
      %v11381 = vsub.s32 %v11378, %v11380
      %v11382 = vrot.slane %v11374, %v11381
      %v11384 = vunpack.c.l.s4 1983009808
      %v11385 = vunpack.c.0.s8 %v11384
      %v11386 = vlaneseq
      %v11387 = vshrl.u32 %v11386, 7
      %v11388 = vsub.s32 %v11385, %v11387
      %v11389 = vrot.slane %v11375, %v11388
      %v11390 = vcombine.low %v11382, %v11389
      %v11392 = vunpack.c.l.s4 1983009808
      %v11393 = vunpack.c.0.s8 %v11392
      %v11394 = vlaneseq
      %v11395 = vshrl.u32 %v11394, 7
      %v11396 = vsub.s32 %v11393, %v11395
      %v11397 = vrot.slane %v11107, %v11396
      %v11418 = vsel %vm2217, %v11181, 0.0
      %v11419 = vadd.f32 %v11174, %v11418
      %v11420 = vadd.f32 %v11419, %v11198
      %v11421 = vsel %vm2217, %v11205, 0.0
      %v11422 = vadd.f32 %v11420, %v11421
      %v11423 = vadd.f32 %v11422, %v11222
      %v11424 = vsel %vm2217, %v11229, 0.0
      %v11425 = vadd.f32 %v11423, %v11424
      %v11426 = vadd.f32 %v11425, %v11246
      %v11427 = vsel %vm2217, %v11253, 0.0
      %v11428 = vadd.f32 %v11426, %v11427
      %v11429 = vadd.f32 %v11428, %v11270
      %v11430 = vsel %vm2217, %v11277, 0.0
      %v11431 = vadd.f32 %v11429, %v11430
      %v11432 = vadd.f32 %v11431, %v11294
      %v11433 = vsel %vm2217, %v11301, 0.0
      %v11434 = vadd.f32 %v11432, %v11433
      %v11435 = vadd.f32 %v11434, %v11318
      %v11436 = vsel %vm2217, %v11325, 0.0
      %v11437 = vadd.f32 %v11435, %v11436
      %v11438 = vadd.f32 %v11437, %v11342
      %v11439 = vsel %vm2217, %v11349, 0.0
      %v11440 = vadd.f32 %v11438, %v11439
      %v11441 = vadd.f32 %v11440, %v11366
      %v11442 = vsel %vm2217, %v11373, 0.0
      %v11443 = vadd.f32 %v11441, %v11442
      %v11444 = vadd.f32 %v11443, %v11390
      %v11445 = vsel %vm2217, %v11397, 0.0
      %v11446 = vadd.f32 %v11444, %v11445
      %v11447 = vrot.slane %v11446, 4
      %v11448 = vadd.f32 %v11446, %v11447
      %v11449 = vrot.slane %v11448, 2
      %v11450 = vadd.f32 %v11448, %v11449
      %v11451 = vrot.slane %v11450, 1
      %v11452 = vadd.f32 %v11450, %v11451
      %v11453 = vrcp.pop 100.0
      %v11454 = vmul.f32 %v11452, %v11453
      %v11455 = vld [vmem:[%s10] sm:$0xff]
      %v11456 = vld [vmem:[%s10 + $0x8] sm:$0xff]
      %v11457 = vld [vmem:[%s10 + $0x10] sm:$0xff]
      %v11458 = vld [vmem:[%s10 + $0x18] sm:$0xff]
      %v11459 = vld [vmem:[%s10 + $0x20] sm:$0xff]
      %v11460 = vld [vmem:[%s10 + $0x28] sm:$0xff]
      %v11461 = vld [vmem:[%s10 + $0x30] sm:$0xff]
      %v11462 = vld [vmem:[%s10 + $0x38] sm:$0xff]
      %v11463 = vld [vmem:[%s10 + $0x40] sm:$0xff]
      %v11464 = vld [vmem:[%s10 + $0x48] sm:$0xff]
      %v11465 = vld [vmem:[%s10 + $0x50] sm:$0xff]
      %v11466 = vld [vmem:[%s10 + $0x58] sm:$0xff]
      %v11467 = vld [vmem:[%s10 + $0x60] sm:$0xff]
      %v11468 = vld [vmem:[%s10 + $0x68] sm:$0xff]
      %v11469 = vld [vmem:[%s10 + $0x70] sm:$0xff]
      %v11470 = vld [vmem:[%s10 + $0x78] sm:$0xff]
      %v11471 = vld [vmem:[#allocation2] sm:$0x1]
      %11472 = vmatprep.subr.mxu0 0.0
      %11473 = vmatpush1.msra.mxu0 %v11470
      %11474 = vmatprep.subr.mxu0 0.0
      %11475 = vmatpush1.msra.mxu0 %v11469
      %11476 = vmatprep.subr.mxu0 0.0
      %11477 = vmatpush1.msra.mxu0 %v11468
      %11478 = vmatprep.subr.mxu0 0.0
      %11479 = vmatpush1.msra.mxu0 %v11467
      %11480 = vmatprep.subr.mxu0 0.0
      %11481 = vmatpush1.msra.mxu0 %v11466
      %11482 = vmatprep.subr.mxu0 0.0
      %11483 = vmatpush1.msra.mxu0 %v11465
      %11484 = vmatprep.subr.mxu0 0.0
      %11485 = vmatpush1.msra.mxu0 %v11464
      %11486 = vmatprep.subr.mxu0 0.0
      %11487 = vmatpush1.msra.mxu0 %v11463
      %11488 = vmatprep.subr.mxu0 0.0
      %11489 = vmatpush1.msra.mxu0 %v11462
      %11490 = vmatprep.subr.mxu0 0.0
      %11491 = vmatpush1.msra.mxu0 %v11461
      %11492 = vmatprep.subr.mxu0 0.0
      %11493 = vmatpush1.msra.mxu0 %v11460
      %11494 = vmatprep.subr.mxu0 0.0
      %11495 = vmatpush1.msra.mxu0 %v11459
      %11496 = vmatprep.subr.mxu0 0.0
      %11497 = vmatpush1.msra.mxu0 %v11458
      %11498 = vmatprep.subr.mxu0 0.0
      %11499 = vmatpush1.msra.mxu0 %v11457
      %11500 = vmatprep.subr.mxu0 0.0
      %11501 = vmatpush1.msra.mxu0 %v11456
      %11502 = vmatprep.subr.mxu0 0.0
      %11503 = vmatpush1.msra.mxu0 %v11455
      %11504 = vmatprep.subr.mxu0 0.0
      %11505 = vmatpush2.msra.mxu0 0.0
      %11506 = vmatprep.subr.mxu0 0.0
      %11507 = vmatpush2.msra.mxu0 0.0
      %11508 = vmatprep.subr.mxu0 0.0
      %11509 = vmatpush2.msra.mxu0 0.0
      %11510 = vmatprep.subr.mxu0 0.0
      %11511 = vmatpush2.msra.mxu0 0.0
      %11512 = vmatprep.subr.mxu0 0.0
      %11513 = vmatpush2.msra.mxu0 0.0
      %11514 = vmatprep.subr.mxu0 0.0
      %11515 = vmatpush2.msra.mxu0 0.0
      %11516 = vmatprep.subr.mxu0 0.0
      %11517 = vmatpush2.msra.mxu0 0.0
      %11518 = vmatprep.subr.mxu0 0.0
      %11519 = vmatpush2.msra.mxu0 0.0
      %11520 = vmatprep.subr.mxu0 0.0
      %11521 = vmatpush2.msra.mxu0 0.0
      %11522 = vmatprep.subr.mxu0 0.0
      %11523 = vmatpush2.msra.mxu0 0.0
      %11524 = vmatprep.subr.mxu0 0.0
      %11525 = vmatpush2.msra.mxu0 0.0
      %11526 = vmatprep.subr.mxu0 0.0
      %11527 = vmatpush2.msra.mxu0 0.0
      %11528 = vmatprep.subr.mxu0 0.0
      %11529 = vmatpush2.msra.mxu0 0.0
      %11530 = vmatprep.subr.mxu0 0.0
      %11531 = vmatpush2.msra.mxu0 0.0
      %11532 = vmatprep.subr.mxu0 0.0
      %11533 = vmatpush2.msra.mxu0 0.0
      %11534 = vmatprep.subr.mxu0 0.0
      %11535 = vmatpush2.msra.mxu0 0.0
      %11536 = vmatprep.mubr.f32.mxu0 0.0
      %11537 = vmatmul.mubr.f32.gmra.mxu0 %v11454
      %v11538 = vpop.f32.mrf.mxu0
      %v11539 = vadd.f32 %v11471, %v11538
      %v11540 = vpop.f32.mrf.mxu0
      %11541 = vdwg.mxu0
      %vm11542 = vcmask 0
      %11543 = vst.msk [vmem:[%s411] sm:$0x1] %vm11542, %v11539
      %p11544 = scmp.lt.s32.totalorder %s25, 1
      %s11545 = scalar_select %p11544, %s25, 1
      %s11546 = scalar_lea.vmem %s12, %s11545
      // Predicated region
      $region69: #{tpu_custom_call.1} parent=67 // pred_check
        %p11547 = pneg %p300
      $region70: #{tpu_custom_call.1} parent=67 // pred_check_branch
        %11549 = sbr.rel (%p11547) target = $region72
      $region71: #{tpu_custom_call.1} parent=67 // pred_region
        _
      $region72: #{tpu_custom_call.1} parent=67 // pred_fallthru
        _
    $region68: #{tpu_custom_call.1} parent=5 // pred_fallthru
      _
    %p11550 = scmp.le.s32.totalorder 2, %s20
    // Predicated region
    $region73: #{tpu_custom_call.1} parent=5 // pred_check
      %p11551 = pneg %p11550
    $region74: #{tpu_custom_call.1} parent=5 // pred_check_branch
      %11553 = sbr.rel (%p11551) target = $region76
    $region75: #{tpu_custom_call.1} parent=5 // pred_region
      %s11554 = ssub.s32 %s20, 2
      // Predicated region
      $region77: #{tpu_custom_call.1} parent=75 // pred_check
        %p11555 = pneg %p306
      $region78: #{tpu_custom_call.1} parent=75 // pred_check_branch
        %11557 = sbr.rel (%p11555) target = $region80
      $region79: #{tpu_custom_call.1} parent=75 // pred_region
        %p11558 = scmp.lt.s32.totalorder %s26, 1
        %s11559 = scalar_select %p11558, %s26, 1
        %s11560 = scalar_lea.vmem %s12, %s11559
      $region80: #{tpu_custom_call.1} parent=75 // pred_fallthru
        _
    $region76: #{tpu_custom_call.1} parent=5 // pred_fallthru
      _
  $region6: #{tpu_custom_call.1} parent=0 // loop_footer
    %s24 = sadd.s32 1, %s20
  $region7: #{tpu_custom_call.1} parent=0 // loop_footer_branch
    %19 = sbr.rel target = $region3
  $region8: #{tpu_custom_call.1} parent=0 // loop_exit
    _

</llo_original>
